<compile_context>
chip_gen: v5e
topology: v5e:2x2
jax: 0.10.0
libtpu: 0.0.40
codegen_flags: <defaults>
</compile_context>

<pallas_src>
import jax
import jax.numpy as jnp
from jax.experimental import pallas as pl
from jax.experimental.pallas import tpu as pltpu


def encoder_kernel(
    x_ref,       # (GTILE, N, 3)   f32
    w1t_ref,     # (3, 128)        f32   first_conv[0] weight^T, BN1 folded
    b1_ref,      # (1, 128)        f32   BN1-folded bias
    w2t_ref,     # (128, 256)      bf16  first_conv[3] weight^T (bias folded into b3)
    w3gt_ref,    # (256, 512)      bf16  second_conv[0] cols acting on global feat
    w3lt_ref,    # (256, 512)      bf16  second_conv[0] cols acting on local feat
    b3_ref,      # (1, 512)        f32   BN2-folded bias (+ folded b2 contribution)
    w4t_ref,     # (512, C)        bf16  second_conv[3] weight^T
    b4_ref,      # (1, C)          f32
    out_ref,     # (GTILE, C)      f32
):
    GT, N, _ = x_ref.shape
    M = GT * N
    C1 = w2t_ref.shape[1]      # 256
    C2 = w3lt_ref.shape[1]     # 512
    C = out_ref.shape[-1]

    x = x_ref[...].reshape(M, 3)                                   # (M, 3) f32

    # first_conv[0..2]: Conv1d(3,128,1) + BN + ReLU.
    # K=3 contraction stays on the VPU as broadcast-FMAs (an MXU pass would be
    # 3/256 populated; kernel is MXU-bound at this GTILE).
    h = (x[:, 0:1] * w1t_ref[0:1, :]
         + x[:, 1:2] * w1t_ref[1:2, :]
         + x[:, 2:3] * w1t_ref[2:3, :]
         + b1_ref[...])
    h = jnp.maximum(h, 0.0)                                        # (M, 128) f32

    # first_conv[3]: Conv1d(128,256,1)  (bias b2 folded into b3 downstream).
    f = jnp.dot(h.astype(jnp.bfloat16), w2t_ref[...],
                preferred_element_type=jnp.float32)                # (M, 256) f32

    # Single bf16 copy of f feeds BOTH the per-group max and the local-branch
    # matmul (max commutes with the monotonic bf16 rounding -> identical math).
    f_bf = f.astype(jnp.bfloat16)                                  # (M, 256) bf16
    fg = jnp.max(f_bf.reshape(GT, N, C1), axis=1)                  # (GT, 256) bf16

    # second_conv[0..2]: Conv1d(512,512,1) on concat([global, local]) + BN + ReLU
    # == split matmul; the global branch is one batched (GT, 256) matmul.
    g_part = jnp.dot(fg, w3gt_ref[...],
                     preferred_element_type=jnp.float32)           # (GT, 512) f32
    f_part = jnp.dot(f_bf, w3lt_ref[...],
                     preferred_element_type=jnp.float32)           # (M, 512) f32
    gb = g_part + b3_ref[...]            # fold b3 into the tiny global branch
    h2 = jnp.maximum(f_part.reshape(GT, N, C2) + gb[:, None, :], 0.0)
    h2 = h2.reshape(M, C2)                                         # (M, 512) f32

    # second_conv[3]: Conv1d(512, C, 1), then max over N.
    # b4 is constant over N so it is added after the max.
    of = jnp.dot(h2.astype(jnp.bfloat16), w4t_ref[...],
                 preferred_element_type=jnp.float32)               # (M, C) f32
    out_ref[...] = jnp.max(of.reshape(GT, N, C), axis=1) + b4_ref[...]


def _full_spec(shape):
    zeros = (0,) * len(shape)
    return pl.BlockSpec(shape, lambda i, _z=zeros: _z)


def _choose_gtile(requested, BG):
    """Group-tile size: a multiple of 8 (sublane tiling of the (gtile, C)
    output block) and small enough that the grid keeps >= 2 steps so both
    v7x TensorCores get work.  Tiny batches fall back to one full block."""
    if BG < 16:
        return max(1, BG)                       # single block == full dim
    req8 = max(8, (requested // 8) * 8)
    cap = max(8, ((BG // 2) // 8) * 8)          # grid length >= 2
    return min(req8, cap)


def encoder_forward(point_groups, params, *, gtile=32):
    """point_groups: (B, G, N, 3) float32  ->  (B, G, C) float32"""
    B, G, N, _ = point_groups.shape
    C = params["w4"].shape[0]
    BG = B * G
    eps = 1e-5

    x = point_groups.reshape(BG, N, 3).astype(jnp.float32)

    # ---- plain-JAX glue: fold eval-mode BN and biases into the weights ----
    s1 = params["bn1_gamma"] / jnp.sqrt(params["bn1_var"] + eps)
    t1 = params["bn1_beta"] - params["bn1_mean"] * s1
    s2 = params["bn2_gamma"] / jnp.sqrt(params["bn2_var"] + eps)
    t2 = params["bn2_beta"] - params["bn2_mean"] * s2

    w1f = params["w1"] * s1[:, None]                  # (128, 3)
    b1f = params["b1"] * s1 + t1                      # (128,)
    w3f = params["w3"] * s2[:, None]                  # (512, 512)
    b3f = params["b3"] * s2 + t2                      # (512,)
    w3g = w3f[:, :256]                                # acts on global feature
    w3l = w3f[:, 256:]                                # acts on local feature
    # b2 is constant across N, so max(f) = max(h @ w2^T) + b2 -> fold it here.
    b3f = b3f + (w3g + w3l) @ params["b2"]

    w1t = w1f.T.astype(jnp.float32)                   # (3, 128)   VPU path, f32
    w2t = params["w2"].T.astype(jnp.bfloat16)         # (128, 256)
    w3gt = w3g.T.astype(jnp.bfloat16)                 # (256, 512)
    w3lt = w3l.T.astype(jnp.bfloat16)                 # (256, 512)
    w4t = params["w4"].T.astype(jnp.bfloat16)         # (512, C)

    row = lambda v: v.reshape(1, -1).astype(jnp.float32)
    weights = [w1t, row(b1f), w2t, w3gt, w3lt, row(b3f), w4t, row(params["b4"])]

    # Group-tile selection + padding so the group axis tiles evenly.
    gtile = _choose_gtile(gtile, BG)
    BG_pad = (-(-BG // gtile)) * gtile
    if BG_pad != BG:
        x = jnp.concatenate(
            [x, jnp.zeros((BG_pad - BG, N, 3), jnp.float32)], axis=0)
    grid = (BG_pad // gtile,)

    in_specs = [pl.BlockSpec((gtile, N, 3), lambda i: (i, 0, 0))]
    in_specs += [_full_spec(w.shape) for w in weights]

    flops = 2 * BG_pad * (N * (3 * 128 + 128 * 256 + 256 * 512 + 512 * C)
                          + 256 * 512)
    bytes_accessed = (int(x.size) * 4
                      + sum(int(w.size) * w.dtype.itemsize for w in weights)
                      + BG_pad * C * 4)

    out = pl.pallas_call(
        encoder_kernel,
        out_shape=jax.ShapeDtypeStruct((BG_pad, C), jnp.float32),
        grid=grid,
        in_specs=in_specs,
        out_specs=pl.BlockSpec((gtile, C), lambda i: (i, 0)),
        compiler_params=pltpu.CompilerParams(
            dimension_semantics=("parallel",),
            # Raise v5e/v6e's 16/32 MiB scoped default for the GTILE>=16 f32
            # intermediates; still leaves ~25% headroom on v7x's 64 MiB VMEM.
            vmem_limit_bytes=48 * 1024 * 1024),
        cost_estimate=pl.CostEstimate(
            flops=flops, transcendentals=0, bytes_accessed=int(bytes_accessed)),
    )(x, *weights)

    return out[:BG].reshape(B, G, C)


def init_params(key, encoder_channel):
    ks = jax.random.split(key, 16)
    n = lambda k, shape, scale=0.05: scale * jax.random.normal(k, shape, jnp.float32)
    return {
        "w1": n(ks[0], (128, 3)),
        "b1": n(ks[1], (128,)),
        "bn1_gamma": 1.0 + 0.1 * jax.random.normal(ks[2], (128,), jnp.float32),
        "bn1_beta": n(ks[3], (128,)),
        "bn1_mean": n(ks[4], (128,)),
        "bn1_var": 0.5 + jax.random.uniform(ks[5], (128,), jnp.float32),
        "w2": n(ks[6], (256, 128)),
        "b2": n(ks[7], (256,)),
        "w3": n(ks[8], (512, 512)),
        "b3": n(ks[9], (512,)),
        "bn2_gamma": 1.0 + 0.1 * jax.random.normal(ks[10], (512,), jnp.float32),
        "bn2_beta": n(ks[11], (512,)),
        "bn2_mean": n(ks[12], (512,)),
        "bn2_var": 0.5 + jax.random.uniform(ks[13], (512,), jnp.float32),
        "w4": n(ks[14], (encoder_channel, 512)),
        "b4": n(ks[15], (encoder_channel,)),
    }


def encoder_forward_ref(point_groups, params):
    """Pure-JAX f32 reference (same math, no Pallas) for a correctness check."""
    B, G, N, _ = point_groups.shape
    eps = 1e-5
    x = point_groups.reshape(B * G, N, 3)
    s1 = params["bn1_gamma"] / jnp.sqrt(params["bn1_var"] + eps)
    t1 = params["bn1_beta"] - params["bn1_mean"] * s1
    s2 = params["bn2_gamma"] / jnp.sqrt(params["bn2_var"] + eps)
    t2 = params["bn2_beta"] - params["bn2_mean"] * s2
    h = jnp.maximum((x @ params["w1"].T + params["b1"]) * s1 + t1, 0.0)
    f = h @ params["w2"].T + params["b2"]                         # (BG, N, 256)
    fg = jnp.max(f, axis=1, keepdims=True)                        # (BG, 1, 256)
    cat = jnp.concatenate([jnp.broadcast_to(fg, f.shape), f], axis=-1)
    h2 = jnp.maximum((cat @ params["w3"].T + params["b3"]) * s2 + t2, 0.0)
    of = h2 @ params["w4"].T + params["b4"]                       # (BG, N, C)
    return jnp.max(of, axis=1).reshape(B, G, -1)


if __name__ == "__main__":
    # BG=32 -> gtile clamps to 16 (grid of 2, M=512 rows per matmul).
    B, G, N, C = 2, 16, 32, 128
    key = jax.random.PRNGKey(0)
    k_pts, k_par = jax.random.split(key)
    point_groups = jax.random.normal(k_pts, (B, G, N, 3), jnp.float32)
    params = init_params(k_par, C)

    out = encoder_forward(point_groups, params)
    out = jax.block_until_ready(out)

    ref = encoder_forward_ref(point_groups, params)
    assert out.shape == (B, G, C), out.shape
    # bf16 matmul operands -> looser tolerance than a pure-f32 run.
    assert jnp.allclose(out, ref, atol=3e-2, rtol=3e-2), float(
        jnp.max(jnp.abs(out - ref)))

    print("KERNEL_OK")
</pallas_src>

<mosaic_0001>
module attributes {stable_mosaic.version = 11 : i64} {
  func.func @encoder_kernel(%arg0: i32, %arg1: memref<16x32x3xf32, #tpu.memory_space<vmem>>, %arg2: memref<3x128xf32, #tpu.memory_space<vmem>>, %arg3: memref<1x128xf32, #tpu.memory_space<vmem>>, %arg4: memref<128x256xbf16, #tpu.memory_space<vmem>>, %arg5: memref<256x512xbf16, #tpu.memory_space<vmem>>, %arg6: memref<256x512xbf16, #tpu.memory_space<vmem>>, %arg7: memref<1x512xf32, #tpu.memory_space<vmem>>, %arg8: memref<512x128xbf16, #tpu.memory_space<vmem>>, %arg9: memref<1x128xf32, #tpu.memory_space<vmem>>, %arg10: memref<16x128xf32, #tpu.memory_space<vmem>>) attributes {dimension_semantics = [#tpu.dimension_semantics<parallel>], iteration_bounds = array<i64: 2>, scalar_prefetch = 0 : i64, scratch_operands = 0 : i64, tpu.core_type = #tpu.core_type<tc>, window_params = [{transform_indices = @transform_0, window_bounds = array<i64: 16, 32, 3>}, {pipeline_mode = #tpu.pipeline_mode<synchronous>, transform_indices = @transform_1, window_bounds = array<i64: 3, 128>}, {pipeline_mode = #tpu.pipeline_mode<synchronous>, transform_indices = @transform_2, window_bounds = array<i64: 1, 128>}, {pipeline_mode = #tpu.pipeline_mode<synchronous>, transform_indices = @transform_3, window_bounds = array<i64: 128, 256>}, {pipeline_mode = #tpu.pipeline_mode<synchronous>, transform_indices = @transform_4, window_bounds = array<i64: 256, 512>}, {pipeline_mode = #tpu.pipeline_mode<synchronous>, transform_indices = @transform_5, window_bounds = array<i64: 256, 512>}, {pipeline_mode = #tpu.pipeline_mode<synchronous>, transform_indices = @transform_6, window_bounds = array<i64: 1, 512>}, {pipeline_mode = #tpu.pipeline_mode<synchronous>, transform_indices = @transform_7, window_bounds = array<i64: 512, 128>}, {pipeline_mode = #tpu.pipeline_mode<synchronous>, transform_indices = @transform_8, window_bounds = array<i64: 1, 128>}, {transform_indices = @transform_9, window_bounds = array<i64: 16, 128>}]} {
    %c0 = arith.constant 0 : index
    %c0_0 = arith.constant 0 : index
    %c0_1 = arith.constant 0 : index
    %0 = vector.load %arg1[%c0, %c0_0, %c0_1] : memref<16x32x3xf32, #tpu.memory_space<vmem>>, vector<16x32x3xf32>
    %1 = vector.shape_cast %0 : vector<16x32x3xf32> to vector<512x3xf32>
    %2 = vector.extract_strided_slice %1 {offsets = [0, 0], sizes = [512, 1], strides = [1, 1]} : vector<512x3xf32> to vector<512x1xf32>
    %c0_2 = arith.constant 0 : index
    %c0_3 = arith.constant 0 : index
    %3 = vector.load %arg2[%c0_2, %c0_3] : memref<3x128xf32, #tpu.memory_space<vmem>>, vector<1x128xf32>
    %4 = vector.broadcast %2 : vector<512x1xf32> to vector<512x128xf32>
    %5 = vector.broadcast %3 : vector<1x128xf32> to vector<512x128xf32>
    %6 = arith.mulf %4, %5 : vector<512x128xf32>
    %7 = vector.extract_strided_slice %1 {offsets = [0, 1], sizes = [512, 1], strides = [1, 1]} : vector<512x3xf32> to vector<512x1xf32>
    %c1 = arith.constant 1 : index
    %c0_4 = arith.constant 0 : index
    %8 = vector.load %arg2[%c1, %c0_4] : memref<3x128xf32, #tpu.memory_space<vmem>>, vector<1x128xf32>
    %9 = vector.broadcast %7 : vector<512x1xf32> to vector<512x128xf32>
    %10 = vector.broadcast %8 : vector<1x128xf32> to vector<512x128xf32>
    %11 = arith.mulf %9, %10 : vector<512x128xf32>
    %12 = arith.addf %6, %11 : vector<512x128xf32>
    %13 = vector.extract_strided_slice %1 {offsets = [0, 2], sizes = [512, 1], strides = [1, 1]} : vector<512x3xf32> to vector<512x1xf32>
    %c2 = arith.constant 2 : index
    %c0_5 = arith.constant 0 : index
    %14 = vector.load %arg2[%c2, %c0_5] : memref<3x128xf32, #tpu.memory_space<vmem>>, vector<1x128xf32>
    %15 = vector.broadcast %13 : vector<512x1xf32> to vector<512x128xf32>
    %16 = vector.broadcast %14 : vector<1x128xf32> to vector<512x128xf32>
    %17 = arith.mulf %15, %16 : vector<512x128xf32>
    %18 = arith.addf %12, %17 : vector<512x128xf32>
    %c0_6 = arith.constant 0 : index
    %c0_7 = arith.constant 0 : index
    %19 = vector.load %arg3[%c0_6, %c0_7] : memref<1x128xf32, #tpu.memory_space<vmem>>, vector<1x128xf32>
    %20 = vector.broadcast %19 : vector<1x128xf32> to vector<512x128xf32>
    %21 = arith.addf %18, %20 : vector<512x128xf32>
    %cst = arith.constant 0.000000e+00 : f32
    %22 = vector.broadcast %cst : f32 to vector<512x128xf32>
    %23 = arith.maximumf %21, %22 : vector<512x128xf32>
    %24 = arith.truncf %23 : vector<512x128xf32> to vector<512x128xbf16>
    %c0_8 = arith.constant 0 : index
    %c0_9 = arith.constant 0 : index
    %25 = vector.load %arg4[%c0_8, %c0_9] : memref<128x256xbf16, #tpu.memory_space<vmem>>, vector<128x256xbf16>
    %cst_10 = arith.constant dense<0.000000e+00> : vector<512x256xf32>
    %26 = tpu.matmul %24, %25, %cst_10 {dimension_numbers = #tpu.dot_dimension_numbers<[1], [0], [0], [1], [0, 0, 1, 1], [], []>} : vector<512x128xbf16>, vector<128x256xbf16>, vector<512x256xf32> -> vector<512x256xf32>
    %27 = arith.truncf %26 : vector<512x256xf32> to vector<512x256xbf16>
    %28 = vector.shape_cast %27 : vector<512x256xbf16> to vector<16x32x256xbf16>
    %cst_11 = arith.constant dense<0xFF80> : vector<16x256xbf16>
    %29 = vector.multi_reduction <maximumf>, %28, %cst_11 [1] : vector<16x32x256xbf16> to vector<16x256xbf16>
    %c0_12 = arith.constant 0 : index
    %c0_13 = arith.constant 0 : index
    %30 = vector.load %arg5[%c0_12, %c0_13] : memref<256x512xbf16, #tpu.memory_space<vmem>>, vector<256x512xbf16>
    %cst_14 = arith.constant dense<0.000000e+00> : vector<16x512xf32>
    %31 = tpu.matmul %29, %30, %cst_14 {dimension_numbers = #tpu.dot_dimension_numbers<[1], [0], [0], [1], [0, 0, 1, 1], [], []>} : vector<16x256xbf16>, vector<256x512xbf16>, vector<16x512xf32> -> vector<16x512xf32>
    %c0_15 = arith.constant 0 : index
    %c0_16 = arith.constant 0 : index
    %32 = vector.load %arg6[%c0_15, %c0_16] : memref<256x512xbf16, #tpu.memory_space<vmem>>, vector<256x512xbf16>
    %cst_17 = arith.constant dense<0.000000e+00> : vector<512x512xf32>
    %33 = tpu.matmul %27, %32, %cst_17 {dimension_numbers = #tpu.dot_dimension_numbers<[1], [0], [0], [1], [0, 0, 1, 1], [], []>} : vector<512x256xbf16>, vector<256x512xbf16>, vector<512x512xf32> -> vector<512x512xf32>
    %c0_18 = arith.constant 0 : index
    %c0_19 = arith.constant 0 : index
    %34 = vector.load %arg7[%c0_18, %c0_19] : memref<1x512xf32, #tpu.memory_space<vmem>>, vector<1x512xf32>
    %35 = vector.broadcast %34 : vector<1x512xf32> to vector<16x512xf32>
    %36 = arith.addf %31, %35 : vector<16x512xf32>
    %37 = vector.shape_cast %33 : vector<512x512xf32> to vector<16x32x512xf32>
    %38 = vector.shape_cast %36 : vector<16x512xf32> to vector<16x1x512xf32>
    %39 = vector.broadcast %38 : vector<16x1x512xf32> to vector<16x32x512xf32>
    %40 = arith.addf %37, %39 : vector<16x32x512xf32>
    %cst_20 = arith.constant 0.000000e+00 : f32
    %41 = vector.broadcast %cst_20 : f32 to vector<16x32x512xf32>
    %42 = arith.maximumf %40, %41 : vector<16x32x512xf32>
    %43 = vector.shape_cast %42 : vector<16x32x512xf32> to vector<512x512xf32>
    %44 = arith.truncf %43 : vector<512x512xf32> to vector<512x512xbf16>
    %c0_21 = arith.constant 0 : index
    %c0_22 = arith.constant 0 : index
    %45 = vector.load %arg8[%c0_21, %c0_22] : memref<512x128xbf16, #tpu.memory_space<vmem>>, vector<512x128xbf16>
    %cst_23 = arith.constant dense<0.000000e+00> : vector<512x128xf32>
    %46 = tpu.matmul %44, %45, %cst_23 {dimension_numbers = #tpu.dot_dimension_numbers<[1], [0], [0], [1], [0, 0, 1, 1], [], []>} : vector<512x512xbf16>, vector<512x128xbf16>, vector<512x128xf32> -> vector<512x128xf32>
    %47 = vector.shape_cast %46 : vector<512x128xf32> to vector<16x32x128xf32>
    %cst_24 = arith.constant dense<0xFF800000> : vector<16x128xf32>
    %48 = vector.multi_reduction <maximumf>, %47, %cst_24 [1] : vector<16x32x128xf32> to vector<16x128xf32>
    %c0_25 = arith.constant 0 : index
    %c0_26 = arith.constant 0 : index
    %49 = vector.load %arg9[%c0_25, %c0_26] : memref<1x128xf32, #tpu.memory_space<vmem>>, vector<1x128xf32>
    %50 = vector.broadcast %49 : vector<1x128xf32> to vector<16x128xf32>
    %51 = arith.addf %48, %50 : vector<16x128xf32>
    %c0_27 = arith.constant 0 : index
    %c0_28 = arith.constant 0 : index
    %52 = vector.load %arg10[%c0_27, %c0_28] : memref<16x128xf32, #tpu.memory_space<vmem>>, vector<16x128xf32>
    tpu.vector_store %arg10[%c0_27, %c0_28], %51 {strides = array<i32>} : memref<16x128xf32, #tpu.memory_space<vmem>>, vector<16x128xf32>,
    return
  }
  func.func @transform_0(%arg0: i32) -> (i32, i32, i32) {
    %c0_i32 = arith.constant 0 : i32
    %c0_i32_0 = arith.constant 0 : i32
    %c0_i32_1 = arith.constant 0 : i32
    return %arg0, %c0_i32, %c0_i32_0 : i32, i32, i32
  }
  func.func @transform_1(%arg0: i32) -> (i32, i32) {
    %c0_i32 = arith.constant 0 : i32
    %c0_i32_0 = arith.constant 0 : i32
    %c0_i32_1 = arith.constant 0 : i32
    return %c0_i32, %c0_i32_0 : i32, i32
  }
  func.func @transform_2(%arg0: i32) -> (i32, i32) {
    %c0_i32 = arith.constant 0 : i32
    %c0_i32_0 = arith.constant 0 : i32
    %c0_i32_1 = arith.constant 0 : i32
    return %c0_i32, %c0_i32_0 : i32, i32
  }
  func.func @transform_3(%arg0: i32) -> (i32, i32) {
    %c0_i32 = arith.constant 0 : i32
    %c0_i32_0 = arith.constant 0 : i32
    %c0_i32_1 = arith.constant 0 : i32
    return %c0_i32, %c0_i32_0 : i32, i32
  }
  func.func @transform_4(%arg0: i32) -> (i32, i32) {
    %c0_i32 = arith.constant 0 : i32
    %c0_i32_0 = arith.constant 0 : i32
    %c0_i32_1 = arith.constant 0 : i32
    return %c0_i32, %c0_i32_0 : i32, i32
  }
  func.func @transform_5(%arg0: i32) -> (i32, i32) {
    %c0_i32 = arith.constant 0 : i32
    %c0_i32_0 = arith.constant 0 : i32
    %c0_i32_1 = arith.constant 0 : i32
    return %c0_i32, %c0_i32_0 : i32, i32
  }
  func.func @transform_6(%arg0: i32) -> (i32, i32) {
    %c0_i32 = arith.constant 0 : i32
    %c0_i32_0 = arith.constant 0 : i32
    %c0_i32_1 = arith.constant 0 : i32
    return %c0_i32, %c0_i32_0 : i32, i32
  }
  func.func @transform_7(%arg0: i32) -> (i32, i32) {
    %c0_i32 = arith.constant 0 : i32
    %c0_i32_0 = arith.constant 0 : i32
    %c0_i32_1 = arith.constant 0 : i32
    return %c0_i32, %c0_i32_0 : i32, i32
  }
  func.func @transform_8(%arg0: i32) -> (i32, i32) {
    %c0_i32 = arith.constant 0 : i32
    %c0_i32_0 = arith.constant 0 : i32
    %c0_i32_1 = arith.constant 0 : i32
    return %c0_i32, %c0_i32_0 : i32, i32
  }
  func.func @transform_9(%arg0: i32) -> (i32, i32) {
    %c0_i32 = arith.constant 0 : i32
    %c0_i32_0 = arith.constant 0 : i32
    return %arg0, %c0_i32 : i32, i32
  }
}

</mosaic_0001>

<llo_original>
// kernel: tpu_custom_call.1
$region0: #{tpu_custom_call.1}
  #allocation0 [shape = 'u32[]', space=smem, size = 0x4, offset = 0x4, fixed_abs, tag = 'smem constant byte address 0x4 - core index']
  #allocation1 [shape = 'u32[72,128]{1,0:T(1,128)}', space=vmem, size = 0x9000, scoped, tag = 'internal scratch']
  %s0 = inlined_call_operand.vmem [shape: f32[32,32,3], index: 0, kind: input, shape index: {}]
  %s1 = inlined_call_operand.vmem [shape: f32[3,128], index: 1, kind: input, shape index: {}]
  %s2 = inlined_call_operand.vmem [shape: f32[1,128], index: 2, kind: input, shape index: {}]
  %s3 = inlined_call_operand.hbm [shape: bf16[128,256], index: 3, kind: input, shape index: {}]
  %s4 = inlined_call_operand.vmem [shape: bf16[256,512], index: 4, kind: input, shape index: {}]
  %s5 = inlined_call_operand.vmem [shape: bf16[256,512], index: 5, kind: input, shape index: {}]
  %s6 = inlined_call_operand.vmem [shape: f32[1,512], index: 6, kind: input, shape index: {}]
  %s7 = inlined_call_operand.hbm [shape: bf16[512,128], index: 7, kind: input, shape index: {}]
  %s8 = inlined_call_operand.vmem [shape: f32[1,128], index: 8, kind: input, shape index: {}]
  %s9 = inlined_call_operand.hbm [shape: f32[32,128], index: 9, kind: output, shape index: {}]
  %s10 = sld [smem:[#allocation0]]
  $region77: #{tpu_custom_call.1} parent=0
    _
  %s12 = ssub.s32 1, %s10
  %s13 = scalar_select 0, %s12, %s10
  $region1: #{tpu_custom_call.1} parent=0
    #allocation2 [shape = 'u8[65536]{0}', space=vmem, size = 0x10000, scoped, tag = 'input window, operand 3, single buffered']
    #allocation3 [shape = 's32[2]{0}', space=sflag, size = 0x8, scoped, tag = 'scoped memory for tpu_custom_call.1']
    #allocation4 [shape = 's32[2]{0}', space=sflag, size = 0x8, scoped, tag = 'scoped memory for tpu_custom_call.1']
    #allocation5 [shape = 'u8[131072]{0}', space=vmem, size = 0x20000, scoped, tag = 'input window, operand 7, single buffered']
    #allocation6 [shape = 's32[1]{0}', space=sflag, size = 0x4, scoped, tag = 'scoped memory for tpu_custom_call.1']
    #allocation7 [shape = 'u8[16384]{0}', space=vmem, size = 0x4000, scoped, tag = 'output window, operand 0']
    %14 = vsyncpa [#allocation3], 0
    %15 = vsyncpa [#allocation6], 0
    %16 = vsyncpa [#allocation4], 0
    %s17 = scalar_lea.sflag [#allocation4], 1
    %18 = vsyncpa %s17, 0
    loop: start=0, step=1, limit=4
    $region2: #{tpu_custom_call.1} parent=1 // loop_pre_header
      _
    $region3: #{tpu_custom_call.1} parent=1 // loop_header
      %s20 = sphi 0, %s24
      %p21 = scmp.ge.s32.totalorder %s20, 4
      %s30 = sphi 0, %s32
      %s33 = sphi 0, %s30
      %s34 = sphi 0, %s33
      %s50 = sphi 0, %s34
      %s54 = sphi 0, %s54
      %s56 = sphi 0, %s54
      %s57 = sphi 0, %s56
      %s71 = sphi 0, %s57
      %s75 = sphi 0, %s75
      %s77 = sphi 0, %s75
      %s78 = sphi 0, %s77
      %s92 = sphi 0, %s78
      %s96 = sphi 0, %s96
      %s98 = sphi 0, %s96
      %s99 = sphi 0, %s98
      %s113 = sphi 0, %s99
      %s117 = sphi 0, %s117
      %s119 = sphi 0, %s117
      %s120 = sphi 0, %s119
      %s134 = sphi 0, %s120
      %s138 = sphi 0, %s138
      %s140 = sphi 0, %s138
      %s141 = sphi 0, %s140
      %s155 = sphi 0, %s141
      %s159 = sphi 0, %s159
      %s161 = sphi 0, %s159
      %s162 = sphi 0, %s161
      %s176 = sphi 0, %s162
      %s180 = sphi 0, %s180
      %s182 = sphi 0, %s180
      %s183 = sphi 0, %s182
      %s197 = sphi 0, %s183
      %s201 = sphi 0, %s201
      %s203 = sphi 0, %s201
      %s204 = sphi 0, %s203
      %s218 = sphi 0, %s204
      %s224 = sphi 0, %s226
      %s227 = sphi 0, %s224
      %s228 = sphi 0, %s227
      %s244 = sphi 0, %s228
    $region4: #{tpu_custom_call.1} parent=1 // loop_header_branch
      %23 = sbr.rel (%p21) target = $region8
    $region5: #{tpu_custom_call.1} parent=1 // loop_body
      %s25 = ssub.s32 %s20, 1
      %s26 = ssub.s32 %s20, 2
      %s27 = sadd.s32 %s20, 1
      %s28 = ssub.s32 %s20, %s27
      %p29 = scmp.eq.s32.totalorder %s28, 0
      %s31 = sadd.s32 %s30, 1
      %s32 = scalar_select %p29, %s30, %s31
      %p35 = pneg %p29
      %p36 = scmp.eq.s32.totalorder %s20, 1
      %p37 = por %p35, %p36
      %p38 = scmp.ne.s32.totalorder %s30, %s33
      %p39 = scmp.eq.s32.totalorder %s20, 0
      %p40 = por %p38, %p39
      %p41 = scmp.ne.s32.totalorder %s30, %s33
      %p42 = scmp.eq.s32.totalorder %s25, 1
      %p43 = por %p41, %p42
      %p44 = scmp.ne.s32.totalorder %s33, %s34
      %p45 = scmp.eq.s32.totalorder %s25, 0
      %p46 = por %p44, %p45
      %p47 = scmp.ne.s32.totalorder %s33, %s34
      %p48 = scmp.eq.s32.totalorder %s26, 1
      %p49 = por %p47, %p48
      %p51 = scmp.ne.s32.totalorder %s34, %s50
      %p52 = scmp.eq.s32.totalorder %s26, 0
      %p53 = por %p51, %p52
      %s55 = sadd.s32 %s54, 1
      %p58 = scmp.eq.s32.totalorder %s20, 1
      %p59 = scmp.ne.s32.totalorder %s54, %s56
      %p60 = scmp.eq.s32.totalorder %s20, 0
      %p61 = por %p59, %p60
      %p62 = scmp.ne.s32.totalorder %s54, %s56
      %p63 = scmp.eq.s32.totalorder %s25, 1
      %p64 = por %p62, %p63
      %p65 = scmp.ne.s32.totalorder %s56, %s57
      %p66 = scmp.eq.s32.totalorder %s25, 0
      %p67 = por %p65, %p66
      %p68 = scmp.ne.s32.totalorder %s56, %s57
      %p69 = scmp.eq.s32.totalorder %s26, 1
      %p70 = por %p68, %p69
      %p72 = scmp.ne.s32.totalorder %s57, %s71
      %p73 = scmp.eq.s32.totalorder %s26, 0
      %p74 = por %p72, %p73
      %s76 = sadd.s32 %s75, 1
      %p79 = scmp.eq.s32.totalorder %s20, 1
      %p80 = scmp.ne.s32.totalorder %s75, %s77
      %p81 = scmp.eq.s32.totalorder %s20, 0
      %p82 = por %p80, %p81
      %p83 = scmp.ne.s32.totalorder %s75, %s77
      %p84 = scmp.eq.s32.totalorder %s25, 1
      %p85 = por %p83, %p84
      %p86 = scmp.ne.s32.totalorder %s77, %s78
      %p87 = scmp.eq.s32.totalorder %s25, 0
      %p88 = por %p86, %p87
      %p89 = scmp.ne.s32.totalorder %s77, %s78
      %p90 = scmp.eq.s32.totalorder %s26, 1
      %p91 = por %p89, %p90
      %p93 = scmp.ne.s32.totalorder %s78, %s92
      %p94 = scmp.eq.s32.totalorder %s26, 0
      %p95 = por %p93, %p94
      %s97 = sadd.s32 %s96, 1
      %p100 = scmp.eq.s32.totalorder %s20, 1
      %p101 = scmp.ne.s32.totalorder %s96, %s98
      %p102 = scmp.eq.s32.totalorder %s20, 0
      %p103 = por %p101, %p102
      %p104 = scmp.ne.s32.totalorder %s96, %s98
      %p105 = scmp.eq.s32.totalorder %s25, 1
      %p106 = por %p104, %p105
      %p107 = scmp.ne.s32.totalorder %s98, %s99
      %p108 = scmp.eq.s32.totalorder %s25, 0
      %p109 = por %p107, %p108
      %p110 = scmp.ne.s32.totalorder %s98, %s99
      %p111 = scmp.eq.s32.totalorder %s26, 1
      %p112 = por %p110, %p111
      %p114 = scmp.ne.s32.totalorder %s99, %s113
      %p115 = scmp.eq.s32.totalorder %s26, 0
      %p116 = por %p114, %p115
      %s118 = sadd.s32 %s117, 1
      %p121 = scmp.eq.s32.totalorder %s20, 1
      %p122 = scmp.ne.s32.totalorder %s117, %s119
      %p123 = scmp.eq.s32.totalorder %s20, 0
      %p124 = por %p122, %p123
      %p125 = scmp.ne.s32.totalorder %s117, %s119
      %p126 = scmp.eq.s32.totalorder %s25, 1
      %p127 = por %p125, %p126
      %p128 = scmp.ne.s32.totalorder %s119, %s120
      %p129 = scmp.eq.s32.totalorder %s25, 0
      %p130 = por %p128, %p129
      %p131 = scmp.ne.s32.totalorder %s119, %s120
      %p132 = scmp.eq.s32.totalorder %s26, 1
      %p133 = por %p131, %p132
      %p135 = scmp.ne.s32.totalorder %s120, %s134
      %p136 = scmp.eq.s32.totalorder %s26, 0
      %p137 = por %p135, %p136
      %s139 = sadd.s32 %s138, 1
      %p142 = scmp.eq.s32.totalorder %s20, 1
      %p143 = scmp.ne.s32.totalorder %s138, %s140
      %p144 = scmp.eq.s32.totalorder %s20, 0
      %p145 = por %p143, %p144
      %p146 = scmp.ne.s32.totalorder %s138, %s140
      %p147 = scmp.eq.s32.totalorder %s25, 1
      %p148 = por %p146, %p147
      %p149 = scmp.ne.s32.totalorder %s140, %s141
      %p150 = scmp.eq.s32.totalorder %s25, 0
      %p151 = por %p149, %p150
      %p152 = scmp.ne.s32.totalorder %s140, %s141
      %p153 = scmp.eq.s32.totalorder %s26, 1
      %p154 = por %p152, %p153
      %p156 = scmp.ne.s32.totalorder %s141, %s155
      %p157 = scmp.eq.s32.totalorder %s26, 0
      %p158 = por %p156, %p157
      %s160 = sadd.s32 %s159, 1
      %p163 = scmp.eq.s32.totalorder %s20, 1
      %p164 = scmp.ne.s32.totalorder %s159, %s161
      %p165 = scmp.eq.s32.totalorder %s20, 0
      %p166 = por %p164, %p165
      %p167 = scmp.ne.s32.totalorder %s159, %s161
      %p168 = scmp.eq.s32.totalorder %s25, 1
      %p169 = por %p167, %p168
      %p170 = scmp.ne.s32.totalorder %s161, %s162
      %p171 = scmp.eq.s32.totalorder %s25, 0
      %p172 = por %p170, %p171
      %p173 = scmp.ne.s32.totalorder %s161, %s162
      %p174 = scmp.eq.s32.totalorder %s26, 1
      %p175 = por %p173, %p174
      %p177 = scmp.ne.s32.totalorder %s162, %s176
      %p178 = scmp.eq.s32.totalorder %s26, 0
      %p179 = por %p177, %p178
      %s181 = sadd.s32 %s180, 1
      %p184 = scmp.eq.s32.totalorder %s20, 1
      %p185 = scmp.ne.s32.totalorder %s180, %s182
      %p186 = scmp.eq.s32.totalorder %s20, 0
      %p187 = por %p185, %p186
      %p188 = scmp.ne.s32.totalorder %s180, %s182
      %p189 = scmp.eq.s32.totalorder %s25, 1
      %p190 = por %p188, %p189
      %p191 = scmp.ne.s32.totalorder %s182, %s183
      %p192 = scmp.eq.s32.totalorder %s25, 0
      %p193 = por %p191, %p192
      %p194 = scmp.ne.s32.totalorder %s182, %s183
      %p195 = scmp.eq.s32.totalorder %s26, 1
      %p196 = por %p194, %p195
      %p198 = scmp.ne.s32.totalorder %s183, %s197
      %p199 = scmp.eq.s32.totalorder %s26, 0
      %p200 = por %p198, %p199
      %s202 = sadd.s32 %s201, 1
      %p205 = scmp.eq.s32.totalorder %s20, 1
      %p206 = scmp.ne.s32.totalorder %s201, %s203
      %p207 = scmp.eq.s32.totalorder %s20, 0
      %p208 = por %p206, %p207
      %p209 = scmp.ne.s32.totalorder %s201, %s203
      %p210 = scmp.eq.s32.totalorder %s25, 1
      %p211 = por %p209, %p210
      %p212 = scmp.ne.s32.totalorder %s203, %s204
      %p213 = scmp.eq.s32.totalorder %s25, 0
      %p214 = por %p212, %p213
      %p215 = scmp.ne.s32.totalorder %s203, %s204
      %p216 = scmp.eq.s32.totalorder %s26, 1
      %p217 = por %p215, %p216
      %p219 = scmp.ne.s32.totalorder %s204, %s218
      %p220 = scmp.eq.s32.totalorder %s26, 0
      %p221 = por %p219, %p220
      %s222 = ssub.s32 %s20, %s27
      %p223 = scmp.eq.s32.totalorder %s222, 0
      %s225 = sadd.s32 %s224, 1
      %s226 = scalar_select %p223, %s224, %s225
      %p229 = pneg %p223
      %p230 = scmp.eq.s32.totalorder %s20, 1
      %p231 = por %p229, %p230
      %p232 = scmp.ne.s32.totalorder %s224, %s227
      %p233 = scmp.eq.s32.totalorder %s20, 0
      %p234 = por %p232, %p233
      %p235 = scmp.ne.s32.totalorder %s224, %s227
      %p236 = scmp.eq.s32.totalorder %s25, 1
      %p237 = por %p235, %p236
      %p238 = scmp.ne.s32.totalorder %s227, %s228
      %p239 = scmp.eq.s32.totalorder %s25, 0
      %p240 = por %p238, %p239
      %p241 = scmp.ne.s32.totalorder %s227, %s228
      %p242 = scmp.eq.s32.totalorder %s26, 1
      %p243 = por %p241, %p242
      %p245 = scmp.ne.s32.totalorder %s228, %s244
      %p246 = scmp.eq.s32.totalorder %s26, 0
      %p247 = por %p245, %p246
      %p248 = scmp.le.s32.totalorder 1, %s20
      %p249 = scmp.lt.s32.totalorder %s20, 3
      %p250 = pnand %p248, %p249
      %p251 = pneg %p250
      // Predicated region
      $region9: #{tpu_custom_call.1} parent=5 // pred_check
        _
      $region10: #{tpu_custom_call.1} parent=5 // pred_check_branch
        %253 = sbr.rel (%p250) target = $region12
      $region11: #{tpu_custom_call.1} parent=5 // pred_region
        %s254 = ssub.s32 %s20, 1
        // Predicated region
        $region13: #{tpu_custom_call.1} parent=11 // pred_check
          %p255 = pneg %p67
        $region14: #{tpu_custom_call.1} parent=11 // pred_check_branch
          %257 = sbr.rel (%p255) target = $region16
        $region15: #{tpu_custom_call.1} parent=11 // pred_region
          _
        $region16: #{tpu_custom_call.1} parent=11 // pred_fallthru
          _
        // Predicated region
        $region17: #{tpu_custom_call.1} parent=11 // pred_check
          %p258 = pneg %p88
        $region18: #{tpu_custom_call.1} parent=11 // pred_check_branch
          %260 = sbr.rel (%p258) target = $region20
        $region19: #{tpu_custom_call.1} parent=11 // pred_region
          _
        $region20: #{tpu_custom_call.1} parent=11 // pred_fallthru
          _
        // Predicated region
        $region21: #{tpu_custom_call.1} parent=11 // pred_check
          %p261 = pneg %p109
        $region22: #{tpu_custom_call.1} parent=11 // pred_check_branch
          %263 = sbr.rel (%p261) target = $region24
        $region23: #{tpu_custom_call.1} parent=11 // pred_region
          %265 = vsyncadd [#allocation3], 0
          %s266 = sshll.u32 %s3, 4
          %s267 = int_to_ptr.hbm [resolvable:$true] %s266
          %s268 = sshll.u32 [#allocation2], 4
          %s269 = int_to_ptr.vmem [resolvable:$true] %s268
          %274 = dma.hbm_to_vmem [thread:$0]  %s267, 2048, %s269, [#allocation3], 128, 128, 8
        $region24: #{tpu_custom_call.1} parent=11 // pred_fallthru
          _
        // Predicated region
        $region25: #{tpu_custom_call.1} parent=11 // pred_check
          %p275 = pneg %p130
        $region26: #{tpu_custom_call.1} parent=11 // pred_check_branch
          %277 = sbr.rel (%p275) target = $region28
        $region27: #{tpu_custom_call.1} parent=11 // pred_region
          _
        $region28: #{tpu_custom_call.1} parent=11 // pred_fallthru
          _
        // Predicated region
        $region29: #{tpu_custom_call.1} parent=11 // pred_check
          %p278 = pneg %p151
        $region30: #{tpu_custom_call.1} parent=11 // pred_check_branch
          %280 = sbr.rel (%p278) target = $region32
        $region31: #{tpu_custom_call.1} parent=11 // pred_region
          _
        $region32: #{tpu_custom_call.1} parent=11 // pred_fallthru
          _
        // Predicated region
        $region33: #{tpu_custom_call.1} parent=11 // pred_check
          %p281 = pneg %p172
        $region34: #{tpu_custom_call.1} parent=11 // pred_check_branch
          %283 = sbr.rel (%p281) target = $region36
        $region35: #{tpu_custom_call.1} parent=11 // pred_region
          _
        $region36: #{tpu_custom_call.1} parent=11 // pred_fallthru
          _
        // Predicated region
        $region37: #{tpu_custom_call.1} parent=11 // pred_check
          %p284 = pneg %p193
        $region38: #{tpu_custom_call.1} parent=11 // pred_check_branch
          %286 = sbr.rel (%p284) target = $region40
        $region39: #{tpu_custom_call.1} parent=11 // pred_region
          %288 = vsyncadd [#allocation6], 0
          %s289 = sshll.u32 %s7, 4
          %s290 = int_to_ptr.hbm [resolvable:$true] %s289
          %s291 = sshll.u32 [#allocation5], 4
          %s292 = int_to_ptr.vmem [resolvable:$true] %s291
          %297 = dma.hbm_to_vmem [thread:$0]  %s290, 4096, %s292, [#allocation6], 64, 64, 4
        $region40: #{tpu_custom_call.1} parent=11 // pred_fallthru
          _
        // Predicated region
        $region41: #{tpu_custom_call.1} parent=11 // pred_check
          %p298 = pneg %p214
        $region42: #{tpu_custom_call.1} parent=11 // pred_check_branch
          %300 = sbr.rel (%p298) target = $region44
        $region43: #{tpu_custom_call.1} parent=11 // pred_region
          _
        $region44: #{tpu_custom_call.1} parent=11 // pred_fallthru
          _
      $region12: #{tpu_custom_call.1} parent=5 // pred_fallthru
        _
      %p301 = scmp.lt.s32.totalorder %s20, 2
      // Predicated region
      $region45: #{tpu_custom_call.1} parent=5 // pred_check
        %p302 = pneg %p301
      $region46: #{tpu_custom_call.1} parent=5 // pred_check_branch
        %304 = sbr.rel (%p302) target = $region48
      $region47: #{tpu_custom_call.1} parent=5 // pred_region
        // Predicated region
        $region49: #{tpu_custom_call.1} parent=47 // pred_check
          %p305 = pneg %p40
        $region50: #{tpu_custom_call.1} parent=47 // pred_check_branch
          %307 = sbr.rel (%p305) target = $region52
        $region51: #{tpu_custom_call.1} parent=47 // pred_region
          %s308 = smul.u32 16, %s20
          %p309 = scmp.lt.s32.totalorder %s308, 31
          %s310 = scalar_select %p309, %s308, 31
          %s311 = smul.addr %s310, 4
          %s312 = smul.addr %s311, 8
          %s313 = scalar_lea.vmem %s0, %s312
          %s314 = smul.u32 16, %s20
        $region52: #{tpu_custom_call.1} parent=47 // pred_fallthru
          _
      $region48: #{tpu_custom_call.1} parent=5 // pred_fallthru
        _
      %p315 = scmp.le.s32.totalorder 1, %s20
      %p316 = scmp.lt.s32.totalorder %s20, 3
      %p317 = pnand %p315, %p316
      %p318 = pneg %p317
      // Predicated region
      $region53: #{tpu_custom_call.1} parent=5 // pred_check
        _
      $region54: #{tpu_custom_call.1} parent=5 // pred_check_branch
        %320 = sbr.rel (%p317) target = $region56
      $region55: #{tpu_custom_call.1} parent=5 // pred_region
        %s321 = ssub.s32 %s20, 1
        // Predicated region
        $region57: #{tpu_custom_call.1} parent=55 // pred_check
          %p322 = pneg %p109
        $region58: #{tpu_custom_call.1} parent=55 // pred_check_branch
          %324 = sbr.rel (%p322) target = $region60
        $region59: #{tpu_custom_call.1} parent=55 // pred_region
          %326 = dma.done [#allocation3], 2048
        $region60: #{tpu_custom_call.1} parent=55 // pred_fallthru
          _
        // Predicated region
        $region61: #{tpu_custom_call.1} parent=55 // pred_check
          %p327 = pneg %p193
        $region62: #{tpu_custom_call.1} parent=55 // pred_check_branch
          %329 = sbr.rel (%p327) target = $region64
        $region63: #{tpu_custom_call.1} parent=55 // pred_region
          %331 = dma.done [#allocation6], 4096
        $region64: #{tpu_custom_call.1} parent=55 // pred_fallthru
          _
        %s332 = smul.u32 16, %s25
        %p333 = scmp.lt.s32.totalorder %s332, 31
        %s334 = scalar_select %p333, %s332, 31
        %s335 = smul.addr %s334, 4
        %s336 = smul.addr %s335, 8
        %s337 = scalar_lea.vmem %s0, %s336
        %p338 = pneg %p46
        %p339 = pneg %p43
        %p340 = pneg %p67
        %p341 = pneg %p64
        %p342 = pneg %p88
        %p343 = pneg %p85
        %p344 = pneg %p109
        %p345 = pneg %p106
        %p346 = pneg %p130
        %p347 = pneg %p127
        %p348 = pneg %p151
        %p349 = pneg %p148
        %p350 = pneg %p172
        %p351 = pneg %p169
        %p352 = pneg %p193
        %p353 = pneg %p190
        %p354 = pneg %p214
        %p355 = pneg %p211
        %p356 = pneg %p240
        %p357 = pneg %p237
        %s358 = sand.u32 %s227, 1
        %s359 = scalar_lea.sflag [#allocation4], %s358
        %s360 = sand.u32 %s227, 1
        %s361 = smul.addr %s360, 16
        %s362 = scalar_lea.vmem [#allocation7], %s361
        %s363 = smul.u32 16, %s25
        %p364 = scmp.lt.s32.totalorder %s363, 31
        %s365 = scalar_select %p364, %s363, 31
        %s366 = smul.addr %s365, 4
        %s367 = smul.addr %s366, 8
        %s368 = scalar_lea.vmem %s0, %s367
        %s369 = smul.u32 16, %s25
        %s370 = smul.u32 2, %s25
        %v371 = vld [vmem:[%s368] sm:$0xff]
        %v372 = vld [vmem:[%s368 + $0x8] sm:$0xff]
        %v373 = vld [vmem:[%s368 + $0x10] sm:$0xff]
        %v374 = vld [vmem:[%s368 + $0x18] sm:$0xff]
        %v375 = vld [vmem:[%s368 + $0x20] sm:$0xff]
        %v376 = vld [vmem:[%s368 + $0x28] sm:$0xff]
        %v377 = vld [vmem:[%s368 + $0x30] sm:$0xff]
        %v378 = vld [vmem:[%s368 + $0x38] sm:$0xff]
        %v379 = vld [vmem:[%s368 + $0x40] sm:$0xff]
        %v380 = vld [vmem:[%s368 + $0x48] sm:$0xff]
        %v381 = vld [vmem:[%s368 + $0x50] sm:$0xff]
        %v382 = vld [vmem:[%s368 + $0x58] sm:$0xff]
        %v383 = vld [vmem:[%s368 + $0x60] sm:$0xff]
        %v384 = vld [vmem:[%s368 + $0x68] sm:$0xff]
        %v385 = vld [vmem:[%s368 + $0x70] sm:$0xff]
        %v386 = vld [vmem:[%s368 + $0x78] sm:$0xff]
        %v387 = vld [vmem:[%s368 + $0x80] sm:$0xff]
        %v388 = vld [vmem:[%s368 + $0x88] sm:$0xff]
        %v389 = vld [vmem:[%s368 + $0x90] sm:$0xff]
        %v390 = vld [vmem:[%s368 + $0x98] sm:$0xff]
        %v391 = vld [vmem:[%s368 + $0xa0] sm:$0xff]
        %v392 = vld [vmem:[%s368 + $0xa8] sm:$0xff]
        %v393 = vld [vmem:[%s368 + $0xb0] sm:$0xff]
        %v394 = vld [vmem:[%s368 + $0xb8] sm:$0xff]
        %v395 = vld [vmem:[%s368 + $0xc0] sm:$0xff]
        %v396 = vld [vmem:[%s368 + $0xc8] sm:$0xff]
        %v397 = vld [vmem:[%s368 + $0xd0] sm:$0xff]
        %v398 = vld [vmem:[%s368 + $0xd8] sm:$0xff]
        %v399 = vld [vmem:[%s368 + $0xe0] sm:$0xff]
        %v400 = vld [vmem:[%s368 + $0xe8] sm:$0xff]
        %v401 = vld [vmem:[%s368 + $0xf0] sm:$0xff]
        %v402 = vld [vmem:[%s368 + $0xf8] sm:$0xff]
        %v403 = vld [vmem:[%s368 + $0x100] sm:$0xff]
        %v404 = vld [vmem:[%s368 + $0x108] sm:$0xff]
        %v405 = vld [vmem:[%s368 + $0x110] sm:$0xff]
        %v406 = vld [vmem:[%s368 + $0x118] sm:$0xff]
        %v407 = vld [vmem:[%s368 + $0x120] sm:$0xff]
        %v408 = vld [vmem:[%s368 + $0x128] sm:$0xff]
        %v409 = vld [vmem:[%s368 + $0x130] sm:$0xff]
        %v410 = vld [vmem:[%s368 + $0x138] sm:$0xff]
        %v411 = vld [vmem:[%s368 + $0x140] sm:$0xff]
        %v412 = vld [vmem:[%s368 + $0x148] sm:$0xff]
        %v413 = vld [vmem:[%s368 + $0x150] sm:$0xff]
        %v414 = vld [vmem:[%s368 + $0x158] sm:$0xff]
        %v415 = vld [vmem:[%s368 + $0x160] sm:$0xff]
        %v416 = vld [vmem:[%s368 + $0x168] sm:$0xff]
        %v417 = vld [vmem:[%s368 + $0x170] sm:$0xff]
        %v418 = vld [vmem:[%s368 + $0x178] sm:$0xff]
        %v419 = vld [vmem:[%s368 + $0x180] sm:$0xff]
        %v420 = vld [vmem:[%s368 + $0x188] sm:$0xff]
        %v421 = vld [vmem:[%s368 + $0x190] sm:$0xff]
        %v422 = vld [vmem:[%s368 + $0x198] sm:$0xff]
        %v423 = vld [vmem:[%s368 + $0x1a0] sm:$0xff]
        %v424 = vld [vmem:[%s368 + $0x1a8] sm:$0xff]
        %v425 = vld [vmem:[%s368 + $0x1b0] sm:$0xff]
        %v426 = vld [vmem:[%s368 + $0x1b8] sm:$0xff]
        %v427 = vld [vmem:[%s368 + $0x1c0] sm:$0xff]
        %v428 = vld [vmem:[%s368 + $0x1c8] sm:$0xff]
        %v429 = vld [vmem:[%s368 + $0x1d0] sm:$0xff]
        %v430 = vld [vmem:[%s368 + $0x1d8] sm:$0xff]
        %v431 = vld [vmem:[%s368 + $0x1e0] sm:$0xff]
        %v432 = vld [vmem:[%s368 + $0x1e8] sm:$0xff]
        %v433 = vld [vmem:[%s368 + $0x1f0] sm:$0xff]
        %v434 = vld [vmem:[%s368 + $0x1f8] sm:$0xff]
        %v435 = vld [vmem:[%s1] sm:$0x1]
        %437 = vset.pattern.permute.xlu0 0
        %438 = vperm.xlu0 %437, %v371
        %v439 = vpop.permute.xlu0 %438
        %442 = vset.pattern.permute.xlu0 0
        %443 = vperm.xlu0 %442, %v372
        %v444 = vpop.permute.xlu0 %443
        %447 = vset.pattern.permute.xlu0 0
        %448 = vperm.xlu0 %447, %v373
        %v449 = vpop.permute.xlu0 %448
        %452 = vset.pattern.permute.xlu0 0
        %453 = vperm.xlu0 %452, %v374
        %v454 = vpop.permute.xlu0 %453
        %457 = vset.pattern.permute.xlu0 0
        %458 = vperm.xlu0 %457, %v375
        %v459 = vpop.permute.xlu0 %458
        %462 = vset.pattern.permute.xlu0 0
        %463 = vperm.xlu0 %462, %v376
        %v464 = vpop.permute.xlu0 %463
        %467 = vset.pattern.permute.xlu0 0
        %468 = vperm.xlu0 %467, %v377
        %v469 = vpop.permute.xlu0 %468
        %472 = vset.pattern.permute.xlu0 0
        %473 = vperm.xlu0 %472, %v378
        %v474 = vpop.permute.xlu0 %473
        %477 = vset.pattern.permute.xlu0 0
        %478 = vperm.xlu0 %477, %v379
        %v479 = vpop.permute.xlu0 %478
        %482 = vset.pattern.permute.xlu0 0
        %483 = vperm.xlu0 %482, %v380
        %v484 = vpop.permute.xlu0 %483
        %487 = vset.pattern.permute.xlu0 0
        %488 = vperm.xlu0 %487, %v381
        %v489 = vpop.permute.xlu0 %488
        %492 = vset.pattern.permute.xlu0 0
        %493 = vperm.xlu0 %492, %v382
        %v494 = vpop.permute.xlu0 %493
        %497 = vset.pattern.permute.xlu0 0
        %498 = vperm.xlu0 %497, %v383
        %v499 = vpop.permute.xlu0 %498
        %502 = vset.pattern.permute.xlu0 0
        %503 = vperm.xlu0 %502, %v384
        %v504 = vpop.permute.xlu0 %503
        %507 = vset.pattern.permute.xlu0 0
        %508 = vperm.xlu0 %507, %v385
        %v509 = vpop.permute.xlu0 %508
        %512 = vset.pattern.permute.xlu0 0
        %513 = vperm.xlu0 %512, %v386
        %v514 = vpop.permute.xlu0 %513
        %517 = vset.pattern.permute.xlu0 0
        %518 = vperm.xlu0 %517, %v387
        %v519 = vpop.permute.xlu0 %518
        %522 = vset.pattern.permute.xlu0 0
        %523 = vperm.xlu0 %522, %v388
        %v524 = vpop.permute.xlu0 %523
        %527 = vset.pattern.permute.xlu0 0
        %528 = vperm.xlu0 %527, %v389
        %v529 = vpop.permute.xlu0 %528
        %532 = vset.pattern.permute.xlu0 0
        %533 = vperm.xlu0 %532, %v390
        %v534 = vpop.permute.xlu0 %533
        %537 = vset.pattern.permute.xlu0 0
        %538 = vperm.xlu0 %537, %v391
        %v539 = vpop.permute.xlu0 %538
        %542 = vset.pattern.permute.xlu0 0
        %543 = vperm.xlu0 %542, %v392
        %v544 = vpop.permute.xlu0 %543
        %547 = vset.pattern.permute.xlu0 0
        %548 = vperm.xlu0 %547, %v393
        %v549 = vpop.permute.xlu0 %548
        %552 = vset.pattern.permute.xlu0 0
        %553 = vperm.xlu0 %552, %v394
        %v554 = vpop.permute.xlu0 %553
        %557 = vset.pattern.permute.xlu0 0
        %558 = vperm.xlu0 %557, %v395
        %v559 = vpop.permute.xlu0 %558
        %562 = vset.pattern.permute.xlu0 0
        %563 = vperm.xlu0 %562, %v396
        %v564 = vpop.permute.xlu0 %563
        %567 = vset.pattern.permute.xlu0 0
        %568 = vperm.xlu0 %567, %v397
        %v569 = vpop.permute.xlu0 %568
        %572 = vset.pattern.permute.xlu0 0
        %573 = vperm.xlu0 %572, %v398
        %v574 = vpop.permute.xlu0 %573
        %577 = vset.pattern.permute.xlu0 0
        %578 = vperm.xlu0 %577, %v399
        %v579 = vpop.permute.xlu0 %578
        %582 = vset.pattern.permute.xlu0 0
        %583 = vperm.xlu0 %582, %v400
        %v584 = vpop.permute.xlu0 %583
        %587 = vset.pattern.permute.xlu0 0
        %588 = vperm.xlu0 %587, %v401
        %v589 = vpop.permute.xlu0 %588
        %592 = vset.pattern.permute.xlu0 0
        %593 = vperm.xlu0 %592, %v402
        %v594 = vpop.permute.xlu0 %593
        %597 = vset.pattern.permute.xlu0 0
        %598 = vperm.xlu0 %597, %v403
        %v599 = vpop.permute.xlu0 %598
        %602 = vset.pattern.permute.xlu0 0
        %603 = vperm.xlu0 %602, %v404
        %v604 = vpop.permute.xlu0 %603
        %607 = vset.pattern.permute.xlu0 0
        %608 = vperm.xlu0 %607, %v405
        %v609 = vpop.permute.xlu0 %608
        %612 = vset.pattern.permute.xlu0 0
        %613 = vperm.xlu0 %612, %v406
        %v614 = vpop.permute.xlu0 %613
        %617 = vset.pattern.permute.xlu0 0
        %618 = vperm.xlu0 %617, %v407
        %v619 = vpop.permute.xlu0 %618
        %622 = vset.pattern.permute.xlu0 0
        %623 = vperm.xlu0 %622, %v408
        %v624 = vpop.permute.xlu0 %623
        %627 = vset.pattern.permute.xlu0 0
        %628 = vperm.xlu0 %627, %v409
        %v629 = vpop.permute.xlu0 %628
        %632 = vset.pattern.permute.xlu0 0
        %633 = vperm.xlu0 %632, %v410
        %v634 = vpop.permute.xlu0 %633
        %637 = vset.pattern.permute.xlu0 0
        %638 = vperm.xlu0 %637, %v411
        %v639 = vpop.permute.xlu0 %638
        %642 = vset.pattern.permute.xlu0 0
        %643 = vperm.xlu0 %642, %v412
        %v644 = vpop.permute.xlu0 %643
        %647 = vset.pattern.permute.xlu0 0
        %648 = vperm.xlu0 %647, %v413
        %v649 = vpop.permute.xlu0 %648
        %652 = vset.pattern.permute.xlu0 0
        %653 = vperm.xlu0 %652, %v414
        %v654 = vpop.permute.xlu0 %653
        %657 = vset.pattern.permute.xlu0 0
        %658 = vperm.xlu0 %657, %v415
        %v659 = vpop.permute.xlu0 %658
        %662 = vset.pattern.permute.xlu0 0
        %663 = vperm.xlu0 %662, %v416
        %v664 = vpop.permute.xlu0 %663
        %667 = vset.pattern.permute.xlu0 0
        %668 = vperm.xlu0 %667, %v417
        %v669 = vpop.permute.xlu0 %668
        %672 = vset.pattern.permute.xlu0 0
        %673 = vperm.xlu0 %672, %v418
        %v674 = vpop.permute.xlu0 %673
        %677 = vset.pattern.permute.xlu0 0
        %678 = vperm.xlu0 %677, %v419
        %v679 = vpop.permute.xlu0 %678
        %682 = vset.pattern.permute.xlu0 0
        %683 = vperm.xlu0 %682, %v420
        %v684 = vpop.permute.xlu0 %683
        %687 = vset.pattern.permute.xlu0 0
        %688 = vperm.xlu0 %687, %v421
        %v689 = vpop.permute.xlu0 %688
        %692 = vset.pattern.permute.xlu0 0
        %693 = vperm.xlu0 %692, %v422
        %v694 = vpop.permute.xlu0 %693
        %697 = vset.pattern.permute.xlu0 0
        %698 = vperm.xlu0 %697, %v423
        %v699 = vpop.permute.xlu0 %698
        %702 = vset.pattern.permute.xlu0 0
        %703 = vperm.xlu0 %702, %v424
        %v704 = vpop.permute.xlu0 %703
        %707 = vset.pattern.permute.xlu0 0
        %708 = vperm.xlu0 %707, %v425
        %v709 = vpop.permute.xlu0 %708
        %712 = vset.pattern.permute.xlu0 0
        %713 = vperm.xlu0 %712, %v426
        %v714 = vpop.permute.xlu0 %713
        %717 = vset.pattern.permute.xlu0 0
        %718 = vperm.xlu0 %717, %v427
        %v719 = vpop.permute.xlu0 %718
        %722 = vset.pattern.permute.xlu0 0
        %723 = vperm.xlu0 %722, %v428
        %v724 = vpop.permute.xlu0 %723
        %727 = vset.pattern.permute.xlu0 0
        %728 = vperm.xlu0 %727, %v429
        %v729 = vpop.permute.xlu0 %728
        %732 = vset.pattern.permute.xlu0 0
        %733 = vperm.xlu0 %732, %v430
        %v734 = vpop.permute.xlu0 %733
        %737 = vset.pattern.permute.xlu0 0
        %738 = vperm.xlu0 %737, %v431
        %v739 = vpop.permute.xlu0 %738
        %742 = vset.pattern.permute.xlu0 0
        %743 = vperm.xlu0 %742, %v432
        %v744 = vpop.permute.xlu0 %743
        %747 = vset.pattern.permute.xlu0 0
        %748 = vperm.xlu0 %747, %v433
        %v749 = vpop.permute.xlu0 %748
        %752 = vset.pattern.permute.xlu0 0
        %753 = vperm.xlu0 %752, %v434
        %v754 = vpop.permute.xlu0 %753
        %v756 = vperm.slane %v435, 0
        %v757 = vmul.f32 %v439, %v756
        %v758 = vmul.f32 %v444, %v756
        %v759 = vmul.f32 %v449, %v756
        %v760 = vmul.f32 %v454, %v756
        %v761 = vmul.f32 %v459, %v756
        %v762 = vmul.f32 %v464, %v756
        %v763 = vmul.f32 %v469, %v756
        %v764 = vmul.f32 %v474, %v756
        %v765 = vmul.f32 %v479, %v756
        %v766 = vmul.f32 %v484, %v756
        %v767 = vmul.f32 %v489, %v756
        %v768 = vmul.f32 %v494, %v756
        %v769 = vmul.f32 %v499, %v756
        %v770 = vmul.f32 %v504, %v756
        %v771 = vmul.f32 %v509, %v756
        %v772 = vmul.f32 %v514, %v756
        %v773 = vmul.f32 %v519, %v756
        %v774 = vmul.f32 %v524, %v756
        %v775 = vmul.f32 %v529, %v756
        %v776 = vmul.f32 %v534, %v756
        %v777 = vmul.f32 %v539, %v756
        %v778 = vmul.f32 %v544, %v756
        %v779 = vmul.f32 %v549, %v756
        %v780 = vmul.f32 %v554, %v756
        %v781 = vmul.f32 %v559, %v756
        %v782 = vmul.f32 %v564, %v756
        %v783 = vmul.f32 %v569, %v756
        %v784 = vmul.f32 %v574, %v756
        %v785 = vmul.f32 %v579, %v756
        %v786 = vmul.f32 %v584, %v756
        %v787 = vmul.f32 %v589, %v756
        %v788 = vmul.f32 %v594, %v756
        %v789 = vmul.f32 %v599, %v756
        %v790 = vmul.f32 %v604, %v756
        %v791 = vmul.f32 %v609, %v756
        %v792 = vmul.f32 %v614, %v756
        %v793 = vmul.f32 %v619, %v756
        %v794 = vmul.f32 %v624, %v756
        %v795 = vmul.f32 %v629, %v756
        %v796 = vmul.f32 %v634, %v756
        %v797 = vmul.f32 %v639, %v756
        %v798 = vmul.f32 %v644, %v756
        %v799 = vmul.f32 %v649, %v756
        %v800 = vmul.f32 %v654, %v756
        %v801 = vmul.f32 %v659, %v756
        %v802 = vmul.f32 %v664, %v756
        %v803 = vmul.f32 %v669, %v756
        %v804 = vmul.f32 %v674, %v756
        %v805 = vmul.f32 %v679, %v756
        %v806 = vmul.f32 %v684, %v756
        %v807 = vmul.f32 %v689, %v756
        %v808 = vmul.f32 %v694, %v756
        %v809 = vmul.f32 %v699, %v756
        %v810 = vmul.f32 %v704, %v756
        %v811 = vmul.f32 %v709, %v756
        %v812 = vmul.f32 %v714, %v756
        %v813 = vmul.f32 %v719, %v756
        %v814 = vmul.f32 %v724, %v756
        %v815 = vmul.f32 %v729, %v756
        %v816 = vmul.f32 %v734, %v756
        %v817 = vmul.f32 %v739, %v756
        %v818 = vmul.f32 %v744, %v756
        %v819 = vmul.f32 %v749, %v756
        %v820 = vmul.f32 %v754, %v756
        %v821 = vld [vmem:[%s1 + $0x1] sm:$0x1]
        %822 = vset.pattern.permute.xlu0 1
        %823 = vperm.xlu0 %822, %v371
        %v824 = vpop.permute.xlu0 %823
        %826 = vset.pattern.permute.xlu0 1
        %827 = vperm.xlu0 %826, %v372
        %v828 = vpop.permute.xlu0 %827
        %830 = vset.pattern.permute.xlu0 1
        %831 = vperm.xlu0 %830, %v373
        %v832 = vpop.permute.xlu0 %831
        %834 = vset.pattern.permute.xlu0 1
        %835 = vperm.xlu0 %834, %v374
        %v836 = vpop.permute.xlu0 %835
        %838 = vset.pattern.permute.xlu0 1
        %839 = vperm.xlu0 %838, %v375
        %v840 = vpop.permute.xlu0 %839
        %842 = vset.pattern.permute.xlu0 1
        %843 = vperm.xlu0 %842, %v376
        %v844 = vpop.permute.xlu0 %843
        %846 = vset.pattern.permute.xlu0 1
        %847 = vperm.xlu0 %846, %v377
        %v848 = vpop.permute.xlu0 %847
        %850 = vset.pattern.permute.xlu0 1
        %851 = vperm.xlu0 %850, %v378
        %v852 = vpop.permute.xlu0 %851
        %854 = vset.pattern.permute.xlu0 1
        %855 = vperm.xlu0 %854, %v379
        %v856 = vpop.permute.xlu0 %855
        %858 = vset.pattern.permute.xlu0 1
        %859 = vperm.xlu0 %858, %v380
        %v860 = vpop.permute.xlu0 %859
        %862 = vset.pattern.permute.xlu0 1
        %863 = vperm.xlu0 %862, %v381
        %v864 = vpop.permute.xlu0 %863
        %866 = vset.pattern.permute.xlu0 1
        %867 = vperm.xlu0 %866, %v382
        %v868 = vpop.permute.xlu0 %867
        %870 = vset.pattern.permute.xlu0 1
        %871 = vperm.xlu0 %870, %v383
        %v872 = vpop.permute.xlu0 %871
        %874 = vset.pattern.permute.xlu0 1
        %875 = vperm.xlu0 %874, %v384
        %v876 = vpop.permute.xlu0 %875
        %878 = vset.pattern.permute.xlu0 1
        %879 = vperm.xlu0 %878, %v385
        %v880 = vpop.permute.xlu0 %879
        %882 = vset.pattern.permute.xlu0 1
        %883 = vperm.xlu0 %882, %v386
        %v884 = vpop.permute.xlu0 %883
        %886 = vset.pattern.permute.xlu0 1
        %887 = vperm.xlu0 %886, %v387
        %v888 = vpop.permute.xlu0 %887
        %890 = vset.pattern.permute.xlu0 1
        %891 = vperm.xlu0 %890, %v388
        %v892 = vpop.permute.xlu0 %891
        %894 = vset.pattern.permute.xlu0 1
        %895 = vperm.xlu0 %894, %v389
        %v896 = vpop.permute.xlu0 %895
        %898 = vset.pattern.permute.xlu0 1
        %899 = vperm.xlu0 %898, %v390
        %v900 = vpop.permute.xlu0 %899
        %902 = vset.pattern.permute.xlu0 1
        %903 = vperm.xlu0 %902, %v391
        %v904 = vpop.permute.xlu0 %903
        %906 = vset.pattern.permute.xlu0 1
        %907 = vperm.xlu0 %906, %v392
        %v908 = vpop.permute.xlu0 %907
        %910 = vset.pattern.permute.xlu0 1
        %911 = vperm.xlu0 %910, %v393
        %v912 = vpop.permute.xlu0 %911
        %914 = vset.pattern.permute.xlu0 1
        %915 = vperm.xlu0 %914, %v394
        %v916 = vpop.permute.xlu0 %915
        %918 = vset.pattern.permute.xlu0 1
        %919 = vperm.xlu0 %918, %v395
        %v920 = vpop.permute.xlu0 %919
        %922 = vset.pattern.permute.xlu0 1
        %923 = vperm.xlu0 %922, %v396
        %v924 = vpop.permute.xlu0 %923
        %926 = vset.pattern.permute.xlu0 1
        %927 = vperm.xlu0 %926, %v397
        %v928 = vpop.permute.xlu0 %927
        %930 = vset.pattern.permute.xlu0 1
        %931 = vperm.xlu0 %930, %v398
        %v932 = vpop.permute.xlu0 %931
        %934 = vset.pattern.permute.xlu0 1
        %935 = vperm.xlu0 %934, %v399
        %v936 = vpop.permute.xlu0 %935
        %938 = vset.pattern.permute.xlu0 1
        %939 = vperm.xlu0 %938, %v400
        %v940 = vpop.permute.xlu0 %939
        %942 = vset.pattern.permute.xlu0 1
        %943 = vperm.xlu0 %942, %v401
        %v944 = vpop.permute.xlu0 %943
        %946 = vset.pattern.permute.xlu0 1
        %947 = vperm.xlu0 %946, %v402
        %v948 = vpop.permute.xlu0 %947
        %950 = vset.pattern.permute.xlu0 1
        %951 = vperm.xlu0 %950, %v403
        %v952 = vpop.permute.xlu0 %951
        %954 = vset.pattern.permute.xlu0 1
        %955 = vperm.xlu0 %954, %v404
        %v956 = vpop.permute.xlu0 %955
        %958 = vset.pattern.permute.xlu0 1
        %959 = vperm.xlu0 %958, %v405
        %v960 = vpop.permute.xlu0 %959
        %962 = vset.pattern.permute.xlu0 1
        %963 = vperm.xlu0 %962, %v406
        %v964 = vpop.permute.xlu0 %963
        %966 = vset.pattern.permute.xlu0 1
        %967 = vperm.xlu0 %966, %v407
        %v968 = vpop.permute.xlu0 %967
        %970 = vset.pattern.permute.xlu0 1
        %971 = vperm.xlu0 %970, %v408
        %v972 = vpop.permute.xlu0 %971
        %974 = vset.pattern.permute.xlu0 1
        %975 = vperm.xlu0 %974, %v409
        %v976 = vpop.permute.xlu0 %975
        %978 = vset.pattern.permute.xlu0 1
        %979 = vperm.xlu0 %978, %v410
        %v980 = vpop.permute.xlu0 %979
        %982 = vset.pattern.permute.xlu0 1
        %983 = vperm.xlu0 %982, %v411
        %v984 = vpop.permute.xlu0 %983
        %986 = vset.pattern.permute.xlu0 1
        %987 = vperm.xlu0 %986, %v412
        %v988 = vpop.permute.xlu0 %987
        %990 = vset.pattern.permute.xlu0 1
        %991 = vperm.xlu0 %990, %v413
        %v992 = vpop.permute.xlu0 %991
        %994 = vset.pattern.permute.xlu0 1
        %995 = vperm.xlu0 %994, %v414
        %v996 = vpop.permute.xlu0 %995
        %998 = vset.pattern.permute.xlu0 1
        %999 = vperm.xlu0 %998, %v415
        %v1000 = vpop.permute.xlu0 %999
        %1002 = vset.pattern.permute.xlu0 1
        %1003 = vperm.xlu0 %1002, %v416
        %v1004 = vpop.permute.xlu0 %1003
        %1006 = vset.pattern.permute.xlu0 1
        %1007 = vperm.xlu0 %1006, %v417
        %v1008 = vpop.permute.xlu0 %1007
        %1010 = vset.pattern.permute.xlu0 1
        %1011 = vperm.xlu0 %1010, %v418
        %v1012 = vpop.permute.xlu0 %1011
        %1014 = vset.pattern.permute.xlu0 1
        %1015 = vperm.xlu0 %1014, %v419
        %v1016 = vpop.permute.xlu0 %1015
        %1018 = vset.pattern.permute.xlu0 1
        %1019 = vperm.xlu0 %1018, %v420
        %v1020 = vpop.permute.xlu0 %1019
        %1022 = vset.pattern.permute.xlu0 1
        %1023 = vperm.xlu0 %1022, %v421
        %v1024 = vpop.permute.xlu0 %1023
        %1026 = vset.pattern.permute.xlu0 1
        %1027 = vperm.xlu0 %1026, %v422
        %v1028 = vpop.permute.xlu0 %1027
        %1030 = vset.pattern.permute.xlu0 1
        %1031 = vperm.xlu0 %1030, %v423
        %v1032 = vpop.permute.xlu0 %1031
        %1034 = vset.pattern.permute.xlu0 1
        %1035 = vperm.xlu0 %1034, %v424
        %v1036 = vpop.permute.xlu0 %1035
        %1038 = vset.pattern.permute.xlu0 1
        %1039 = vperm.xlu0 %1038, %v425
        %v1040 = vpop.permute.xlu0 %1039
        %1042 = vset.pattern.permute.xlu0 1
        %1043 = vperm.xlu0 %1042, %v426
        %v1044 = vpop.permute.xlu0 %1043
        %1046 = vset.pattern.permute.xlu0 1
        %1047 = vperm.xlu0 %1046, %v427
        %v1048 = vpop.permute.xlu0 %1047
        %1050 = vset.pattern.permute.xlu0 1
        %1051 = vperm.xlu0 %1050, %v428
        %v1052 = vpop.permute.xlu0 %1051
        %1054 = vset.pattern.permute.xlu0 1
        %1055 = vperm.xlu0 %1054, %v429
        %v1056 = vpop.permute.xlu0 %1055
        %1058 = vset.pattern.permute.xlu0 1
        %1059 = vperm.xlu0 %1058, %v430
        %v1060 = vpop.permute.xlu0 %1059
        %1062 = vset.pattern.permute.xlu0 1
        %1063 = vperm.xlu0 %1062, %v431
        %v1064 = vpop.permute.xlu0 %1063
        %1066 = vset.pattern.permute.xlu0 1
        %1067 = vperm.xlu0 %1066, %v432
        %v1068 = vpop.permute.xlu0 %1067
        %1070 = vset.pattern.permute.xlu0 1
        %1071 = vperm.xlu0 %1070, %v433
        %v1072 = vpop.permute.xlu0 %1071
        %1074 = vset.pattern.permute.xlu0 1
        %1075 = vperm.xlu0 %1074, %v434
        %v1076 = vpop.permute.xlu0 %1075
        %v1078 = vperm.slane %v821, 0
        %v1079 = vmul.f32 %v824, %v1078
        %v1080 = vmul.f32 %v828, %v1078
        %v1081 = vmul.f32 %v832, %v1078
        %v1082 = vmul.f32 %v836, %v1078
        %v1083 = vmul.f32 %v840, %v1078
        %v1084 = vmul.f32 %v844, %v1078
        %v1085 = vmul.f32 %v848, %v1078
        %v1086 = vmul.f32 %v852, %v1078
        %v1087 = vmul.f32 %v856, %v1078
        %v1088 = vmul.f32 %v860, %v1078
        %v1089 = vmul.f32 %v864, %v1078
        %v1090 = vmul.f32 %v868, %v1078
        %v1091 = vmul.f32 %v872, %v1078
        %v1092 = vmul.f32 %v876, %v1078
        %v1093 = vmul.f32 %v880, %v1078
        %v1094 = vmul.f32 %v884, %v1078
        %v1095 = vmul.f32 %v888, %v1078
        %v1096 = vmul.f32 %v892, %v1078
        %v1097 = vmul.f32 %v896, %v1078
        %v1098 = vmul.f32 %v900, %v1078
        %v1099 = vmul.f32 %v904, %v1078
        %v1100 = vmul.f32 %v908, %v1078
        %v1101 = vmul.f32 %v912, %v1078
        %v1102 = vmul.f32 %v916, %v1078
        %v1103 = vmul.f32 %v920, %v1078
        %v1104 = vmul.f32 %v924, %v1078
        %v1105 = vmul.f32 %v928, %v1078
        %v1106 = vmul.f32 %v932, %v1078
        %v1107 = vmul.f32 %v936, %v1078
        %v1108 = vmul.f32 %v940, %v1078
        %v1109 = vmul.f32 %v944, %v1078
        %v1110 = vmul.f32 %v948, %v1078
        %v1111 = vmul.f32 %v952, %v1078
        %v1112 = vmul.f32 %v956, %v1078
        %v1113 = vmul.f32 %v960, %v1078
        %v1114 = vmul.f32 %v964, %v1078
        %v1115 = vmul.f32 %v968, %v1078
        %v1116 = vmul.f32 %v972, %v1078
        %v1117 = vmul.f32 %v976, %v1078
        %v1118 = vmul.f32 %v980, %v1078
        %v1119 = vmul.f32 %v984, %v1078
        %v1120 = vmul.f32 %v988, %v1078
        %v1121 = vmul.f32 %v992, %v1078
        %v1122 = vmul.f32 %v996, %v1078
        %v1123 = vmul.f32 %v1000, %v1078
        %v1124 = vmul.f32 %v1004, %v1078
        %v1125 = vmul.f32 %v1008, %v1078
        %v1126 = vmul.f32 %v1012, %v1078
        %v1127 = vmul.f32 %v1016, %v1078
        %v1128 = vmul.f32 %v1020, %v1078
        %v1129 = vmul.f32 %v1024, %v1078
        %v1130 = vmul.f32 %v1028, %v1078
        %v1131 = vmul.f32 %v1032, %v1078
        %v1132 = vmul.f32 %v1036, %v1078
        %v1133 = vmul.f32 %v1040, %v1078
        %v1134 = vmul.f32 %v1044, %v1078
        %v1135 = vmul.f32 %v1048, %v1078
        %v1136 = vmul.f32 %v1052, %v1078
        %v1137 = vmul.f32 %v1056, %v1078
        %v1138 = vmul.f32 %v1060, %v1078
        %v1139 = vmul.f32 %v1064, %v1078
        %v1140 = vmul.f32 %v1068, %v1078
        %v1141 = vmul.f32 %v1072, %v1078
        %v1142 = vmul.f32 %v1076, %v1078
        %v1143 = vadd.f32 %v757, %v1079
        %v1144 = vadd.f32 %v758, %v1080
        %v1145 = vadd.f32 %v759, %v1081
        %v1146 = vadd.f32 %v760, %v1082
        %v1147 = vadd.f32 %v761, %v1083
        %v1148 = vadd.f32 %v762, %v1084
        %v1149 = vadd.f32 %v763, %v1085
        %v1150 = vadd.f32 %v764, %v1086
        %v1151 = vadd.f32 %v765, %v1087
        %v1152 = vadd.f32 %v766, %v1088
        %v1153 = vadd.f32 %v767, %v1089
        %v1154 = vadd.f32 %v768, %v1090
        %v1155 = vadd.f32 %v769, %v1091
        %v1156 = vadd.f32 %v770, %v1092
        %v1157 = vadd.f32 %v771, %v1093
        %v1158 = vadd.f32 %v772, %v1094
        %v1159 = vadd.f32 %v773, %v1095
        %v1160 = vadd.f32 %v774, %v1096
        %v1161 = vadd.f32 %v775, %v1097
        %v1162 = vadd.f32 %v776, %v1098
        %v1163 = vadd.f32 %v777, %v1099
        %v1164 = vadd.f32 %v778, %v1100
        %v1165 = vadd.f32 %v779, %v1101
        %v1166 = vadd.f32 %v780, %v1102
        %v1167 = vadd.f32 %v781, %v1103
        %v1168 = vadd.f32 %v782, %v1104
        %v1169 = vadd.f32 %v783, %v1105
        %v1170 = vadd.f32 %v784, %v1106
        %v1171 = vadd.f32 %v785, %v1107
        %v1172 = vadd.f32 %v786, %v1108
        %v1173 = vadd.f32 %v787, %v1109
        %v1174 = vadd.f32 %v788, %v1110
        %v1175 = vadd.f32 %v789, %v1111
        %v1176 = vadd.f32 %v790, %v1112
        %v1177 = vadd.f32 %v791, %v1113
        %v1178 = vadd.f32 %v792, %v1114
        %v1179 = vadd.f32 %v793, %v1115
        %v1180 = vadd.f32 %v794, %v1116
        %v1181 = vadd.f32 %v795, %v1117
        %v1182 = vadd.f32 %v796, %v1118
        %v1183 = vadd.f32 %v797, %v1119
        %v1184 = vadd.f32 %v798, %v1120
        %v1185 = vadd.f32 %v799, %v1121
        %v1186 = vadd.f32 %v800, %v1122
        %v1187 = vadd.f32 %v801, %v1123
        %v1188 = vadd.f32 %v802, %v1124
        %v1189 = vadd.f32 %v803, %v1125
        %v1190 = vadd.f32 %v804, %v1126
        %v1191 = vadd.f32 %v805, %v1127
        %v1192 = vadd.f32 %v806, %v1128
        %v1193 = vadd.f32 %v807, %v1129
        %v1194 = vadd.f32 %v808, %v1130
        %v1195 = vadd.f32 %v809, %v1131
        %v1196 = vadd.f32 %v810, %v1132
        %v1197 = vadd.f32 %v811, %v1133
        %v1198 = vadd.f32 %v812, %v1134
        %v1199 = vadd.f32 %v813, %v1135
        %v1200 = vadd.f32 %v814, %v1136
        %v1201 = vadd.f32 %v815, %v1137
        %v1202 = vadd.f32 %v816, %v1138
        %v1203 = vadd.f32 %v817, %v1139
        %v1204 = vadd.f32 %v818, %v1140
        %v1205 = vadd.f32 %v819, %v1141
        %v1206 = vadd.f32 %v820, %v1142
        %v1207 = vld [vmem:[%s1 + $0x2] sm:$0x1]
        %1208 = vset.pattern.permute.xlu0 2
        %1209 = vperm.xlu0 %1208, %v371
        %v1210 = vpop.permute.xlu0 %1209
        %1212 = vset.pattern.permute.xlu0 2
        %1213 = vperm.xlu0 %1212, %v372
        %v1214 = vpop.permute.xlu0 %1213
        %1216 = vset.pattern.permute.xlu0 2
        %1217 = vperm.xlu0 %1216, %v373
        %v1218 = vpop.permute.xlu0 %1217
        %1220 = vset.pattern.permute.xlu0 2
        %1221 = vperm.xlu0 %1220, %v374
        %v1222 = vpop.permute.xlu0 %1221
        %1224 = vset.pattern.permute.xlu0 2
        %1225 = vperm.xlu0 %1224, %v375
        %v1226 = vpop.permute.xlu0 %1225
        %1228 = vset.pattern.permute.xlu0 2
        %1229 = vperm.xlu0 %1228, %v376
        %v1230 = vpop.permute.xlu0 %1229
        %1232 = vset.pattern.permute.xlu0 2
        %1233 = vperm.xlu0 %1232, %v377
        %v1234 = vpop.permute.xlu0 %1233
        %1236 = vset.pattern.permute.xlu0 2
        %1237 = vperm.xlu0 %1236, %v378
        %v1238 = vpop.permute.xlu0 %1237
        %1240 = vset.pattern.permute.xlu0 2
        %1241 = vperm.xlu0 %1240, %v379
        %v1242 = vpop.permute.xlu0 %1241
        %1244 = vset.pattern.permute.xlu0 2
        %1245 = vperm.xlu0 %1244, %v380
        %v1246 = vpop.permute.xlu0 %1245
        %1248 = vset.pattern.permute.xlu0 2
        %1249 = vperm.xlu0 %1248, %v381
        %v1250 = vpop.permute.xlu0 %1249
        %1252 = vset.pattern.permute.xlu0 2
        %1253 = vperm.xlu0 %1252, %v382
        %v1254 = vpop.permute.xlu0 %1253
        %1256 = vset.pattern.permute.xlu0 2
        %1257 = vperm.xlu0 %1256, %v383
        %v1258 = vpop.permute.xlu0 %1257
        %1260 = vset.pattern.permute.xlu0 2
        %1261 = vperm.xlu0 %1260, %v384
        %v1262 = vpop.permute.xlu0 %1261
        %1264 = vset.pattern.permute.xlu0 2
        %1265 = vperm.xlu0 %1264, %v385
        %v1266 = vpop.permute.xlu0 %1265
        %1268 = vset.pattern.permute.xlu0 2
        %1269 = vperm.xlu0 %1268, %v386
        %v1270 = vpop.permute.xlu0 %1269
        %1272 = vset.pattern.permute.xlu0 2
        %1273 = vperm.xlu0 %1272, %v387
        %v1274 = vpop.permute.xlu0 %1273
        %1276 = vset.pattern.permute.xlu0 2
        %1277 = vperm.xlu0 %1276, %v388
        %v1278 = vpop.permute.xlu0 %1277
        %1280 = vset.pattern.permute.xlu0 2
        %1281 = vperm.xlu0 %1280, %v389
        %v1282 = vpop.permute.xlu0 %1281
        %1284 = vset.pattern.permute.xlu0 2
        %1285 = vperm.xlu0 %1284, %v390
        %v1286 = vpop.permute.xlu0 %1285
        %1288 = vset.pattern.permute.xlu0 2
        %1289 = vperm.xlu0 %1288, %v391
        %v1290 = vpop.permute.xlu0 %1289
        %1292 = vset.pattern.permute.xlu0 2
        %1293 = vperm.xlu0 %1292, %v392
        %v1294 = vpop.permute.xlu0 %1293
        %1296 = vset.pattern.permute.xlu0 2
        %1297 = vperm.xlu0 %1296, %v393
        %v1298 = vpop.permute.xlu0 %1297
        %1300 = vset.pattern.permute.xlu0 2
        %1301 = vperm.xlu0 %1300, %v394
        %v1302 = vpop.permute.xlu0 %1301
        %1304 = vset.pattern.permute.xlu0 2
        %1305 = vperm.xlu0 %1304, %v395
        %v1306 = vpop.permute.xlu0 %1305
        %1308 = vset.pattern.permute.xlu0 2
        %1309 = vperm.xlu0 %1308, %v396
        %v1310 = vpop.permute.xlu0 %1309
        %1312 = vset.pattern.permute.xlu0 2
        %1313 = vperm.xlu0 %1312, %v397
        %v1314 = vpop.permute.xlu0 %1313
        %1316 = vset.pattern.permute.xlu0 2
        %1317 = vperm.xlu0 %1316, %v398
        %v1318 = vpop.permute.xlu0 %1317
        %1320 = vset.pattern.permute.xlu0 2
        %1321 = vperm.xlu0 %1320, %v399
        %v1322 = vpop.permute.xlu0 %1321
        %1324 = vset.pattern.permute.xlu0 2
        %1325 = vperm.xlu0 %1324, %v400
        %v1326 = vpop.permute.xlu0 %1325
        %1328 = vset.pattern.permute.xlu0 2
        %1329 = vperm.xlu0 %1328, %v401
        %v1330 = vpop.permute.xlu0 %1329
        %1332 = vset.pattern.permute.xlu0 2
        %1333 = vperm.xlu0 %1332, %v402
        %v1334 = vpop.permute.xlu0 %1333
        %1336 = vset.pattern.permute.xlu0 2
        %1337 = vperm.xlu0 %1336, %v403
        %v1338 = vpop.permute.xlu0 %1337
        %1340 = vset.pattern.permute.xlu0 2
        %1341 = vperm.xlu0 %1340, %v404
        %v1342 = vpop.permute.xlu0 %1341
        %1344 = vset.pattern.permute.xlu0 2
        %1345 = vperm.xlu0 %1344, %v405
        %v1346 = vpop.permute.xlu0 %1345
        %1348 = vset.pattern.permute.xlu0 2
        %1349 = vperm.xlu0 %1348, %v406
        %v1350 = vpop.permute.xlu0 %1349
        %1352 = vset.pattern.permute.xlu0 2
        %1353 = vperm.xlu0 %1352, %v407
        %v1354 = vpop.permute.xlu0 %1353
        %1356 = vset.pattern.permute.xlu0 2
        %1357 = vperm.xlu0 %1356, %v408
        %v1358 = vpop.permute.xlu0 %1357
        %1360 = vset.pattern.permute.xlu0 2
        %1361 = vperm.xlu0 %1360, %v409
        %v1362 = vpop.permute.xlu0 %1361
        %1364 = vset.pattern.permute.xlu0 2
        %1365 = vperm.xlu0 %1364, %v410
        %v1366 = vpop.permute.xlu0 %1365
        %1368 = vset.pattern.permute.xlu0 2
        %1369 = vperm.xlu0 %1368, %v411
        %v1370 = vpop.permute.xlu0 %1369
        %1372 = vset.pattern.permute.xlu0 2
        %1373 = vperm.xlu0 %1372, %v412
        %v1374 = vpop.permute.xlu0 %1373
        %1376 = vset.pattern.permute.xlu0 2
        %1377 = vperm.xlu0 %1376, %v413
        %v1378 = vpop.permute.xlu0 %1377
        %1380 = vset.pattern.permute.xlu0 2
        %1381 = vperm.xlu0 %1380, %v414
        %v1382 = vpop.permute.xlu0 %1381
        %1384 = vset.pattern.permute.xlu0 2
        %1385 = vperm.xlu0 %1384, %v415
        %v1386 = vpop.permute.xlu0 %1385
        %1388 = vset.pattern.permute.xlu0 2
        %1389 = vperm.xlu0 %1388, %v416
        %v1390 = vpop.permute.xlu0 %1389
        %1392 = vset.pattern.permute.xlu0 2
        %1393 = vperm.xlu0 %1392, %v417
        %v1394 = vpop.permute.xlu0 %1393
        %1396 = vset.pattern.permute.xlu0 2
        %1397 = vperm.xlu0 %1396, %v418
        %v1398 = vpop.permute.xlu0 %1397
        %1400 = vset.pattern.permute.xlu0 2
        %1401 = vperm.xlu0 %1400, %v419
        %v1402 = vpop.permute.xlu0 %1401
        %1404 = vset.pattern.permute.xlu0 2
        %1405 = vperm.xlu0 %1404, %v420
        %v1406 = vpop.permute.xlu0 %1405
        %1408 = vset.pattern.permute.xlu0 2
        %1409 = vperm.xlu0 %1408, %v421
        %v1410 = vpop.permute.xlu0 %1409
        %1412 = vset.pattern.permute.xlu0 2
        %1413 = vperm.xlu0 %1412, %v422
        %v1414 = vpop.permute.xlu0 %1413
        %1416 = vset.pattern.permute.xlu0 2
        %1417 = vperm.xlu0 %1416, %v423
        %v1418 = vpop.permute.xlu0 %1417
        %1420 = vset.pattern.permute.xlu0 2
        %1421 = vperm.xlu0 %1420, %v424
        %v1422 = vpop.permute.xlu0 %1421
        %1424 = vset.pattern.permute.xlu0 2
        %1425 = vperm.xlu0 %1424, %v425
        %v1426 = vpop.permute.xlu0 %1425
        %1428 = vset.pattern.permute.xlu0 2
        %1429 = vperm.xlu0 %1428, %v426
        %v1430 = vpop.permute.xlu0 %1429
        %1432 = vset.pattern.permute.xlu0 2
        %1433 = vperm.xlu0 %1432, %v427
        %v1434 = vpop.permute.xlu0 %1433
        %1436 = vset.pattern.permute.xlu0 2
        %1437 = vperm.xlu0 %1436, %v428
        %v1438 = vpop.permute.xlu0 %1437
        %1440 = vset.pattern.permute.xlu0 2
        %1441 = vperm.xlu0 %1440, %v429
        %v1442 = vpop.permute.xlu0 %1441
        %1444 = vset.pattern.permute.xlu0 2
        %1445 = vperm.xlu0 %1444, %v430
        %v1446 = vpop.permute.xlu0 %1445
        %1448 = vset.pattern.permute.xlu0 2
        %1449 = vperm.xlu0 %1448, %v431
        %v1450 = vpop.permute.xlu0 %1449
        %1452 = vset.pattern.permute.xlu0 2
        %1453 = vperm.xlu0 %1452, %v432
        %v1454 = vpop.permute.xlu0 %1453
        %1456 = vset.pattern.permute.xlu0 2
        %1457 = vperm.xlu0 %1456, %v433
        %v1458 = vpop.permute.xlu0 %1457
        %1460 = vset.pattern.permute.xlu0 2
        %1461 = vperm.xlu0 %1460, %v434
        %v1462 = vpop.permute.xlu0 %1461
        %v1464 = vperm.slane %v1207, 0
        %v1465 = vmul.f32 %v1210, %v1464
        %v1466 = vmul.f32 %v1214, %v1464
        %v1467 = vmul.f32 %v1218, %v1464
        %v1468 = vmul.f32 %v1222, %v1464
        %v1469 = vmul.f32 %v1226, %v1464
        %v1470 = vmul.f32 %v1230, %v1464
        %v1471 = vmul.f32 %v1234, %v1464
        %v1472 = vmul.f32 %v1238, %v1464
        %v1473 = vmul.f32 %v1242, %v1464
        %v1474 = vmul.f32 %v1246, %v1464
        %v1475 = vmul.f32 %v1250, %v1464
        %v1476 = vmul.f32 %v1254, %v1464
        %v1477 = vmul.f32 %v1258, %v1464
        %v1478 = vmul.f32 %v1262, %v1464
        %v1479 = vmul.f32 %v1266, %v1464
        %v1480 = vmul.f32 %v1270, %v1464
        %v1481 = vmul.f32 %v1274, %v1464
        %v1482 = vmul.f32 %v1278, %v1464
        %v1483 = vmul.f32 %v1282, %v1464
        %v1484 = vmul.f32 %v1286, %v1464
        %v1485 = vmul.f32 %v1290, %v1464
        %v1486 = vmul.f32 %v1294, %v1464
        %v1487 = vmul.f32 %v1298, %v1464
        %v1488 = vmul.f32 %v1302, %v1464
        %v1489 = vmul.f32 %v1306, %v1464
        %v1490 = vmul.f32 %v1310, %v1464
        %v1491 = vmul.f32 %v1314, %v1464
        %v1492 = vmul.f32 %v1318, %v1464
        %v1493 = vmul.f32 %v1322, %v1464
        %v1494 = vmul.f32 %v1326, %v1464
        %v1495 = vmul.f32 %v1330, %v1464
        %v1496 = vmul.f32 %v1334, %v1464
        %v1497 = vmul.f32 %v1338, %v1464
        %v1498 = vmul.f32 %v1342, %v1464
        %v1499 = vmul.f32 %v1346, %v1464
        %v1500 = vmul.f32 %v1350, %v1464
        %v1501 = vmul.f32 %v1354, %v1464
        %v1502 = vmul.f32 %v1358, %v1464
        %v1503 = vmul.f32 %v1362, %v1464
        %v1504 = vmul.f32 %v1366, %v1464
        %v1505 = vmul.f32 %v1370, %v1464
        %v1506 = vmul.f32 %v1374, %v1464
        %v1507 = vmul.f32 %v1378, %v1464
        %v1508 = vmul.f32 %v1382, %v1464
        %v1509 = vmul.f32 %v1386, %v1464
        %v1510 = vmul.f32 %v1390, %v1464
        %v1511 = vmul.f32 %v1394, %v1464
        %v1512 = vmul.f32 %v1398, %v1464
        %v1513 = vmul.f32 %v1402, %v1464
        %v1514 = vmul.f32 %v1406, %v1464
        %v1515 = vmul.f32 %v1410, %v1464
        %v1516 = vmul.f32 %v1414, %v1464
        %v1517 = vmul.f32 %v1418, %v1464
        %v1518 = vmul.f32 %v1422, %v1464
        %v1519 = vmul.f32 %v1426, %v1464
        %v1520 = vmul.f32 %v1430, %v1464
        %v1521 = vmul.f32 %v1434, %v1464
        %v1522 = vmul.f32 %v1438, %v1464
        %v1523 = vmul.f32 %v1442, %v1464
        %v1524 = vmul.f32 %v1446, %v1464
        %v1525 = vmul.f32 %v1450, %v1464
        %v1526 = vmul.f32 %v1454, %v1464
        %v1527 = vmul.f32 %v1458, %v1464
        %v1528 = vmul.f32 %v1462, %v1464
        %v1529 = vadd.f32 %v1143, %v1465
        %v1530 = vadd.f32 %v1144, %v1466
        %v1531 = vadd.f32 %v1145, %v1467
        %v1532 = vadd.f32 %v1146, %v1468
        %v1533 = vadd.f32 %v1147, %v1469
        %v1534 = vadd.f32 %v1148, %v1470
        %v1535 = vadd.f32 %v1149, %v1471
        %v1536 = vadd.f32 %v1150, %v1472
        %v1537 = vadd.f32 %v1151, %v1473
        %v1538 = vadd.f32 %v1152, %v1474
        %v1539 = vadd.f32 %v1153, %v1475
        %v1540 = vadd.f32 %v1154, %v1476
        %v1541 = vadd.f32 %v1155, %v1477
        %v1542 = vadd.f32 %v1156, %v1478
        %v1543 = vadd.f32 %v1157, %v1479
        %v1544 = vadd.f32 %v1158, %v1480
        %v1545 = vadd.f32 %v1159, %v1481
        %v1546 = vadd.f32 %v1160, %v1482
        %v1547 = vadd.f32 %v1161, %v1483
        %v1548 = vadd.f32 %v1162, %v1484
        %v1549 = vadd.f32 %v1163, %v1485
        %v1550 = vadd.f32 %v1164, %v1486
        %v1551 = vadd.f32 %v1165, %v1487
        %v1552 = vadd.f32 %v1166, %v1488
        %v1553 = vadd.f32 %v1167, %v1489
        %v1554 = vadd.f32 %v1168, %v1490
        %v1555 = vadd.f32 %v1169, %v1491
        %v1556 = vadd.f32 %v1170, %v1492
        %v1557 = vadd.f32 %v1171, %v1493
        %v1558 = vadd.f32 %v1172, %v1494
        %v1559 = vadd.f32 %v1173, %v1495
        %v1560 = vadd.f32 %v1174, %v1496
        %v1561 = vadd.f32 %v1175, %v1497
        %v1562 = vadd.f32 %v1176, %v1498
        %v1563 = vadd.f32 %v1177, %v1499
        %v1564 = vadd.f32 %v1178, %v1500
        %v1565 = vadd.f32 %v1179, %v1501
        %v1566 = vadd.f32 %v1180, %v1502
        %v1567 = vadd.f32 %v1181, %v1503
        %v1568 = vadd.f32 %v1182, %v1504
        %v1569 = vadd.f32 %v1183, %v1505
        %v1570 = vadd.f32 %v1184, %v1506
        %v1571 = vadd.f32 %v1185, %v1507
        %v1572 = vadd.f32 %v1186, %v1508
        %v1573 = vadd.f32 %v1187, %v1509
        %v1574 = vadd.f32 %v1188, %v1510
        %v1575 = vadd.f32 %v1189, %v1511
        %v1576 = vadd.f32 %v1190, %v1512
        %v1577 = vadd.f32 %v1191, %v1513
        %v1578 = vadd.f32 %v1192, %v1514
        %v1579 = vadd.f32 %v1193, %v1515
        %v1580 = vadd.f32 %v1194, %v1516
        %v1581 = vadd.f32 %v1195, %v1517
        %v1582 = vadd.f32 %v1196, %v1518
        %v1583 = vadd.f32 %v1197, %v1519
        %v1584 = vadd.f32 %v1198, %v1520
        %v1585 = vadd.f32 %v1199, %v1521
        %v1586 = vadd.f32 %v1200, %v1522
        %v1587 = vadd.f32 %v1201, %v1523
        %v1588 = vadd.f32 %v1202, %v1524
        %v1589 = vadd.f32 %v1203, %v1525
        %v1590 = vadd.f32 %v1204, %v1526
        %v1591 = vadd.f32 %v1205, %v1527
        %v1592 = vadd.f32 %v1206, %v1528
        %v1593 = vld [vmem:[%s2] sm:$0x1]
        %v1595 = vperm.slane %v1593, 0
        %v1597 = vadd.f32 %v1529, %v1595
        %v1598 = vadd.f32 %v1530, %v1595
        %v1599 = vadd.f32 %v1531, %v1595
        %v1600 = vadd.f32 %v1532, %v1595
        %v1601 = vadd.f32 %v1533, %v1595
        %v1602 = vadd.f32 %v1534, %v1595
        %v1603 = vadd.f32 %v1535, %v1595
        %v1604 = vadd.f32 %v1536, %v1595
        %v1605 = vadd.f32 %v1537, %v1595
        %v1606 = vadd.f32 %v1538, %v1595
        %v1607 = vadd.f32 %v1539, %v1595
        %v1608 = vadd.f32 %v1540, %v1595
        %v1609 = vadd.f32 %v1541, %v1595
        %v1610 = vadd.f32 %v1542, %v1595
        %v1611 = vadd.f32 %v1543, %v1595
        %v1612 = vadd.f32 %v1544, %v1595
        %v1613 = vadd.f32 %v1545, %v1595
        %v1614 = vadd.f32 %v1546, %v1595
        %v1615 = vadd.f32 %v1547, %v1595
        %v1616 = vadd.f32 %v1548, %v1595
        %v1617 = vadd.f32 %v1549, %v1595
        %v1618 = vadd.f32 %v1550, %v1595
        %v1619 = vadd.f32 %v1551, %v1595
        %v1620 = vadd.f32 %v1552, %v1595
        %v1621 = vadd.f32 %v1553, %v1595
        %v1622 = vadd.f32 %v1554, %v1595
        %v1623 = vadd.f32 %v1555, %v1595
        %v1624 = vadd.f32 %v1556, %v1595
        %v1625 = vadd.f32 %v1557, %v1595
        %v1626 = vadd.f32 %v1558, %v1595
        %v1627 = vadd.f32 %v1559, %v1595
        %v1628 = vadd.f32 %v1560, %v1595
        %v1629 = vadd.f32 %v1561, %v1595
        %v1630 = vadd.f32 %v1562, %v1595
        %v1631 = vadd.f32 %v1563, %v1595
        %v1632 = vadd.f32 %v1564, %v1595
        %v1633 = vadd.f32 %v1565, %v1595
        %v1634 = vadd.f32 %v1566, %v1595
        %v1635 = vadd.f32 %v1567, %v1595
        %v1636 = vadd.f32 %v1568, %v1595
        %v1637 = vadd.f32 %v1569, %v1595
        %v1638 = vadd.f32 %v1570, %v1595
        %v1639 = vadd.f32 %v1571, %v1595
        %v1640 = vadd.f32 %v1572, %v1595
        %v1641 = vadd.f32 %v1573, %v1595
        %v1642 = vadd.f32 %v1574, %v1595
        %v1643 = vadd.f32 %v1575, %v1595
        %v1644 = vadd.f32 %v1576, %v1595
        %v1645 = vadd.f32 %v1577, %v1595
        %v1646 = vadd.f32 %v1578, %v1595
        %v1647 = vadd.f32 %v1579, %v1595
        %v1648 = vadd.f32 %v1580, %v1595
        %v1649 = vadd.f32 %v1581, %v1595
        %v1650 = vadd.f32 %v1582, %v1595
        %v1651 = vadd.f32 %v1583, %v1595
        %v1652 = vadd.f32 %v1584, %v1595
        %v1653 = vadd.f32 %v1585, %v1595
        %v1654 = vadd.f32 %v1586, %v1595
        %v1655 = vadd.f32 %v1587, %v1595
        %v1656 = vadd.f32 %v1588, %v1595
        %v1657 = vadd.f32 %v1589, %v1595
        %v1658 = vadd.f32 %v1590, %v1595
        %v1659 = vadd.f32 %v1591, %v1595
        %v1660 = vadd.f32 %v1592, %v1595
        %v1661 = vmax.f32 %v1597, 0.0
        %v1662 = vmax.f32 %v1598, 0.0
        %v1663 = vmax.f32 %v1599, 0.0
        %v1664 = vmax.f32 %v1600, 0.0
        %v1665 = vmax.f32 %v1601, 0.0
        %v1666 = vmax.f32 %v1602, 0.0
        %v1667 = vmax.f32 %v1603, 0.0
        %v1668 = vmax.f32 %v1604, 0.0
        %v1669 = vmax.f32 %v1605, 0.0
        %v1670 = vmax.f32 %v1606, 0.0
        %v1671 = vmax.f32 %v1607, 0.0
        %v1672 = vmax.f32 %v1608, 0.0
        %v1673 = vmax.f32 %v1609, 0.0
        %v1674 = vmax.f32 %v1610, 0.0
        %v1675 = vmax.f32 %v1611, 0.0
        %v1676 = vmax.f32 %v1612, 0.0
        %v1677 = vmax.f32 %v1613, 0.0
        %v1678 = vmax.f32 %v1614, 0.0
        %v1679 = vmax.f32 %v1615, 0.0
        %v1680 = vmax.f32 %v1616, 0.0
        %v1681 = vmax.f32 %v1617, 0.0
        %v1682 = vmax.f32 %v1618, 0.0
        %v1683 = vmax.f32 %v1619, 0.0
        %v1684 = vmax.f32 %v1620, 0.0
        %v1685 = vmax.f32 %v1621, 0.0
        %v1686 = vmax.f32 %v1622, 0.0
        %v1687 = vmax.f32 %v1623, 0.0
        %v1688 = vmax.f32 %v1624, 0.0
        %v1689 = vmax.f32 %v1625, 0.0
        %v1690 = vmax.f32 %v1626, 0.0
        %v1691 = vmax.f32 %v1627, 0.0
        %v1692 = vmax.f32 %v1628, 0.0
        %v1693 = vmax.f32 %v1629, 0.0
        %v1694 = vmax.f32 %v1630, 0.0
        %v1695 = vmax.f32 %v1631, 0.0
        %v1696 = vmax.f32 %v1632, 0.0
        %v1697 = vmax.f32 %v1633, 0.0
        %v1698 = vmax.f32 %v1634, 0.0
        %v1699 = vmax.f32 %v1635, 0.0
        %v1700 = vmax.f32 %v1636, 0.0
        %v1701 = vmax.f32 %v1637, 0.0
        %v1702 = vmax.f32 %v1638, 0.0
        %v1703 = vmax.f32 %v1639, 0.0
        %v1704 = vmax.f32 %v1640, 0.0
        %v1705 = vmax.f32 %v1641, 0.0
        %v1706 = vmax.f32 %v1642, 0.0
        %v1707 = vmax.f32 %v1643, 0.0
        %v1708 = vmax.f32 %v1644, 0.0
        %v1709 = vmax.f32 %v1645, 0.0
        %v1710 = vmax.f32 %v1646, 0.0
        %v1711 = vmax.f32 %v1647, 0.0
        %v1712 = vmax.f32 %v1648, 0.0
        %v1713 = vmax.f32 %v1649, 0.0
        %v1714 = vmax.f32 %v1650, 0.0
        %v1715 = vmax.f32 %v1651, 0.0
        %v1716 = vmax.f32 %v1652, 0.0
        %v1717 = vmax.f32 %v1653, 0.0
        %v1718 = vmax.f32 %v1654, 0.0
        %v1719 = vmax.f32 %v1655, 0.0
        %v1720 = vmax.f32 %v1656, 0.0
        %v1721 = vmax.f32 %v1657, 0.0
        %v1722 = vmax.f32 %v1658, 0.0
        %v1723 = vmax.f32 %v1659, 0.0
        %v1724 = vmax.f32 %v1660, 0.0
        %v1725 = vpack.c.bf16 %v1662, %v1661
        %v1726 = vpack.c.bf16 %v1664, %v1663
        %v1727 = vpack.c.bf16 %v1666, %v1665
        %v1728 = vpack.c.bf16 %v1668, %v1667
        %v1729 = vpack.c.bf16 %v1670, %v1669
        %v1730 = vpack.c.bf16 %v1672, %v1671
        %v1731 = vpack.c.bf16 %v1674, %v1673
        %v1732 = vpack.c.bf16 %v1676, %v1675
        %v1733 = vpack.c.bf16 %v1678, %v1677
        %v1734 = vpack.c.bf16 %v1680, %v1679
        %v1735 = vpack.c.bf16 %v1682, %v1681
        %v1736 = vpack.c.bf16 %v1684, %v1683
        %v1737 = vpack.c.bf16 %v1686, %v1685
        %v1738 = vpack.c.bf16 %v1688, %v1687
        %v1739 = vpack.c.bf16 %v1690, %v1689
        %v1740 = vpack.c.bf16 %v1692, %v1691
        %v1741 = vpack.c.bf16 %v1694, %v1693
        %v1742 = vpack.c.bf16 %v1696, %v1695
        %v1743 = vpack.c.bf16 %v1698, %v1697
        %v1744 = vpack.c.bf16 %v1700, %v1699
        %v1745 = vpack.c.bf16 %v1702, %v1701
        %v1746 = vpack.c.bf16 %v1704, %v1703
        %v1747 = vpack.c.bf16 %v1706, %v1705
        %v1748 = vpack.c.bf16 %v1708, %v1707
        %v1749 = vpack.c.bf16 %v1710, %v1709
        %v1750 = vpack.c.bf16 %v1712, %v1711
        %v1751 = vpack.c.bf16 %v1714, %v1713
        %v1752 = vpack.c.bf16 %v1716, %v1715
        %v1753 = vpack.c.bf16 %v1718, %v1717
        %v1754 = vpack.c.bf16 %v1720, %v1719
        %v1755 = vpack.c.bf16 %v1722, %v1721
        %v1756 = vpack.c.bf16 %v1724, %v1723
        %v1757 = vld [vmem:[#allocation2] sm:$0xff]
        %v1758 = vld [vmem:[#allocation2 + $0x8] sm:$0xff]
        %v1759 = vld [vmem:[#allocation2 + $0x10] sm:$0xff]
        %v1760 = vld [vmem:[#allocation2 + $0x18] sm:$0xff]
        %v1761 = vld [vmem:[#allocation2 + $0x20] sm:$0xff]
        %v1762 = vld [vmem:[#allocation2 + $0x28] sm:$0xff]
        %v1763 = vld [vmem:[#allocation2 + $0x30] sm:$0xff]
        %v1764 = vld [vmem:[#allocation2 + $0x38] sm:$0xff]
        %v1765 = vld [vmem:[#allocation2 + $0x40] sm:$0xff]
        %v1766 = vld [vmem:[#allocation2 + $0x48] sm:$0xff]
        %v1767 = vld [vmem:[#allocation2 + $0x50] sm:$0xff]
        %v1768 = vld [vmem:[#allocation2 + $0x58] sm:$0xff]
        %v1769 = vld [vmem:[#allocation2 + $0x60] sm:$0xff]
        %v1770 = vld [vmem:[#allocation2 + $0x68] sm:$0xff]
        %v1771 = vld [vmem:[#allocation2 + $0x70] sm:$0xff]
        %v1772 = vld [vmem:[#allocation2 + $0x78] sm:$0xff]
        %v1789 = vunpack.c.l.b16 %v1757
        %v1790 = vunpack.c.h.b16 %v1757
        %v1791 = vunpack.c.l.b16 %v1758
        %v1792 = vunpack.c.h.b16 %v1758
        %v1793 = vunpack.c.l.b16 %v1759
        %v1794 = vunpack.c.h.b16 %v1759
        %v1795 = vunpack.c.l.b16 %v1760
        %v1796 = vunpack.c.h.b16 %v1760
        %v1797 = vunpack.c.l.b16 %v1761
        %v1798 = vunpack.c.h.b16 %v1761
        %v1799 = vunpack.c.l.b16 %v1762
        %v1800 = vunpack.c.h.b16 %v1762
        %v1801 = vunpack.c.l.b16 %v1763
        %v1802 = vunpack.c.h.b16 %v1763
        %v1803 = vunpack.c.l.b16 %v1764
        %v1804 = vunpack.c.h.b16 %v1764
        %v1805 = vunpack.c.l.b16 %v1765
        %v1806 = vunpack.c.h.b16 %v1765
        %v1807 = vunpack.c.l.b16 %v1766
        %v1808 = vunpack.c.h.b16 %v1766
        %v1809 = vunpack.c.l.b16 %v1767
        %v1810 = vunpack.c.h.b16 %v1767
        %v1811 = vunpack.c.l.b16 %v1768
        %v1812 = vunpack.c.h.b16 %v1768
        %v1813 = vunpack.c.l.b16 %v1769
        %v1814 = vunpack.c.h.b16 %v1769
        %v1815 = vunpack.c.l.b16 %v1770
        %v1816 = vunpack.c.h.b16 %v1770
        %v1817 = vunpack.c.l.b16 %v1771
        %v1818 = vunpack.c.h.b16 %v1771
        %v1819 = vunpack.c.l.b16 %v1772
        %v1820 = vunpack.c.h.b16 %v1772
        %v1821 = vpack.c.b16 %v1791, %v1789
        %v1822 = vpack.c.b16 %v1792, %v1790
        %v1823 = vpack.c.b16 %v1795, %v1793
        %v1824 = vpack.c.b16 %v1796, %v1794
        %v1825 = vpack.c.b16 %v1799, %v1797
        %v1826 = vpack.c.b16 %v1800, %v1798
        %v1827 = vpack.c.b16 %v1803, %v1801
        %v1828 = vpack.c.b16 %v1804, %v1802
        %v1829 = vpack.c.b16 %v1807, %v1805
        %v1830 = vpack.c.b16 %v1808, %v1806
        %v1831 = vpack.c.b16 %v1811, %v1809
        %v1832 = vpack.c.b16 %v1812, %v1810
        %v1833 = vpack.c.b16 %v1815, %v1813
        %v1834 = vpack.c.b16 %v1816, %v1814
        %v1835 = vpack.c.b16 %v1819, %v1817
        %v1836 = vpack.c.b16 %v1820, %v1818
        %1853 = vmatpush.bf16.msra.mxu0 %v1835
        %1854 = vmatpush.bf16.msra.mxu0 %v1833
        %1855 = vmatpush.bf16.msra.mxu0 %v1831
        %1856 = vmatpush.bf16.msra.mxu0 %v1829
        %1857 = vmatpush.bf16.msra.mxu0 %v1827
        %1858 = vmatpush.bf16.msra.mxu0 %v1825
        %1859 = vmatpush.bf16.msra.mxu0 %v1823
        %1860 = vmatpush.bf16.msra.mxu0 %v1821
        %1861 = vmatmul.bf16.gmra.mxu0 %v1725
        %v1862 = vpop.f32.mrf.mxu0
        %v1863 = vadd.f32 0.0, %v1862
        %v1864 = vpop.f32.mrf.mxu0
        %v1865 = vadd.f32 0.0, %v1864
        %1866 = vmatmul.bf16.gmra.mxu0 %v1726
        %v1867 = vpop.f32.mrf.mxu0
        %v1868 = vadd.f32 0.0, %v1867
        %v1869 = vpop.f32.mrf.mxu0
        %v1870 = vadd.f32 0.0, %v1869
        %1871 = vmatmul.bf16.gmra.mxu0 %v1727
        %v1872 = vpop.f32.mrf.mxu0
        %v1873 = vadd.f32 0.0, %v1872
        %v1874 = vpop.f32.mrf.mxu0
        %v1875 = vadd.f32 0.0, %v1874
        %1876 = vmatmul.bf16.gmra.mxu0 %v1728
        %v1877 = vpop.f32.mrf.mxu0
        %v1878 = vadd.f32 0.0, %v1877
        %v1879 = vpop.f32.mrf.mxu0
        %v1880 = vadd.f32 0.0, %v1879
        %1881 = vmatmul.bf16.gmra.mxu0 %v1729
        %v1882 = vpop.f32.mrf.mxu0
        %v1883 = vadd.f32 0.0, %v1882
        %v1884 = vpop.f32.mrf.mxu0
        %v1885 = vadd.f32 0.0, %v1884
        %1886 = vmatmul.bf16.gmra.mxu0 %v1730
        %v1887 = vpop.f32.mrf.mxu0
        %v1888 = vadd.f32 0.0, %v1887
        %v1889 = vpop.f32.mrf.mxu0
        %v1890 = vadd.f32 0.0, %v1889
        %1891 = vmatmul.bf16.gmra.mxu0 %v1731
        %v1892 = vpop.f32.mrf.mxu0
        %v1893 = vadd.f32 0.0, %v1892
        %v1894 = vpop.f32.mrf.mxu0
        %v1895 = vadd.f32 0.0, %v1894
        %1896 = vmatmul.bf16.gmra.mxu0 %v1732
        %v1897 = vpop.f32.mrf.mxu0
        %v1898 = vadd.f32 0.0, %v1897
        %v1899 = vpop.f32.mrf.mxu0
        %v1900 = vadd.f32 0.0, %v1899
        %1901 = vmatmul.bf16.gmra.mxu0 %v1733
        %v1902 = vpop.f32.mrf.mxu0
        %v1903 = vadd.f32 0.0, %v1902
        %v1904 = vpop.f32.mrf.mxu0
        %v1905 = vadd.f32 0.0, %v1904
        %1906 = vmatmul.bf16.gmra.mxu0 %v1734
        %v1907 = vpop.f32.mrf.mxu0
        %v1908 = vadd.f32 0.0, %v1907
        %v1909 = vpop.f32.mrf.mxu0
        %v1910 = vadd.f32 0.0, %v1909
        %1911 = vmatmul.bf16.gmra.mxu0 %v1735
        %v1912 = vpop.f32.mrf.mxu0
        %v1913 = vadd.f32 0.0, %v1912
        %v1914 = vpop.f32.mrf.mxu0
        %v1915 = vadd.f32 0.0, %v1914
        %1916 = vmatmul.bf16.gmra.mxu0 %v1736
        %v1917 = vpop.f32.mrf.mxu0
        %v1918 = vadd.f32 0.0, %v1917
        %v1919 = vpop.f32.mrf.mxu0
        %v1920 = vadd.f32 0.0, %v1919
        %1921 = vmatmul.bf16.gmra.mxu0 %v1737
        %v1922 = vpop.f32.mrf.mxu0
        %v1923 = vadd.f32 0.0, %v1922
        %v1924 = vpop.f32.mrf.mxu0
        %v1925 = vadd.f32 0.0, %v1924
        %1926 = vmatmul.bf16.gmra.mxu0 %v1738
        %v1927 = vpop.f32.mrf.mxu0
        %v1928 = vadd.f32 0.0, %v1927
        %v1929 = vpop.f32.mrf.mxu0
        %v1930 = vadd.f32 0.0, %v1929
        %1931 = vmatmul.bf16.gmra.mxu0 %v1739
        %v1932 = vpop.f32.mrf.mxu0
        %v1933 = vadd.f32 0.0, %v1932
        %v1934 = vpop.f32.mrf.mxu0
        %v1935 = vadd.f32 0.0, %v1934
        %1936 = vmatmul.bf16.gmra.mxu0 %v1740
        %v1937 = vpop.f32.mrf.mxu0
        %v1938 = vadd.f32 0.0, %v1937
        %v1939 = vpop.f32.mrf.mxu0
        %v1940 = vadd.f32 0.0, %v1939
        %1941 = vmatmul.bf16.gmra.mxu0 %v1741
        %v1942 = vpop.f32.mrf.mxu0
        %v1943 = vadd.f32 0.0, %v1942
        %v1944 = vpop.f32.mrf.mxu0
        %v1945 = vadd.f32 0.0, %v1944
        %1946 = vmatmul.bf16.gmra.mxu0 %v1742
        %v1947 = vpop.f32.mrf.mxu0
        %v1948 = vadd.f32 0.0, %v1947
        %v1949 = vpop.f32.mrf.mxu0
        %v1950 = vadd.f32 0.0, %v1949
        %1951 = vmatmul.bf16.gmra.mxu0 %v1743
        %v1952 = vpop.f32.mrf.mxu0
        %v1953 = vadd.f32 0.0, %v1952
        %v1954 = vpop.f32.mrf.mxu0
        %v1955 = vadd.f32 0.0, %v1954
        %1956 = vmatmul.bf16.gmra.mxu0 %v1744
        %v1957 = vpop.f32.mrf.mxu0
        %v1958 = vadd.f32 0.0, %v1957
        %v1959 = vpop.f32.mrf.mxu0
        %v1960 = vadd.f32 0.0, %v1959
        %1961 = vmatmul.bf16.gmra.mxu0 %v1745
        %v1962 = vpop.f32.mrf.mxu0
        %v1963 = vadd.f32 0.0, %v1962
        %v1964 = vpop.f32.mrf.mxu0
        %v1965 = vadd.f32 0.0, %v1964
        %1966 = vmatmul.bf16.gmra.mxu0 %v1746
        %v1967 = vpop.f32.mrf.mxu0
        %v1968 = vadd.f32 0.0, %v1967
        %v1969 = vpop.f32.mrf.mxu0
        %v1970 = vadd.f32 0.0, %v1969
        %1971 = vmatmul.bf16.gmra.mxu0 %v1747
        %v1972 = vpop.f32.mrf.mxu0
        %v1973 = vadd.f32 0.0, %v1972
        %v1974 = vpop.f32.mrf.mxu0
        %v1975 = vadd.f32 0.0, %v1974
        %1976 = vmatmul.bf16.gmra.mxu0 %v1748
        %v1977 = vpop.f32.mrf.mxu0
        %v1978 = vadd.f32 0.0, %v1977
        %v1979 = vpop.f32.mrf.mxu0
        %v1980 = vadd.f32 0.0, %v1979
        %1981 = vmatmul.bf16.gmra.mxu0 %v1749
        %v1982 = vpop.f32.mrf.mxu0
        %v1983 = vadd.f32 0.0, %v1982
        %v1984 = vpop.f32.mrf.mxu0
        %v1985 = vadd.f32 0.0, %v1984
        %1986 = vmatmul.bf16.gmra.mxu0 %v1750
        %v1987 = vpop.f32.mrf.mxu0
        %v1988 = vadd.f32 0.0, %v1987
        %v1989 = vpop.f32.mrf.mxu0
        %v1990 = vadd.f32 0.0, %v1989
        %1991 = vmatmul.bf16.gmra.mxu0 %v1751
        %v1992 = vpop.f32.mrf.mxu0
        %v1993 = vadd.f32 0.0, %v1992
        %v1994 = vpop.f32.mrf.mxu0
        %v1995 = vadd.f32 0.0, %v1994
        %1996 = vmatmul.bf16.gmra.mxu0 %v1752
        %v1997 = vpop.f32.mrf.mxu0
        %v1998 = vadd.f32 0.0, %v1997
        %v1999 = vpop.f32.mrf.mxu0
        %v2000 = vadd.f32 0.0, %v1999
        %2001 = vmatmul.bf16.gmra.mxu0 %v1753
        %v2002 = vpop.f32.mrf.mxu0
        %v2003 = vadd.f32 0.0, %v2002
        %v2004 = vpop.f32.mrf.mxu0
        %v2005 = vadd.f32 0.0, %v2004
        %2006 = vmatmul.bf16.gmra.mxu0 %v1754
        %v2007 = vpop.f32.mrf.mxu0
        %v2008 = vadd.f32 0.0, %v2007
        %v2009 = vpop.f32.mrf.mxu0
        %v2010 = vadd.f32 0.0, %v2009
        %2011 = vmatmul.bf16.gmra.mxu0 %v1755
        %v2012 = vpop.f32.mrf.mxu0
        %v2013 = vadd.f32 0.0, %v2012
        %v2014 = vpop.f32.mrf.mxu0
        %v2015 = vadd.f32 0.0, %v2014
        %2016 = vmatmul.bf16.gmra.mxu0 %v1756
        %v2017 = vpop.f32.mrf.mxu0
        %v2018 = vadd.f32 0.0, %v2017
        %v2019 = vpop.f32.mrf.mxu0
        %v2020 = vadd.f32 0.0, %v2019
        %2021 = vdwg.mxu0
        %2022 = vmatpush.bf16.msra.mxu0 %v1836
        %2023 = vmatpush.bf16.msra.mxu0 %v1834
        %2024 = vmatpush.bf16.msra.mxu0 %v1832
        %2025 = vmatpush.bf16.msra.mxu0 %v1830
        %2026 = vmatpush.bf16.msra.mxu0 %v1828
        %2027 = vmatpush.bf16.msra.mxu0 %v1826
        %2028 = vmatpush.bf16.msra.mxu0 %v1824
        %2029 = vmatpush.bf16.msra.mxu0 %v1822
        %2030 = vmatmul.bf16.gmra.mxu0 %v1725
        %v2031 = vpop.f32.mrf.mxu0
        %v2032 = vadd.f32 0.0, %v2031
        %v2033 = vpop.f32.mrf.mxu0
        %v2034 = vadd.f32 0.0, %v2033
        %2035 = vmatmul.bf16.gmra.mxu0 %v1726
        %v2036 = vpop.f32.mrf.mxu0
        %v2037 = vadd.f32 0.0, %v2036
        %v2038 = vpop.f32.mrf.mxu0
        %v2039 = vadd.f32 0.0, %v2038
        %2040 = vmatmul.bf16.gmra.mxu0 %v1727
        %v2041 = vpop.f32.mrf.mxu0
        %v2042 = vadd.f32 0.0, %v2041
        %v2043 = vpop.f32.mrf.mxu0
        %v2044 = vadd.f32 0.0, %v2043
        %2045 = vmatmul.bf16.gmra.mxu0 %v1728
        %v2046 = vpop.f32.mrf.mxu0
        %v2047 = vadd.f32 0.0, %v2046
        %v2048 = vpop.f32.mrf.mxu0
        %v2049 = vadd.f32 0.0, %v2048
        %2050 = vmatmul.bf16.gmra.mxu0 %v1729
        %v2051 = vpop.f32.mrf.mxu0
        %v2052 = vadd.f32 0.0, %v2051
        %v2053 = vpop.f32.mrf.mxu0
        %v2054 = vadd.f32 0.0, %v2053
        %2055 = vmatmul.bf16.gmra.mxu0 %v1730
        %v2056 = vpop.f32.mrf.mxu0
        %v2057 = vadd.f32 0.0, %v2056
        %v2058 = vpop.f32.mrf.mxu0
        %v2059 = vadd.f32 0.0, %v2058
        %2060 = vmatmul.bf16.gmra.mxu0 %v1731
        %v2061 = vpop.f32.mrf.mxu0
        %v2062 = vadd.f32 0.0, %v2061
        %v2063 = vpop.f32.mrf.mxu0
        %v2064 = vadd.f32 0.0, %v2063
        %2065 = vmatmul.bf16.gmra.mxu0 %v1732
        %v2066 = vpop.f32.mrf.mxu0
        %v2067 = vadd.f32 0.0, %v2066
        %v2068 = vpop.f32.mrf.mxu0
        %v2069 = vadd.f32 0.0, %v2068
        %2070 = vmatmul.bf16.gmra.mxu0 %v1733
        %v2071 = vpop.f32.mrf.mxu0
        %v2072 = vadd.f32 0.0, %v2071
        %v2073 = vpop.f32.mrf.mxu0
        %v2074 = vadd.f32 0.0, %v2073
        %2075 = vmatmul.bf16.gmra.mxu0 %v1734
        %v2076 = vpop.f32.mrf.mxu0
        %v2077 = vadd.f32 0.0, %v2076
        %v2078 = vpop.f32.mrf.mxu0
        %v2079 = vadd.f32 0.0, %v2078
        %2080 = vmatmul.bf16.gmra.mxu0 %v1735
        %v2081 = vpop.f32.mrf.mxu0
        %v2082 = vadd.f32 0.0, %v2081
        %v2083 = vpop.f32.mrf.mxu0
        %v2084 = vadd.f32 0.0, %v2083
        %2085 = vmatmul.bf16.gmra.mxu0 %v1736
        %v2086 = vpop.f32.mrf.mxu0
        %v2087 = vadd.f32 0.0, %v2086
        %v2088 = vpop.f32.mrf.mxu0
        %v2089 = vadd.f32 0.0, %v2088
        %2090 = vmatmul.bf16.gmra.mxu0 %v1737
        %v2091 = vpop.f32.mrf.mxu0
        %v2092 = vadd.f32 0.0, %v2091
        %v2093 = vpop.f32.mrf.mxu0
        %v2094 = vadd.f32 0.0, %v2093
        %2095 = vmatmul.bf16.gmra.mxu0 %v1738
        %v2096 = vpop.f32.mrf.mxu0
        %v2097 = vadd.f32 0.0, %v2096
        %v2098 = vpop.f32.mrf.mxu0
        %v2099 = vadd.f32 0.0, %v2098
        %2100 = vmatmul.bf16.gmra.mxu0 %v1739
        %v2101 = vpop.f32.mrf.mxu0
        %v2102 = vadd.f32 0.0, %v2101
        %v2103 = vpop.f32.mrf.mxu0
        %v2104 = vadd.f32 0.0, %v2103
        %2105 = vmatmul.bf16.gmra.mxu0 %v1740
        %v2106 = vpop.f32.mrf.mxu0
        %v2107 = vadd.f32 0.0, %v2106
        %v2108 = vpop.f32.mrf.mxu0
        %v2109 = vadd.f32 0.0, %v2108
        %2110 = vmatmul.bf16.gmra.mxu0 %v1741
        %v2111 = vpop.f32.mrf.mxu0
        %v2112 = vadd.f32 0.0, %v2111
        %v2113 = vpop.f32.mrf.mxu0
        %v2114 = vadd.f32 0.0, %v2113
        %2115 = vmatmul.bf16.gmra.mxu0 %v1742
        %v2116 = vpop.f32.mrf.mxu0
        %v2117 = vadd.f32 0.0, %v2116
        %v2118 = vpop.f32.mrf.mxu0
        %v2119 = vadd.f32 0.0, %v2118
        %2120 = vmatmul.bf16.gmra.mxu0 %v1743
        %v2121 = vpop.f32.mrf.mxu0
        %v2122 = vadd.f32 0.0, %v2121
        %v2123 = vpop.f32.mrf.mxu0
        %v2124 = vadd.f32 0.0, %v2123
        %2125 = vmatmul.bf16.gmra.mxu0 %v1744
        %v2126 = vpop.f32.mrf.mxu0
        %v2127 = vadd.f32 0.0, %v2126
        %v2128 = vpop.f32.mrf.mxu0
        %v2129 = vadd.f32 0.0, %v2128
        %2130 = vmatmul.bf16.gmra.mxu0 %v1745
        %v2131 = vpop.f32.mrf.mxu0
        %v2132 = vadd.f32 0.0, %v2131
        %v2133 = vpop.f32.mrf.mxu0
        %v2134 = vadd.f32 0.0, %v2133
        %2135 = vmatmul.bf16.gmra.mxu0 %v1746
        %v2136 = vpop.f32.mrf.mxu0
        %v2137 = vadd.f32 0.0, %v2136
        %v2138 = vpop.f32.mrf.mxu0
        %v2139 = vadd.f32 0.0, %v2138
        %2140 = vmatmul.bf16.gmra.mxu0 %v1747
        %v2141 = vpop.f32.mrf.mxu0
        %v2142 = vadd.f32 0.0, %v2141
        %v2143 = vpop.f32.mrf.mxu0
        %v2144 = vadd.f32 0.0, %v2143
        %2145 = vmatmul.bf16.gmra.mxu0 %v1748
        %v2146 = vpop.f32.mrf.mxu0
        %v2147 = vadd.f32 0.0, %v2146
        %v2148 = vpop.f32.mrf.mxu0
        %v2149 = vadd.f32 0.0, %v2148
        %2150 = vmatmul.bf16.gmra.mxu0 %v1749
        %v2151 = vpop.f32.mrf.mxu0
        %v2152 = vadd.f32 0.0, %v2151
        %v2153 = vpop.f32.mrf.mxu0
        %v2154 = vadd.f32 0.0, %v2153
        %2155 = vmatmul.bf16.gmra.mxu0 %v1750
        %v2156 = vpop.f32.mrf.mxu0
        %v2157 = vadd.f32 0.0, %v2156
        %v2158 = vpop.f32.mrf.mxu0
        %v2159 = vadd.f32 0.0, %v2158
        %2160 = vmatmul.bf16.gmra.mxu0 %v1751
        %v2161 = vpop.f32.mrf.mxu0
        %v2162 = vadd.f32 0.0, %v2161
        %v2163 = vpop.f32.mrf.mxu0
        %v2164 = vadd.f32 0.0, %v2163
        %2165 = vmatmul.bf16.gmra.mxu0 %v1752
        %v2166 = vpop.f32.mrf.mxu0
        %v2167 = vadd.f32 0.0, %v2166
        %v2168 = vpop.f32.mrf.mxu0
        %v2169 = vadd.f32 0.0, %v2168
        %2170 = vmatmul.bf16.gmra.mxu0 %v1753
        %v2171 = vpop.f32.mrf.mxu0
        %v2172 = vadd.f32 0.0, %v2171
        %v2173 = vpop.f32.mrf.mxu0
        %v2174 = vadd.f32 0.0, %v2173
        %2175 = vmatmul.bf16.gmra.mxu0 %v1754
        %v2176 = vpop.f32.mrf.mxu0
        %v2177 = vadd.f32 0.0, %v2176
        %v2178 = vpop.f32.mrf.mxu0
        %v2179 = vadd.f32 0.0, %v2178
        %2180 = vmatmul.bf16.gmra.mxu0 %v1755
        %v2181 = vpop.f32.mrf.mxu0
        %v2182 = vadd.f32 0.0, %v2181
        %v2183 = vpop.f32.mrf.mxu0
        %v2184 = vadd.f32 0.0, %v2183
        %2185 = vmatmul.bf16.gmra.mxu0 %v1756
        %v2186 = vpop.f32.mrf.mxu0
        %v2187 = vadd.f32 0.0, %v2186
        %v2188 = vpop.f32.mrf.mxu0
        %v2189 = vadd.f32 0.0, %v2188
        %2190 = vdwg.mxu0
        %v2191 = vpack.c.bf16 %v2032, %v1863
        %v2192 = vpack.c.bf16 %v2034, %v1865
        %v2193 = vpack.c.bf16 %v2037, %v1868
        %v2194 = vpack.c.bf16 %v2039, %v1870
        %v2195 = vpack.c.bf16 %v2042, %v1873
        %v2196 = vpack.c.bf16 %v2044, %v1875
        %v2197 = vpack.c.bf16 %v2047, %v1878
        %v2198 = vpack.c.bf16 %v2049, %v1880
        %v2199 = vpack.c.bf16 %v2052, %v1883
        %v2200 = vpack.c.bf16 %v2054, %v1885
        %v2201 = vpack.c.bf16 %v2057, %v1888
        %v2202 = vpack.c.bf16 %v2059, %v1890
        %v2203 = vpack.c.bf16 %v2062, %v1893
        %v2204 = vpack.c.bf16 %v2064, %v1895
        %v2205 = vpack.c.bf16 %v2067, %v1898
        %v2206 = vpack.c.bf16 %v2069, %v1900
        %v2207 = vpack.c.bf16 %v2072, %v1903
        %v2208 = vpack.c.bf16 %v2074, %v1905
        %v2209 = vpack.c.bf16 %v2077, %v1908
        %v2210 = vpack.c.bf16 %v2079, %v1910
        %v2211 = vpack.c.bf16 %v2082, %v1913
        %v2212 = vpack.c.bf16 %v2084, %v1915
        %v2213 = vpack.c.bf16 %v2087, %v1918
        %v2214 = vpack.c.bf16 %v2089, %v1920
        %v2215 = vpack.c.bf16 %v2092, %v1923
        %v2216 = vpack.c.bf16 %v2094, %v1925
        %v2217 = vpack.c.bf16 %v2097, %v1928
        %v2218 = vpack.c.bf16 %v2099, %v1930
        %v2219 = vpack.c.bf16 %v2102, %v1933
        %v2220 = vpack.c.bf16 %v2104, %v1935
        %v2221 = vpack.c.bf16 %v2107, %v1938
        %v2222 = vpack.c.bf16 %v2109, %v1940
        %v2223 = vpack.c.bf16 %v2112, %v1943
        %v2224 = vpack.c.bf16 %v2114, %v1945
        %v2225 = vpack.c.bf16 %v2117, %v1948
        %v2226 = vpack.c.bf16 %v2119, %v1950
        %v2227 = vpack.c.bf16 %v2122, %v1953
        %v2228 = vpack.c.bf16 %v2124, %v1955
        %v2229 = vpack.c.bf16 %v2127, %v1958
        %v2230 = vpack.c.bf16 %v2129, %v1960
        %v2231 = vpack.c.bf16 %v2132, %v1963
        %v2232 = vpack.c.bf16 %v2134, %v1965
        %v2233 = vpack.c.bf16 %v2137, %v1968
        %v2234 = vpack.c.bf16 %v2139, %v1970
        %v2235 = vpack.c.bf16 %v2142, %v1973
        %v2236 = vpack.c.bf16 %v2144, %v1975
        %v2237 = vpack.c.bf16 %v2147, %v1978
        %v2238 = vpack.c.bf16 %v2149, %v1980
        %v2239 = vpack.c.bf16 %v2152, %v1983
        %v2240 = vpack.c.bf16 %v2154, %v1985
        %v2241 = vpack.c.bf16 %v2157, %v1988
        %v2242 = vpack.c.bf16 %v2159, %v1990
        %v2243 = vpack.c.bf16 %v2162, %v1993
        %v2244 = vpack.c.bf16 %v2164, %v1995
        %v2245 = vpack.c.bf16 %v2167, %v1998
        %v2246 = vpack.c.bf16 %v2169, %v2000
        %v2247 = vpack.c.bf16 %v2172, %v2003
        %v2248 = vpack.c.bf16 %v2174, %v2005
        %v2249 = vpack.c.bf16 %v2177, %v2008
        %v2250 = vpack.c.bf16 %v2179, %v2010
        %v2251 = vpack.c.bf16 %v2182, %v2013
        %v2252 = vpack.c.bf16 %v2184, %v2015
        %v2253 = vpack.c.bf16 %v2187, %v2018
        %v2254 = vpack.c.bf16 %v2189, %v2020
        %v2255 = vunpack.c.l.bf16 %v2191
        %v2256 = vunpack.c.h.bf16 %v2191
        %v2257 = vunpack.c.l.bf16 %v2192
        %v2258 = vunpack.c.h.bf16 %v2192
        %v2259 = vunpack.c.l.bf16 %v2193
        %v2260 = vunpack.c.h.bf16 %v2193
        %v2261 = vunpack.c.l.bf16 %v2194
        %v2262 = vunpack.c.h.bf16 %v2194
        %v2263 = vunpack.c.l.bf16 %v2195
        %v2264 = vunpack.c.h.bf16 %v2195
        %v2265 = vunpack.c.l.bf16 %v2196
        %v2266 = vunpack.c.h.bf16 %v2196
        %v2267 = vunpack.c.l.bf16 %v2197
        %v2268 = vunpack.c.h.bf16 %v2197
        %v2269 = vunpack.c.l.bf16 %v2198
        %v2270 = vunpack.c.h.bf16 %v2198
        %v2271 = vunpack.c.l.bf16 %v2199
        %v2272 = vunpack.c.h.bf16 %v2199
        %v2273 = vunpack.c.l.bf16 %v2200
        %v2274 = vunpack.c.h.bf16 %v2200
        %v2275 = vunpack.c.l.bf16 %v2201
        %v2276 = vunpack.c.h.bf16 %v2201
        %v2277 = vunpack.c.l.bf16 %v2202
        %v2278 = vunpack.c.h.bf16 %v2202
        %v2279 = vunpack.c.l.bf16 %v2203
        %v2280 = vunpack.c.h.bf16 %v2203
        %v2281 = vunpack.c.l.bf16 %v2204
        %v2282 = vunpack.c.h.bf16 %v2204
        %v2283 = vunpack.c.l.bf16 %v2205
        %v2284 = vunpack.c.h.bf16 %v2205
        %v2285 = vunpack.c.l.bf16 %v2206
        %v2286 = vunpack.c.h.bf16 %v2206
        %v2287 = vunpack.c.l.bf16 %v2207
        %v2288 = vunpack.c.h.bf16 %v2207
        %v2289 = vunpack.c.l.bf16 %v2208
        %v2290 = vunpack.c.h.bf16 %v2208
        %v2291 = vunpack.c.l.bf16 %v2209
        %v2292 = vunpack.c.h.bf16 %v2209
        %v2293 = vunpack.c.l.bf16 %v2210
        %v2294 = vunpack.c.h.bf16 %v2210
        %v2295 = vunpack.c.l.bf16 %v2211
        %v2296 = vunpack.c.h.bf16 %v2211
        %v2297 = vunpack.c.l.bf16 %v2212
        %v2298 = vunpack.c.h.bf16 %v2212
        %v2299 = vunpack.c.l.bf16 %v2213
        %v2300 = vunpack.c.h.bf16 %v2213
        %v2301 = vunpack.c.l.bf16 %v2214
        %v2302 = vunpack.c.h.bf16 %v2214
        %v2303 = vunpack.c.l.bf16 %v2215
        %v2304 = vunpack.c.h.bf16 %v2215
        %v2305 = vunpack.c.l.bf16 %v2216
        %v2306 = vunpack.c.h.bf16 %v2216
        %v2307 = vunpack.c.l.bf16 %v2217
        %v2308 = vunpack.c.h.bf16 %v2217
        %v2309 = vunpack.c.l.bf16 %v2218
        %v2310 = vunpack.c.h.bf16 %v2218
        %v2311 = vunpack.c.l.bf16 %v2219
        %v2312 = vunpack.c.h.bf16 %v2219
        %v2313 = vunpack.c.l.bf16 %v2220
        %v2314 = vunpack.c.h.bf16 %v2220
        %v2315 = vunpack.c.l.bf16 %v2221
        %v2316 = vunpack.c.h.bf16 %v2221
        %v2317 = vunpack.c.l.bf16 %v2222
        %v2318 = vunpack.c.h.bf16 %v2222
        %v2319 = vunpack.c.l.bf16 %v2223
        %v2320 = vunpack.c.h.bf16 %v2223
        %v2321 = vunpack.c.l.bf16 %v2224
        %v2322 = vunpack.c.h.bf16 %v2224
        %v2323 = vunpack.c.l.bf16 %v2225
        %v2324 = vunpack.c.h.bf16 %v2225
        %v2325 = vunpack.c.l.bf16 %v2226
        %v2326 = vunpack.c.h.bf16 %v2226
        %v2327 = vunpack.c.l.bf16 %v2227
        %v2328 = vunpack.c.h.bf16 %v2227
        %v2329 = vunpack.c.l.bf16 %v2228
        %v2330 = vunpack.c.h.bf16 %v2228
        %v2331 = vunpack.c.l.bf16 %v2229
        %v2332 = vunpack.c.h.bf16 %v2229
        %v2333 = vunpack.c.l.bf16 %v2230
        %v2334 = vunpack.c.h.bf16 %v2230
        %v2335 = vunpack.c.l.bf16 %v2231
        %v2336 = vunpack.c.h.bf16 %v2231
        %v2337 = vunpack.c.l.bf16 %v2232
        %v2338 = vunpack.c.h.bf16 %v2232
        %v2339 = vunpack.c.l.bf16 %v2233
        %v2340 = vunpack.c.h.bf16 %v2233
        %v2341 = vunpack.c.l.bf16 %v2234
        %v2342 = vunpack.c.h.bf16 %v2234
        %v2343 = vunpack.c.l.bf16 %v2235
        %v2344 = vunpack.c.h.bf16 %v2235
        %v2345 = vunpack.c.l.bf16 %v2236
        %v2346 = vunpack.c.h.bf16 %v2236
        %v2347 = vunpack.c.l.bf16 %v2237
        %v2348 = vunpack.c.h.bf16 %v2237
        %v2349 = vunpack.c.l.bf16 %v2238
        %v2350 = vunpack.c.h.bf16 %v2238
        %v2351 = vunpack.c.l.bf16 %v2239
        %v2352 = vunpack.c.h.bf16 %v2239
        %v2353 = vunpack.c.l.bf16 %v2240
        %v2354 = vunpack.c.h.bf16 %v2240
        %v2355 = vunpack.c.l.bf16 %v2241
        %v2356 = vunpack.c.h.bf16 %v2241
        %v2357 = vunpack.c.l.bf16 %v2242
        %v2358 = vunpack.c.h.bf16 %v2242
        %v2359 = vunpack.c.l.bf16 %v2243
        %v2360 = vunpack.c.h.bf16 %v2243
        %v2361 = vunpack.c.l.bf16 %v2244
        %v2362 = vunpack.c.h.bf16 %v2244
        %v2363 = vunpack.c.l.bf16 %v2245
        %v2364 = vunpack.c.h.bf16 %v2245
        %v2365 = vunpack.c.l.bf16 %v2246
        %v2366 = vunpack.c.h.bf16 %v2246
        %v2367 = vunpack.c.l.bf16 %v2247
        %v2368 = vunpack.c.h.bf16 %v2247
        %v2369 = vunpack.c.l.bf16 %v2248
        %v2370 = vunpack.c.h.bf16 %v2248
        %v2371 = vunpack.c.l.bf16 %v2249
        %v2372 = vunpack.c.h.bf16 %v2249
        %v2373 = vunpack.c.l.bf16 %v2250
        %v2374 = vunpack.c.h.bf16 %v2250
        %v2375 = vunpack.c.l.bf16 %v2251
        %v2376 = vunpack.c.h.bf16 %v2251
        %v2377 = vunpack.c.l.bf16 %v2252
        %v2378 = vunpack.c.h.bf16 %v2252
        %v2379 = vunpack.c.l.bf16 %v2253
        %v2380 = vunpack.c.h.bf16 %v2253
        %v2381 = vunpack.c.l.bf16 %v2254
        %v2382 = vunpack.c.h.bf16 %v2254
        %v2383 = vmax.f32 %v2255, %v2257
        %v2384 = vmax.f32 %v2383, %v2259
        %v2385 = vmax.f32 %v2384, %v2261
        %v2386 = vrot.slane %v2385, 4
        %v2387 = vmax.f32 %v2385, %v2386
        %v2388 = vrot.slane %v2387, 2
        %v2389 = vmax.f32 %v2387, %v2388
        %v2390 = vrot.slane %v2389, 1
        %v2391 = vmax.f32 %v2389, %v2390
        %v2392 = vmax.f32 %v2256, %v2258
        %v2393 = vmax.f32 %v2392, %v2260
        %v2394 = vmax.f32 %v2393, %v2262
        %v2395 = vrot.slane %v2394, 4
        %v2396 = vmax.f32 %v2394, %v2395
        %v2397 = vrot.slane %v2396, 2
        %v2398 = vmax.f32 %v2396, %v2397
        %v2399 = vrot.slane %v2398, 1
        %v2400 = vmax.f32 %v2398, %v2399
        %v2401 = vmax.f32 %v2263, %v2265
        %v2402 = vmax.f32 %v2401, %v2267
        %v2403 = vmax.f32 %v2402, %v2269
        %v2404 = vrot.slane %v2403, 4
        %v2405 = vmax.f32 %v2403, %v2404
        %v2406 = vrot.slane %v2405, 2
        %v2407 = vmax.f32 %v2405, %v2406
        %v2408 = vrot.slane %v2407, 1
        %v2409 = vmax.f32 %v2407, %v2408
        %v2410 = vmax.f32 %v2264, %v2266
        %v2411 = vmax.f32 %v2410, %v2268
        %v2412 = vmax.f32 %v2411, %v2270
        %v2413 = vrot.slane %v2412, 4
        %v2414 = vmax.f32 %v2412, %v2413
        %v2415 = vrot.slane %v2414, 2
        %v2416 = vmax.f32 %v2414, %v2415
        %v2417 = vrot.slane %v2416, 1
        %v2418 = vmax.f32 %v2416, %v2417
        %v2419 = vmax.f32 %v2271, %v2273
        %v2420 = vmax.f32 %v2419, %v2275
        %v2421 = vmax.f32 %v2420, %v2277
        %v2422 = vrot.slane %v2421, 4
        %v2423 = vmax.f32 %v2421, %v2422
        %v2424 = vrot.slane %v2423, 2
        %v2425 = vmax.f32 %v2423, %v2424
        %v2426 = vrot.slane %v2425, 1
        %v2427 = vmax.f32 %v2425, %v2426
        %v2428 = vmax.f32 %v2272, %v2274
        %v2429 = vmax.f32 %v2428, %v2276
        %v2430 = vmax.f32 %v2429, %v2278
        %v2431 = vrot.slane %v2430, 4
        %v2432 = vmax.f32 %v2430, %v2431
        %v2433 = vrot.slane %v2432, 2
        %v2434 = vmax.f32 %v2432, %v2433
        %v2435 = vrot.slane %v2434, 1
        %v2436 = vmax.f32 %v2434, %v2435
        %v2437 = vmax.f32 %v2279, %v2281
        %v2438 = vmax.f32 %v2437, %v2283
        %v2439 = vmax.f32 %v2438, %v2285
        %v2440 = vrot.slane %v2439, 4
        %v2441 = vmax.f32 %v2439, %v2440
        %v2442 = vrot.slane %v2441, 2
        %v2443 = vmax.f32 %v2441, %v2442
        %v2444 = vrot.slane %v2443, 1
        %v2445 = vmax.f32 %v2443, %v2444
        %v2446 = vmax.f32 %v2280, %v2282
        %v2447 = vmax.f32 %v2446, %v2284
        %v2448 = vmax.f32 %v2447, %v2286
        %v2449 = vrot.slane %v2448, 4
        %v2450 = vmax.f32 %v2448, %v2449
        %v2451 = vrot.slane %v2450, 2
        %v2452 = vmax.f32 %v2450, %v2451
        %v2453 = vrot.slane %v2452, 1
        %v2454 = vmax.f32 %v2452, %v2453
        %v2455 = vmax.f32 %v2287, %v2289
        %v2456 = vmax.f32 %v2455, %v2291
        %v2457 = vmax.f32 %v2456, %v2293
        %v2458 = vrot.slane %v2457, 4
        %v2459 = vmax.f32 %v2457, %v2458
        %v2460 = vrot.slane %v2459, 2
        %v2461 = vmax.f32 %v2459, %v2460
        %v2462 = vrot.slane %v2461, 1
        %v2463 = vmax.f32 %v2461, %v2462
        %v2464 = vmax.f32 %v2288, %v2290
        %v2465 = vmax.f32 %v2464, %v2292
        %v2466 = vmax.f32 %v2465, %v2294
        %v2467 = vrot.slane %v2466, 4
        %v2468 = vmax.f32 %v2466, %v2467
        %v2469 = vrot.slane %v2468, 2
        %v2470 = vmax.f32 %v2468, %v2469
        %v2471 = vrot.slane %v2470, 1
        %v2472 = vmax.f32 %v2470, %v2471
        %v2473 = vmax.f32 %v2295, %v2297
        %v2474 = vmax.f32 %v2473, %v2299
        %v2475 = vmax.f32 %v2474, %v2301
        %v2476 = vrot.slane %v2475, 4
        %v2477 = vmax.f32 %v2475, %v2476
        %v2478 = vrot.slane %v2477, 2
        %v2479 = vmax.f32 %v2477, %v2478
        %v2480 = vrot.slane %v2479, 1
        %v2481 = vmax.f32 %v2479, %v2480
        %v2482 = vmax.f32 %v2296, %v2298
        %v2483 = vmax.f32 %v2482, %v2300
        %v2484 = vmax.f32 %v2483, %v2302
        %v2485 = vrot.slane %v2484, 4
        %v2486 = vmax.f32 %v2484, %v2485
        %v2487 = vrot.slane %v2486, 2
        %v2488 = vmax.f32 %v2486, %v2487
        %v2489 = vrot.slane %v2488, 1
        %v2490 = vmax.f32 %v2488, %v2489
        %v2491 = vmax.f32 %v2303, %v2305
        %v2492 = vmax.f32 %v2491, %v2307
        %v2493 = vmax.f32 %v2492, %v2309
        %v2494 = vrot.slane %v2493, 4
        %v2495 = vmax.f32 %v2493, %v2494
        %v2496 = vrot.slane %v2495, 2
        %v2497 = vmax.f32 %v2495, %v2496
        %v2498 = vrot.slane %v2497, 1
        %v2499 = vmax.f32 %v2497, %v2498
        %v2500 = vmax.f32 %v2304, %v2306
        %v2501 = vmax.f32 %v2500, %v2308
        %v2502 = vmax.f32 %v2501, %v2310
        %v2503 = vrot.slane %v2502, 4
        %v2504 = vmax.f32 %v2502, %v2503
        %v2505 = vrot.slane %v2504, 2
        %v2506 = vmax.f32 %v2504, %v2505
        %v2507 = vrot.slane %v2506, 1
        %v2508 = vmax.f32 %v2506, %v2507
        %v2509 = vmax.f32 %v2311, %v2313
        %v2510 = vmax.f32 %v2509, %v2315
        %v2511 = vmax.f32 %v2510, %v2317
        %v2512 = vrot.slane %v2511, 4
        %v2513 = vmax.f32 %v2511, %v2512
        %v2514 = vrot.slane %v2513, 2
        %v2515 = vmax.f32 %v2513, %v2514
        %v2516 = vrot.slane %v2515, 1
        %v2517 = vmax.f32 %v2515, %v2516
        %v2518 = vmax.f32 %v2312, %v2314
        %v2519 = vmax.f32 %v2518, %v2316
        %v2520 = vmax.f32 %v2519, %v2318
        %v2521 = vrot.slane %v2520, 4
        %v2522 = vmax.f32 %v2520, %v2521
        %v2523 = vrot.slane %v2522, 2
        %v2524 = vmax.f32 %v2522, %v2523
        %v2525 = vrot.slane %v2524, 1
        %v2526 = vmax.f32 %v2524, %v2525
        %v2527 = vmax.f32 %v2319, %v2321
        %v2528 = vmax.f32 %v2527, %v2323
        %v2529 = vmax.f32 %v2528, %v2325
        %v2530 = vrot.slane %v2529, 4
        %v2531 = vmax.f32 %v2529, %v2530
        %v2532 = vrot.slane %v2531, 2
        %v2533 = vmax.f32 %v2531, %v2532
        %v2534 = vrot.slane %v2533, 1
        %v2535 = vmax.f32 %v2533, %v2534
        %v2536 = vmax.f32 %v2320, %v2322
        %v2537 = vmax.f32 %v2536, %v2324
        %v2538 = vmax.f32 %v2537, %v2326
        %v2539 = vrot.slane %v2538, 4
        %v2540 = vmax.f32 %v2538, %v2539
        %v2541 = vrot.slane %v2540, 2
        %v2542 = vmax.f32 %v2540, %v2541
        %v2543 = vrot.slane %v2542, 1
        %v2544 = vmax.f32 %v2542, %v2543
        %v2545 = vmax.f32 %v2327, %v2329
        %v2546 = vmax.f32 %v2545, %v2331
        %v2547 = vmax.f32 %v2546, %v2333
        %v2548 = vrot.slane %v2547, 4
        %v2549 = vmax.f32 %v2547, %v2548
        %v2550 = vrot.slane %v2549, 2
        %v2551 = vmax.f32 %v2549, %v2550
        %v2552 = vrot.slane %v2551, 1
        %v2553 = vmax.f32 %v2551, %v2552
        %v2554 = vmax.f32 %v2328, %v2330
        %v2555 = vmax.f32 %v2554, %v2332
        %v2556 = vmax.f32 %v2555, %v2334
        %v2557 = vrot.slane %v2556, 4
        %v2558 = vmax.f32 %v2556, %v2557
        %v2559 = vrot.slane %v2558, 2
        %v2560 = vmax.f32 %v2558, %v2559
        %v2561 = vrot.slane %v2560, 1
        %v2562 = vmax.f32 %v2560, %v2561
        %v2563 = vmax.f32 %v2335, %v2337
        %v2564 = vmax.f32 %v2563, %v2339
        %v2565 = vmax.f32 %v2564, %v2341
        %v2566 = vrot.slane %v2565, 4
        %v2567 = vmax.f32 %v2565, %v2566
        %v2568 = vrot.slane %v2567, 2
        %v2569 = vmax.f32 %v2567, %v2568
        %v2570 = vrot.slane %v2569, 1
        %v2571 = vmax.f32 %v2569, %v2570
        %v2572 = vmax.f32 %v2336, %v2338
        %v2573 = vmax.f32 %v2572, %v2340
        %v2574 = vmax.f32 %v2573, %v2342
        %v2575 = vrot.slane %v2574, 4
        %v2576 = vmax.f32 %v2574, %v2575
        %v2577 = vrot.slane %v2576, 2
        %v2578 = vmax.f32 %v2576, %v2577
        %v2579 = vrot.slane %v2578, 1
        %v2580 = vmax.f32 %v2578, %v2579
        %v2581 = vmax.f32 %v2343, %v2345
        %v2582 = vmax.f32 %v2581, %v2347
        %v2583 = vmax.f32 %v2582, %v2349
        %v2584 = vrot.slane %v2583, 4
        %v2585 = vmax.f32 %v2583, %v2584
        %v2586 = vrot.slane %v2585, 2
        %v2587 = vmax.f32 %v2585, %v2586
        %v2588 = vrot.slane %v2587, 1
        %v2589 = vmax.f32 %v2587, %v2588
        %v2590 = vmax.f32 %v2344, %v2346
        %v2591 = vmax.f32 %v2590, %v2348
        %v2592 = vmax.f32 %v2591, %v2350
        %v2593 = vrot.slane %v2592, 4
        %v2594 = vmax.f32 %v2592, %v2593
        %v2595 = vrot.slane %v2594, 2
        %v2596 = vmax.f32 %v2594, %v2595
        %v2597 = vrot.slane %v2596, 1
        %v2598 = vmax.f32 %v2596, %v2597
        %v2599 = vmax.f32 %v2351, %v2353
        %v2600 = vmax.f32 %v2599, %v2355
        %v2601 = vmax.f32 %v2600, %v2357
        %v2602 = vrot.slane %v2601, 4
        %v2603 = vmax.f32 %v2601, %v2602
        %v2604 = vrot.slane %v2603, 2
        %v2605 = vmax.f32 %v2603, %v2604
        %v2606 = vrot.slane %v2605, 1
        %v2607 = vmax.f32 %v2605, %v2606
        %v2608 = vmax.f32 %v2352, %v2354
        %v2609 = vmax.f32 %v2608, %v2356
        %v2610 = vmax.f32 %v2609, %v2358
        %v2611 = vrot.slane %v2610, 4
        %v2612 = vmax.f32 %v2610, %v2611
        %v2613 = vrot.slane %v2612, 2
        %v2614 = vmax.f32 %v2612, %v2613
        %v2615 = vrot.slane %v2614, 1
        %v2616 = vmax.f32 %v2614, %v2615
        %v2617 = vmax.f32 %v2359, %v2361
        %v2618 = vmax.f32 %v2617, %v2363
        %v2619 = vmax.f32 %v2618, %v2365
        %v2620 = vrot.slane %v2619, 4
        %v2621 = vmax.f32 %v2619, %v2620
        %v2622 = vrot.slane %v2621, 2
        %v2623 = vmax.f32 %v2621, %v2622
        %v2624 = vrot.slane %v2623, 1
        %v2625 = vmax.f32 %v2623, %v2624
        %v2626 = vmax.f32 %v2360, %v2362
        %v2627 = vmax.f32 %v2626, %v2364
        %v2628 = vmax.f32 %v2627, %v2366
        %v2629 = vrot.slane %v2628, 4
        %v2630 = vmax.f32 %v2628, %v2629
        %v2631 = vrot.slane %v2630, 2
        %v2632 = vmax.f32 %v2630, %v2631
        %v2633 = vrot.slane %v2632, 1
        %v2634 = vmax.f32 %v2632, %v2633
        %v2635 = vmax.f32 %v2367, %v2369
        %v2636 = vmax.f32 %v2635, %v2371
        %v2637 = vmax.f32 %v2636, %v2373
        %v2638 = vrot.slane %v2637, 4
        %v2639 = vmax.f32 %v2637, %v2638
        %v2640 = vrot.slane %v2639, 2
        %v2641 = vmax.f32 %v2639, %v2640
        %v2642 = vrot.slane %v2641, 1
        %v2643 = vmax.f32 %v2641, %v2642
        %v2644 = vmax.f32 %v2368, %v2370
        %v2645 = vmax.f32 %v2644, %v2372
        %v2646 = vmax.f32 %v2645, %v2374
        %v2647 = vrot.slane %v2646, 4
        %v2648 = vmax.f32 %v2646, %v2647
        %v2649 = vrot.slane %v2648, 2
        %v2650 = vmax.f32 %v2648, %v2649
        %v2651 = vrot.slane %v2650, 1
        %v2652 = vmax.f32 %v2650, %v2651
        %v2653 = vmax.f32 %v2375, %v2377
        %v2654 = vmax.f32 %v2653, %v2379
        %v2655 = vmax.f32 %v2654, %v2381
        %v2656 = vrot.slane %v2655, 4
        %v2657 = vmax.f32 %v2655, %v2656
        %v2658 = vrot.slane %v2657, 2
        %v2659 = vmax.f32 %v2657, %v2658
        %v2660 = vrot.slane %v2659, 1
        %v2661 = vmax.f32 %v2659, %v2660
        %v2662 = vmax.f32 %v2376, %v2378
        %v2663 = vmax.f32 %v2662, %v2380
        %v2664 = vmax.f32 %v2663, %v2382
        %v2665 = vrot.slane %v2664, 4
        %v2666 = vmax.f32 %v2664, %v2665
        %v2667 = vrot.slane %v2666, 2
        %v2668 = vmax.f32 %v2666, %v2667
        %v2669 = vrot.slane %v2668, 1
        %v2670 = vmax.f32 %v2668, %v2669
        %v2671 = vpack.c.bf16 %v2391, %v2391
        %v2672 = vpack.c.bf16 %v2400, %v2400
        %v2673 = vpack.c.bf16 %v2409, %v2409
        %v2674 = vpack.c.bf16 %v2418, %v2418
        %v2675 = vpack.c.bf16 %v2427, %v2427
        %v2676 = vpack.c.bf16 %v2436, %v2436
        %v2677 = vpack.c.bf16 %v2445, %v2445
        %v2678 = vpack.c.bf16 %v2454, %v2454
        %v2679 = vpack.c.bf16 %v2463, %v2463
        %v2680 = vpack.c.bf16 %v2472, %v2472
        %v2681 = vpack.c.bf16 %v2481, %v2481
        %v2682 = vpack.c.bf16 %v2490, %v2490
        %v2683 = vpack.c.bf16 %v2499, %v2499
        %v2684 = vpack.c.bf16 %v2508, %v2508
        %v2685 = vpack.c.bf16 %v2517, %v2517
        %v2686 = vpack.c.bf16 %v2526, %v2526
        %v2687 = vpack.c.bf16 %v2535, %v2535
        %v2688 = vpack.c.bf16 %v2544, %v2544
        %v2689 = vpack.c.bf16 %v2553, %v2553
        %v2690 = vpack.c.bf16 %v2562, %v2562
        %v2691 = vpack.c.bf16 %v2571, %v2571
        %v2692 = vpack.c.bf16 %v2580, %v2580
        %v2693 = vpack.c.bf16 %v2589, %v2589
        %v2694 = vpack.c.bf16 %v2598, %v2598
        %v2695 = vpack.c.bf16 %v2607, %v2607
        %v2696 = vpack.c.bf16 %v2616, %v2616
        %v2697 = vpack.c.bf16 %v2625, %v2625
        %v2698 = vpack.c.bf16 %v2634, %v2634
        %v2699 = vpack.c.bf16 %v2643, %v2643
        %v2700 = vpack.c.bf16 %v2652, %v2652
        %v2701 = vpack.c.bf16 %v2661, %v2661
        %v2702 = vpack.c.bf16 %v2670, %v2670
        %v2703 = vld [vmem:[%s4] sm:$0xff]
        %v2704 = vld [vmem:[%s4 + $0x8] sm:$0xff]
        %v2705 = vld [vmem:[%s4 + $0x10] sm:$0xff]
        %v2706 = vld [vmem:[%s4 + $0x18] sm:$0xff]
        %v2707 = vld [vmem:[%s4 + $0x20] sm:$0xff]
        %v2708 = vld [vmem:[%s4 + $0x28] sm:$0xff]
        %v2709 = vld [vmem:[%s4 + $0x30] sm:$0xff]
        %v2710 = vld [vmem:[%s4 + $0x38] sm:$0xff]
        %v2711 = vld [vmem:[%s4 + $0x40] sm:$0xff]
        %v2712 = vld [vmem:[%s4 + $0x48] sm:$0xff]
        %v2713 = vld [vmem:[%s4 + $0x50] sm:$0xff]
        %v2714 = vld [vmem:[%s4 + $0x58] sm:$0xff]
        %v2715 = vld [vmem:[%s4 + $0x60] sm:$0xff]
        %v2716 = vld [vmem:[%s4 + $0x68] sm:$0xff]
        %v2717 = vld [vmem:[%s4 + $0x70] sm:$0xff]
        %v2718 = vld [vmem:[%s4 + $0x78] sm:$0xff]
        %v2719 = vld [vmem:[%s4 + $0x80] sm:$0xff]
        %v2720 = vld [vmem:[%s4 + $0x88] sm:$0xff]
        %v2721 = vld [vmem:[%s4 + $0x90] sm:$0xff]
        %v2722 = vld [vmem:[%s4 + $0x98] sm:$0xff]
        %v2723 = vld [vmem:[%s4 + $0xa0] sm:$0xff]
        %v2724 = vld [vmem:[%s4 + $0xa8] sm:$0xff]
        %v2725 = vld [vmem:[%s4 + $0xb0] sm:$0xff]
        %v2726 = vld [vmem:[%s4 + $0xb8] sm:$0xff]
        %v2727 = vld [vmem:[%s4 + $0xc0] sm:$0xff]
        %v2728 = vld [vmem:[%s4 + $0xc8] sm:$0xff]
        %v2729 = vld [vmem:[%s4 + $0xd0] sm:$0xff]
        %v2730 = vld [vmem:[%s4 + $0xd8] sm:$0xff]
        %v2731 = vld [vmem:[%s4 + $0xe0] sm:$0xff]
        %v2732 = vld [vmem:[%s4 + $0xe8] sm:$0xff]
        %v2733 = vld [vmem:[%s4 + $0xf0] sm:$0xff]
        %v2734 = vld [vmem:[%s4 + $0xf8] sm:$0xff]
        %v2735 = vld [vmem:[%s4 + $0x100] sm:$0xff]
        %v2736 = vld [vmem:[%s4 + $0x108] sm:$0xff]
        %v2737 = vld [vmem:[%s4 + $0x110] sm:$0xff]
        %v2738 = vld [vmem:[%s4 + $0x118] sm:$0xff]
        %v2739 = vld [vmem:[%s4 + $0x120] sm:$0xff]
        %v2740 = vld [vmem:[%s4 + $0x128] sm:$0xff]
        %v2741 = vld [vmem:[%s4 + $0x130] sm:$0xff]
        %v2742 = vld [vmem:[%s4 + $0x138] sm:$0xff]
        %v2743 = vld [vmem:[%s4 + $0x140] sm:$0xff]
        %v2744 = vld [vmem:[%s4 + $0x148] sm:$0xff]
        %v2745 = vld [vmem:[%s4 + $0x150] sm:$0xff]
        %v2746 = vld [vmem:[%s4 + $0x158] sm:$0xff]
        %v2747 = vld [vmem:[%s4 + $0x160] sm:$0xff]
        %v2748 = vld [vmem:[%s4 + $0x168] sm:$0xff]
        %v2749 = vld [vmem:[%s4 + $0x170] sm:$0xff]
        %v2750 = vld [vmem:[%s4 + $0x178] sm:$0xff]
        %v2751 = vld [vmem:[%s4 + $0x180] sm:$0xff]
        %v2752 = vld [vmem:[%s4 + $0x188] sm:$0xff]
        %v2753 = vld [vmem:[%s4 + $0x190] sm:$0xff]
        %v2754 = vld [vmem:[%s4 + $0x198] sm:$0xff]
        %v2755 = vld [vmem:[%s4 + $0x1a0] sm:$0xff]
        %v2756 = vld [vmem:[%s4 + $0x1a8] sm:$0xff]
        %v2757 = vld [vmem:[%s4 + $0x1b0] sm:$0xff]
        %v2758 = vld [vmem:[%s4 + $0x1b8] sm:$0xff]
        %v2759 = vld [vmem:[%s4 + $0x1c0] sm:$0xff]
        %v2760 = vld [vmem:[%s4 + $0x1c8] sm:$0xff]
        %v2761 = vld [vmem:[%s4 + $0x1d0] sm:$0xff]
        %v2762 = vld [vmem:[%s4 + $0x1d8] sm:$0xff]
        %v2763 = vld [vmem:[%s4 + $0x1e0] sm:$0xff]
        %v2764 = vld [vmem:[%s4 + $0x1e8] sm:$0xff]
        %v2765 = vld [vmem:[%s4 + $0x1f0] sm:$0xff]
        %v2766 = vld [vmem:[%s4 + $0x1f8] sm:$0xff]
        %v2767 = vld [vmem:[%s5] sm:$0xff]
        %v2768 = vld [vmem:[%s5 + $0x8] sm:$0xff]
        %v2769 = vld [vmem:[%s5 + $0x10] sm:$0xff]
        %v2770 = vld [vmem:[%s5 + $0x18] sm:$0xff]
        %v2771 = vld [vmem:[%s5 + $0x20] sm:$0xff]
        %v2772 = vld [vmem:[%s5 + $0x28] sm:$0xff]
        %v2773 = vld [vmem:[%s5 + $0x30] sm:$0xff]
        %v2774 = vld [vmem:[%s5 + $0x38] sm:$0xff]
        %v2775 = vld [vmem:[%s5 + $0x40] sm:$0xff]
        %v2776 = vld [vmem:[%s5 + $0x48] sm:$0xff]
        %v2777 = vld [vmem:[%s5 + $0x50] sm:$0xff]
        %v2778 = vld [vmem:[%s5 + $0x58] sm:$0xff]
        %v2779 = vld [vmem:[%s5 + $0x60] sm:$0xff]
        %v2780 = vld [vmem:[%s5 + $0x68] sm:$0xff]
        %v2781 = vld [vmem:[%s5 + $0x70] sm:$0xff]
        %v2782 = vld [vmem:[%s5 + $0x78] sm:$0xff]
        %v2783 = vld [vmem:[%s5 + $0x80] sm:$0xff]
        %v2784 = vld [vmem:[%s5 + $0x88] sm:$0xff]
        %v2785 = vld [vmem:[%s5 + $0x90] sm:$0xff]
        %v2786 = vld [vmem:[%s5 + $0x98] sm:$0xff]
        %v2787 = vld [vmem:[%s5 + $0xa0] sm:$0xff]
        %v2788 = vld [vmem:[%s5 + $0xa8] sm:$0xff]
        %v2789 = vld [vmem:[%s5 + $0xb0] sm:$0xff]
        %v2790 = vld [vmem:[%s5 + $0xb8] sm:$0xff]
        %v2791 = vld [vmem:[%s5 + $0xc0] sm:$0xff]
        %v2792 = vld [vmem:[%s5 + $0xc8] sm:$0xff]
        %v2793 = vld [vmem:[%s5 + $0xd0] sm:$0xff]
        %v2794 = vld [vmem:[%s5 + $0xd8] sm:$0xff]
        %v2795 = vld [vmem:[%s5 + $0xe0] sm:$0xff]
        %v2796 = vld [vmem:[%s5 + $0xe8] sm:$0xff]
        %v2797 = vld [vmem:[%s5 + $0xf0] sm:$0xff]
        %v2798 = vld [vmem:[%s5 + $0xf8] sm:$0xff]
        %v2799 = vld [vmem:[%s5 + $0x100] sm:$0xff]
        %v2800 = vld [vmem:[%s5 + $0x108] sm:$0xff]
        %v2801 = vld [vmem:[%s5 + $0x110] sm:$0xff]
        %v2802 = vld [vmem:[%s5 + $0x118] sm:$0xff]
        %v2803 = vld [vmem:[%s5 + $0x120] sm:$0xff]
        %v2804 = vld [vmem:[%s5 + $0x128] sm:$0xff]
        %v2805 = vld [vmem:[%s5 + $0x130] sm:$0xff]
        %v2806 = vld [vmem:[%s5 + $0x138] sm:$0xff]
        %v2807 = vld [vmem:[%s5 + $0x140] sm:$0xff]
        %v2808 = vld [vmem:[%s5 + $0x148] sm:$0xff]
        %v2809 = vld [vmem:[%s5 + $0x150] sm:$0xff]
        %v2810 = vld [vmem:[%s5 + $0x158] sm:$0xff]
        %v2811 = vld [vmem:[%s5 + $0x160] sm:$0xff]
        %v2812 = vld [vmem:[%s5 + $0x168] sm:$0xff]
        %v2813 = vld [vmem:[%s5 + $0x170] sm:$0xff]
        %v2814 = vld [vmem:[%s5 + $0x178] sm:$0xff]
        %v2815 = vld [vmem:[%s5 + $0x180] sm:$0xff]
        %v2816 = vld [vmem:[%s5 + $0x188] sm:$0xff]
        %v2817 = vld [vmem:[%s5 + $0x190] sm:$0xff]
        %v2818 = vld [vmem:[%s5 + $0x198] sm:$0xff]
        %v2819 = vld [vmem:[%s5 + $0x1a0] sm:$0xff]
        %v2820 = vld [vmem:[%s5 + $0x1a8] sm:$0xff]
        %v2821 = vld [vmem:[%s5 + $0x1b0] sm:$0xff]
        %v2822 = vld [vmem:[%s5 + $0x1b8] sm:$0xff]
        %v2823 = vld [vmem:[%s5 + $0x1c0] sm:$0xff]
        %v2824 = vld [vmem:[%s5 + $0x1c8] sm:$0xff]
        %v2825 = vld [vmem:[%s5 + $0x1d0] sm:$0xff]
        %v2826 = vld [vmem:[%s5 + $0x1d8] sm:$0xff]
        %v2827 = vld [vmem:[%s5 + $0x1e0] sm:$0xff]
        %v2828 = vld [vmem:[%s5 + $0x1e8] sm:$0xff]
        %v2829 = vld [vmem:[%s5 + $0x1f0] sm:$0xff]
        %v2830 = vld [vmem:[%s5 + $0x1f8] sm:$0xff]
        %v2895 = vunpack.c.l.b16 %v2191
        %v2896 = vunpack.c.h.b16 %v2191
        %v2897 = vunpack.c.l.b16 %v2192
        %v2898 = vunpack.c.h.b16 %v2192
        %v2899 = vunpack.c.l.b16 %v2193
        %v2900 = vunpack.c.h.b16 %v2193
        %v2901 = vunpack.c.l.b16 %v2194
        %v2902 = vunpack.c.h.b16 %v2194
        %v2903 = vunpack.c.l.b16 %v2195
        %v2904 = vunpack.c.h.b16 %v2195
        %v2905 = vunpack.c.l.b16 %v2196
        %v2906 = vunpack.c.h.b16 %v2196
        %v2907 = vunpack.c.l.b16 %v2197
        %v2908 = vunpack.c.h.b16 %v2197
        %v2909 = vunpack.c.l.b16 %v2198
        %v2910 = vunpack.c.h.b16 %v2198
        %v2911 = vunpack.c.l.b16 %v2199
        %v2912 = vunpack.c.h.b16 %v2199
        %v2913 = vunpack.c.l.b16 %v2200
        %v2914 = vunpack.c.h.b16 %v2200
        %v2915 = vunpack.c.l.b16 %v2201
        %v2916 = vunpack.c.h.b16 %v2201
        %v2917 = vunpack.c.l.b16 %v2202
        %v2918 = vunpack.c.h.b16 %v2202
        %v2919 = vunpack.c.l.b16 %v2203
        %v2920 = vunpack.c.h.b16 %v2203
        %v2921 = vunpack.c.l.b16 %v2204
        %v2922 = vunpack.c.h.b16 %v2204
        %v2923 = vunpack.c.l.b16 %v2205
        %v2924 = vunpack.c.h.b16 %v2205
        %v2925 = vunpack.c.l.b16 %v2206
        %v2926 = vunpack.c.h.b16 %v2206
        %v2927 = vunpack.c.l.b16 %v2207
        %v2928 = vunpack.c.h.b16 %v2207
        %v2929 = vunpack.c.l.b16 %v2208
        %v2930 = vunpack.c.h.b16 %v2208
        %v2931 = vunpack.c.l.b16 %v2209
        %v2932 = vunpack.c.h.b16 %v2209
        %v2933 = vunpack.c.l.b16 %v2210
        %v2934 = vunpack.c.h.b16 %v2210
        %v2935 = vunpack.c.l.b16 %v2211
        %v2936 = vunpack.c.h.b16 %v2211
        %v2937 = vunpack.c.l.b16 %v2212
        %v2938 = vunpack.c.h.b16 %v2212
        %v2939 = vunpack.c.l.b16 %v2213
        %v2940 = vunpack.c.h.b16 %v2213
        %v2941 = vunpack.c.l.b16 %v2214
        %v2942 = vunpack.c.h.b16 %v2214
        %v2943 = vunpack.c.l.b16 %v2215
        %v2944 = vunpack.c.h.b16 %v2215
        %v2945 = vunpack.c.l.b16 %v2216
        %v2946 = vunpack.c.h.b16 %v2216
        %v2947 = vunpack.c.l.b16 %v2217
        %v2948 = vunpack.c.h.b16 %v2217
        %v2949 = vunpack.c.l.b16 %v2218
        %v2950 = vunpack.c.h.b16 %v2218
        %v2951 = vunpack.c.l.b16 %v2219
        %v2952 = vunpack.c.h.b16 %v2219
        %v2953 = vunpack.c.l.b16 %v2220
        %v2954 = vunpack.c.h.b16 %v2220
        %v2955 = vunpack.c.l.b16 %v2221
        %v2956 = vunpack.c.h.b16 %v2221
        %v2957 = vunpack.c.l.b16 %v2222
        %v2958 = vunpack.c.h.b16 %v2222
        %v2959 = vunpack.c.l.b16 %v2223
        %v2960 = vunpack.c.h.b16 %v2223
        %v2961 = vunpack.c.l.b16 %v2224
        %v2962 = vunpack.c.h.b16 %v2224
        %v2963 = vunpack.c.l.b16 %v2225
        %v2964 = vunpack.c.h.b16 %v2225
        %v2965 = vunpack.c.l.b16 %v2226
        %v2966 = vunpack.c.h.b16 %v2226
        %v2967 = vunpack.c.l.b16 %v2227
        %v2968 = vunpack.c.h.b16 %v2227
        %v2969 = vunpack.c.l.b16 %v2228
        %v2970 = vunpack.c.h.b16 %v2228
        %v2971 = vunpack.c.l.b16 %v2229
        %v2972 = vunpack.c.h.b16 %v2229
        %v2973 = vunpack.c.l.b16 %v2230
        %v2974 = vunpack.c.h.b16 %v2230
        %v2975 = vunpack.c.l.b16 %v2231
        %v2976 = vunpack.c.h.b16 %v2231
        %v2977 = vunpack.c.l.b16 %v2232
        %v2978 = vunpack.c.h.b16 %v2232
        %v2979 = vunpack.c.l.b16 %v2233
        %v2980 = vunpack.c.h.b16 %v2233
        %v2981 = vunpack.c.l.b16 %v2234
        %v2982 = vunpack.c.h.b16 %v2234
        %v2983 = vunpack.c.l.b16 %v2235
        %v2984 = vunpack.c.h.b16 %v2235
        %v2985 = vunpack.c.l.b16 %v2236
        %v2986 = vunpack.c.h.b16 %v2236
        %v2987 = vunpack.c.l.b16 %v2237
        %v2988 = vunpack.c.h.b16 %v2237
        %v2989 = vunpack.c.l.b16 %v2238
        %v2990 = vunpack.c.h.b16 %v2238
        %v2991 = vunpack.c.l.b16 %v2239
        %v2992 = vunpack.c.h.b16 %v2239
        %v2993 = vunpack.c.l.b16 %v2240
        %v2994 = vunpack.c.h.b16 %v2240
        %v2995 = vunpack.c.l.b16 %v2241
        %v2996 = vunpack.c.h.b16 %v2241
        %v2997 = vunpack.c.l.b16 %v2242
        %v2998 = vunpack.c.h.b16 %v2242
        %v2999 = vunpack.c.l.b16 %v2243
        %v3000 = vunpack.c.h.b16 %v2243
        %v3001 = vunpack.c.l.b16 %v2244
        %v3002 = vunpack.c.h.b16 %v2244
        %v3003 = vunpack.c.l.b16 %v2245
        %v3004 = vunpack.c.h.b16 %v2245
        %v3005 = vunpack.c.l.b16 %v2246
        %v3006 = vunpack.c.h.b16 %v2246
        %v3007 = vunpack.c.l.b16 %v2247
        %v3008 = vunpack.c.h.b16 %v2247
        %v3009 = vunpack.c.l.b16 %v2248
        %v3010 = vunpack.c.h.b16 %v2248
        %v3011 = vunpack.c.l.b16 %v2249
        %v3012 = vunpack.c.h.b16 %v2249
        %v3013 = vunpack.c.l.b16 %v2250
        %v3014 = vunpack.c.h.b16 %v2250
        %v3015 = vunpack.c.l.b16 %v2251
        %v3016 = vunpack.c.h.b16 %v2251
        %v3017 = vunpack.c.l.b16 %v2252
        %v3018 = vunpack.c.h.b16 %v2252
        %v3019 = vunpack.c.l.b16 %v2253
        %v3020 = vunpack.c.h.b16 %v2253
        %v3021 = vunpack.c.l.b16 %v2254
        %v3022 = vunpack.c.h.b16 %v2254
        %v3023 = vpack.c.b16 %v2897, %v2895
        %v3024 = vpack.c.b16 %v2898, %v2896
        %v3025 = vpack.c.b16 %v2901, %v2899
        %v3026 = vpack.c.b16 %v2902, %v2900
        %v3027 = vpack.c.b16 %v2905, %v2903
        %v3028 = vpack.c.b16 %v2906, %v2904
        %v3029 = vpack.c.b16 %v2909, %v2907
        %v3030 = vpack.c.b16 %v2910, %v2908
        %v3031 = vpack.c.b16 %v2913, %v2911
        %v3032 = vpack.c.b16 %v2914, %v2912
        %v3033 = vpack.c.b16 %v2917, %v2915
        %v3034 = vpack.c.b16 %v2918, %v2916
        %v3035 = vpack.c.b16 %v2921, %v2919
        %v3036 = vpack.c.b16 %v2922, %v2920
        %v3037 = vpack.c.b16 %v2925, %v2923
        %v3038 = vpack.c.b16 %v2926, %v2924
        %v3039 = vpack.c.b16 %v2929, %v2927
        %v3040 = vpack.c.b16 %v2930, %v2928
        %v3041 = vpack.c.b16 %v2933, %v2931
        %v3042 = vpack.c.b16 %v2934, %v2932
        %v3043 = vpack.c.b16 %v2937, %v2935
        %v3044 = vpack.c.b16 %v2938, %v2936
        %v3045 = vpack.c.b16 %v2941, %v2939
        %v3046 = vpack.c.b16 %v2942, %v2940
        %v3047 = vpack.c.b16 %v2945, %v2943
        %v3048 = vpack.c.b16 %v2946, %v2944
        %v3049 = vpack.c.b16 %v2949, %v2947
        %v3050 = vpack.c.b16 %v2950, %v2948
        %v3051 = vpack.c.b16 %v2953, %v2951
        %v3052 = vpack.c.b16 %v2954, %v2952
        %v3053 = vpack.c.b16 %v2957, %v2955
        %v3054 = vpack.c.b16 %v2958, %v2956
        %v3055 = vpack.c.b16 %v2961, %v2959
        %v3056 = vpack.c.b16 %v2962, %v2960
        %v3057 = vpack.c.b16 %v2965, %v2963
        %v3058 = vpack.c.b16 %v2966, %v2964
        %v3059 = vpack.c.b16 %v2969, %v2967
        %v3060 = vpack.c.b16 %v2970, %v2968
        %v3061 = vpack.c.b16 %v2973, %v2971
        %v3062 = vpack.c.b16 %v2974, %v2972
        %v3063 = vpack.c.b16 %v2977, %v2975
        %v3064 = vpack.c.b16 %v2978, %v2976
        %v3065 = vpack.c.b16 %v2981, %v2979
        %v3066 = vpack.c.b16 %v2982, %v2980
        %v3067 = vpack.c.b16 %v2985, %v2983
        %v3068 = vpack.c.b16 %v2986, %v2984
        %v3069 = vpack.c.b16 %v2989, %v2987
        %v3070 = vpack.c.b16 %v2990, %v2988
        %v3071 = vpack.c.b16 %v2993, %v2991
        %v3072 = vpack.c.b16 %v2994, %v2992
        %v3073 = vpack.c.b16 %v2997, %v2995
        %v3074 = vpack.c.b16 %v2998, %v2996
        %v3075 = vpack.c.b16 %v3001, %v2999
        %v3076 = vpack.c.b16 %v3002, %v3000
        %v3077 = vpack.c.b16 %v3005, %v3003
        %v3078 = vpack.c.b16 %v3006, %v3004
        %v3079 = vpack.c.b16 %v3009, %v3007
        %v3080 = vpack.c.b16 %v3010, %v3008
        %v3081 = vpack.c.b16 %v3013, %v3011
        %v3082 = vpack.c.b16 %v3014, %v3012
        %v3083 = vpack.c.b16 %v3017, %v3015
        %v3084 = vpack.c.b16 %v3018, %v3016
        %v3085 = vpack.c.b16 %v3021, %v3019
        %v3086 = vpack.c.b16 %v3022, %v3020
        %v3215 = vunpack.c.l.b16 %v2767
        %v3216 = vunpack.c.h.b16 %v2767
        %v3217 = vunpack.c.l.b16 %v2768
        %v3218 = vunpack.c.h.b16 %v2768
        %v3219 = vunpack.c.l.b16 %v2769
        %v3220 = vunpack.c.h.b16 %v2769
        %v3221 = vunpack.c.l.b16 %v2770
        %v3222 = vunpack.c.h.b16 %v2770
        %v3223 = vunpack.c.l.b16 %v2771
        %v3224 = vunpack.c.h.b16 %v2771
        %v3225 = vunpack.c.l.b16 %v2772
        %v3226 = vunpack.c.h.b16 %v2772
        %v3227 = vunpack.c.l.b16 %v2773
        %v3228 = vunpack.c.h.b16 %v2773
        %v3229 = vunpack.c.l.b16 %v2774
        %v3230 = vunpack.c.h.b16 %v2774
        %v3231 = vunpack.c.l.b16 %v2775
        %v3232 = vunpack.c.h.b16 %v2775
        %v3233 = vunpack.c.l.b16 %v2776
        %v3234 = vunpack.c.h.b16 %v2776
        %v3235 = vunpack.c.l.b16 %v2777
        %v3236 = vunpack.c.h.b16 %v2777
        %v3237 = vunpack.c.l.b16 %v2778
        %v3238 = vunpack.c.h.b16 %v2778
        %v3239 = vunpack.c.l.b16 %v2779
        %v3240 = vunpack.c.h.b16 %v2779
        %v3241 = vunpack.c.l.b16 %v2780
        %v3242 = vunpack.c.h.b16 %v2780
        %v3243 = vunpack.c.l.b16 %v2781
        %v3244 = vunpack.c.h.b16 %v2781
        %v3245 = vunpack.c.l.b16 %v2782
        %v3246 = vunpack.c.h.b16 %v2782
        %v3247 = vunpack.c.l.b16 %v2783
        %v3248 = vunpack.c.h.b16 %v2783
        %v3249 = vunpack.c.l.b16 %v2784
        %v3250 = vunpack.c.h.b16 %v2784
        %v3251 = vunpack.c.l.b16 %v2785
        %v3252 = vunpack.c.h.b16 %v2785
        %v3253 = vunpack.c.l.b16 %v2786
        %v3254 = vunpack.c.h.b16 %v2786
        %v3255 = vunpack.c.l.b16 %v2787
        %v3256 = vunpack.c.h.b16 %v2787
        %v3257 = vunpack.c.l.b16 %v2788
        %v3258 = vunpack.c.h.b16 %v2788
        %v3259 = vunpack.c.l.b16 %v2789
        %v3260 = vunpack.c.h.b16 %v2789
        %v3261 = vunpack.c.l.b16 %v2790
        %v3262 = vunpack.c.h.b16 %v2790
        %v3263 = vunpack.c.l.b16 %v2791
        %v3264 = vunpack.c.h.b16 %v2791
        %v3265 = vunpack.c.l.b16 %v2792
        %v3266 = vunpack.c.h.b16 %v2792
        %v3267 = vunpack.c.l.b16 %v2793
        %v3268 = vunpack.c.h.b16 %v2793
        %v3269 = vunpack.c.l.b16 %v2794
        %v3270 = vunpack.c.h.b16 %v2794
        %v3271 = vunpack.c.l.b16 %v2795
        %v3272 = vunpack.c.h.b16 %v2795
        %v3273 = vunpack.c.l.b16 %v2796
        %v3274 = vunpack.c.h.b16 %v2796
        %v3275 = vunpack.c.l.b16 %v2797
        %v3276 = vunpack.c.h.b16 %v2797
        %v3277 = vunpack.c.l.b16 %v2798
        %v3278 = vunpack.c.h.b16 %v2798
        %v3279 = vunpack.c.l.b16 %v2799
        %v3280 = vunpack.c.h.b16 %v2799
        %v3281 = vunpack.c.l.b16 %v2800
        %v3282 = vunpack.c.h.b16 %v2800
        %v3283 = vunpack.c.l.b16 %v2801
        %v3284 = vunpack.c.h.b16 %v2801
        %v3285 = vunpack.c.l.b16 %v2802
        %v3286 = vunpack.c.h.b16 %v2802
        %v3287 = vunpack.c.l.b16 %v2803
        %v3288 = vunpack.c.h.b16 %v2803
        %v3289 = vunpack.c.l.b16 %v2804
        %v3290 = vunpack.c.h.b16 %v2804
        %v3291 = vunpack.c.l.b16 %v2805
        %v3292 = vunpack.c.h.b16 %v2805
        %v3293 = vunpack.c.l.b16 %v2806
        %v3294 = vunpack.c.h.b16 %v2806
        %v3295 = vunpack.c.l.b16 %v2807
        %v3296 = vunpack.c.h.b16 %v2807
        %v3297 = vunpack.c.l.b16 %v2808
        %v3298 = vunpack.c.h.b16 %v2808
        %v3299 = vunpack.c.l.b16 %v2809
        %v3300 = vunpack.c.h.b16 %v2809
        %v3301 = vunpack.c.l.b16 %v2810
        %v3302 = vunpack.c.h.b16 %v2810
        %v3303 = vunpack.c.l.b16 %v2811
        %v3304 = vunpack.c.h.b16 %v2811
        %v3305 = vunpack.c.l.b16 %v2812
        %v3306 = vunpack.c.h.b16 %v2812
        %v3307 = vunpack.c.l.b16 %v2813
        %v3308 = vunpack.c.h.b16 %v2813
        %v3309 = vunpack.c.l.b16 %v2814
        %v3310 = vunpack.c.h.b16 %v2814
        %v3311 = vunpack.c.l.b16 %v2815
        %v3312 = vunpack.c.h.b16 %v2815
        %v3313 = vunpack.c.l.b16 %v2816
        %v3314 = vunpack.c.h.b16 %v2816
        %v3315 = vunpack.c.l.b16 %v2817
        %v3316 = vunpack.c.h.b16 %v2817
        %v3317 = vunpack.c.l.b16 %v2818
        %v3318 = vunpack.c.h.b16 %v2818
        %v3319 = vunpack.c.l.b16 %v2819
        %v3320 = vunpack.c.h.b16 %v2819
        %v3321 = vunpack.c.l.b16 %v2820
        %v3322 = vunpack.c.h.b16 %v2820
        %v3323 = vunpack.c.l.b16 %v2821
        %v3324 = vunpack.c.h.b16 %v2821
        %v3325 = vunpack.c.l.b16 %v2822
        %v3326 = vunpack.c.h.b16 %v2822
        %v3327 = vunpack.c.l.b16 %v2823
        %v3328 = vunpack.c.h.b16 %v2823
        %v3329 = vunpack.c.l.b16 %v2824
        %v3330 = vunpack.c.h.b16 %v2824
        %v3331 = vunpack.c.l.b16 %v2825
        %v3332 = vunpack.c.h.b16 %v2825
        %v3333 = vunpack.c.l.b16 %v2826
        %v3334 = vunpack.c.h.b16 %v2826
        %v3335 = vunpack.c.l.b16 %v2827
        %v3336 = vunpack.c.h.b16 %v2827
        %v3337 = vunpack.c.l.b16 %v2828
        %v3338 = vunpack.c.h.b16 %v2828
        %v3339 = vunpack.c.l.b16 %v2829
        %v3340 = vunpack.c.h.b16 %v2829
        %v3341 = vunpack.c.l.b16 %v2830
        %v3342 = vunpack.c.h.b16 %v2830
        %v3343 = vpack.c.b16 %v3219, %v3215
        %v3344 = vpack.c.b16 %v3220, %v3216
        %v3345 = vpack.c.b16 %v3221, %v3217
        %v3346 = vpack.c.b16 %v3222, %v3218
        %v3347 = vpack.c.b16 %v3227, %v3223
        %v3348 = vpack.c.b16 %v3228, %v3224
        %v3349 = vpack.c.b16 %v3229, %v3225
        %v3350 = vpack.c.b16 %v3230, %v3226
        %v3351 = vpack.c.b16 %v3235, %v3231
        %v3352 = vpack.c.b16 %v3236, %v3232
        %v3353 = vpack.c.b16 %v3237, %v3233
        %v3354 = vpack.c.b16 %v3238, %v3234
        %v3355 = vpack.c.b16 %v3243, %v3239
        %v3356 = vpack.c.b16 %v3244, %v3240
        %v3357 = vpack.c.b16 %v3245, %v3241
        %v3358 = vpack.c.b16 %v3246, %v3242
        %v3359 = vpack.c.b16 %v3251, %v3247
        %v3360 = vpack.c.b16 %v3252, %v3248
        %v3361 = vpack.c.b16 %v3253, %v3249
        %v3362 = vpack.c.b16 %v3254, %v3250
        %v3363 = vpack.c.b16 %v3259, %v3255
        %v3364 = vpack.c.b16 %v3260, %v3256
        %v3365 = vpack.c.b16 %v3261, %v3257
        %v3366 = vpack.c.b16 %v3262, %v3258
        %v3367 = vpack.c.b16 %v3267, %v3263
        %v3368 = vpack.c.b16 %v3268, %v3264
        %v3369 = vpack.c.b16 %v3269, %v3265
        %v3370 = vpack.c.b16 %v3270, %v3266
        %v3371 = vpack.c.b16 %v3275, %v3271
        %v3372 = vpack.c.b16 %v3276, %v3272
        %v3373 = vpack.c.b16 %v3277, %v3273
        %v3374 = vpack.c.b16 %v3278, %v3274
        %v3375 = vpack.c.b16 %v3283, %v3279
        %v3376 = vpack.c.b16 %v3284, %v3280
        %v3377 = vpack.c.b16 %v3285, %v3281
        %v3378 = vpack.c.b16 %v3286, %v3282
        %v3379 = vpack.c.b16 %v3291, %v3287
        %v3380 = vpack.c.b16 %v3292, %v3288
        %v3381 = vpack.c.b16 %v3293, %v3289
        %v3382 = vpack.c.b16 %v3294, %v3290
        %v3383 = vpack.c.b16 %v3299, %v3295
        %v3384 = vpack.c.b16 %v3300, %v3296
        %v3385 = vpack.c.b16 %v3301, %v3297
        %v3386 = vpack.c.b16 %v3302, %v3298
        %v3387 = vpack.c.b16 %v3307, %v3303
        %v3388 = vpack.c.b16 %v3308, %v3304
        %v3389 = vpack.c.b16 %v3309, %v3305
        %v3390 = vpack.c.b16 %v3310, %v3306
        %v3391 = vpack.c.b16 %v3315, %v3311
        %v3392 = vpack.c.b16 %v3316, %v3312
        %v3393 = vpack.c.b16 %v3317, %v3313
        %v3394 = vpack.c.b16 %v3318, %v3314
        %v3395 = vpack.c.b16 %v3323, %v3319
        %v3396 = vpack.c.b16 %v3324, %v3320
        %v3397 = vpack.c.b16 %v3325, %v3321
        %v3398 = vpack.c.b16 %v3326, %v3322
        %v3399 = vpack.c.b16 %v3331, %v3327
        %v3400 = vpack.c.b16 %v3332, %v3328
        %v3401 = vpack.c.b16 %v3333, %v3329
        %v3402 = vpack.c.b16 %v3334, %v3330
        %v3403 = vpack.c.b16 %v3339, %v3335
        %v3404 = vpack.c.b16 %v3340, %v3336
        %v3405 = vpack.c.b16 %v3341, %v3337
        %v3406 = vpack.c.b16 %v3342, %v3338
        %3471 = vmatpush.bf16.msra.mxu0 %v3371
        %3472 = vmatpush.bf16.msra.mxu0 %v3367
        %3473 = vmatpush.bf16.msra.mxu0 %v3363
        %3474 = vmatpush.bf16.msra.mxu0 %v3359
        %3475 = vmatpush.bf16.msra.mxu0 %v3355
        %3476 = vmatpush.bf16.msra.mxu0 %v3351
        %3477 = vmatpush.bf16.msra.mxu0 %v3347
        %3478 = vmatpush.bf16.msra.mxu0 %v3343
        %3479 = vmatmul.bf16.gmra.mxu0 %v3023
        %v3480 = vpop.f32.mrf.mxu0
        %v3481 = vadd.f32 0.0, %v3480
        %v3482 = vpop.f32.mrf.mxu0
        %v3483 = vadd.f32 0.0, %v3482
        %3484 = vmatmul.bf16.gmra.mxu0 %v3025
        %v3485 = vpop.f32.mrf.mxu0
        %v3486 = vadd.f32 0.0, %v3485
        %v3487 = vpop.f32.mrf.mxu0
        %v3488 = vadd.f32 0.0, %v3487
        %3489 = vmatmul.bf16.gmra.mxu0 %v3027
        %v3490 = vpop.f32.mrf.mxu0
        %v3491 = vadd.f32 0.0, %v3490
        %v3492 = vpop.f32.mrf.mxu0
        %v3493 = vadd.f32 0.0, %v3492
        %3494 = vmatmul.bf16.gmra.mxu0 %v3029
        %v3495 = vpop.f32.mrf.mxu0
        %v3496 = vadd.f32 0.0, %v3495
        %v3497 = vpop.f32.mrf.mxu0
        %v3498 = vadd.f32 0.0, %v3497
        %3499 = vmatmul.bf16.gmra.mxu0 %v3031
        %v3500 = vpop.f32.mrf.mxu0
        %v3501 = vadd.f32 0.0, %v3500
        %v3502 = vpop.f32.mrf.mxu0
        %v3503 = vadd.f32 0.0, %v3502
        %3504 = vmatmul.bf16.gmra.mxu0 %v3033
        %v3505 = vpop.f32.mrf.mxu0
        %v3506 = vadd.f32 0.0, %v3505
        %v3507 = vpop.f32.mrf.mxu0
        %v3508 = vadd.f32 0.0, %v3507
        %3509 = vmatmul.bf16.gmra.mxu0 %v3035
        %v3510 = vpop.f32.mrf.mxu0
        %v3511 = vadd.f32 0.0, %v3510
        %v3512 = vpop.f32.mrf.mxu0
        %v3513 = vadd.f32 0.0, %v3512
        %3514 = vmatmul.bf16.gmra.mxu0 %v3037
        %v3515 = vpop.f32.mrf.mxu0
        %v3516 = vadd.f32 0.0, %v3515
        %v3517 = vpop.f32.mrf.mxu0
        %v3518 = vadd.f32 0.0, %v3517
        %3519 = vmatmul.bf16.gmra.mxu0 %v3039
        %v3520 = vpop.f32.mrf.mxu0
        %v3521 = vadd.f32 0.0, %v3520
        %v3522 = vpop.f32.mrf.mxu0
        %v3523 = vadd.f32 0.0, %v3522
        %3524 = vmatmul.bf16.gmra.mxu0 %v3041
        %v3525 = vpop.f32.mrf.mxu0
        %v3526 = vadd.f32 0.0, %v3525
        %v3527 = vpop.f32.mrf.mxu0
        %v3528 = vadd.f32 0.0, %v3527
        %3529 = vmatmul.bf16.gmra.mxu0 %v3043
        %v3530 = vpop.f32.mrf.mxu0
        %v3531 = vadd.f32 0.0, %v3530
        %v3532 = vpop.f32.mrf.mxu0
        %v3533 = vadd.f32 0.0, %v3532
        %3534 = vmatmul.bf16.gmra.mxu0 %v3045
        %v3535 = vpop.f32.mrf.mxu0
        %v3536 = vadd.f32 0.0, %v3535
        %v3537 = vpop.f32.mrf.mxu0
        %v3538 = vadd.f32 0.0, %v3537
        %3539 = vmatmul.bf16.gmra.mxu0 %v3047
        %v3540 = vpop.f32.mrf.mxu0
        %v3541 = vadd.f32 0.0, %v3540
        %v3542 = vpop.f32.mrf.mxu0
        %v3543 = vadd.f32 0.0, %v3542
        %3544 = vmatmul.bf16.gmra.mxu0 %v3049
        %v3545 = vpop.f32.mrf.mxu0
        %v3546 = vadd.f32 0.0, %v3545
        %v3547 = vpop.f32.mrf.mxu0
        %v3548 = vadd.f32 0.0, %v3547
        %3549 = vmatmul.bf16.gmra.mxu0 %v3051
        %v3550 = vpop.f32.mrf.mxu0
        %v3551 = vadd.f32 0.0, %v3550
        %v3552 = vpop.f32.mrf.mxu0
        %v3553 = vadd.f32 0.0, %v3552
        %3554 = vmatmul.bf16.gmra.mxu0 %v3053
        %v3555 = vpop.f32.mrf.mxu0
        %v3556 = vadd.f32 0.0, %v3555
        %v3557 = vpop.f32.mrf.mxu0
        %v3558 = vadd.f32 0.0, %v3557
        %3559 = vmatmul.bf16.gmra.mxu0 %v3055
        %v3560 = vpop.f32.mrf.mxu0
        %v3561 = vadd.f32 0.0, %v3560
        %v3562 = vpop.f32.mrf.mxu0
        %v3563 = vadd.f32 0.0, %v3562
        %3564 = vmatmul.bf16.gmra.mxu0 %v3057
        %v3565 = vpop.f32.mrf.mxu0
        %v3566 = vadd.f32 0.0, %v3565
        %v3567 = vpop.f32.mrf.mxu0
        %v3568 = vadd.f32 0.0, %v3567
        %3569 = vmatmul.bf16.gmra.mxu0 %v3059
        %v3570 = vpop.f32.mrf.mxu0
        %v3571 = vadd.f32 0.0, %v3570
        %v3572 = vpop.f32.mrf.mxu0
        %v3573 = vadd.f32 0.0, %v3572
        %3574 = vmatmul.bf16.gmra.mxu0 %v3061
        %v3575 = vpop.f32.mrf.mxu0
        %v3576 = vadd.f32 0.0, %v3575
        %v3577 = vpop.f32.mrf.mxu0
        %v3578 = vadd.f32 0.0, %v3577
        %3579 = vmatmul.bf16.gmra.mxu0 %v3063
        %v3580 = vpop.f32.mrf.mxu0
        %v3581 = vadd.f32 0.0, %v3580
        %v3582 = vpop.f32.mrf.mxu0
        %v3583 = vadd.f32 0.0, %v3582
        %3584 = vmatmul.bf16.gmra.mxu0 %v3065
        %v3585 = vpop.f32.mrf.mxu0
        %v3586 = vadd.f32 0.0, %v3585
        %v3587 = vpop.f32.mrf.mxu0
        %v3588 = vadd.f32 0.0, %v3587
        %3589 = vmatmul.bf16.gmra.mxu0 %v3067
        %v3590 = vpop.f32.mrf.mxu0
        %v3591 = vadd.f32 0.0, %v3590
        %v3592 = vpop.f32.mrf.mxu0
        %v3593 = vadd.f32 0.0, %v3592
        %3594 = vmatmul.bf16.gmra.mxu0 %v3069
        %v3595 = vpop.f32.mrf.mxu0
        %v3596 = vadd.f32 0.0, %v3595
        %v3597 = vpop.f32.mrf.mxu0
        %v3598 = vadd.f32 0.0, %v3597
        %3599 = vmatmul.bf16.gmra.mxu0 %v3071
        %v3600 = vpop.f32.mrf.mxu0
        %v3601 = vadd.f32 0.0, %v3600
        %v3602 = vpop.f32.mrf.mxu0
        %v3603 = vadd.f32 0.0, %v3602
        %3604 = vmatmul.bf16.gmra.mxu0 %v3073
        %v3605 = vpop.f32.mrf.mxu0
        %v3606 = vadd.f32 0.0, %v3605
        %v3607 = vpop.f32.mrf.mxu0
        %v3608 = vadd.f32 0.0, %v3607
        %3609 = vmatmul.bf16.gmra.mxu0 %v3075
        %v3610 = vpop.f32.mrf.mxu0
        %v3611 = vadd.f32 0.0, %v3610
        %v3612 = vpop.f32.mrf.mxu0
        %v3613 = vadd.f32 0.0, %v3612
        %3614 = vmatmul.bf16.gmra.mxu0 %v3077
        %v3615 = vpop.f32.mrf.mxu0
        %v3616 = vadd.f32 0.0, %v3615
        %v3617 = vpop.f32.mrf.mxu0
        %v3618 = vadd.f32 0.0, %v3617
        %3619 = vmatmul.bf16.gmra.mxu0 %v3079
        %v3620 = vpop.f32.mrf.mxu0
        %v3621 = vadd.f32 0.0, %v3620
        %v3622 = vpop.f32.mrf.mxu0
        %v3623 = vadd.f32 0.0, %v3622
        %3624 = vmatmul.bf16.gmra.mxu0 %v3081
        %v3625 = vpop.f32.mrf.mxu0
        %v3626 = vadd.f32 0.0, %v3625
        %v3627 = vpop.f32.mrf.mxu0
        %v3628 = vadd.f32 0.0, %v3627
        %3629 = vmatmul.bf16.gmra.mxu0 %v3083
        %v3630 = vpop.f32.mrf.mxu0
        %v3631 = vadd.f32 0.0, %v3630
        %v3632 = vpop.f32.mrf.mxu0
        %v3633 = vadd.f32 0.0, %v3632
        %3634 = vmatmul.bf16.gmra.mxu0 %v3085
        %v3635 = vpop.f32.mrf.mxu0
        %v3636 = vadd.f32 0.0, %v3635
        %v3637 = vpop.f32.mrf.mxu0
        %v3638 = vadd.f32 0.0, %v3637
        %3639 = vdwg.mxu0
        %3640 = vmatpush.bf16.msra.mxu0 %v3403
        %3641 = vmatpush.bf16.msra.mxu0 %v3399
        %3642 = vmatpush.bf16.msra.mxu0 %v3395
        %3643 = vmatpush.bf16.msra.mxu0 %v3391
        %3644 = vmatpush.bf16.msra.mxu0 %v3387
        %3645 = vmatpush.bf16.msra.mxu0 %v3383
        %3646 = vmatpush.bf16.msra.mxu0 %v3379
        %3647 = vmatpush.bf16.msra.mxu0 %v3375
        %3648 = vmatmul.bf16.gmra.mxu0 %v3024
        %v3649 = vpop.f32.mrf.mxu0
        %v3650 = vadd.f32 %v3481, %v3649
        %v3651 = vpop.f32.mrf.mxu0
        %v3652 = vadd.f32 %v3483, %v3651
        %3653 = vmatmul.bf16.gmra.mxu0 %v3026
        %v3654 = vpop.f32.mrf.mxu0
        %v3655 = vadd.f32 %v3486, %v3654
        %v3656 = vpop.f32.mrf.mxu0
        %v3657 = vadd.f32 %v3488, %v3656
        %3658 = vmatmul.bf16.gmra.mxu0 %v3028
        %v3659 = vpop.f32.mrf.mxu0
        %v3660 = vadd.f32 %v3491, %v3659
        %v3661 = vpop.f32.mrf.mxu0
        %v3662 = vadd.f32 %v3493, %v3661
        %3663 = vmatmul.bf16.gmra.mxu0 %v3030
        %v3664 = vpop.f32.mrf.mxu0
        %v3665 = vadd.f32 %v3496, %v3664
        %v3666 = vpop.f32.mrf.mxu0
        %v3667 = vadd.f32 %v3498, %v3666
        %3668 = vmatmul.bf16.gmra.mxu0 %v3032
        %v3669 = vpop.f32.mrf.mxu0
        %v3670 = vadd.f32 %v3501, %v3669
        %v3671 = vpop.f32.mrf.mxu0
        %v3672 = vadd.f32 %v3503, %v3671
        %3673 = vmatmul.bf16.gmra.mxu0 %v3034
        %v3674 = vpop.f32.mrf.mxu0
        %v3675 = vadd.f32 %v3506, %v3674
        %v3676 = vpop.f32.mrf.mxu0
        %v3677 = vadd.f32 %v3508, %v3676
        %3678 = vmatmul.bf16.gmra.mxu0 %v3036
        %v3679 = vpop.f32.mrf.mxu0
        %v3680 = vadd.f32 %v3511, %v3679
        %v3681 = vpop.f32.mrf.mxu0
        %v3682 = vadd.f32 %v3513, %v3681
        %3683 = vmatmul.bf16.gmra.mxu0 %v3038
        %v3684 = vpop.f32.mrf.mxu0
        %v3685 = vadd.f32 %v3516, %v3684
        %v3686 = vpop.f32.mrf.mxu0
        %v3687 = vadd.f32 %v3518, %v3686
        %3688 = vmatmul.bf16.gmra.mxu0 %v3040
        %v3689 = vpop.f32.mrf.mxu0
        %v3690 = vadd.f32 %v3521, %v3689
        %v3691 = vpop.f32.mrf.mxu0
        %v3692 = vadd.f32 %v3523, %v3691
        %3693 = vmatmul.bf16.gmra.mxu0 %v3042
        %v3694 = vpop.f32.mrf.mxu0
        %v3695 = vadd.f32 %v3526, %v3694
        %v3696 = vpop.f32.mrf.mxu0
        %v3697 = vadd.f32 %v3528, %v3696
        %3698 = vmatmul.bf16.gmra.mxu0 %v3044
        %v3699 = vpop.f32.mrf.mxu0
        %v3700 = vadd.f32 %v3531, %v3699
        %v3701 = vpop.f32.mrf.mxu0
        %v3702 = vadd.f32 %v3533, %v3701
        %3703 = vmatmul.bf16.gmra.mxu0 %v3046
        %v3704 = vpop.f32.mrf.mxu0
        %v3705 = vadd.f32 %v3536, %v3704
        %v3706 = vpop.f32.mrf.mxu0
        %v3707 = vadd.f32 %v3538, %v3706
        %3708 = vmatmul.bf16.gmra.mxu0 %v3048
        %v3709 = vpop.f32.mrf.mxu0
        %v3710 = vadd.f32 %v3541, %v3709
        %v3711 = vpop.f32.mrf.mxu0
        %v3712 = vadd.f32 %v3543, %v3711
        %3713 = vmatmul.bf16.gmra.mxu0 %v3050
        %v3714 = vpop.f32.mrf.mxu0
        %v3715 = vadd.f32 %v3546, %v3714
        %v3716 = vpop.f32.mrf.mxu0
        %v3717 = vadd.f32 %v3548, %v3716
        %3718 = vmatmul.bf16.gmra.mxu0 %v3052
        %v3719 = vpop.f32.mrf.mxu0
        %v3720 = vadd.f32 %v3551, %v3719
        %v3721 = vpop.f32.mrf.mxu0
        %v3722 = vadd.f32 %v3553, %v3721
        %3723 = vmatmul.bf16.gmra.mxu0 %v3054
        %v3724 = vpop.f32.mrf.mxu0
        %v3725 = vadd.f32 %v3556, %v3724
        %v3726 = vpop.f32.mrf.mxu0
        %v3727 = vadd.f32 %v3558, %v3726
        %3728 = vmatmul.bf16.gmra.mxu0 %v3056
        %v3729 = vpop.f32.mrf.mxu0
        %v3730 = vadd.f32 %v3561, %v3729
        %v3731 = vpop.f32.mrf.mxu0
        %v3732 = vadd.f32 %v3563, %v3731
        %3733 = vmatmul.bf16.gmra.mxu0 %v3058
        %v3734 = vpop.f32.mrf.mxu0
        %v3735 = vadd.f32 %v3566, %v3734
        %v3736 = vpop.f32.mrf.mxu0
        %v3737 = vadd.f32 %v3568, %v3736
        %3738 = vmatmul.bf16.gmra.mxu0 %v3060
        %v3739 = vpop.f32.mrf.mxu0
        %v3740 = vadd.f32 %v3571, %v3739
        %v3741 = vpop.f32.mrf.mxu0
        %v3742 = vadd.f32 %v3573, %v3741
        %3743 = vmatmul.bf16.gmra.mxu0 %v3062
        %v3744 = vpop.f32.mrf.mxu0
        %v3745 = vadd.f32 %v3576, %v3744
        %v3746 = vpop.f32.mrf.mxu0
        %v3747 = vadd.f32 %v3578, %v3746
        %3748 = vmatmul.bf16.gmra.mxu0 %v3064
        %v3749 = vpop.f32.mrf.mxu0
        %v3750 = vadd.f32 %v3581, %v3749
        %v3751 = vpop.f32.mrf.mxu0
        %v3752 = vadd.f32 %v3583, %v3751
        %3753 = vmatmul.bf16.gmra.mxu0 %v3066
        %v3754 = vpop.f32.mrf.mxu0
        %v3755 = vadd.f32 %v3586, %v3754
        %v3756 = vpop.f32.mrf.mxu0
        %v3757 = vadd.f32 %v3588, %v3756
        %3758 = vmatmul.bf16.gmra.mxu0 %v3068
        %v3759 = vpop.f32.mrf.mxu0
        %v3760 = vadd.f32 %v3591, %v3759
        %v3761 = vpop.f32.mrf.mxu0
        %v3762 = vadd.f32 %v3593, %v3761
        %3763 = vmatmul.bf16.gmra.mxu0 %v3070
        %v3764 = vpop.f32.mrf.mxu0
        %v3765 = vadd.f32 %v3596, %v3764
        %v3766 = vpop.f32.mrf.mxu0
        %v3767 = vadd.f32 %v3598, %v3766
        %3768 = vmatmul.bf16.gmra.mxu0 %v3072
        %v3769 = vpop.f32.mrf.mxu0
        %v3770 = vadd.f32 %v3601, %v3769
        %v3771 = vpop.f32.mrf.mxu0
        %v3772 = vadd.f32 %v3603, %v3771
        %3773 = vmatmul.bf16.gmra.mxu0 %v3074
        %v3774 = vpop.f32.mrf.mxu0
        %v3775 = vadd.f32 %v3606, %v3774
        %v3776 = vpop.f32.mrf.mxu0
        %v3777 = vadd.f32 %v3608, %v3776
        %3778 = vmatmul.bf16.gmra.mxu0 %v3076
        %v3779 = vpop.f32.mrf.mxu0
        %v3780 = vadd.f32 %v3611, %v3779
        %v3781 = vpop.f32.mrf.mxu0
        %v3782 = vadd.f32 %v3613, %v3781
        %3783 = vmatmul.bf16.gmra.mxu0 %v3078
        %v3784 = vpop.f32.mrf.mxu0
        %v3785 = vadd.f32 %v3616, %v3784
        %v3786 = vpop.f32.mrf.mxu0
        %v3787 = vadd.f32 %v3618, %v3786
        %3788 = vmatmul.bf16.gmra.mxu0 %v3080
        %v3789 = vpop.f32.mrf.mxu0
        %v3790 = vadd.f32 %v3621, %v3789
        %v3791 = vpop.f32.mrf.mxu0
        %v3792 = vadd.f32 %v3623, %v3791
        %3793 = vmatmul.bf16.gmra.mxu0 %v3082
        %v3794 = vpop.f32.mrf.mxu0
        %v3795 = vadd.f32 %v3626, %v3794
        %v3796 = vpop.f32.mrf.mxu0
        %v3797 = vadd.f32 %v3628, %v3796
        %3798 = vmatmul.bf16.gmra.mxu0 %v3084
        %v3799 = vpop.f32.mrf.mxu0
        %v3800 = vadd.f32 %v3631, %v3799
        %v3801 = vpop.f32.mrf.mxu0
        %v3802 = vadd.f32 %v3633, %v3801
        %3803 = vmatmul.bf16.gmra.mxu0 %v3086
        %v3804 = vpop.f32.mrf.mxu0
        %v3805 = vadd.f32 %v3636, %v3804
        %v3806 = vpop.f32.mrf.mxu0
        %v3807 = vadd.f32 %v3638, %v3806
        %3808 = vdwg.mxu0
        %3809 = vmatpush.bf16.msra.mxu0 %v3372
        %3810 = vmatpush.bf16.msra.mxu0 %v3368
        %3811 = vmatpush.bf16.msra.mxu0 %v3364
        %3812 = vmatpush.bf16.msra.mxu0 %v3360
        %3813 = vmatpush.bf16.msra.mxu0 %v3356
        %3814 = vmatpush.bf16.msra.mxu0 %v3352
        %3815 = vmatpush.bf16.msra.mxu0 %v3348
        %3816 = vmatpush.bf16.msra.mxu0 %v3344
        %3817 = vmatmul.bf16.gmra.mxu0 %v3023
        %v3818 = vpop.f32.mrf.mxu0
        %v3819 = vadd.f32 0.0, %v3818
        %v3820 = vpop.f32.mrf.mxu0
        %v3821 = vadd.f32 0.0, %v3820
        %3822 = vmatmul.bf16.gmra.mxu0 %v3025
        %v3823 = vpop.f32.mrf.mxu0
        %v3824 = vadd.f32 0.0, %v3823
        %v3825 = vpop.f32.mrf.mxu0
        %v3826 = vadd.f32 0.0, %v3825
        %3827 = vmatmul.bf16.gmra.mxu0 %v3027
        %v3828 = vpop.f32.mrf.mxu0
        %v3829 = vadd.f32 0.0, %v3828
        %v3830 = vpop.f32.mrf.mxu0
        %v3831 = vadd.f32 0.0, %v3830
        %3832 = vmatmul.bf16.gmra.mxu0 %v3029
        %v3833 = vpop.f32.mrf.mxu0
        %v3834 = vadd.f32 0.0, %v3833
        %v3835 = vpop.f32.mrf.mxu0
        %v3836 = vadd.f32 0.0, %v3835
        %3837 = vmatmul.bf16.gmra.mxu0 %v3031
        %v3838 = vpop.f32.mrf.mxu0
        %v3839 = vadd.f32 0.0, %v3838
        %v3840 = vpop.f32.mrf.mxu0
        %v3841 = vadd.f32 0.0, %v3840
        %3842 = vmatmul.bf16.gmra.mxu0 %v3033
        %v3843 = vpop.f32.mrf.mxu0
        %v3844 = vadd.f32 0.0, %v3843
        %v3845 = vpop.f32.mrf.mxu0
        %v3846 = vadd.f32 0.0, %v3845
        %3847 = vmatmul.bf16.gmra.mxu0 %v3035
        %v3848 = vpop.f32.mrf.mxu0
        %v3849 = vadd.f32 0.0, %v3848
        %v3850 = vpop.f32.mrf.mxu0
        %v3851 = vadd.f32 0.0, %v3850
        %3852 = vmatmul.bf16.gmra.mxu0 %v3037
        %v3853 = vpop.f32.mrf.mxu0
        %v3854 = vadd.f32 0.0, %v3853
        %v3855 = vpop.f32.mrf.mxu0
        %v3856 = vadd.f32 0.0, %v3855
        %3857 = vmatmul.bf16.gmra.mxu0 %v3039
        %v3858 = vpop.f32.mrf.mxu0
        %v3859 = vadd.f32 0.0, %v3858
        %v3860 = vpop.f32.mrf.mxu0
        %v3861 = vadd.f32 0.0, %v3860
        %3862 = vmatmul.bf16.gmra.mxu0 %v3041
        %v3863 = vpop.f32.mrf.mxu0
        %v3864 = vadd.f32 0.0, %v3863
        %v3865 = vpop.f32.mrf.mxu0
        %v3866 = vadd.f32 0.0, %v3865
        %3867 = vmatmul.bf16.gmra.mxu0 %v3043
        %v3868 = vpop.f32.mrf.mxu0
        %v3869 = vadd.f32 0.0, %v3868
        %v3870 = vpop.f32.mrf.mxu0
        %v3871 = vadd.f32 0.0, %v3870
        %3872 = vmatmul.bf16.gmra.mxu0 %v3045
        %v3873 = vpop.f32.mrf.mxu0
        %v3874 = vadd.f32 0.0, %v3873
        %v3875 = vpop.f32.mrf.mxu0
        %v3876 = vadd.f32 0.0, %v3875
        %3877 = vmatmul.bf16.gmra.mxu0 %v3047
        %v3878 = vpop.f32.mrf.mxu0
        %v3879 = vadd.f32 0.0, %v3878
        %v3880 = vpop.f32.mrf.mxu0
        %v3881 = vadd.f32 0.0, %v3880
        %3882 = vmatmul.bf16.gmra.mxu0 %v3049
        %v3883 = vpop.f32.mrf.mxu0
        %v3884 = vadd.f32 0.0, %v3883
        %v3885 = vpop.f32.mrf.mxu0
        %v3886 = vadd.f32 0.0, %v3885
        %3887 = vmatmul.bf16.gmra.mxu0 %v3051
        %v3888 = vpop.f32.mrf.mxu0
        %v3889 = vadd.f32 0.0, %v3888
        %v3890 = vpop.f32.mrf.mxu0
        %v3891 = vadd.f32 0.0, %v3890
        %3892 = vmatmul.bf16.gmra.mxu0 %v3053
        %v3893 = vpop.f32.mrf.mxu0
        %v3894 = vadd.f32 0.0, %v3893
        %v3895 = vpop.f32.mrf.mxu0
        %v3896 = vadd.f32 0.0, %v3895
        %3897 = vmatmul.bf16.gmra.mxu0 %v3055
        %v3898 = vpop.f32.mrf.mxu0
        %v3899 = vadd.f32 0.0, %v3898
        %v3900 = vpop.f32.mrf.mxu0
        %v3901 = vadd.f32 0.0, %v3900
        %3902 = vmatmul.bf16.gmra.mxu0 %v3057
        %v3903 = vpop.f32.mrf.mxu0
        %v3904 = vadd.f32 0.0, %v3903
        %v3905 = vpop.f32.mrf.mxu0
        %v3906 = vadd.f32 0.0, %v3905
        %3907 = vmatmul.bf16.gmra.mxu0 %v3059
        %v3908 = vpop.f32.mrf.mxu0
        %v3909 = vadd.f32 0.0, %v3908
        %v3910 = vpop.f32.mrf.mxu0
        %v3911 = vadd.f32 0.0, %v3910
        %3912 = vmatmul.bf16.gmra.mxu0 %v3061
        %v3913 = vpop.f32.mrf.mxu0
        %v3914 = vadd.f32 0.0, %v3913
        %v3915 = vpop.f32.mrf.mxu0
        %v3916 = vadd.f32 0.0, %v3915
        %3917 = vmatmul.bf16.gmra.mxu0 %v3063
        %v3918 = vpop.f32.mrf.mxu0
        %v3919 = vadd.f32 0.0, %v3918
        %v3920 = vpop.f32.mrf.mxu0
        %v3921 = vadd.f32 0.0, %v3920
        %3922 = vmatmul.bf16.gmra.mxu0 %v3065
        %v3923 = vpop.f32.mrf.mxu0
        %v3924 = vadd.f32 0.0, %v3923
        %v3925 = vpop.f32.mrf.mxu0
        %v3926 = vadd.f32 0.0, %v3925
        %3927 = vmatmul.bf16.gmra.mxu0 %v3067
        %v3928 = vpop.f32.mrf.mxu0
        %v3929 = vadd.f32 0.0, %v3928
        %v3930 = vpop.f32.mrf.mxu0
        %v3931 = vadd.f32 0.0, %v3930
        %3932 = vmatmul.bf16.gmra.mxu0 %v3069
        %v3933 = vpop.f32.mrf.mxu0
        %v3934 = vadd.f32 0.0, %v3933
        %v3935 = vpop.f32.mrf.mxu0
        %v3936 = vadd.f32 0.0, %v3935
        %3937 = vmatmul.bf16.gmra.mxu0 %v3071
        %v3938 = vpop.f32.mrf.mxu0
        %v3939 = vadd.f32 0.0, %v3938
        %v3940 = vpop.f32.mrf.mxu0
        %v3941 = vadd.f32 0.0, %v3940
        %3942 = vmatmul.bf16.gmra.mxu0 %v3073
        %v3943 = vpop.f32.mrf.mxu0
        %v3944 = vadd.f32 0.0, %v3943
        %v3945 = vpop.f32.mrf.mxu0
        %v3946 = vadd.f32 0.0, %v3945
        %3947 = vmatmul.bf16.gmra.mxu0 %v3075
        %v3948 = vpop.f32.mrf.mxu0
        %v3949 = vadd.f32 0.0, %v3948
        %v3950 = vpop.f32.mrf.mxu0
        %v3951 = vadd.f32 0.0, %v3950
        %3952 = vmatmul.bf16.gmra.mxu0 %v3077
        %v3953 = vpop.f32.mrf.mxu0
        %v3954 = vadd.f32 0.0, %v3953
        %v3955 = vpop.f32.mrf.mxu0
        %v3956 = vadd.f32 0.0, %v3955
        %3957 = vmatmul.bf16.gmra.mxu0 %v3079
        %v3958 = vpop.f32.mrf.mxu0
        %v3959 = vadd.f32 0.0, %v3958
        %v3960 = vpop.f32.mrf.mxu0
        %v3961 = vadd.f32 0.0, %v3960
        %3962 = vmatmul.bf16.gmra.mxu0 %v3081
        %v3963 = vpop.f32.mrf.mxu0
        %v3964 = vadd.f32 0.0, %v3963
        %v3965 = vpop.f32.mrf.mxu0
        %v3966 = vadd.f32 0.0, %v3965
        %3967 = vmatmul.bf16.gmra.mxu0 %v3083
        %v3968 = vpop.f32.mrf.mxu0
        %v3969 = vadd.f32 0.0, %v3968
        %v3970 = vpop.f32.mrf.mxu0
        %v3971 = vadd.f32 0.0, %v3970
        %3972 = vmatmul.bf16.gmra.mxu0 %v3085
        %v3973 = vpop.f32.mrf.mxu0
        %v3974 = vadd.f32 0.0, %v3973
        %v3975 = vpop.f32.mrf.mxu0
        %v3976 = vadd.f32 0.0, %v3975
        %3977 = vdwg.mxu0
        %3978 = vmatpush.bf16.msra.mxu0 %v3404
        %3979 = vmatpush.bf16.msra.mxu0 %v3400
        %3980 = vmatpush.bf16.msra.mxu0 %v3396
        %3981 = vmatpush.bf16.msra.mxu0 %v3392
        %3982 = vmatpush.bf16.msra.mxu0 %v3388
        %3983 = vmatpush.bf16.msra.mxu0 %v3384
        %3984 = vmatpush.bf16.msra.mxu0 %v3380
        %3985 = vmatpush.bf16.msra.mxu0 %v3376
        %3986 = vmatmul.bf16.gmra.mxu0 %v3024
        %v3987 = vpop.f32.mrf.mxu0
        %v3988 = vadd.f32 %v3819, %v3987
        %v3989 = vpop.f32.mrf.mxu0
        %v3990 = vadd.f32 %v3821, %v3989
        %3991 = vmatmul.bf16.gmra.mxu0 %v3026
        %v3992 = vpop.f32.mrf.mxu0
        %v3993 = vadd.f32 %v3824, %v3992
        %v3994 = vpop.f32.mrf.mxu0
        %v3995 = vadd.f32 %v3826, %v3994
        %3996 = vmatmul.bf16.gmra.mxu0 %v3028
        %v3997 = vpop.f32.mrf.mxu0
        %v3998 = vadd.f32 %v3829, %v3997
        %v3999 = vpop.f32.mrf.mxu0
        %v4000 = vadd.f32 %v3831, %v3999
        %4001 = vmatmul.bf16.gmra.mxu0 %v3030
        %v4002 = vpop.f32.mrf.mxu0
        %v4003 = vadd.f32 %v3834, %v4002
        %v4004 = vpop.f32.mrf.mxu0
        %v4005 = vadd.f32 %v3836, %v4004
        %4006 = vmatmul.bf16.gmra.mxu0 %v3032
        %v4007 = vpop.f32.mrf.mxu0
        %v4008 = vadd.f32 %v3839, %v4007
        %v4009 = vpop.f32.mrf.mxu0
        %v4010 = vadd.f32 %v3841, %v4009
        %4011 = vmatmul.bf16.gmra.mxu0 %v3034
        %v4012 = vpop.f32.mrf.mxu0
        %v4013 = vadd.f32 %v3844, %v4012
        %v4014 = vpop.f32.mrf.mxu0
        %v4015 = vadd.f32 %v3846, %v4014
        %4016 = vmatmul.bf16.gmra.mxu0 %v3036
        %v4017 = vpop.f32.mrf.mxu0
        %v4018 = vadd.f32 %v3849, %v4017
        %v4019 = vpop.f32.mrf.mxu0
        %v4020 = vadd.f32 %v3851, %v4019
        %4021 = vmatmul.bf16.gmra.mxu0 %v3038
        %v4022 = vpop.f32.mrf.mxu0
        %v4023 = vadd.f32 %v3854, %v4022
        %v4024 = vpop.f32.mrf.mxu0
        %v4025 = vadd.f32 %v3856, %v4024
        %4026 = vmatmul.bf16.gmra.mxu0 %v3040
        %v4027 = vpop.f32.mrf.mxu0
        %v4028 = vadd.f32 %v3859, %v4027
        %v4029 = vpop.f32.mrf.mxu0
        %v4030 = vadd.f32 %v3861, %v4029
        %4031 = vmatmul.bf16.gmra.mxu0 %v3042
        %v4032 = vpop.f32.mrf.mxu0
        %v4033 = vadd.f32 %v3864, %v4032
        %v4034 = vpop.f32.mrf.mxu0
        %v4035 = vadd.f32 %v3866, %v4034
        %4036 = vmatmul.bf16.gmra.mxu0 %v3044
        %v4037 = vpop.f32.mrf.mxu0
        %v4038 = vadd.f32 %v3869, %v4037
        %v4039 = vpop.f32.mrf.mxu0
        %v4040 = vadd.f32 %v3871, %v4039
        %4041 = vmatmul.bf16.gmra.mxu0 %v3046
        %v4042 = vpop.f32.mrf.mxu0
        %v4043 = vadd.f32 %v3874, %v4042
        %v4044 = vpop.f32.mrf.mxu0
        %v4045 = vadd.f32 %v3876, %v4044
        %4046 = vmatmul.bf16.gmra.mxu0 %v3048
        %v4047 = vpop.f32.mrf.mxu0
        %v4048 = vadd.f32 %v3879, %v4047
        %v4049 = vpop.f32.mrf.mxu0
        %v4050 = vadd.f32 %v3881, %v4049
        %4051 = vmatmul.bf16.gmra.mxu0 %v3050
        %v4052 = vpop.f32.mrf.mxu0
        %v4053 = vadd.f32 %v3884, %v4052
        %v4054 = vpop.f32.mrf.mxu0
        %v4055 = vadd.f32 %v3886, %v4054
        %4056 = vmatmul.bf16.gmra.mxu0 %v3052
        %v4057 = vpop.f32.mrf.mxu0
        %v4058 = vadd.f32 %v3889, %v4057
        %v4059 = vpop.f32.mrf.mxu0
        %v4060 = vadd.f32 %v3891, %v4059
        %4061 = vmatmul.bf16.gmra.mxu0 %v3054
        %v4062 = vpop.f32.mrf.mxu0
        %v4063 = vadd.f32 %v3894, %v4062
        %v4064 = vpop.f32.mrf.mxu0
        %v4065 = vadd.f32 %v3896, %v4064
        %4066 = vmatmul.bf16.gmra.mxu0 %v3056
        %v4067 = vpop.f32.mrf.mxu0
        %v4068 = vadd.f32 %v3899, %v4067
        %v4069 = vpop.f32.mrf.mxu0
        %v4070 = vadd.f32 %v3901, %v4069
        %4071 = vmatmul.bf16.gmra.mxu0 %v3058
        %v4072 = vpop.f32.mrf.mxu0
        %v4073 = vadd.f32 %v3904, %v4072
        %v4074 = vpop.f32.mrf.mxu0
        %v4075 = vadd.f32 %v3906, %v4074
        %4076 = vmatmul.bf16.gmra.mxu0 %v3060
        %v4077 = vpop.f32.mrf.mxu0
        %v4078 = vadd.f32 %v3909, %v4077
        %v4079 = vpop.f32.mrf.mxu0
        %v4080 = vadd.f32 %v3911, %v4079
        %4081 = vmatmul.bf16.gmra.mxu0 %v3062
        %v4082 = vpop.f32.mrf.mxu0
        %v4083 = vadd.f32 %v3914, %v4082
        %v4084 = vpop.f32.mrf.mxu0
        %v4085 = vadd.f32 %v3916, %v4084
        %4086 = vmatmul.bf16.gmra.mxu0 %v3064
        %v4087 = vpop.f32.mrf.mxu0
        %v4088 = vadd.f32 %v3919, %v4087
        %v4089 = vpop.f32.mrf.mxu0
        %v4090 = vadd.f32 %v3921, %v4089
        %4091 = vmatmul.bf16.gmra.mxu0 %v3066
        %v4092 = vpop.f32.mrf.mxu0
        %v4093 = vadd.f32 %v3924, %v4092
        %v4094 = vpop.f32.mrf.mxu0
        %v4095 = vadd.f32 %v3926, %v4094
        %4096 = vmatmul.bf16.gmra.mxu0 %v3068
        %v4097 = vpop.f32.mrf.mxu0
        %v4098 = vadd.f32 %v3929, %v4097
        %v4099 = vpop.f32.mrf.mxu0
        %v4100 = vadd.f32 %v3931, %v4099
        %4101 = vmatmul.bf16.gmra.mxu0 %v3070
        %v4102 = vpop.f32.mrf.mxu0
        %v4103 = vadd.f32 %v3934, %v4102
        %v4104 = vpop.f32.mrf.mxu0
        %v4105 = vadd.f32 %v3936, %v4104
        %4106 = vmatmul.bf16.gmra.mxu0 %v3072
        %v4107 = vpop.f32.mrf.mxu0
        %v4108 = vadd.f32 %v3939, %v4107
        %v4109 = vpop.f32.mrf.mxu0
        %v4110 = vadd.f32 %v3941, %v4109
        %4111 = vmatmul.bf16.gmra.mxu0 %v3074
        %v4112 = vpop.f32.mrf.mxu0
        %v4113 = vadd.f32 %v3944, %v4112
        %v4114 = vpop.f32.mrf.mxu0
        %v4115 = vadd.f32 %v3946, %v4114
        %4116 = vmatmul.bf16.gmra.mxu0 %v3076
        %v4117 = vpop.f32.mrf.mxu0
        %v4118 = vadd.f32 %v3949, %v4117
        %v4119 = vpop.f32.mrf.mxu0
        %v4120 = vadd.f32 %v3951, %v4119
        %4121 = vmatmul.bf16.gmra.mxu0 %v3078
        %v4122 = vpop.f32.mrf.mxu0
        %v4123 = vadd.f32 %v3954, %v4122
        %v4124 = vpop.f32.mrf.mxu0
        %v4125 = vadd.f32 %v3956, %v4124
        %4126 = vmatmul.bf16.gmra.mxu0 %v3080
        %v4127 = vpop.f32.mrf.mxu0
        %v4128 = vadd.f32 %v3959, %v4127
        %v4129 = vpop.f32.mrf.mxu0
        %v4130 = vadd.f32 %v3961, %v4129
        %4131 = vmatmul.bf16.gmra.mxu0 %v3082
        %v4132 = vpop.f32.mrf.mxu0
        %v4133 = vadd.f32 %v3964, %v4132
        %v4134 = vpop.f32.mrf.mxu0
        %v4135 = vadd.f32 %v3966, %v4134
        %4136 = vmatmul.bf16.gmra.mxu0 %v3084
        %v4137 = vpop.f32.mrf.mxu0
        %v4138 = vadd.f32 %v3969, %v4137
        %v4139 = vpop.f32.mrf.mxu0
        %v4140 = vadd.f32 %v3971, %v4139
        %4141 = vmatmul.bf16.gmra.mxu0 %v3086
        %v4142 = vpop.f32.mrf.mxu0
        %v4143 = vadd.f32 %v3974, %v4142
        %v4144 = vpop.f32.mrf.mxu0
        %v4145 = vadd.f32 %v3976, %v4144
        %4146 = vdwg.mxu0
        %4147 = vmatpush.bf16.msra.mxu0 %v3373
        %4148 = vmatpush.bf16.msra.mxu0 %v3369
        %4149 = vmatpush.bf16.msra.mxu0 %v3365
        %4150 = vmatpush.bf16.msra.mxu0 %v3361
        %4151 = vmatpush.bf16.msra.mxu0 %v3357
        %4152 = vmatpush.bf16.msra.mxu0 %v3353
        %4153 = vmatpush.bf16.msra.mxu0 %v3349
        %4154 = vmatpush.bf16.msra.mxu0 %v3345
        %4155 = vmatmul.bf16.gmra.mxu0 %v3023
        %v4156 = vpop.f32.mrf.mxu0
        %v4157 = vadd.f32 0.0, %v4156
        %v4158 = vpop.f32.mrf.mxu0
        %v4159 = vadd.f32 0.0, %v4158
        %4160 = vmatmul.bf16.gmra.mxu0 %v3025
        %v4161 = vpop.f32.mrf.mxu0
        %v4162 = vadd.f32 0.0, %v4161
        %v4163 = vpop.f32.mrf.mxu0
        %v4164 = vadd.f32 0.0, %v4163
        %4165 = vmatmul.bf16.gmra.mxu0 %v3027
        %v4166 = vpop.f32.mrf.mxu0
        %v4167 = vadd.f32 0.0, %v4166
        %v4168 = vpop.f32.mrf.mxu0
        %v4169 = vadd.f32 0.0, %v4168
        %4170 = vmatmul.bf16.gmra.mxu0 %v3029
        %v4171 = vpop.f32.mrf.mxu0
        %v4172 = vadd.f32 0.0, %v4171
        %v4173 = vpop.f32.mrf.mxu0
        %v4174 = vadd.f32 0.0, %v4173
        %4175 = vmatmul.bf16.gmra.mxu0 %v3031
        %v4176 = vpop.f32.mrf.mxu0
        %v4177 = vadd.f32 0.0, %v4176
        %v4178 = vpop.f32.mrf.mxu0
        %v4179 = vadd.f32 0.0, %v4178
        %4180 = vmatmul.bf16.gmra.mxu0 %v3033
        %v4181 = vpop.f32.mrf.mxu0
        %v4182 = vadd.f32 0.0, %v4181
        %v4183 = vpop.f32.mrf.mxu0
        %v4184 = vadd.f32 0.0, %v4183
        %4185 = vmatmul.bf16.gmra.mxu0 %v3035
        %v4186 = vpop.f32.mrf.mxu0
        %v4187 = vadd.f32 0.0, %v4186
        %v4188 = vpop.f32.mrf.mxu0
        %v4189 = vadd.f32 0.0, %v4188
        %4190 = vmatmul.bf16.gmra.mxu0 %v3037
        %v4191 = vpop.f32.mrf.mxu0
        %v4192 = vadd.f32 0.0, %v4191
        %v4193 = vpop.f32.mrf.mxu0
        %v4194 = vadd.f32 0.0, %v4193
        %4195 = vmatmul.bf16.gmra.mxu0 %v3039
        %v4196 = vpop.f32.mrf.mxu0
        %v4197 = vadd.f32 0.0, %v4196
        %v4198 = vpop.f32.mrf.mxu0
        %v4199 = vadd.f32 0.0, %v4198
        %4200 = vmatmul.bf16.gmra.mxu0 %v3041
        %v4201 = vpop.f32.mrf.mxu0
        %v4202 = vadd.f32 0.0, %v4201
        %v4203 = vpop.f32.mrf.mxu0
        %v4204 = vadd.f32 0.0, %v4203
        %4205 = vmatmul.bf16.gmra.mxu0 %v3043
        %v4206 = vpop.f32.mrf.mxu0
        %v4207 = vadd.f32 0.0, %v4206
        %v4208 = vpop.f32.mrf.mxu0
        %v4209 = vadd.f32 0.0, %v4208
        %4210 = vmatmul.bf16.gmra.mxu0 %v3045
        %v4211 = vpop.f32.mrf.mxu0
        %v4212 = vadd.f32 0.0, %v4211
        %v4213 = vpop.f32.mrf.mxu0
        %v4214 = vadd.f32 0.0, %v4213
        %4215 = vmatmul.bf16.gmra.mxu0 %v3047
        %v4216 = vpop.f32.mrf.mxu0
        %v4217 = vadd.f32 0.0, %v4216
        %v4218 = vpop.f32.mrf.mxu0
        %v4219 = vadd.f32 0.0, %v4218
        %4220 = vmatmul.bf16.gmra.mxu0 %v3049
        %v4221 = vpop.f32.mrf.mxu0
        %v4222 = vadd.f32 0.0, %v4221
        %v4223 = vpop.f32.mrf.mxu0
        %v4224 = vadd.f32 0.0, %v4223
        %4225 = vmatmul.bf16.gmra.mxu0 %v3051
        %v4226 = vpop.f32.mrf.mxu0
        %v4227 = vadd.f32 0.0, %v4226
        %v4228 = vpop.f32.mrf.mxu0
        %v4229 = vadd.f32 0.0, %v4228
        %4230 = vmatmul.bf16.gmra.mxu0 %v3053
        %v4231 = vpop.f32.mrf.mxu0
        %v4232 = vadd.f32 0.0, %v4231
        %v4233 = vpop.f32.mrf.mxu0
        %v4234 = vadd.f32 0.0, %v4233
        %4235 = vmatmul.bf16.gmra.mxu0 %v3055
        %v4236 = vpop.f32.mrf.mxu0
        %v4237 = vadd.f32 0.0, %v4236
        %v4238 = vpop.f32.mrf.mxu0
        %v4239 = vadd.f32 0.0, %v4238
        %4240 = vmatmul.bf16.gmra.mxu0 %v3057
        %v4241 = vpop.f32.mrf.mxu0
        %v4242 = vadd.f32 0.0, %v4241
        %v4243 = vpop.f32.mrf.mxu0
        %v4244 = vadd.f32 0.0, %v4243
        %4245 = vmatmul.bf16.gmra.mxu0 %v3059
        %v4246 = vpop.f32.mrf.mxu0
        %v4247 = vadd.f32 0.0, %v4246
        %v4248 = vpop.f32.mrf.mxu0
        %v4249 = vadd.f32 0.0, %v4248
        %4250 = vmatmul.bf16.gmra.mxu0 %v3061
        %v4251 = vpop.f32.mrf.mxu0
        %v4252 = vadd.f32 0.0, %v4251
        %v4253 = vpop.f32.mrf.mxu0
        %v4254 = vadd.f32 0.0, %v4253
        %4255 = vmatmul.bf16.gmra.mxu0 %v3063
        %v4256 = vpop.f32.mrf.mxu0
        %v4257 = vadd.f32 0.0, %v4256
        %v4258 = vpop.f32.mrf.mxu0
        %v4259 = vadd.f32 0.0, %v4258
        %4260 = vmatmul.bf16.gmra.mxu0 %v3065
        %v4261 = vpop.f32.mrf.mxu0
        %v4262 = vadd.f32 0.0, %v4261
        %v4263 = vpop.f32.mrf.mxu0
        %v4264 = vadd.f32 0.0, %v4263
        %4265 = vmatmul.bf16.gmra.mxu0 %v3067
        %v4266 = vpop.f32.mrf.mxu0
        %v4267 = vadd.f32 0.0, %v4266
        %v4268 = vpop.f32.mrf.mxu0
        %v4269 = vadd.f32 0.0, %v4268
        %4270 = vmatmul.bf16.gmra.mxu0 %v3069
        %v4271 = vpop.f32.mrf.mxu0
        %v4272 = vadd.f32 0.0, %v4271
        %v4273 = vpop.f32.mrf.mxu0
        %v4274 = vadd.f32 0.0, %v4273
        %4275 = vmatmul.bf16.gmra.mxu0 %v3071
        %v4276 = vpop.f32.mrf.mxu0
        %v4277 = vadd.f32 0.0, %v4276
        %v4278 = vpop.f32.mrf.mxu0
        %v4279 = vadd.f32 0.0, %v4278
        %4280 = vmatmul.bf16.gmra.mxu0 %v3073
        %v4281 = vpop.f32.mrf.mxu0
        %v4282 = vadd.f32 0.0, %v4281
        %v4283 = vpop.f32.mrf.mxu0
        %v4284 = vadd.f32 0.0, %v4283
        %4285 = vmatmul.bf16.gmra.mxu0 %v3075
        %v4286 = vpop.f32.mrf.mxu0
        %v4287 = vadd.f32 0.0, %v4286
        %v4288 = vpop.f32.mrf.mxu0
        %v4289 = vadd.f32 0.0, %v4288
        %4290 = vmatmul.bf16.gmra.mxu0 %v3077
        %v4291 = vpop.f32.mrf.mxu0
        %v4292 = vadd.f32 0.0, %v4291
        %v4293 = vpop.f32.mrf.mxu0
        %v4294 = vadd.f32 0.0, %v4293
        %4295 = vmatmul.bf16.gmra.mxu0 %v3079
        %v4296 = vpop.f32.mrf.mxu0
        %v4297 = vadd.f32 0.0, %v4296
        %v4298 = vpop.f32.mrf.mxu0
        %v4299 = vadd.f32 0.0, %v4298
        %4300 = vmatmul.bf16.gmra.mxu0 %v3081
        %v4301 = vpop.f32.mrf.mxu0
        %v4302 = vadd.f32 0.0, %v4301
        %v4303 = vpop.f32.mrf.mxu0
        %v4304 = vadd.f32 0.0, %v4303
        %4305 = vmatmul.bf16.gmra.mxu0 %v3083
        %v4306 = vpop.f32.mrf.mxu0
        %v4307 = vadd.f32 0.0, %v4306
        %v4308 = vpop.f32.mrf.mxu0
        %v4309 = vadd.f32 0.0, %v4308
        %4310 = vmatmul.bf16.gmra.mxu0 %v3085
        %v4311 = vpop.f32.mrf.mxu0
        %v4312 = vadd.f32 0.0, %v4311
        %v4313 = vpop.f32.mrf.mxu0
        %v4314 = vadd.f32 0.0, %v4313
        %4315 = vdwg.mxu0
        %4316 = vmatpush.bf16.msra.mxu0 %v3405
        %4317 = vmatpush.bf16.msra.mxu0 %v3401
        %4318 = vmatpush.bf16.msra.mxu0 %v3397
        %4319 = vmatpush.bf16.msra.mxu0 %v3393
        %4320 = vmatpush.bf16.msra.mxu0 %v3389
        %4321 = vmatpush.bf16.msra.mxu0 %v3385
        %4322 = vmatpush.bf16.msra.mxu0 %v3381
        %4323 = vmatpush.bf16.msra.mxu0 %v3377
        %4324 = vmatmul.bf16.gmra.mxu0 %v3024
        %v4325 = vpop.f32.mrf.mxu0
        %v4326 = vadd.f32 %v4157, %v4325
        %v4327 = vpop.f32.mrf.mxu0
        %v4328 = vadd.f32 %v4159, %v4327
        %4329 = vmatmul.bf16.gmra.mxu0 %v3026
        %v4330 = vpop.f32.mrf.mxu0
        %v4331 = vadd.f32 %v4162, %v4330
        %v4332 = vpop.f32.mrf.mxu0
        %v4333 = vadd.f32 %v4164, %v4332
        %4334 = vmatmul.bf16.gmra.mxu0 %v3028
        %v4335 = vpop.f32.mrf.mxu0
        %v4336 = vadd.f32 %v4167, %v4335
        %v4337 = vpop.f32.mrf.mxu0
        %v4338 = vadd.f32 %v4169, %v4337
        %4339 = vmatmul.bf16.gmra.mxu0 %v3030
        %v4340 = vpop.f32.mrf.mxu0
        %v4341 = vadd.f32 %v4172, %v4340
        %v4342 = vpop.f32.mrf.mxu0
        %v4343 = vadd.f32 %v4174, %v4342
        %4344 = vmatmul.bf16.gmra.mxu0 %v3032
        %v4345 = vpop.f32.mrf.mxu0
        %v4346 = vadd.f32 %v4177, %v4345
        %v4347 = vpop.f32.mrf.mxu0
        %v4348 = vadd.f32 %v4179, %v4347
        %4349 = vmatmul.bf16.gmra.mxu0 %v3034
        %v4350 = vpop.f32.mrf.mxu0
        %v4351 = vadd.f32 %v4182, %v4350
        %v4352 = vpop.f32.mrf.mxu0
        %v4353 = vadd.f32 %v4184, %v4352
        %4354 = vmatmul.bf16.gmra.mxu0 %v3036
        %v4355 = vpop.f32.mrf.mxu0
        %v4356 = vadd.f32 %v4187, %v4355
        %v4357 = vpop.f32.mrf.mxu0
        %v4358 = vadd.f32 %v4189, %v4357
        %4359 = vmatmul.bf16.gmra.mxu0 %v3038
        %v4360 = vpop.f32.mrf.mxu0
        %v4361 = vadd.f32 %v4192, %v4360
        %v4362 = vpop.f32.mrf.mxu0
        %v4363 = vadd.f32 %v4194, %v4362
        %4364 = vmatmul.bf16.gmra.mxu0 %v3040
        %v4365 = vpop.f32.mrf.mxu0
        %v4366 = vadd.f32 %v4197, %v4365
        %v4367 = vpop.f32.mrf.mxu0
        %v4368 = vadd.f32 %v4199, %v4367
        %4369 = vmatmul.bf16.gmra.mxu0 %v3042
        %v4370 = vpop.f32.mrf.mxu0
        %v4371 = vadd.f32 %v4202, %v4370
        %v4372 = vpop.f32.mrf.mxu0
        %v4373 = vadd.f32 %v4204, %v4372
        %4374 = vmatmul.bf16.gmra.mxu0 %v3044
        %v4375 = vpop.f32.mrf.mxu0
        %v4376 = vadd.f32 %v4207, %v4375
        %v4377 = vpop.f32.mrf.mxu0
        %v4378 = vadd.f32 %v4209, %v4377
        %4379 = vmatmul.bf16.gmra.mxu0 %v3046
        %v4380 = vpop.f32.mrf.mxu0
        %v4381 = vadd.f32 %v4212, %v4380
        %v4382 = vpop.f32.mrf.mxu0
        %v4383 = vadd.f32 %v4214, %v4382
        %4384 = vmatmul.bf16.gmra.mxu0 %v3048
        %v4385 = vpop.f32.mrf.mxu0
        %v4386 = vadd.f32 %v4217, %v4385
        %v4387 = vpop.f32.mrf.mxu0
        %v4388 = vadd.f32 %v4219, %v4387
        %4389 = vmatmul.bf16.gmra.mxu0 %v3050
        %v4390 = vpop.f32.mrf.mxu0
        %v4391 = vadd.f32 %v4222, %v4390
        %v4392 = vpop.f32.mrf.mxu0
        %v4393 = vadd.f32 %v4224, %v4392
        %4394 = vmatmul.bf16.gmra.mxu0 %v3052
        %v4395 = vpop.f32.mrf.mxu0
        %v4396 = vadd.f32 %v4227, %v4395
        %v4397 = vpop.f32.mrf.mxu0
        %v4398 = vadd.f32 %v4229, %v4397
        %4399 = vmatmul.bf16.gmra.mxu0 %v3054
        %v4400 = vpop.f32.mrf.mxu0
        %v4401 = vadd.f32 %v4232, %v4400
        %v4402 = vpop.f32.mrf.mxu0
        %v4403 = vadd.f32 %v4234, %v4402
        %4404 = vmatmul.bf16.gmra.mxu0 %v3056
        %v4405 = vpop.f32.mrf.mxu0
        %v4406 = vadd.f32 %v4237, %v4405
        %v4407 = vpop.f32.mrf.mxu0
        %v4408 = vadd.f32 %v4239, %v4407
        %4409 = vmatmul.bf16.gmra.mxu0 %v3058
        %v4410 = vpop.f32.mrf.mxu0
        %v4411 = vadd.f32 %v4242, %v4410
        %v4412 = vpop.f32.mrf.mxu0
        %v4413 = vadd.f32 %v4244, %v4412
        %4414 = vmatmul.bf16.gmra.mxu0 %v3060
        %v4415 = vpop.f32.mrf.mxu0
        %v4416 = vadd.f32 %v4247, %v4415
        %v4417 = vpop.f32.mrf.mxu0
        %v4418 = vadd.f32 %v4249, %v4417
        %4419 = vmatmul.bf16.gmra.mxu0 %v3062
        %v4420 = vpop.f32.mrf.mxu0
        %v4421 = vadd.f32 %v4252, %v4420
        %v4422 = vpop.f32.mrf.mxu0
        %v4423 = vadd.f32 %v4254, %v4422
        %4424 = vmatmul.bf16.gmra.mxu0 %v3064
        %v4425 = vpop.f32.mrf.mxu0
        %v4426 = vadd.f32 %v4257, %v4425
        %v4427 = vpop.f32.mrf.mxu0
        %v4428 = vadd.f32 %v4259, %v4427
        %4429 = vmatmul.bf16.gmra.mxu0 %v3066
        %v4430 = vpop.f32.mrf.mxu0
        %v4431 = vadd.f32 %v4262, %v4430
        %v4432 = vpop.f32.mrf.mxu0
        %v4433 = vadd.f32 %v4264, %v4432
        %4434 = vmatmul.bf16.gmra.mxu0 %v3068
        %v4435 = vpop.f32.mrf.mxu0
        %v4436 = vadd.f32 %v4267, %v4435
        %v4437 = vpop.f32.mrf.mxu0
        %v4438 = vadd.f32 %v4269, %v4437
        %4439 = vmatmul.bf16.gmra.mxu0 %v3070
        %v4440 = vpop.f32.mrf.mxu0
        %v4441 = vadd.f32 %v4272, %v4440
        %v4442 = vpop.f32.mrf.mxu0
        %v4443 = vadd.f32 %v4274, %v4442
        %4444 = vmatmul.bf16.gmra.mxu0 %v3072
        %v4445 = vpop.f32.mrf.mxu0
        %v4446 = vadd.f32 %v4277, %v4445
        %v4447 = vpop.f32.mrf.mxu0
        %v4448 = vadd.f32 %v4279, %v4447
        %4449 = vmatmul.bf16.gmra.mxu0 %v3074
        %v4450 = vpop.f32.mrf.mxu0
        %v4451 = vadd.f32 %v4282, %v4450
        %v4452 = vpop.f32.mrf.mxu0
        %v4453 = vadd.f32 %v4284, %v4452
        %4454 = vmatmul.bf16.gmra.mxu0 %v3076
        %v4455 = vpop.f32.mrf.mxu0
        %v4456 = vadd.f32 %v4287, %v4455
        %v4457 = vpop.f32.mrf.mxu0
        %v4458 = vadd.f32 %v4289, %v4457
        %4459 = vmatmul.bf16.gmra.mxu0 %v3078
        %v4460 = vpop.f32.mrf.mxu0
        %v4461 = vadd.f32 %v4292, %v4460
        %v4462 = vpop.f32.mrf.mxu0
        %v4463 = vadd.f32 %v4294, %v4462
        %4464 = vmatmul.bf16.gmra.mxu0 %v3080
        %v4465 = vpop.f32.mrf.mxu0
        %v4466 = vadd.f32 %v4297, %v4465
        %v4467 = vpop.f32.mrf.mxu0
        %v4468 = vadd.f32 %v4299, %v4467
        %4469 = vmatmul.bf16.gmra.mxu0 %v3082
        %v4470 = vpop.f32.mrf.mxu0
        %v4471 = vadd.f32 %v4302, %v4470
        %v4472 = vpop.f32.mrf.mxu0
        %v4473 = vadd.f32 %v4304, %v4472
        %4474 = vmatmul.bf16.gmra.mxu0 %v3084
        %v4475 = vpop.f32.mrf.mxu0
        %v4476 = vadd.f32 %v4307, %v4475
        %v4477 = vpop.f32.mrf.mxu0
        %v4478 = vadd.f32 %v4309, %v4477
        %4479 = vmatmul.bf16.gmra.mxu0 %v3086
        %v4480 = vpop.f32.mrf.mxu0
        %v4481 = vadd.f32 %v4312, %v4480
        %v4482 = vpop.f32.mrf.mxu0
        %v4483 = vadd.f32 %v4314, %v4482
        %4484 = vdwg.mxu0
        %4485 = vmatpush.bf16.msra.mxu0 %v3374
        %4486 = vmatpush.bf16.msra.mxu0 %v3370
        %4487 = vmatpush.bf16.msra.mxu0 %v3366
        %4488 = vmatpush.bf16.msra.mxu0 %v3362
        %4489 = vmatpush.bf16.msra.mxu0 %v3358
        %4490 = vmatpush.bf16.msra.mxu0 %v3354
        %4491 = vmatpush.bf16.msra.mxu0 %v3350
        %4492 = vmatpush.bf16.msra.mxu0 %v3346
        %4493 = vmatmul.bf16.gmra.mxu0 %v3023
        %v4494 = vpop.f32.mrf.mxu0
        %v4495 = vadd.f32 0.0, %v4494
        %v4496 = vpop.f32.mrf.mxu0
        %v4497 = vadd.f32 0.0, %v4496
        %4498 = vmatmul.bf16.gmra.mxu0 %v3025
        %v4499 = vpop.f32.mrf.mxu0
        %v4500 = vadd.f32 0.0, %v4499
        %v4501 = vpop.f32.mrf.mxu0
        %v4502 = vadd.f32 0.0, %v4501
        %4503 = vmatmul.bf16.gmra.mxu0 %v3027
        %v4504 = vpop.f32.mrf.mxu0
        %v4505 = vadd.f32 0.0, %v4504
        %v4506 = vpop.f32.mrf.mxu0
        %v4507 = vadd.f32 0.0, %v4506
        %4508 = vmatmul.bf16.gmra.mxu0 %v3029
        %v4509 = vpop.f32.mrf.mxu0
        %v4510 = vadd.f32 0.0, %v4509
        %v4511 = vpop.f32.mrf.mxu0
        %v4512 = vadd.f32 0.0, %v4511
        %4513 = vmatmul.bf16.gmra.mxu0 %v3031
        %v4514 = vpop.f32.mrf.mxu0
        %v4515 = vadd.f32 0.0, %v4514
        %v4516 = vpop.f32.mrf.mxu0
        %v4517 = vadd.f32 0.0, %v4516
        %4518 = vmatmul.bf16.gmra.mxu0 %v3033
        %v4519 = vpop.f32.mrf.mxu0
        %v4520 = vadd.f32 0.0, %v4519
        %v4521 = vpop.f32.mrf.mxu0
        %v4522 = vadd.f32 0.0, %v4521
        %4523 = vmatmul.bf16.gmra.mxu0 %v3035
        %v4524 = vpop.f32.mrf.mxu0
        %v4525 = vadd.f32 0.0, %v4524
        %v4526 = vpop.f32.mrf.mxu0
        %v4527 = vadd.f32 0.0, %v4526
        %4528 = vmatmul.bf16.gmra.mxu0 %v3037
        %v4529 = vpop.f32.mrf.mxu0
        %v4530 = vadd.f32 0.0, %v4529
        %v4531 = vpop.f32.mrf.mxu0
        %v4532 = vadd.f32 0.0, %v4531
        %4533 = vmatmul.bf16.gmra.mxu0 %v3039
        %v4534 = vpop.f32.mrf.mxu0
        %v4535 = vadd.f32 0.0, %v4534
        %v4536 = vpop.f32.mrf.mxu0
        %v4537 = vadd.f32 0.0, %v4536
        %4538 = vmatmul.bf16.gmra.mxu0 %v3041
        %v4539 = vpop.f32.mrf.mxu0
        %v4540 = vadd.f32 0.0, %v4539
        %v4541 = vpop.f32.mrf.mxu0
        %v4542 = vadd.f32 0.0, %v4541
        %4543 = vmatmul.bf16.gmra.mxu0 %v3043
        %v4544 = vpop.f32.mrf.mxu0
        %v4545 = vadd.f32 0.0, %v4544
        %v4546 = vpop.f32.mrf.mxu0
        %v4547 = vadd.f32 0.0, %v4546
        %4548 = vmatmul.bf16.gmra.mxu0 %v3045
        %v4549 = vpop.f32.mrf.mxu0
        %v4550 = vadd.f32 0.0, %v4549
        %v4551 = vpop.f32.mrf.mxu0
        %v4552 = vadd.f32 0.0, %v4551
        %4553 = vmatmul.bf16.gmra.mxu0 %v3047
        %v4554 = vpop.f32.mrf.mxu0
        %v4555 = vadd.f32 0.0, %v4554
        %v4556 = vpop.f32.mrf.mxu0
        %v4557 = vadd.f32 0.0, %v4556
        %4558 = vmatmul.bf16.gmra.mxu0 %v3049
        %v4559 = vpop.f32.mrf.mxu0
        %v4560 = vadd.f32 0.0, %v4559
        %v4561 = vpop.f32.mrf.mxu0
        %v4562 = vadd.f32 0.0, %v4561
        %4563 = vmatmul.bf16.gmra.mxu0 %v3051
        %v4564 = vpop.f32.mrf.mxu0
        %v4565 = vadd.f32 0.0, %v4564
        %v4566 = vpop.f32.mrf.mxu0
        %v4567 = vadd.f32 0.0, %v4566
        %4568 = vmatmul.bf16.gmra.mxu0 %v3053
        %v4569 = vpop.f32.mrf.mxu0
        %v4570 = vadd.f32 0.0, %v4569
        %v4571 = vpop.f32.mrf.mxu0
        %v4572 = vadd.f32 0.0, %v4571
        %4573 = vmatmul.bf16.gmra.mxu0 %v3055
        %v4574 = vpop.f32.mrf.mxu0
        %v4575 = vadd.f32 0.0, %v4574
        %v4576 = vpop.f32.mrf.mxu0
        %v4577 = vadd.f32 0.0, %v4576
        %4578 = vmatmul.bf16.gmra.mxu0 %v3057
        %v4579 = vpop.f32.mrf.mxu0
        %v4580 = vadd.f32 0.0, %v4579
        %v4581 = vpop.f32.mrf.mxu0
        %v4582 = vadd.f32 0.0, %v4581
        %4583 = vmatmul.bf16.gmra.mxu0 %v3059
        %v4584 = vpop.f32.mrf.mxu0
        %v4585 = vadd.f32 0.0, %v4584
        %v4586 = vpop.f32.mrf.mxu0
        %v4587 = vadd.f32 0.0, %v4586
        %4588 = vmatmul.bf16.gmra.mxu0 %v3061
        %v4589 = vpop.f32.mrf.mxu0
        %v4590 = vadd.f32 0.0, %v4589
        %v4591 = vpop.f32.mrf.mxu0
        %v4592 = vadd.f32 0.0, %v4591
        %4593 = vmatmul.bf16.gmra.mxu0 %v3063
        %v4594 = vpop.f32.mrf.mxu0
        %v4595 = vadd.f32 0.0, %v4594
        %v4596 = vpop.f32.mrf.mxu0
        %v4597 = vadd.f32 0.0, %v4596
        %4598 = vmatmul.bf16.gmra.mxu0 %v3065
        %v4599 = vpop.f32.mrf.mxu0
        %v4600 = vadd.f32 0.0, %v4599
        %v4601 = vpop.f32.mrf.mxu0
        %v4602 = vadd.f32 0.0, %v4601
        %4603 = vmatmul.bf16.gmra.mxu0 %v3067
        %v4604 = vpop.f32.mrf.mxu0
        %v4605 = vadd.f32 0.0, %v4604
        %v4606 = vpop.f32.mrf.mxu0
        %v4607 = vadd.f32 0.0, %v4606
        %4608 = vmatmul.bf16.gmra.mxu0 %v3069
        %v4609 = vpop.f32.mrf.mxu0
        %v4610 = vadd.f32 0.0, %v4609
        %v4611 = vpop.f32.mrf.mxu0
        %v4612 = vadd.f32 0.0, %v4611
        %4613 = vmatmul.bf16.gmra.mxu0 %v3071
        %v4614 = vpop.f32.mrf.mxu0
        %v4615 = vadd.f32 0.0, %v4614
        %v4616 = vpop.f32.mrf.mxu0
        %v4617 = vadd.f32 0.0, %v4616
        %4618 = vmatmul.bf16.gmra.mxu0 %v3073
        %v4619 = vpop.f32.mrf.mxu0
        %v4620 = vadd.f32 0.0, %v4619
        %v4621 = vpop.f32.mrf.mxu0
        %v4622 = vadd.f32 0.0, %v4621
        %4623 = vmatmul.bf16.gmra.mxu0 %v3075
        %v4624 = vpop.f32.mrf.mxu0
        %v4625 = vadd.f32 0.0, %v4624
        %v4626 = vpop.f32.mrf.mxu0
        %v4627 = vadd.f32 0.0, %v4626
        %4628 = vmatmul.bf16.gmra.mxu0 %v3077
        %v4629 = vpop.f32.mrf.mxu0
        %v4630 = vadd.f32 0.0, %v4629
        %v4631 = vpop.f32.mrf.mxu0
        %v4632 = vadd.f32 0.0, %v4631
        %4633 = vmatmul.bf16.gmra.mxu0 %v3079
        %v4634 = vpop.f32.mrf.mxu0
        %v4635 = vadd.f32 0.0, %v4634
        %v4636 = vpop.f32.mrf.mxu0
        %v4637 = vadd.f32 0.0, %v4636
        %4638 = vmatmul.bf16.gmra.mxu0 %v3081
        %v4639 = vpop.f32.mrf.mxu0
        %v4640 = vadd.f32 0.0, %v4639
        %v4641 = vpop.f32.mrf.mxu0
        %v4642 = vadd.f32 0.0, %v4641
        %4643 = vmatmul.bf16.gmra.mxu0 %v3083
        %v4644 = vpop.f32.mrf.mxu0
        %v4645 = vadd.f32 0.0, %v4644
        %v4646 = vpop.f32.mrf.mxu0
        %v4647 = vadd.f32 0.0, %v4646
        %4648 = vmatmul.bf16.gmra.mxu0 %v3085
        %v4649 = vpop.f32.mrf.mxu0
        %v4650 = vadd.f32 0.0, %v4649
        %v4651 = vpop.f32.mrf.mxu0
        %v4652 = vadd.f32 0.0, %v4651
        %4653 = vdwg.mxu0
        %4654 = vmatpush.bf16.msra.mxu0 %v3406
        %4655 = vmatpush.bf16.msra.mxu0 %v3402
        %4656 = vmatpush.bf16.msra.mxu0 %v3398
        %4657 = vmatpush.bf16.msra.mxu0 %v3394
        %4658 = vmatpush.bf16.msra.mxu0 %v3390
        %4659 = vmatpush.bf16.msra.mxu0 %v3386
        %4660 = vmatpush.bf16.msra.mxu0 %v3382
        %4661 = vmatpush.bf16.msra.mxu0 %v3378
        %4662 = vmatmul.bf16.gmra.mxu0 %v3024
        %v4663 = vpop.f32.mrf.mxu0
        %v4664 = vadd.f32 %v4495, %v4663
        %v4665 = vpop.f32.mrf.mxu0
        %v4666 = vadd.f32 %v4497, %v4665
        %4667 = vmatmul.bf16.gmra.mxu0 %v3026
        %v4668 = vpop.f32.mrf.mxu0
        %v4669 = vadd.f32 %v4500, %v4668
        %v4670 = vpop.f32.mrf.mxu0
        %v4671 = vadd.f32 %v4502, %v4670
        %4672 = vmatmul.bf16.gmra.mxu0 %v3028
        %v4673 = vpop.f32.mrf.mxu0
        %v4674 = vadd.f32 %v4505, %v4673
        %v4675 = vpop.f32.mrf.mxu0
        %v4676 = vadd.f32 %v4507, %v4675
        %4677 = vmatmul.bf16.gmra.mxu0 %v3030
        %v4678 = vpop.f32.mrf.mxu0
        %v4679 = vadd.f32 %v4510, %v4678
        %v4680 = vpop.f32.mrf.mxu0
        %v4681 = vadd.f32 %v4512, %v4680
        %4682 = vmatmul.bf16.gmra.mxu0 %v3032
        %v4683 = vpop.f32.mrf.mxu0
        %v4684 = vadd.f32 %v4515, %v4683
        %v4685 = vpop.f32.mrf.mxu0
        %v4686 = vadd.f32 %v4517, %v4685
        %4687 = vmatmul.bf16.gmra.mxu0 %v3034
        %v4688 = vpop.f32.mrf.mxu0
        %v4689 = vadd.f32 %v4520, %v4688
        %v4690 = vpop.f32.mrf.mxu0
        %v4691 = vadd.f32 %v4522, %v4690
        %4692 = vmatmul.bf16.gmra.mxu0 %v3036
        %v4693 = vpop.f32.mrf.mxu0
        %v4694 = vadd.f32 %v4525, %v4693
        %v4695 = vpop.f32.mrf.mxu0
        %v4696 = vadd.f32 %v4527, %v4695
        %4697 = vmatmul.bf16.gmra.mxu0 %v3038
        %v4698 = vpop.f32.mrf.mxu0
        %v4699 = vadd.f32 %v4530, %v4698
        %v4700 = vpop.f32.mrf.mxu0
        %v4701 = vadd.f32 %v4532, %v4700
        %4702 = vmatmul.bf16.gmra.mxu0 %v3040
        %v4703 = vpop.f32.mrf.mxu0
        %v4704 = vadd.f32 %v4535, %v4703
        %v4705 = vpop.f32.mrf.mxu0
        %v4706 = vadd.f32 %v4537, %v4705
        %4707 = vmatmul.bf16.gmra.mxu0 %v3042
        %v4708 = vpop.f32.mrf.mxu0
        %v4709 = vadd.f32 %v4540, %v4708
        %v4710 = vpop.f32.mrf.mxu0
        %v4711 = vadd.f32 %v4542, %v4710
        %4712 = vmatmul.bf16.gmra.mxu0 %v3044
        %v4713 = vpop.f32.mrf.mxu0
        %v4714 = vadd.f32 %v4545, %v4713
        %v4715 = vpop.f32.mrf.mxu0
        %v4716 = vadd.f32 %v4547, %v4715
        %4717 = vmatmul.bf16.gmra.mxu0 %v3046
        %v4718 = vpop.f32.mrf.mxu0
        %v4719 = vadd.f32 %v4550, %v4718
        %v4720 = vpop.f32.mrf.mxu0
        %v4721 = vadd.f32 %v4552, %v4720
        %4722 = vmatmul.bf16.gmra.mxu0 %v3048
        %v4723 = vpop.f32.mrf.mxu0
        %v4724 = vadd.f32 %v4555, %v4723
        %v4725 = vpop.f32.mrf.mxu0
        %v4726 = vadd.f32 %v4557, %v4725
        %4727 = vmatmul.bf16.gmra.mxu0 %v3050
        %v4728 = vpop.f32.mrf.mxu0
        %v4729 = vadd.f32 %v4560, %v4728
        %v4730 = vpop.f32.mrf.mxu0
        %v4731 = vadd.f32 %v4562, %v4730
        %4732 = vmatmul.bf16.gmra.mxu0 %v3052
        %v4733 = vpop.f32.mrf.mxu0
        %v4734 = vadd.f32 %v4565, %v4733
        %v4735 = vpop.f32.mrf.mxu0
        %v4736 = vadd.f32 %v4567, %v4735
        %4737 = vmatmul.bf16.gmra.mxu0 %v3054
        %v4738 = vpop.f32.mrf.mxu0
        %v4739 = vadd.f32 %v4570, %v4738
        %v4740 = vpop.f32.mrf.mxu0
        %v4741 = vadd.f32 %v4572, %v4740
        %4742 = vmatmul.bf16.gmra.mxu0 %v3056
        %v4743 = vpop.f32.mrf.mxu0
        %v4744 = vadd.f32 %v4575, %v4743
        %v4745 = vpop.f32.mrf.mxu0
        %v4746 = vadd.f32 %v4577, %v4745
        %4747 = vmatmul.bf16.gmra.mxu0 %v3058
        %v4748 = vpop.f32.mrf.mxu0
        %v4749 = vadd.f32 %v4580, %v4748
        %v4750 = vpop.f32.mrf.mxu0
        %v4751 = vadd.f32 %v4582, %v4750
        %4752 = vmatmul.bf16.gmra.mxu0 %v3060
        %v4753 = vpop.f32.mrf.mxu0
        %v4754 = vadd.f32 %v4585, %v4753
        %v4755 = vpop.f32.mrf.mxu0
        %v4756 = vadd.f32 %v4587, %v4755
        %4757 = vmatmul.bf16.gmra.mxu0 %v3062
        %v4758 = vpop.f32.mrf.mxu0
        %v4759 = vadd.f32 %v4590, %v4758
        %v4760 = vpop.f32.mrf.mxu0
        %v4761 = vadd.f32 %v4592, %v4760
        %4762 = vmatmul.bf16.gmra.mxu0 %v3064
        %v4763 = vpop.f32.mrf.mxu0
        %v4764 = vadd.f32 %v4595, %v4763
        %v4765 = vpop.f32.mrf.mxu0
        %v4766 = vadd.f32 %v4597, %v4765
        %4767 = vmatmul.bf16.gmra.mxu0 %v3066
        %v4768 = vpop.f32.mrf.mxu0
        %v4769 = vadd.f32 %v4600, %v4768
        %v4770 = vpop.f32.mrf.mxu0
        %v4771 = vadd.f32 %v4602, %v4770
        %4772 = vmatmul.bf16.gmra.mxu0 %v3068
        %v4773 = vpop.f32.mrf.mxu0
        %v4774 = vadd.f32 %v4605, %v4773
        %v4775 = vpop.f32.mrf.mxu0
        %v4776 = vadd.f32 %v4607, %v4775
        %4777 = vmatmul.bf16.gmra.mxu0 %v3070
        %v4778 = vpop.f32.mrf.mxu0
        %v4779 = vadd.f32 %v4610, %v4778
        %v4780 = vpop.f32.mrf.mxu0
        %v4781 = vadd.f32 %v4612, %v4780
        %4782 = vmatmul.bf16.gmra.mxu0 %v3072
        %v4783 = vpop.f32.mrf.mxu0
        %v4784 = vadd.f32 %v4615, %v4783
        %v4785 = vpop.f32.mrf.mxu0
        %v4786 = vadd.f32 %v4617, %v4785
        %4787 = vmatmul.bf16.gmra.mxu0 %v3074
        %v4788 = vpop.f32.mrf.mxu0
        %v4789 = vadd.f32 %v4620, %v4788
        %v4790 = vpop.f32.mrf.mxu0
        %v4791 = vadd.f32 %v4622, %v4790
        %4792 = vmatmul.bf16.gmra.mxu0 %v3076
        %v4793 = vpop.f32.mrf.mxu0
        %v4794 = vadd.f32 %v4625, %v4793
        %v4795 = vpop.f32.mrf.mxu0
        %v4796 = vadd.f32 %v4627, %v4795
        %4797 = vmatmul.bf16.gmra.mxu0 %v3078
        %v4798 = vpop.f32.mrf.mxu0
        %v4799 = vadd.f32 %v4630, %v4798
        %v4800 = vpop.f32.mrf.mxu0
        %v4801 = vadd.f32 %v4632, %v4800
        %4802 = vmatmul.bf16.gmra.mxu0 %v3080
        %v4803 = vpop.f32.mrf.mxu0
        %v4804 = vadd.f32 %v4635, %v4803
        %v4805 = vpop.f32.mrf.mxu0
        %v4806 = vadd.f32 %v4637, %v4805
        %4807 = vmatmul.bf16.gmra.mxu0 %v3082
        %v4808 = vpop.f32.mrf.mxu0
        %v4809 = vadd.f32 %v4640, %v4808
        %v4810 = vpop.f32.mrf.mxu0
        %v4811 = vadd.f32 %v4642, %v4810
        %4812 = vmatmul.bf16.gmra.mxu0 %v3084
        %v4813 = vpop.f32.mrf.mxu0
        %v4814 = vadd.f32 %v4645, %v4813
        %v4815 = vpop.f32.mrf.mxu0
        %v4816 = vadd.f32 %v4647, %v4815
        %4817 = vmatmul.bf16.gmra.mxu0 %v3086
        %v4818 = vpop.f32.mrf.mxu0
        %v4819 = vadd.f32 %v4650, %v4818
        %v4820 = vpop.f32.mrf.mxu0
        %v4821 = vadd.f32 %v4652, %v4820
        %4822 = vdwg.mxu0
        %v4823 = vld [vmem:[%s6] sm:$0xf]
        %v4825 = vperm.slane %v4823, 0
        %v4826 = vperm.slane %v4823, 1
        %v4827 = vperm.slane %v4823, 2
        %v4828 = vperm.slane %v4823, 3
        %v4865 = vunpack.c.l.b16 %v2671
        %v4866 = vunpack.c.l.b16 %v2672
        %v4867 = vunpack.c.l.b16 %v2673
        %v4868 = vunpack.c.l.b16 %v2674
        %v4869 = vunpack.c.l.b16 %v2675
        %v4870 = vunpack.c.l.b16 %v2676
        %v4871 = vunpack.c.l.b16 %v2677
        %v4872 = vunpack.c.l.b16 %v2678
        %v4873 = vunpack.c.l.b16 %v2679
        %v4874 = vunpack.c.l.b16 %v2680
        %v4875 = vunpack.c.l.b16 %v2681
        %v4876 = vunpack.c.l.b16 %v2682
        %v4877 = vunpack.c.l.b16 %v2683
        %v4878 = vunpack.c.l.b16 %v2684
        %v4879 = vunpack.c.l.b16 %v2685
        %v4880 = vunpack.c.l.b16 %v2686
        %v4881 = vunpack.c.l.b16 %v2687
        %v4882 = vunpack.c.l.b16 %v2688
        %v4883 = vunpack.c.l.b16 %v2689
        %v4884 = vunpack.c.l.b16 %v2690
        %v4885 = vunpack.c.l.b16 %v2691
        %v4886 = vunpack.c.l.b16 %v2692
        %v4887 = vunpack.c.l.b16 %v2693
        %v4888 = vunpack.c.l.b16 %v2694
        %v4889 = vunpack.c.l.b16 %v2695
        %v4890 = vunpack.c.l.b16 %v2696
        %v4891 = vunpack.c.l.b16 %v2697
        %v4892 = vunpack.c.l.b16 %v2698
        %v4893 = vunpack.c.l.b16 %v2699
        %v4894 = vunpack.c.l.b16 %v2700
        %v4895 = vunpack.c.l.b16 %v2701
        %v4896 = vunpack.c.l.b16 %v2702
        %vm4897 = vcmask 1041409
        %v4898 = vsel %vm4897, %v4867, %v4865
        %vm4899 = vcmask 1042434
        %v4900 = vsel %vm4899, %v4869, %v4898
        %vm4901 = vcmask 1043459
        %v4902 = vsel %vm4901, %v4871, %v4900
        %vm4903 = vcmask 1044484
        %v4904 = vsel %vm4903, %v4873, %v4902
        %vm4905 = vcmask 1045509
        %v4906 = vsel %vm4905, %v4875, %v4904
        %vm4907 = vcmask 1046534
        %v4908 = vsel %vm4907, %v4877, %v4906
        %vm4909 = vcmask 1047559
        %v4910 = vsel %vm4909, %v4879, %v4908
        %v4911 = vsel %vm4897, %v4868, %v4866
        %v4912 = vsel %vm4899, %v4870, %v4911
        %v4913 = vsel %vm4901, %v4872, %v4912
        %v4914 = vsel %vm4903, %v4874, %v4913
        %v4915 = vsel %vm4905, %v4876, %v4914
        %v4916 = vsel %vm4907, %v4878, %v4915
        %v4917 = vsel %vm4909, %v4880, %v4916
        %v4918 = vsel %vm4897, %v4883, %v4881
        %v4919 = vsel %vm4899, %v4885, %v4918
        %v4920 = vsel %vm4901, %v4887, %v4919
        %v4921 = vsel %vm4903, %v4889, %v4920
        %v4922 = vsel %vm4905, %v4891, %v4921
        %v4923 = vsel %vm4907, %v4893, %v4922
        %v4924 = vsel %vm4909, %v4895, %v4923
        %v4925 = vsel %vm4897, %v4884, %v4882
        %v4926 = vsel %vm4899, %v4886, %v4925
        %v4927 = vsel %vm4901, %v4888, %v4926
        %v4928 = vsel %vm4903, %v4890, %v4927
        %v4929 = vsel %vm4905, %v4892, %v4928
        %v4930 = vsel %vm4907, %v4894, %v4929
        %v4931 = vsel %vm4909, %v4896, %v4930
        %v4932 = vpack.c.b16 %v4924, %v4910
        %v4933 = vpack.c.b16 %v4931, %v4917
        %v5000 = vunpack.c.l.b16 %v2703
        %v5001 = vunpack.c.h.b16 %v2703
        %v5002 = vunpack.c.l.b16 %v2704
        %v5003 = vunpack.c.h.b16 %v2704
        %v5004 = vunpack.c.l.b16 %v2705
        %v5005 = vunpack.c.h.b16 %v2705
        %v5006 = vunpack.c.l.b16 %v2706
        %v5007 = vunpack.c.h.b16 %v2706
        %v5008 = vunpack.c.l.b16 %v2707
        %v5009 = vunpack.c.h.b16 %v2707
        %v5010 = vunpack.c.l.b16 %v2708
        %v5011 = vunpack.c.h.b16 %v2708
        %v5012 = vunpack.c.l.b16 %v2709
        %v5013 = vunpack.c.h.b16 %v2709
        %v5014 = vunpack.c.l.b16 %v2710
        %v5015 = vunpack.c.h.b16 %v2710
        %v5016 = vunpack.c.l.b16 %v2711
        %v5017 = vunpack.c.h.b16 %v2711
        %v5018 = vunpack.c.l.b16 %v2712
        %v5019 = vunpack.c.h.b16 %v2712
        %v5020 = vunpack.c.l.b16 %v2713
        %v5021 = vunpack.c.h.b16 %v2713
        %v5022 = vunpack.c.l.b16 %v2714
        %v5023 = vunpack.c.h.b16 %v2714
        %v5024 = vunpack.c.l.b16 %v2715
        %v5025 = vunpack.c.h.b16 %v2715
        %v5026 = vunpack.c.l.b16 %v2716
        %v5027 = vunpack.c.h.b16 %v2716
        %v5028 = vunpack.c.l.b16 %v2717
        %v5029 = vunpack.c.h.b16 %v2717
        %v5030 = vunpack.c.l.b16 %v2718
        %v5031 = vunpack.c.h.b16 %v2718
        %v5032 = vunpack.c.l.b16 %v2719
        %v5033 = vunpack.c.h.b16 %v2719
        %v5034 = vunpack.c.l.b16 %v2720
        %v5035 = vunpack.c.h.b16 %v2720
        %v5036 = vunpack.c.l.b16 %v2721
        %v5037 = vunpack.c.h.b16 %v2721
        %v5038 = vunpack.c.l.b16 %v2722
        %v5039 = vunpack.c.h.b16 %v2722
        %v5040 = vunpack.c.l.b16 %v2723
        %v5041 = vunpack.c.h.b16 %v2723
        %v5042 = vunpack.c.l.b16 %v2724
        %v5043 = vunpack.c.h.b16 %v2724
        %v5044 = vunpack.c.l.b16 %v2725
        %v5045 = vunpack.c.h.b16 %v2725
        %v5046 = vunpack.c.l.b16 %v2726
        %v5047 = vunpack.c.h.b16 %v2726
        %v5048 = vunpack.c.l.b16 %v2727
        %v5049 = vunpack.c.h.b16 %v2727
        %v5050 = vunpack.c.l.b16 %v2728
        %v5051 = vunpack.c.h.b16 %v2728
        %v5052 = vunpack.c.l.b16 %v2729
        %v5053 = vunpack.c.h.b16 %v2729
        %v5054 = vunpack.c.l.b16 %v2730
        %v5055 = vunpack.c.h.b16 %v2730
        %v5056 = vunpack.c.l.b16 %v2731
        %v5057 = vunpack.c.h.b16 %v2731
        %v5058 = vunpack.c.l.b16 %v2732
        %v5059 = vunpack.c.h.b16 %v2732
        %v5060 = vunpack.c.l.b16 %v2733
        %v5061 = vunpack.c.h.b16 %v2733
        %v5062 = vunpack.c.l.b16 %v2734
        %v5063 = vunpack.c.h.b16 %v2734
        %v5064 = vunpack.c.l.b16 %v2735
        %v5065 = vunpack.c.h.b16 %v2735
        %v5066 = vunpack.c.l.b16 %v2736
        %v5067 = vunpack.c.h.b16 %v2736
        %v5068 = vunpack.c.l.b16 %v2737
        %v5069 = vunpack.c.h.b16 %v2737
        %v5070 = vunpack.c.l.b16 %v2738
        %v5071 = vunpack.c.h.b16 %v2738
        %v5072 = vunpack.c.l.b16 %v2739
        %v5073 = vunpack.c.h.b16 %v2739
        %v5074 = vunpack.c.l.b16 %v2740
        %v5075 = vunpack.c.h.b16 %v2740
        %v5076 = vunpack.c.l.b16 %v2741
        %v5077 = vunpack.c.h.b16 %v2741
        %v5078 = vunpack.c.l.b16 %v2742
        %v5079 = vunpack.c.h.b16 %v2742
        %v5080 = vunpack.c.l.b16 %v2743
        %v5081 = vunpack.c.h.b16 %v2743
        %v5082 = vunpack.c.l.b16 %v2744
        %v5083 = vunpack.c.h.b16 %v2744
        %v5084 = vunpack.c.l.b16 %v2745
        %v5085 = vunpack.c.h.b16 %v2745
        %v5086 = vunpack.c.l.b16 %v2746
        %v5087 = vunpack.c.h.b16 %v2746
        %v5088 = vunpack.c.l.b16 %v2747
        %v5089 = vunpack.c.h.b16 %v2747
        %v5090 = vunpack.c.l.b16 %v2748
        %v5091 = vunpack.c.h.b16 %v2748
        %v5092 = vunpack.c.l.b16 %v2749
        %v5093 = vunpack.c.h.b16 %v2749
        %v5094 = vunpack.c.l.b16 %v2750
        %v5095 = vunpack.c.h.b16 %v2750
        %v5096 = vunpack.c.l.b16 %v2751
        %v5097 = vunpack.c.h.b16 %v2751
        %v5098 = vunpack.c.l.b16 %v2752
        %v5099 = vunpack.c.h.b16 %v2752
        %v5100 = vunpack.c.l.b16 %v2753
        %v5101 = vunpack.c.h.b16 %v2753
        %v5102 = vunpack.c.l.b16 %v2754
        %v5103 = vunpack.c.h.b16 %v2754
        %v5104 = vunpack.c.l.b16 %v2755
        %v5105 = vunpack.c.h.b16 %v2755
        %v5106 = vunpack.c.l.b16 %v2756
        %v5107 = vunpack.c.h.b16 %v2756
        %v5108 = vunpack.c.l.b16 %v2757
        %v5109 = vunpack.c.h.b16 %v2757
        %v5110 = vunpack.c.l.b16 %v2758
        %v5111 = vunpack.c.h.b16 %v2758
        %v5112 = vunpack.c.l.b16 %v2759
        %v5113 = vunpack.c.h.b16 %v2759
        %v5114 = vunpack.c.l.b16 %v2760
        %v5115 = vunpack.c.h.b16 %v2760
        %v5116 = vunpack.c.l.b16 %v2761
        %v5117 = vunpack.c.h.b16 %v2761
        %v5118 = vunpack.c.l.b16 %v2762
        %v5119 = vunpack.c.h.b16 %v2762
        %v5120 = vunpack.c.l.b16 %v2763
        %v5121 = vunpack.c.h.b16 %v2763
        %v5122 = vunpack.c.l.b16 %v2764
        %v5123 = vunpack.c.h.b16 %v2764
        %v5124 = vunpack.c.l.b16 %v2765
        %v5125 = vunpack.c.h.b16 %v2765
        %v5126 = vunpack.c.l.b16 %v2766
        %v5127 = vunpack.c.h.b16 %v2766
        %v5128 = vpack.c.b16 %v5004, %v5000
        %v5129 = vpack.c.b16 %v5005, %v5001
        %v5130 = vpack.c.b16 %v5006, %v5002
        %v5131 = vpack.c.b16 %v5007, %v5003
        %v5132 = vpack.c.b16 %v5012, %v5008
        %v5133 = vpack.c.b16 %v5013, %v5009
        %v5134 = vpack.c.b16 %v5014, %v5010
        %v5135 = vpack.c.b16 %v5015, %v5011
        %v5136 = vpack.c.b16 %v5020, %v5016
        %v5137 = vpack.c.b16 %v5021, %v5017
        %v5138 = vpack.c.b16 %v5022, %v5018
        %v5139 = vpack.c.b16 %v5023, %v5019
        %v5140 = vpack.c.b16 %v5028, %v5024
        %v5141 = vpack.c.b16 %v5029, %v5025
        %v5142 = vpack.c.b16 %v5030, %v5026
        %v5143 = vpack.c.b16 %v5031, %v5027
        %v5144 = vpack.c.b16 %v5036, %v5032
        %v5145 = vpack.c.b16 %v5037, %v5033
        %v5146 = vpack.c.b16 %v5038, %v5034
        %v5147 = vpack.c.b16 %v5039, %v5035
        %v5148 = vpack.c.b16 %v5044, %v5040
        %v5149 = vpack.c.b16 %v5045, %v5041
        %v5150 = vpack.c.b16 %v5046, %v5042
        %v5151 = vpack.c.b16 %v5047, %v5043
        %v5152 = vpack.c.b16 %v5052, %v5048
        %v5153 = vpack.c.b16 %v5053, %v5049
        %v5154 = vpack.c.b16 %v5054, %v5050
        %v5155 = vpack.c.b16 %v5055, %v5051
        %v5156 = vpack.c.b16 %v5060, %v5056
        %v5157 = vpack.c.b16 %v5061, %v5057
        %v5158 = vpack.c.b16 %v5062, %v5058
        %v5159 = vpack.c.b16 %v5063, %v5059
        %v5160 = vpack.c.b16 %v5068, %v5064
        %v5161 = vpack.c.b16 %v5069, %v5065
        %v5162 = vpack.c.b16 %v5070, %v5066
        %v5163 = vpack.c.b16 %v5071, %v5067
        %v5164 = vpack.c.b16 %v5076, %v5072
        %v5165 = vpack.c.b16 %v5077, %v5073
        %v5166 = vpack.c.b16 %v5078, %v5074
        %v5167 = vpack.c.b16 %v5079, %v5075
        %v5168 = vpack.c.b16 %v5084, %v5080
        %v5169 = vpack.c.b16 %v5085, %v5081
        %v5170 = vpack.c.b16 %v5086, %v5082
        %v5171 = vpack.c.b16 %v5087, %v5083
        %v5172 = vpack.c.b16 %v5092, %v5088
        %v5173 = vpack.c.b16 %v5093, %v5089
        %v5174 = vpack.c.b16 %v5094, %v5090
        %v5175 = vpack.c.b16 %v5095, %v5091
        %v5176 = vpack.c.b16 %v5100, %v5096
        %v5177 = vpack.c.b16 %v5101, %v5097
        %v5178 = vpack.c.b16 %v5102, %v5098
        %v5179 = vpack.c.b16 %v5103, %v5099
        %v5180 = vpack.c.b16 %v5108, %v5104
        %v5181 = vpack.c.b16 %v5109, %v5105
        %v5182 = vpack.c.b16 %v5110, %v5106
        %v5183 = vpack.c.b16 %v5111, %v5107
        %v5184 = vpack.c.b16 %v5116, %v5112
        %v5185 = vpack.c.b16 %v5117, %v5113
        %v5186 = vpack.c.b16 %v5118, %v5114
        %v5187 = vpack.c.b16 %v5119, %v5115
        %v5188 = vpack.c.b16 %v5124, %v5120
        %v5189 = vpack.c.b16 %v5125, %v5121
        %v5190 = vpack.c.b16 %v5126, %v5122
        %v5191 = vpack.c.b16 %v5127, %v5123
        %5256 = vmatpush.bf16.msra.mxu0 %v5156
        %5257 = vmatpush.bf16.msra.mxu0 %v5152
        %5258 = vmatpush.bf16.msra.mxu0 %v5148
        %5259 = vmatpush.bf16.msra.mxu0 %v5144
        %5260 = vmatpush.bf16.msra.mxu0 %v5140
        %5261 = vmatpush.bf16.msra.mxu0 %v5136
        %5262 = vmatpush.bf16.msra.mxu0 %v5132
        %5263 = vmatpush.bf16.msra.mxu0 %v5128
        %5264 = vmatmul.bf16.gmra.mxu0 %v4932
        %v5265 = vpop.f32.mrf.mxu0
        %v5266 = vadd.f32 %v4825, %v5265
        %v5267 = vpop.f32.mrf.mxu0
        %v5268 = vadd.f32 %v4825, %v5267
        %5269 = vdwg.mxu0
        %5270 = vmatpush.bf16.msra.mxu0 %v5188
        %5271 = vmatpush.bf16.msra.mxu0 %v5184
        %5272 = vmatpush.bf16.msra.mxu0 %v5180
        %5273 = vmatpush.bf16.msra.mxu0 %v5176
        %5274 = vmatpush.bf16.msra.mxu0 %v5172
        %5275 = vmatpush.bf16.msra.mxu0 %v5168
        %5276 = vmatpush.bf16.msra.mxu0 %v5164
        %5277 = vmatpush.bf16.msra.mxu0 %v5160
        %5278 = vmatmul.bf16.gmra.mxu0 %v4933
        %v5279 = vpop.f32.mrf.mxu0
        %v5280 = vadd.f32 %v5266, %v5279
        %v5281 = vpop.f32.mrf.mxu0
        %v5282 = vadd.f32 %v5268, %v5281
        %5283 = vdwg.mxu0
        %5284 = vmatpush.bf16.msra.mxu0 %v5157
        %5285 = vmatpush.bf16.msra.mxu0 %v5153
        %5286 = vmatpush.bf16.msra.mxu0 %v5149
        %5287 = vmatpush.bf16.msra.mxu0 %v5145
        %5288 = vmatpush.bf16.msra.mxu0 %v5141
        %5289 = vmatpush.bf16.msra.mxu0 %v5137
        %5290 = vmatpush.bf16.msra.mxu0 %v5133
        %5291 = vmatpush.bf16.msra.mxu0 %v5129
        %5292 = vmatmul.bf16.gmra.mxu0 %v4932
        %v5293 = vpop.f32.mrf.mxu0
        %v5294 = vadd.f32 %v4826, %v5293
        %v5295 = vpop.f32.mrf.mxu0
        %v5296 = vadd.f32 %v4826, %v5295
        %5297 = vdwg.mxu0
        %5298 = vmatpush.bf16.msra.mxu0 %v5189
        %5299 = vmatpush.bf16.msra.mxu0 %v5185
        %5300 = vmatpush.bf16.msra.mxu0 %v5181
        %5301 = vmatpush.bf16.msra.mxu0 %v5177
        %5302 = vmatpush.bf16.msra.mxu0 %v5173
        %5303 = vmatpush.bf16.msra.mxu0 %v5169
        %5304 = vmatpush.bf16.msra.mxu0 %v5165
        %5305 = vmatpush.bf16.msra.mxu0 %v5161
        %5306 = vmatmul.bf16.gmra.mxu0 %v4933
        %v5307 = vpop.f32.mrf.mxu0
        %v5308 = vadd.f32 %v5294, %v5307
        %v5309 = vpop.f32.mrf.mxu0
        %v5310 = vadd.f32 %v5296, %v5309
        %5311 = vdwg.mxu0
        %5312 = vmatpush.bf16.msra.mxu0 %v5158
        %5313 = vmatpush.bf16.msra.mxu0 %v5154
        %5314 = vmatpush.bf16.msra.mxu0 %v5150
        %5315 = vmatpush.bf16.msra.mxu0 %v5146
        %5316 = vmatpush.bf16.msra.mxu0 %v5142
        %5317 = vmatpush.bf16.msra.mxu0 %v5138
        %5318 = vmatpush.bf16.msra.mxu0 %v5134
        %5319 = vmatpush.bf16.msra.mxu0 %v5130
        %5320 = vmatmul.bf16.gmra.mxu0 %v4932
        %v5321 = vpop.f32.mrf.mxu0
        %v5322 = vadd.f32 %v4827, %v5321
        %v5323 = vpop.f32.mrf.mxu0
        %v5324 = vadd.f32 %v4827, %v5323
        %5325 = vdwg.mxu0
        %5326 = vmatpush.bf16.msra.mxu0 %v5190
        %5327 = vmatpush.bf16.msra.mxu0 %v5186
        %5328 = vmatpush.bf16.msra.mxu0 %v5182
        %5329 = vmatpush.bf16.msra.mxu0 %v5178
        %5330 = vmatpush.bf16.msra.mxu0 %v5174
        %5331 = vmatpush.bf16.msra.mxu0 %v5170
        %5332 = vmatpush.bf16.msra.mxu0 %v5166
        %5333 = vmatpush.bf16.msra.mxu0 %v5162
        %5334 = vmatmul.bf16.gmra.mxu0 %v4933
        %v5335 = vpop.f32.mrf.mxu0
        %v5336 = vadd.f32 %v5322, %v5335
        %v5337 = vpop.f32.mrf.mxu0
        %v5338 = vadd.f32 %v5324, %v5337
        %5339 = vdwg.mxu0
        %5340 = vmatpush.bf16.msra.mxu0 %v5159
        %5341 = vmatpush.bf16.msra.mxu0 %v5155
        %5342 = vmatpush.bf16.msra.mxu0 %v5151
        %5343 = vmatpush.bf16.msra.mxu0 %v5147
        %5344 = vmatpush.bf16.msra.mxu0 %v5143
        %5345 = vmatpush.bf16.msra.mxu0 %v5139
        %5346 = vmatpush.bf16.msra.mxu0 %v5135
        %5347 = vmatpush.bf16.msra.mxu0 %v5131
        %5348 = vmatmul.bf16.gmra.mxu0 %v4932
        %v5349 = vpop.f32.mrf.mxu0
        %v5350 = vadd.f32 %v4828, %v5349
        %v5351 = vpop.f32.mrf.mxu0
        %v5352 = vadd.f32 %v4828, %v5351
        %5353 = vdwg.mxu0
        %5354 = vmatpush.bf16.msra.mxu0 %v5191
        %5355 = vmatpush.bf16.msra.mxu0 %v5187
        %5356 = vmatpush.bf16.msra.mxu0 %v5183
        %5357 = vmatpush.bf16.msra.mxu0 %v5179
        %5358 = vmatpush.bf16.msra.mxu0 %v5175
        %5359 = vmatpush.bf16.msra.mxu0 %v5171
        %5360 = vmatpush.bf16.msra.mxu0 %v5167
        %5361 = vmatpush.bf16.msra.mxu0 %v5163
        %5362 = vmatmul.bf16.gmra.mxu0 %v4933
        %v5363 = vpop.f32.mrf.mxu0
        %v5364 = vadd.f32 %v5350, %v5363
        %v5365 = vpop.f32.mrf.mxu0
        %v5366 = vadd.f32 %v5352, %v5365
        %5367 = vdwg.mxu0
        %v5376 = vrot.slane %v5308, 7
        %v5377 = vrot.slane %v5336, 6
        %v5378 = vrot.slane %v5364, 5
        %v5379 = vrot.slane %v5310, 7
        %v5380 = vrot.slane %v5338, 6
        %v5381 = vrot.slane %v5366, 5
        %vm5382 = vcmask 1040384
        %v5383 = vsel %vm5382, %v5280, %v5376
        %v5384 = vsel %vm4899, %v5377, %v5378
        %vm5385 = vcmask 1041408
        %v5386 = vsel %vm5385, %v5383, %v5384
        %v5387 = vsel %vm4897, %v5280, %v5376
        %v5388 = vsel %vm4901, %v5377, %v5378
        %vm5389 = vcmask 1042433
        %v5390 = vsel %vm5389, %v5387, %v5388
        %v5391 = vrot.slane %v5390, 1
        %v5392 = vsel %vm4899, %v5280, %v5376
        %v5393 = vsel %vm4903, %v5377, %v5378
        %vm5394 = vcmask 1043458
        %v5395 = vsel %vm5394, %v5392, %v5393
        %v5396 = vrot.slane %v5395, 2
        %v5397 = vsel %vm4901, %v5280, %v5376
        %v5398 = vsel %vm4905, %v5377, %v5378
        %vm5399 = vcmask 1044483
        %v5400 = vsel %vm5399, %v5397, %v5398
        %v5401 = vrot.slane %v5400, 3
        %v5402 = vsel %vm4903, %v5280, %v5376
        %v5403 = vsel %vm4907, %v5377, %v5378
        %vm5404 = vcmask 1045508
        %v5405 = vsel %vm5404, %v5402, %v5403
        %v5406 = vrot.slane %v5405, 4
        %v5407 = vsel %vm4905, %v5280, %v5376
        %vm5408 = vcmask 1046528
        %v5409 = vsel %vm5408, %v5378, %v5377
        %vm5410 = vcmask 1046533
        %v5411 = vsel %vm5410, %v5407, %v5409
        %v5412 = vrot.slane %v5411, 5
        %v5413 = vsel %vm4907, %v5280, %v5376
        %v5414 = vsel %vm5382, %v5377, %v5378
        %vm5415 = vcmask 1045504
        %v5416 = vsel %vm5415, %v5414, %v5413
        %v5417 = vrot.slane %v5416, 6
        %v5418 = vsel %vm5408, %v5376, %v5280
        %v5419 = vsel %vm4897, %v5377, %v5378
        %vm5420 = vcmask 1046529
        %v5421 = vsel %vm5420, %v5419, %v5418
        %v5422 = vrot.slane %v5421, 7
        %v5423 = vsel %vm5382, %v5282, %v5379
        %v5424 = vsel %vm4899, %v5380, %v5381
        %v5425 = vsel %vm5385, %v5423, %v5424
        %v5426 = vsel %vm4897, %v5282, %v5379
        %v5427 = vsel %vm4901, %v5380, %v5381
        %v5428 = vsel %vm5389, %v5426, %v5427
        %v5429 = vrot.slane %v5428, 1
        %v5430 = vsel %vm4899, %v5282, %v5379
        %v5431 = vsel %vm4903, %v5380, %v5381
        %v5432 = vsel %vm5394, %v5430, %v5431
        %v5433 = vrot.slane %v5432, 2
        %v5434 = vsel %vm4901, %v5282, %v5379
        %v5435 = vsel %vm4905, %v5380, %v5381
        %v5436 = vsel %vm5399, %v5434, %v5435
        %v5437 = vrot.slane %v5436, 3
        %v5438 = vsel %vm4903, %v5282, %v5379
        %v5439 = vsel %vm4907, %v5380, %v5381
        %v5440 = vsel %vm5404, %v5438, %v5439
        %v5441 = vrot.slane %v5440, 4
        %v5442 = vsel %vm4905, %v5282, %v5379
        %v5443 = vsel %vm5408, %v5381, %v5380
        %v5444 = vsel %vm5410, %v5442, %v5443
        %v5445 = vrot.slane %v5444, 5
        %v5446 = vsel %vm4907, %v5282, %v5379
        %v5447 = vsel %vm5382, %v5380, %v5381
        %v5448 = vsel %vm5415, %v5447, %v5446
        %v5449 = vrot.slane %v5448, 6
        %v5450 = vsel %vm5408, %v5379, %v5282
        %v5451 = vsel %vm4897, %v5380, %v5381
        %v5452 = vsel %vm5420, %v5451, %v5450
        %v5453 = vrot.slane %v5452, 7
        %v5454 = vperm.slane %v5386, 0
        %v5455 = vperm.slane %v5386, 1
        %v5456 = vperm.slane %v5386, 2
        %v5457 = vperm.slane %v5386, 3
        %v5458 = vperm.slane %v5391, 0
        %v5459 = vperm.slane %v5391, 1
        %v5460 = vperm.slane %v5391, 2
        %v5461 = vperm.slane %v5391, 3
        %v5462 = vperm.slane %v5396, 0
        %v5463 = vperm.slane %v5396, 1
        %v5464 = vperm.slane %v5396, 2
        %v5465 = vperm.slane %v5396, 3
        %v5466 = vperm.slane %v5401, 0
        %v5467 = vperm.slane %v5401, 1
        %v5468 = vperm.slane %v5401, 2
        %v5469 = vperm.slane %v5401, 3
        %v5470 = vperm.slane %v5406, 0
        %v5471 = vperm.slane %v5406, 1
        %v5472 = vperm.slane %v5406, 2
        %v5473 = vperm.slane %v5406, 3
        %v5474 = vperm.slane %v5412, 0
        %v5475 = vperm.slane %v5412, 1
        %v5476 = vperm.slane %v5412, 2
        %v5477 = vperm.slane %v5412, 3
        %v5478 = vperm.slane %v5417, 0
        %v5479 = vperm.slane %v5417, 1
        %v5480 = vperm.slane %v5417, 2
        %v5481 = vperm.slane %v5417, 3
        %v5482 = vperm.slane %v5422, 0
        %v5483 = vperm.slane %v5422, 1
        %v5484 = vperm.slane %v5422, 2
        %v5485 = vperm.slane %v5422, 3
        %v5486 = vperm.slane %v5425, 0
        %v5487 = vperm.slane %v5425, 1
        %v5488 = vperm.slane %v5425, 2
        %v5489 = vperm.slane %v5425, 3
        %v5490 = vperm.slane %v5429, 0
        %v5491 = vperm.slane %v5429, 1
        %v5492 = vperm.slane %v5429, 2
        %v5493 = vperm.slane %v5429, 3
        %v5494 = vperm.slane %v5433, 0
        %v5495 = vperm.slane %v5433, 1
        %v5496 = vperm.slane %v5433, 2
        %v5497 = vperm.slane %v5433, 3
        %v5498 = vperm.slane %v5437, 0
        %v5499 = vperm.slane %v5437, 1
        %v5500 = vperm.slane %v5437, 2
        %v5501 = vperm.slane %v5437, 3
        %v5502 = vperm.slane %v5441, 0
        %v5503 = vperm.slane %v5441, 1
        %v5504 = vperm.slane %v5441, 2
        %v5505 = vperm.slane %v5441, 3
        %v5506 = vperm.slane %v5445, 0
        %v5507 = vperm.slane %v5445, 1
        %v5508 = vperm.slane %v5445, 2
        %v5509 = vperm.slane %v5445, 3
        %v5510 = vperm.slane %v5449, 0
        %v5511 = vperm.slane %v5449, 1
        %v5512 = vperm.slane %v5449, 2
        %v5513 = vperm.slane %v5449, 3
        %v5514 = vperm.slane %v5453, 0
        %v5515 = vperm.slane %v5453, 1
        %v5516 = vperm.slane %v5453, 2
        %v5517 = vperm.slane %v5453, 3
        %v5582 = vadd.f32 %v3650, %v5454
        %v5583 = vadd.f32 %v3988, %v5455
        %v5584 = vadd.f32 %v4326, %v5456
        %v5585 = vadd.f32 %v4664, %v5457
        %v5586 = vadd.f32 %v3652, %v5454
        %v5587 = vadd.f32 %v3990, %v5455
        %v5588 = vadd.f32 %v4328, %v5456
        %v5589 = vadd.f32 %v4666, %v5457
        %v5590 = vadd.f32 %v3655, %v5454
        %v5591 = vadd.f32 %v3993, %v5455
        %v5592 = vadd.f32 %v4331, %v5456
        %v5593 = vadd.f32 %v4669, %v5457
        %v5594 = vadd.f32 %v3657, %v5454
        %v5595 = vadd.f32 %v3995, %v5455
        %v5596 = vadd.f32 %v4333, %v5456
        %v5597 = vadd.f32 %v4671, %v5457
        %v5598 = vadd.f32 %v3660, %v5458
        %v5599 = vadd.f32 %v3998, %v5459
        %v5600 = vadd.f32 %v4336, %v5460
        %v5601 = vadd.f32 %v4674, %v5461
        %v5602 = vadd.f32 %v3662, %v5458
        %v5603 = vadd.f32 %v4000, %v5459
        %v5604 = vadd.f32 %v4338, %v5460
        %v5605 = vadd.f32 %v4676, %v5461
        %v5606 = vadd.f32 %v3665, %v5458
        %v5607 = vadd.f32 %v4003, %v5459
        %v5608 = vadd.f32 %v4341, %v5460
        %v5609 = vadd.f32 %v4679, %v5461
        %v5610 = vadd.f32 %v3667, %v5458
        %v5611 = vadd.f32 %v4005, %v5459
        %v5612 = vadd.f32 %v4343, %v5460
        %v5613 = vadd.f32 %v4681, %v5461
        %v5614 = vadd.f32 %v3670, %v5462
        %v5615 = vadd.f32 %v4008, %v5463
        %v5616 = vadd.f32 %v4346, %v5464
        %v5617 = vadd.f32 %v4684, %v5465
        %v5618 = vadd.f32 %v3672, %v5462
        %v5619 = vadd.f32 %v4010, %v5463
        %v5620 = vadd.f32 %v4348, %v5464
        %v5621 = vadd.f32 %v4686, %v5465
        %v5622 = vadd.f32 %v3675, %v5462
        %v5623 = vadd.f32 %v4013, %v5463
        %v5624 = vadd.f32 %v4351, %v5464
        %v5625 = vadd.f32 %v4689, %v5465
        %v5626 = vadd.f32 %v3677, %v5462
        %v5627 = vadd.f32 %v4015, %v5463
        %v5628 = vadd.f32 %v4353, %v5464
        %v5629 = vadd.f32 %v4691, %v5465
        %v5630 = vadd.f32 %v3680, %v5466
        %v5631 = vadd.f32 %v4018, %v5467
        %v5632 = vadd.f32 %v4356, %v5468
        %v5633 = vadd.f32 %v4694, %v5469
        %v5634 = vadd.f32 %v3682, %v5466
        %v5635 = vadd.f32 %v4020, %v5467
        %v5636 = vadd.f32 %v4358, %v5468
        %v5637 = vadd.f32 %v4696, %v5469
        %v5638 = vadd.f32 %v3685, %v5466
        %v5639 = vadd.f32 %v4023, %v5467
        %v5640 = vadd.f32 %v4361, %v5468
        %v5641 = vadd.f32 %v4699, %v5469
        %v5642 = vadd.f32 %v3687, %v5466
        %v5643 = vadd.f32 %v4025, %v5467
        %v5644 = vadd.f32 %v4363, %v5468
        %v5645 = vadd.f32 %v4701, %v5469
        %v5646 = vadd.f32 %v3690, %v5470
        %v5647 = vadd.f32 %v4028, %v5471
        %v5648 = vadd.f32 %v4366, %v5472
        %v5649 = vadd.f32 %v4704, %v5473
        %v5650 = vadd.f32 %v3692, %v5470
        %v5651 = vadd.f32 %v4030, %v5471
        %v5652 = vadd.f32 %v4368, %v5472
        %v5653 = vadd.f32 %v4706, %v5473
        %v5654 = vadd.f32 %v3695, %v5470
        %v5655 = vadd.f32 %v4033, %v5471
        %v5656 = vadd.f32 %v4371, %v5472
        %v5657 = vadd.f32 %v4709, %v5473
        %v5658 = vadd.f32 %v3697, %v5470
        %v5659 = vadd.f32 %v4035, %v5471
        %v5660 = vadd.f32 %v4373, %v5472
        %v5661 = vadd.f32 %v4711, %v5473
        %v5662 = vadd.f32 %v3700, %v5474
        %v5663 = vadd.f32 %v4038, %v5475
        %v5664 = vadd.f32 %v4376, %v5476
        %v5665 = vadd.f32 %v4714, %v5477
        %v5666 = vadd.f32 %v3702, %v5474
        %v5667 = vadd.f32 %v4040, %v5475
        %v5668 = vadd.f32 %v4378, %v5476
        %v5669 = vadd.f32 %v4716, %v5477
        %v5670 = vadd.f32 %v3705, %v5474
        %v5671 = vadd.f32 %v4043, %v5475
        %v5672 = vadd.f32 %v4381, %v5476
        %v5673 = vadd.f32 %v4719, %v5477
        %v5674 = vadd.f32 %v3707, %v5474
        %v5675 = vadd.f32 %v4045, %v5475
        %v5676 = vadd.f32 %v4383, %v5476
        %v5677 = vadd.f32 %v4721, %v5477
        %v5678 = vadd.f32 %v3710, %v5478
        %v5679 = vadd.f32 %v4048, %v5479
        %v5680 = vadd.f32 %v4386, %v5480
        %v5681 = vadd.f32 %v4724, %v5481
        %v5682 = vadd.f32 %v3712, %v5478
        %v5683 = vadd.f32 %v4050, %v5479
        %v5684 = vadd.f32 %v4388, %v5480
        %v5685 = vadd.f32 %v4726, %v5481
        %v5686 = vadd.f32 %v3715, %v5478
        %v5687 = vadd.f32 %v4053, %v5479
        %v5688 = vadd.f32 %v4391, %v5480
        %v5689 = vadd.f32 %v4729, %v5481
        %v5690 = vadd.f32 %v3717, %v5478
        %v5691 = vadd.f32 %v4055, %v5479
        %v5692 = vadd.f32 %v4393, %v5480
        %v5693 = vadd.f32 %v4731, %v5481
        %v5694 = vadd.f32 %v3720, %v5482
        %v5695 = vadd.f32 %v4058, %v5483
        %v5696 = vadd.f32 %v4396, %v5484
        %v5697 = vadd.f32 %v4734, %v5485
        %v5698 = vadd.f32 %v3722, %v5482
        %v5699 = vadd.f32 %v4060, %v5483
        %v5700 = vadd.f32 %v4398, %v5484
        %v5701 = vadd.f32 %v4736, %v5485
        %v5702 = vadd.f32 %v3725, %v5482
        %v5703 = vadd.f32 %v4063, %v5483
        %v5704 = vadd.f32 %v4401, %v5484
        %v5705 = vadd.f32 %v4739, %v5485
        %v5706 = vadd.f32 %v3727, %v5482
        %v5707 = vadd.f32 %v4065, %v5483
        %v5708 = vadd.f32 %v4403, %v5484
        %v5709 = vadd.f32 %v4741, %v5485
        %v5710 = vadd.f32 %v3730, %v5486
        %v5711 = vadd.f32 %v4068, %v5487
        %v5712 = vadd.f32 %v4406, %v5488
        %v5713 = vadd.f32 %v4744, %v5489
        %v5714 = vadd.f32 %v3732, %v5486
        %v5715 = vadd.f32 %v4070, %v5487
        %v5716 = vadd.f32 %v4408, %v5488
        %v5717 = vadd.f32 %v4746, %v5489
        %v5718 = vadd.f32 %v3735, %v5486
        %v5719 = vadd.f32 %v4073, %v5487
        %v5720 = vadd.f32 %v4411, %v5488
        %v5721 = vadd.f32 %v4749, %v5489
        %v5722 = vadd.f32 %v3737, %v5486
        %v5723 = vadd.f32 %v4075, %v5487
        %v5724 = vadd.f32 %v4413, %v5488
        %v5725 = vadd.f32 %v4751, %v5489
        %v5726 = vadd.f32 %v3740, %v5490
        %v5727 = vadd.f32 %v4078, %v5491
        %v5728 = vadd.f32 %v4416, %v5492
        %v5729 = vadd.f32 %v4754, %v5493
        %v5730 = vadd.f32 %v3742, %v5490
        %v5731 = vadd.f32 %v4080, %v5491
        %v5732 = vadd.f32 %v4418, %v5492
        %v5733 = vadd.f32 %v4756, %v5493
        %v5734 = vadd.f32 %v3745, %v5490
        %v5735 = vadd.f32 %v4083, %v5491
        %v5736 = vadd.f32 %v4421, %v5492
        %v5737 = vadd.f32 %v4759, %v5493
        %v5738 = vadd.f32 %v3747, %v5490
        %v5739 = vadd.f32 %v4085, %v5491
        %v5740 = vadd.f32 %v4423, %v5492
        %v5741 = vadd.f32 %v4761, %v5493
        %v5742 = vadd.f32 %v3750, %v5494
        %v5743 = vadd.f32 %v4088, %v5495
        %v5744 = vadd.f32 %v4426, %v5496
        %v5745 = vadd.f32 %v4764, %v5497
        %v5746 = vadd.f32 %v3752, %v5494
        %v5747 = vadd.f32 %v4090, %v5495
        %v5748 = vadd.f32 %v4428, %v5496
        %v5749 = vadd.f32 %v4766, %v5497
        %v5750 = vadd.f32 %v3755, %v5494
        %v5751 = vadd.f32 %v4093, %v5495
        %v5752 = vadd.f32 %v4431, %v5496
        %v5753 = vadd.f32 %v4769, %v5497
        %v5754 = vadd.f32 %v3757, %v5494
        %v5755 = vadd.f32 %v4095, %v5495
        %v5756 = vadd.f32 %v4433, %v5496
        %v5757 = vadd.f32 %v4771, %v5497
        %v5758 = vadd.f32 %v3760, %v5498
        %v5759 = vadd.f32 %v4098, %v5499
        %v5760 = vadd.f32 %v4436, %v5500
        %v5761 = vadd.f32 %v4774, %v5501
        %v5762 = vadd.f32 %v3762, %v5498
        %v5763 = vadd.f32 %v4100, %v5499
        %v5764 = vadd.f32 %v4438, %v5500
        %v5765 = vadd.f32 %v4776, %v5501
        %v5766 = vadd.f32 %v3765, %v5498
        %v5767 = vadd.f32 %v4103, %v5499
        %v5768 = vadd.f32 %v4441, %v5500
        %v5769 = vadd.f32 %v4779, %v5501
        %v5770 = vadd.f32 %v3767, %v5498
        %v5771 = vadd.f32 %v4105, %v5499
        %v5772 = vadd.f32 %v4443, %v5500
        %v5773 = vadd.f32 %v4781, %v5501
        %v5774 = vadd.f32 %v3770, %v5502
        %v5775 = vadd.f32 %v4108, %v5503
        %v5776 = vadd.f32 %v4446, %v5504
        %v5777 = vadd.f32 %v4784, %v5505
        %v5778 = vadd.f32 %v3772, %v5502
        %v5779 = vadd.f32 %v4110, %v5503
        %v5780 = vadd.f32 %v4448, %v5504
        %v5781 = vadd.f32 %v4786, %v5505
        %v5782 = vadd.f32 %v3775, %v5502
        %v5783 = vadd.f32 %v4113, %v5503
        %v5784 = vadd.f32 %v4451, %v5504
        %v5785 = vadd.f32 %v4789, %v5505
        %v5786 = vadd.f32 %v3777, %v5502
        %v5787 = vadd.f32 %v4115, %v5503
        %v5788 = vadd.f32 %v4453, %v5504
        %v5789 = vadd.f32 %v4791, %v5505
        %v5790 = vadd.f32 %v3780, %v5506
        %v5791 = vadd.f32 %v4118, %v5507
        %v5792 = vadd.f32 %v4456, %v5508
        %v5793 = vadd.f32 %v4794, %v5509
        %v5794 = vadd.f32 %v3782, %v5506
        %v5795 = vadd.f32 %v4120, %v5507
        %v5796 = vadd.f32 %v4458, %v5508
        %v5797 = vadd.f32 %v4796, %v5509
        %v5798 = vadd.f32 %v3785, %v5506
        %v5799 = vadd.f32 %v4123, %v5507
        %v5800 = vadd.f32 %v4461, %v5508
        %v5801 = vadd.f32 %v4799, %v5509
        %v5802 = vadd.f32 %v3787, %v5506
        %v5803 = vadd.f32 %v4125, %v5507
        %v5804 = vadd.f32 %v4463, %v5508
        %v5805 = vadd.f32 %v4801, %v5509
        %v5806 = vadd.f32 %v3790, %v5510
        %v5807 = vadd.f32 %v4128, %v5511
        %v5808 = vadd.f32 %v4466, %v5512
        %v5809 = vadd.f32 %v4804, %v5513
        %v5810 = vadd.f32 %v3792, %v5510
        %v5811 = vadd.f32 %v4130, %v5511
        %v5812 = vadd.f32 %v4468, %v5512
        %v5813 = vadd.f32 %v4806, %v5513
        %v5814 = vadd.f32 %v3795, %v5510
        %v5815 = vadd.f32 %v4133, %v5511
        %v5816 = vadd.f32 %v4471, %v5512
        %v5817 = vadd.f32 %v4809, %v5513
        %v5818 = vadd.f32 %v3797, %v5510
        %v5819 = vadd.f32 %v4135, %v5511
        %v5820 = vadd.f32 %v4473, %v5512
        %v5821 = vadd.f32 %v4811, %v5513
        %v5822 = vadd.f32 %v3800, %v5514
        %v5823 = vadd.f32 %v4138, %v5515
        %v5824 = vadd.f32 %v4476, %v5516
        %v5825 = vadd.f32 %v4814, %v5517
        %v5826 = vadd.f32 %v3802, %v5514
        %v5827 = vadd.f32 %v4140, %v5515
        %v5828 = vadd.f32 %v4478, %v5516
        %v5829 = vadd.f32 %v4816, %v5517
        %v5830 = vadd.f32 %v3805, %v5514
        %v5831 = vadd.f32 %v4143, %v5515
        %v5832 = vadd.f32 %v4481, %v5516
        %v5833 = vadd.f32 %v4819, %v5517
        %v5834 = vadd.f32 %v3807, %v5514
        %v5835 = vadd.f32 %v4145, %v5515
        %v5836 = vadd.f32 %v4483, %v5516
        %v5837 = vadd.f32 %v4821, %v5517
        %v5838 = vmax.f32 %v5582, 0.0
        %v5839 = vmax.f32 %v5583, 0.0
        %v5840 = vmax.f32 %v5584, 0.0
        %v5841 = vmax.f32 %v5585, 0.0
        %v5842 = vmax.f32 %v5586, 0.0
        %v5843 = vmax.f32 %v5587, 0.0
        %v5844 = vmax.f32 %v5588, 0.0
        %v5845 = vmax.f32 %v5589, 0.0
        %v5846 = vmax.f32 %v5590, 0.0
        %v5847 = vmax.f32 %v5591, 0.0
        %v5848 = vmax.f32 %v5592, 0.0
        %v5849 = vmax.f32 %v5593, 0.0
        %v5850 = vmax.f32 %v5594, 0.0
        %v5851 = vmax.f32 %v5595, 0.0
        %v5852 = vmax.f32 %v5596, 0.0
        %v5853 = vmax.f32 %v5597, 0.0
        %v5854 = vmax.f32 %v5598, 0.0
        %v5855 = vmax.f32 %v5599, 0.0
        %v5856 = vmax.f32 %v5600, 0.0
        %v5857 = vmax.f32 %v5601, 0.0
        %v5858 = vmax.f32 %v5602, 0.0
        %v5859 = vmax.f32 %v5603, 0.0
        %v5860 = vmax.f32 %v5604, 0.0
        %v5861 = vmax.f32 %v5605, 0.0
        %v5862 = vmax.f32 %v5606, 0.0
        %v5863 = vmax.f32 %v5607, 0.0
        %v5864 = vmax.f32 %v5608, 0.0
        %v5865 = vmax.f32 %v5609, 0.0
        %v5866 = vmax.f32 %v5610, 0.0
        %v5867 = vmax.f32 %v5611, 0.0
        %v5868 = vmax.f32 %v5612, 0.0
        %v5869 = vmax.f32 %v5613, 0.0
        %v5870 = vmax.f32 %v5614, 0.0
        %v5871 = vmax.f32 %v5615, 0.0
        %v5872 = vmax.f32 %v5616, 0.0
        %v5873 = vmax.f32 %v5617, 0.0
        %v5874 = vmax.f32 %v5618, 0.0
        %v5875 = vmax.f32 %v5619, 0.0
        %v5876 = vmax.f32 %v5620, 0.0
        %v5877 = vmax.f32 %v5621, 0.0
        %v5878 = vmax.f32 %v5622, 0.0
        %v5879 = vmax.f32 %v5623, 0.0
        %v5880 = vmax.f32 %v5624, 0.0
        %v5881 = vmax.f32 %v5625, 0.0
        %v5882 = vmax.f32 %v5626, 0.0
        %v5883 = vmax.f32 %v5627, 0.0
        %v5884 = vmax.f32 %v5628, 0.0
        %v5885 = vmax.f32 %v5629, 0.0
        %v5886 = vmax.f32 %v5630, 0.0
        %v5887 = vmax.f32 %v5631, 0.0
        %v5888 = vmax.f32 %v5632, 0.0
        %v5889 = vmax.f32 %v5633, 0.0
        %v5890 = vmax.f32 %v5634, 0.0
        %v5891 = vmax.f32 %v5635, 0.0
        %v5892 = vmax.f32 %v5636, 0.0
        %v5893 = vmax.f32 %v5637, 0.0
        %v5894 = vmax.f32 %v5638, 0.0
        %v5895 = vmax.f32 %v5639, 0.0
        %v5896 = vmax.f32 %v5640, 0.0
        %v5897 = vmax.f32 %v5641, 0.0
        %v5898 = vmax.f32 %v5642, 0.0
        %v5899 = vmax.f32 %v5643, 0.0
        %v5900 = vmax.f32 %v5644, 0.0
        %v5901 = vmax.f32 %v5645, 0.0
        %v5902 = vmax.f32 %v5646, 0.0
        %v5903 = vmax.f32 %v5647, 0.0
        %v5904 = vmax.f32 %v5648, 0.0
        %v5905 = vmax.f32 %v5649, 0.0
        %v5906 = vmax.f32 %v5650, 0.0
        %v5907 = vmax.f32 %v5651, 0.0
        %v5908 = vmax.f32 %v5652, 0.0
        %v5909 = vmax.f32 %v5653, 0.0
        %v5910 = vmax.f32 %v5654, 0.0
        %v5911 = vmax.f32 %v5655, 0.0
        %v5912 = vmax.f32 %v5656, 0.0
        %v5913 = vmax.f32 %v5657, 0.0
        %v5914 = vmax.f32 %v5658, 0.0
        %v5915 = vmax.f32 %v5659, 0.0
        %v5916 = vmax.f32 %v5660, 0.0
        %v5917 = vmax.f32 %v5661, 0.0
        %v5918 = vmax.f32 %v5662, 0.0
        %v5919 = vmax.f32 %v5663, 0.0
        %v5920 = vmax.f32 %v5664, 0.0
        %v5921 = vmax.f32 %v5665, 0.0
        %v5922 = vmax.f32 %v5666, 0.0
        %v5923 = vmax.f32 %v5667, 0.0
        %v5924 = vmax.f32 %v5668, 0.0
        %v5925 = vmax.f32 %v5669, 0.0
        %v5926 = vmax.f32 %v5670, 0.0
        %v5927 = vmax.f32 %v5671, 0.0
        %v5928 = vmax.f32 %v5672, 0.0
        %v5929 = vmax.f32 %v5673, 0.0
        %v5930 = vmax.f32 %v5674, 0.0
        %v5931 = vmax.f32 %v5675, 0.0
        %v5932 = vmax.f32 %v5676, 0.0
        %v5933 = vmax.f32 %v5677, 0.0
        %v5934 = vmax.f32 %v5678, 0.0
        %v5935 = vmax.f32 %v5679, 0.0
        %v5936 = vmax.f32 %v5680, 0.0
        %v5937 = vmax.f32 %v5681, 0.0
        %v5938 = vmax.f32 %v5682, 0.0
        %v5939 = vmax.f32 %v5683, 0.0
        %v5940 = vmax.f32 %v5684, 0.0
        %v5941 = vmax.f32 %v5685, 0.0
        %v5942 = vmax.f32 %v5686, 0.0
        %v5943 = vmax.f32 %v5687, 0.0
        %v5944 = vmax.f32 %v5688, 0.0
        %v5945 = vmax.f32 %v5689, 0.0
        %v5946 = vmax.f32 %v5690, 0.0
        %v5947 = vmax.f32 %v5691, 0.0
        %v5948 = vmax.f32 %v5692, 0.0
        %v5949 = vmax.f32 %v5693, 0.0
        %v5950 = vmax.f32 %v5694, 0.0
        %v5951 = vmax.f32 %v5695, 0.0
        %v5952 = vmax.f32 %v5696, 0.0
        %v5953 = vmax.f32 %v5697, 0.0
        %v5954 = vmax.f32 %v5698, 0.0
        %v5955 = vmax.f32 %v5699, 0.0
        %v5956 = vmax.f32 %v5700, 0.0
        %v5957 = vmax.f32 %v5701, 0.0
        %v5958 = vmax.f32 %v5702, 0.0
        %v5959 = vmax.f32 %v5703, 0.0
        %v5960 = vmax.f32 %v5704, 0.0
        %v5961 = vmax.f32 %v5705, 0.0
        %v5962 = vmax.f32 %v5706, 0.0
        %v5963 = vmax.f32 %v5707, 0.0
        %v5964 = vmax.f32 %v5708, 0.0
        %v5965 = vmax.f32 %v5709, 0.0
        %v5966 = vmax.f32 %v5710, 0.0
        %v5967 = vmax.f32 %v5711, 0.0
        %v5968 = vmax.f32 %v5712, 0.0
        %v5969 = vmax.f32 %v5713, 0.0
        %v5970 = vmax.f32 %v5714, 0.0
        %v5971 = vmax.f32 %v5715, 0.0
        %v5972 = vmax.f32 %v5716, 0.0
        %v5973 = vmax.f32 %v5717, 0.0
        %v5974 = vmax.f32 %v5718, 0.0
        %v5975 = vmax.f32 %v5719, 0.0
        %v5976 = vmax.f32 %v5720, 0.0
        %v5977 = vmax.f32 %v5721, 0.0
        %v5978 = vmax.f32 %v5722, 0.0
        %v5979 = vmax.f32 %v5723, 0.0
        %v5980 = vmax.f32 %v5724, 0.0
        %v5981 = vmax.f32 %v5725, 0.0
        %v5982 = vmax.f32 %v5726, 0.0
        %v5983 = vmax.f32 %v5727, 0.0
        %v5984 = vmax.f32 %v5728, 0.0
        %v5985 = vmax.f32 %v5729, 0.0
        %v5986 = vmax.f32 %v5730, 0.0
        %v5987 = vmax.f32 %v5731, 0.0
        %v5988 = vmax.f32 %v5732, 0.0
        %v5989 = vmax.f32 %v5733, 0.0
        %v5990 = vmax.f32 %v5734, 0.0
        %v5991 = vmax.f32 %v5735, 0.0
        %v5992 = vmax.f32 %v5736, 0.0
        %v5993 = vmax.f32 %v5737, 0.0
        %v5994 = vmax.f32 %v5738, 0.0
        %v5995 = vmax.f32 %v5739, 0.0
        %v5996 = vmax.f32 %v5740, 0.0
        %v5997 = vmax.f32 %v5741, 0.0
        %v5998 = vmax.f32 %v5742, 0.0
        %v5999 = vmax.f32 %v5743, 0.0
        %v6000 = vmax.f32 %v5744, 0.0
        %v6001 = vmax.f32 %v5745, 0.0
        %v6002 = vmax.f32 %v5746, 0.0
        %v6003 = vmax.f32 %v5747, 0.0
        %v6004 = vmax.f32 %v5748, 0.0
        %v6005 = vmax.f32 %v5749, 0.0
        %v6006 = vmax.f32 %v5750, 0.0
        %v6007 = vmax.f32 %v5751, 0.0
        %v6008 = vmax.f32 %v5752, 0.0
        %v6009 = vmax.f32 %v5753, 0.0
        %v6010 = vmax.f32 %v5754, 0.0
        %v6011 = vmax.f32 %v5755, 0.0
        %v6012 = vmax.f32 %v5756, 0.0
        %v6013 = vmax.f32 %v5757, 0.0
        %v6014 = vmax.f32 %v5758, 0.0
        %v6015 = vmax.f32 %v5759, 0.0
        %v6016 = vmax.f32 %v5760, 0.0
        %v6017 = vmax.f32 %v5761, 0.0
        %v6018 = vmax.f32 %v5762, 0.0
        %v6019 = vmax.f32 %v5763, 0.0
        %v6020 = vmax.f32 %v5764, 0.0
        %v6021 = vmax.f32 %v5765, 0.0
        %v6022 = vmax.f32 %v5766, 0.0
        %v6023 = vmax.f32 %v5767, 0.0
        %v6024 = vmax.f32 %v5768, 0.0
        %v6025 = vmax.f32 %v5769, 0.0
        %v6026 = vmax.f32 %v5770, 0.0
        %v6027 = vmax.f32 %v5771, 0.0
        %v6028 = vmax.f32 %v5772, 0.0
        %v6029 = vmax.f32 %v5773, 0.0
        %v6030 = vmax.f32 %v5774, 0.0
        %v6031 = vmax.f32 %v5775, 0.0
        %v6032 = vmax.f32 %v5776, 0.0
        %v6033 = vmax.f32 %v5777, 0.0
        %v6034 = vmax.f32 %v5778, 0.0
        %v6035 = vmax.f32 %v5779, 0.0
        %v6036 = vmax.f32 %v5780, 0.0
        %v6037 = vmax.f32 %v5781, 0.0
        %v6038 = vmax.f32 %v5782, 0.0
        %v6039 = vmax.f32 %v5783, 0.0
        %v6040 = vmax.f32 %v5784, 0.0
        %v6041 = vmax.f32 %v5785, 0.0
        %v6042 = vmax.f32 %v5786, 0.0
        %v6043 = vmax.f32 %v5787, 0.0
        %v6044 = vmax.f32 %v5788, 0.0
        %v6045 = vmax.f32 %v5789, 0.0
        %v6046 = vmax.f32 %v5790, 0.0
        %v6047 = vmax.f32 %v5791, 0.0
        %v6048 = vmax.f32 %v5792, 0.0
        %v6049 = vmax.f32 %v5793, 0.0
        %v6050 = vmax.f32 %v5794, 0.0
        %v6051 = vmax.f32 %v5795, 0.0
        %v6052 = vmax.f32 %v5796, 0.0
        %v6053 = vmax.f32 %v5797, 0.0
        %v6054 = vmax.f32 %v5798, 0.0
        %v6055 = vmax.f32 %v5799, 0.0
        %v6056 = vmax.f32 %v5800, 0.0
        %v6057 = vmax.f32 %v5801, 0.0
        %v6058 = vmax.f32 %v5802, 0.0
        %v6059 = vmax.f32 %v5803, 0.0
        %v6060 = vmax.f32 %v5804, 0.0
        %v6061 = vmax.f32 %v5805, 0.0
        %v6062 = vmax.f32 %v5806, 0.0
        %v6063 = vmax.f32 %v5807, 0.0
        %v6064 = vmax.f32 %v5808, 0.0
        %v6065 = vmax.f32 %v5809, 0.0
        %v6066 = vmax.f32 %v5810, 0.0
        %v6067 = vmax.f32 %v5811, 0.0
        %v6068 = vmax.f32 %v5812, 0.0
        %v6069 = vmax.f32 %v5813, 0.0
        %v6070 = vmax.f32 %v5814, 0.0
        %v6071 = vmax.f32 %v5815, 0.0
        %v6072 = vmax.f32 %v5816, 0.0
        %v6073 = vmax.f32 %v5817, 0.0
        %v6074 = vmax.f32 %v5818, 0.0
        %v6075 = vmax.f32 %v5819, 0.0
        %v6076 = vmax.f32 %v5820, 0.0
        %v6077 = vmax.f32 %v5821, 0.0
        %v6078 = vmax.f32 %v5822, 0.0
        %v6079 = vmax.f32 %v5823, 0.0
        %v6080 = vmax.f32 %v5824, 0.0
        %v6081 = vmax.f32 %v5825, 0.0
        %v6082 = vmax.f32 %v5826, 0.0
        %v6083 = vmax.f32 %v5827, 0.0
        %v6084 = vmax.f32 %v5828, 0.0
        %v6085 = vmax.f32 %v5829, 0.0
        %v6086 = vmax.f32 %v5830, 0.0
        %v6087 = vmax.f32 %v5831, 0.0
        %v6088 = vmax.f32 %v5832, 0.0
        %v6089 = vmax.f32 %v5833, 0.0
        %v6090 = vmax.f32 %v5834, 0.0
        %v6091 = vmax.f32 %v5835, 0.0
        %v6092 = vmax.f32 %v5836, 0.0
        %v6093 = vmax.f32 %v5837, 0.0
        %v6094 = vpack.c.bf16 %v5842, %v5838
        %v6095 = vpack.c.bf16 %v5843, %v5839
        %v6096 = vpack.c.bf16 %v5844, %v5840
        %v6097 = vpack.c.bf16 %v5845, %v5841
        %v6098 = vpack.c.bf16 %v5850, %v5846
        %v6099 = vpack.c.bf16 %v5851, %v5847
        %v6100 = vpack.c.bf16 %v5852, %v5848
        %v6101 = vpack.c.bf16 %v5853, %v5849
        %v6102 = vpack.c.bf16 %v5858, %v5854
        %v6103 = vpack.c.bf16 %v5859, %v5855
        %v6104 = vpack.c.bf16 %v5860, %v5856
        %v6105 = vpack.c.bf16 %v5861, %v5857
        %v6106 = vpack.c.bf16 %v5866, %v5862
        %v6107 = vpack.c.bf16 %v5867, %v5863
        %v6108 = vpack.c.bf16 %v5868, %v5864
        %v6109 = vpack.c.bf16 %v5869, %v5865
        %v6110 = vpack.c.bf16 %v5874, %v5870
        %v6111 = vpack.c.bf16 %v5875, %v5871
        %v6112 = vpack.c.bf16 %v5876, %v5872
        %v6113 = vpack.c.bf16 %v5877, %v5873
        %v6114 = vpack.c.bf16 %v5882, %v5878
        %v6115 = vpack.c.bf16 %v5883, %v5879
        %v6116 = vpack.c.bf16 %v5884, %v5880
        %v6117 = vpack.c.bf16 %v5885, %v5881
        %v6118 = vpack.c.bf16 %v5890, %v5886
        %v6119 = vpack.c.bf16 %v5891, %v5887
        %v6120 = vpack.c.bf16 %v5892, %v5888
        %v6121 = vpack.c.bf16 %v5893, %v5889
        %v6122 = vpack.c.bf16 %v5898, %v5894
        %v6123 = vpack.c.bf16 %v5899, %v5895
        %v6124 = vpack.c.bf16 %v5900, %v5896
        %v6125 = vpack.c.bf16 %v5901, %v5897
        %v6126 = vpack.c.bf16 %v5906, %v5902
        %v6127 = vpack.c.bf16 %v5907, %v5903
        %v6128 = vpack.c.bf16 %v5908, %v5904
        %v6129 = vpack.c.bf16 %v5909, %v5905
        %v6130 = vpack.c.bf16 %v5914, %v5910
        %v6131 = vpack.c.bf16 %v5915, %v5911
        %v6132 = vpack.c.bf16 %v5916, %v5912
        %v6133 = vpack.c.bf16 %v5917, %v5913
        %v6134 = vpack.c.bf16 %v5922, %v5918
        %v6135 = vpack.c.bf16 %v5923, %v5919
        %v6136 = vpack.c.bf16 %v5924, %v5920
        %v6137 = vpack.c.bf16 %v5925, %v5921
        %v6138 = vpack.c.bf16 %v5930, %v5926
        %v6139 = vpack.c.bf16 %v5931, %v5927
        %v6140 = vpack.c.bf16 %v5932, %v5928
        %v6141 = vpack.c.bf16 %v5933, %v5929
        %v6142 = vpack.c.bf16 %v5938, %v5934
        %v6143 = vpack.c.bf16 %v5939, %v5935
        %v6144 = vpack.c.bf16 %v5940, %v5936
        %v6145 = vpack.c.bf16 %v5941, %v5937
        %v6146 = vpack.c.bf16 %v5946, %v5942
        %v6147 = vpack.c.bf16 %v5947, %v5943
        %v6148 = vpack.c.bf16 %v5948, %v5944
        %v6149 = vpack.c.bf16 %v5949, %v5945
        %v6150 = vpack.c.bf16 %v5954, %v5950
        %v6151 = vpack.c.bf16 %v5955, %v5951
        %v6152 = vpack.c.bf16 %v5956, %v5952
        %v6153 = vpack.c.bf16 %v5957, %v5953
        %v6154 = vpack.c.bf16 %v5962, %v5958
        %v6155 = vpack.c.bf16 %v5963, %v5959
        %v6156 = vpack.c.bf16 %v5964, %v5960
        %v6157 = vpack.c.bf16 %v5965, %v5961
        %v6158 = vpack.c.bf16 %v5970, %v5966
        %v6159 = vpack.c.bf16 %v5971, %v5967
        %v6160 = vpack.c.bf16 %v5972, %v5968
        %v6161 = vpack.c.bf16 %v5973, %v5969
        %v6162 = vpack.c.bf16 %v5978, %v5974
        %v6163 = vpack.c.bf16 %v5979, %v5975
        %v6164 = vpack.c.bf16 %v5980, %v5976
        %v6165 = vpack.c.bf16 %v5981, %v5977
        %v6166 = vpack.c.bf16 %v5986, %v5982
        %v6167 = vpack.c.bf16 %v5987, %v5983
        %v6168 = vpack.c.bf16 %v5988, %v5984
        %v6169 = vpack.c.bf16 %v5989, %v5985
        %v6170 = vpack.c.bf16 %v5994, %v5990
        %v6171 = vpack.c.bf16 %v5995, %v5991
        %v6172 = vpack.c.bf16 %v5996, %v5992
        %v6173 = vpack.c.bf16 %v5997, %v5993
        %v6174 = vpack.c.bf16 %v6002, %v5998
        %v6175 = vpack.c.bf16 %v6003, %v5999
        %v6176 = vpack.c.bf16 %v6004, %v6000
        %v6177 = vpack.c.bf16 %v6005, %v6001
        %v6178 = vpack.c.bf16 %v6010, %v6006
        %v6179 = vpack.c.bf16 %v6011, %v6007
        %v6180 = vpack.c.bf16 %v6012, %v6008
        %v6181 = vpack.c.bf16 %v6013, %v6009
        %v6182 = vpack.c.bf16 %v6018, %v6014
        %v6183 = vpack.c.bf16 %v6019, %v6015
        %v6184 = vpack.c.bf16 %v6020, %v6016
        %v6185 = vpack.c.bf16 %v6021, %v6017
        %v6186 = vpack.c.bf16 %v6026, %v6022
        %v6187 = vpack.c.bf16 %v6027, %v6023
        %v6188 = vpack.c.bf16 %v6028, %v6024
        %v6189 = vpack.c.bf16 %v6029, %v6025
        %v6190 = vpack.c.bf16 %v6034, %v6030
        %v6191 = vpack.c.bf16 %v6035, %v6031
        %v6192 = vpack.c.bf16 %v6036, %v6032
        %v6193 = vpack.c.bf16 %v6037, %v6033
        %v6194 = vpack.c.bf16 %v6042, %v6038
        %v6195 = vpack.c.bf16 %v6043, %v6039
        %v6196 = vpack.c.bf16 %v6044, %v6040
        %v6197 = vpack.c.bf16 %v6045, %v6041
        %v6198 = vpack.c.bf16 %v6050, %v6046
        %v6199 = vpack.c.bf16 %v6051, %v6047
        %v6200 = vpack.c.bf16 %v6052, %v6048
        %v6201 = vpack.c.bf16 %v6053, %v6049
        %v6202 = vpack.c.bf16 %v6058, %v6054
        %v6203 = vpack.c.bf16 %v6059, %v6055
        %v6204 = vpack.c.bf16 %v6060, %v6056
        %v6205 = vpack.c.bf16 %v6061, %v6057
        %v6206 = vpack.c.bf16 %v6066, %v6062
        %v6207 = vpack.c.bf16 %v6067, %v6063
        %v6208 = vpack.c.bf16 %v6068, %v6064
        %v6209 = vpack.c.bf16 %v6069, %v6065
        %v6210 = vpack.c.bf16 %v6074, %v6070
        %v6211 = vpack.c.bf16 %v6075, %v6071
        %v6212 = vpack.c.bf16 %v6076, %v6072
        %v6213 = vpack.c.bf16 %v6077, %v6073
        %v6214 = vpack.c.bf16 %v6082, %v6078
        %v6215 = vpack.c.bf16 %v6083, %v6079
        %v6216 = vpack.c.bf16 %v6084, %v6080
        %v6217 = vpack.c.bf16 %v6085, %v6081
        %v6218 = vpack.c.bf16 %v6090, %v6086
        %v6219 = vpack.c.bf16 %v6091, %v6087
        %v6220 = vpack.c.bf16 %v6092, %v6088
        %v6221 = vpack.c.bf16 %v6093, %v6089
        %v6222 = vld [vmem:[#allocation5] sm:$0xf]
        %v6223 = vld [vmem:[#allocation5 + $0x4] sm:$0xf]
        %v6224 = vld [vmem:[#allocation5 + $0x8] sm:$0xf]
        %v6225 = vld [vmem:[#allocation5 + $0xc] sm:$0xf]
        %v6226 = vld [vmem:[#allocation5 + $0x10] sm:$0xf]
        %v6227 = vld [vmem:[#allocation5 + $0x14] sm:$0xf]
        %v6228 = vld [vmem:[#allocation5 + $0x18] sm:$0xf]
        %v6229 = vld [vmem:[#allocation5 + $0x1c] sm:$0xf]
        %v6230 = vld [vmem:[#allocation5 + $0x20] sm:$0xf]
        %v6231 = vld [vmem:[#allocation5 + $0x24] sm:$0xf]
        %v6232 = vld [vmem:[#allocation5 + $0x28] sm:$0xf]
        %v6233 = vld [vmem:[#allocation5 + $0x2c] sm:$0xf]
        %v6234 = vld [vmem:[#allocation5 + $0x30] sm:$0xf]
        %v6235 = vld [vmem:[#allocation5 + $0x34] sm:$0xf]
        %v6236 = vld [vmem:[#allocation5 + $0x38] sm:$0xf]
        %v6237 = vld [vmem:[#allocation5 + $0x3c] sm:$0xf]
        %v6238 = vld [vmem:[#allocation5 + $0x40] sm:$0xf]
        %v6239 = vld [vmem:[#allocation5 + $0x44] sm:$0xf]
        %v6240 = vld [vmem:[#allocation5 + $0x48] sm:$0xf]
        %v6241 = vld [vmem:[#allocation5 + $0x4c] sm:$0xf]
        %v6242 = vld [vmem:[#allocation5 + $0x50] sm:$0xf]
        %v6243 = vld [vmem:[#allocation5 + $0x54] sm:$0xf]
        %v6244 = vld [vmem:[#allocation5 + $0x58] sm:$0xf]
        %v6245 = vld [vmem:[#allocation5 + $0x5c] sm:$0xf]
        %v6246 = vld [vmem:[#allocation5 + $0x60] sm:$0xf]
        %v6247 = vld [vmem:[#allocation5 + $0x64] sm:$0xf]
        %v6248 = vld [vmem:[#allocation5 + $0x68] sm:$0xf]
        %v6249 = vld [vmem:[#allocation5 + $0x6c] sm:$0xf]
        %v6250 = vld [vmem:[#allocation5 + $0x70] sm:$0xf]
        %v6251 = vld [vmem:[#allocation5 + $0x74] sm:$0xf]
        %v6252 = vld [vmem:[#allocation5 + $0x78] sm:$0xf]
        %v6253 = vld [vmem:[#allocation5 + $0x7c] sm:$0xf]
        %v6254 = vld [vmem:[#allocation5 + $0x80] sm:$0xf]
        %v6255 = vld [vmem:[#allocation5 + $0x84] sm:$0xf]
        %v6256 = vld [vmem:[#allocation5 + $0x88] sm:$0xf]
        %v6257 = vld [vmem:[#allocation5 + $0x8c] sm:$0xf]
        %v6258 = vld [vmem:[#allocation5 + $0x90] sm:$0xf]
        %v6259 = vld [vmem:[#allocation5 + $0x94] sm:$0xf]
        %v6260 = vld [vmem:[#allocation5 + $0x98] sm:$0xf]
        %v6261 = vld [vmem:[#allocation5 + $0x9c] sm:$0xf]
        %v6262 = vld [vmem:[#allocation5 + $0xa0] sm:$0xf]
        %v6263 = vld [vmem:[#allocation5 + $0xa4] sm:$0xf]
        %v6264 = vld [vmem:[#allocation5 + $0xa8] sm:$0xf]
        %v6265 = vld [vmem:[#allocation5 + $0xac] sm:$0xf]
        %v6266 = vld [vmem:[#allocation5 + $0xb0] sm:$0xf]
        %v6267 = vld [vmem:[#allocation5 + $0xb4] sm:$0xf]
        %v6268 = vld [vmem:[#allocation5 + $0xb8] sm:$0xf]
        %v6269 = vld [vmem:[#allocation5 + $0xbc] sm:$0xf]
        %v6270 = vld [vmem:[#allocation5 + $0xc0] sm:$0xf]
        %v6271 = vld [vmem:[#allocation5 + $0xc4] sm:$0xf]
        %v6272 = vld [vmem:[#allocation5 + $0xc8] sm:$0xf]
        %v6273 = vld [vmem:[#allocation5 + $0xcc] sm:$0xf]
        %v6274 = vld [vmem:[#allocation5 + $0xd0] sm:$0xf]
        %v6275 = vld [vmem:[#allocation5 + $0xd4] sm:$0xf]
        %v6276 = vld [vmem:[#allocation5 + $0xd8] sm:$0xf]
        %v6277 = vld [vmem:[#allocation5 + $0xdc] sm:$0xf]
        %v6278 = vld [vmem:[#allocation5 + $0xe0] sm:$0xf]
        %v6279 = vld [vmem:[#allocation5 + $0xe4] sm:$0xf]
        %v6280 = vld [vmem:[#allocation5 + $0xe8] sm:$0xf]
        %v6281 = vld [vmem:[#allocation5 + $0xec] sm:$0xf]
        %v6282 = vld [vmem:[#allocation5 + $0xf0] sm:$0xf]
        %v6283 = vld [vmem:[#allocation5 + $0xf4] sm:$0xf]
        %v6284 = vld [vmem:[#allocation5 + $0xf8] sm:$0xf]
        %v6285 = vld [vmem:[#allocation5 + $0xfc] sm:$0xf]
        %v6350 = vunpack.c.l.b16 %v6222
        %v6351 = vunpack.c.l.b16 %v6223
        %v6352 = vunpack.c.l.b16 %v6224
        %v6353 = vunpack.c.l.b16 %v6225
        %v6354 = vunpack.c.l.b16 %v6226
        %v6355 = vunpack.c.l.b16 %v6227
        %v6356 = vunpack.c.l.b16 %v6228
        %v6357 = vunpack.c.l.b16 %v6229
        %v6358 = vunpack.c.l.b16 %v6230
        %v6359 = vunpack.c.l.b16 %v6231
        %v6360 = vunpack.c.l.b16 %v6232
        %v6361 = vunpack.c.l.b16 %v6233
        %v6362 = vunpack.c.l.b16 %v6234
        %v6363 = vunpack.c.l.b16 %v6235
        %v6364 = vunpack.c.l.b16 %v6236
        %v6365 = vunpack.c.l.b16 %v6237
        %v6366 = vunpack.c.l.b16 %v6238
        %v6367 = vunpack.c.l.b16 %v6239
        %v6368 = vunpack.c.l.b16 %v6240
        %v6369 = vunpack.c.l.b16 %v6241
        %v6370 = vunpack.c.l.b16 %v6242
        %v6371 = vunpack.c.l.b16 %v6243
        %v6372 = vunpack.c.l.b16 %v6244
        %v6373 = vunpack.c.l.b16 %v6245
        %v6374 = vunpack.c.l.b16 %v6246
        %v6375 = vunpack.c.l.b16 %v6247
        %v6376 = vunpack.c.l.b16 %v6248
        %v6377 = vunpack.c.l.b16 %v6249
        %v6378 = vunpack.c.l.b16 %v6250
        %v6379 = vunpack.c.l.b16 %v6251
        %v6380 = vunpack.c.l.b16 %v6252
        %v6381 = vunpack.c.l.b16 %v6253
        %v6382 = vunpack.c.l.b16 %v6254
        %v6383 = vunpack.c.l.b16 %v6255
        %v6384 = vunpack.c.l.b16 %v6256
        %v6385 = vunpack.c.l.b16 %v6257
        %v6386 = vunpack.c.l.b16 %v6258
        %v6387 = vunpack.c.l.b16 %v6259
        %v6388 = vunpack.c.l.b16 %v6260
        %v6389 = vunpack.c.l.b16 %v6261
        %v6390 = vunpack.c.l.b16 %v6262
        %v6391 = vunpack.c.l.b16 %v6263
        %v6392 = vunpack.c.l.b16 %v6264
        %v6393 = vunpack.c.l.b16 %v6265
        %v6394 = vunpack.c.l.b16 %v6266
        %v6395 = vunpack.c.l.b16 %v6267
        %v6396 = vunpack.c.l.b16 %v6268
        %v6397 = vunpack.c.l.b16 %v6269
        %v6398 = vunpack.c.l.b16 %v6270
        %v6399 = vunpack.c.l.b16 %v6271
        %v6400 = vunpack.c.l.b16 %v6272
        %v6401 = vunpack.c.l.b16 %v6273
        %v6402 = vunpack.c.l.b16 %v6274
        %v6403 = vunpack.c.l.b16 %v6275
        %v6404 = vunpack.c.l.b16 %v6276
        %v6405 = vunpack.c.l.b16 %v6277
        %v6406 = vunpack.c.l.b16 %v6278
        %v6407 = vunpack.c.l.b16 %v6279
        %v6408 = vunpack.c.l.b16 %v6280
        %v6409 = vunpack.c.l.b16 %v6281
        %v6410 = vunpack.c.l.b16 %v6282
        %v6411 = vunpack.c.l.b16 %v6283
        %v6412 = vunpack.c.l.b16 %v6284
        %v6413 = vunpack.c.l.b16 %v6285
        %v6414 = vpack.c.b16 %v6351, %v6350
        %v6415 = vpack.c.b16 %v6353, %v6352
        %v6416 = vpack.c.b16 %v6355, %v6354
        %v6417 = vpack.c.b16 %v6357, %v6356
        %v6418 = vpack.c.b16 %v6359, %v6358
        %v6419 = vpack.c.b16 %v6361, %v6360
        %v6420 = vpack.c.b16 %v6363, %v6362
        %v6421 = vpack.c.b16 %v6365, %v6364
        %v6422 = vpack.c.b16 %v6367, %v6366
        %v6423 = vpack.c.b16 %v6369, %v6368
        %v6424 = vpack.c.b16 %v6371, %v6370
        %v6425 = vpack.c.b16 %v6373, %v6372
        %v6426 = vpack.c.b16 %v6375, %v6374
        %v6427 = vpack.c.b16 %v6377, %v6376
        %v6428 = vpack.c.b16 %v6379, %v6378
        %v6429 = vpack.c.b16 %v6381, %v6380
        %v6430 = vpack.c.b16 %v6383, %v6382
        %v6431 = vpack.c.b16 %v6385, %v6384
        %v6432 = vpack.c.b16 %v6387, %v6386
        %v6433 = vpack.c.b16 %v6389, %v6388
        %v6434 = vpack.c.b16 %v6391, %v6390
        %v6435 = vpack.c.b16 %v6393, %v6392
        %v6436 = vpack.c.b16 %v6395, %v6394
        %v6437 = vpack.c.b16 %v6397, %v6396
        %v6438 = vpack.c.b16 %v6399, %v6398
        %v6439 = vpack.c.b16 %v6401, %v6400
        %v6440 = vpack.c.b16 %v6403, %v6402
        %v6441 = vpack.c.b16 %v6405, %v6404
        %v6442 = vpack.c.b16 %v6407, %v6406
        %v6443 = vpack.c.b16 %v6409, %v6408
        %v6444 = vpack.c.b16 %v6411, %v6410
        %v6445 = vpack.c.b16 %v6413, %v6412
        %6478 = vmatpush.bf16.msra.mxu0 %v6421
        %6479 = vmatpush.bf16.msra.mxu0 %v6420
        %6480 = vmatpush.bf16.msra.mxu0 %v6419
        %6481 = vmatpush.bf16.msra.mxu0 %v6418
        %6482 = vmatpush.bf16.msra.mxu0 %v6417
        %6483 = vmatpush.bf16.msra.mxu0 %v6416
        %6484 = vmatpush.bf16.msra.mxu0 %v6415
        %6485 = vmatpush.bf16.msra.mxu0 %v6414
        %6486 = vmatmul.bf16.gmra.mxu0 %v6094
        %v6487 = vpop.f32.mrf.mxu0
        %v6488 = vadd.f32 0.0, %v6487
        %v6489 = vpop.f32.mrf.mxu0
        %v6490 = vadd.f32 0.0, %v6489
        %6491 = vmatmul.bf16.gmra.mxu0 %v6098
        %v6492 = vpop.f32.mrf.mxu0
        %v6493 = vadd.f32 0.0, %v6492
        %v6494 = vpop.f32.mrf.mxu0
        %v6495 = vadd.f32 0.0, %v6494
        %6496 = vmatmul.bf16.gmra.mxu0 %v6102
        %v6497 = vpop.f32.mrf.mxu0
        %v6498 = vadd.f32 0.0, %v6497
        %v6499 = vpop.f32.mrf.mxu0
        %v6500 = vadd.f32 0.0, %v6499
        %6501 = vmatmul.bf16.gmra.mxu0 %v6106
        %v6502 = vpop.f32.mrf.mxu0
        %v6503 = vadd.f32 0.0, %v6502
        %v6504 = vpop.f32.mrf.mxu0
        %v6505 = vadd.f32 0.0, %v6504
        %6506 = vmatmul.bf16.gmra.mxu0 %v6110
        %v6507 = vpop.f32.mrf.mxu0
        %v6508 = vadd.f32 0.0, %v6507
        %v6509 = vpop.f32.mrf.mxu0
        %v6510 = vadd.f32 0.0, %v6509
        %6511 = vmatmul.bf16.gmra.mxu0 %v6114
        %v6512 = vpop.f32.mrf.mxu0
        %v6513 = vadd.f32 0.0, %v6512
        %v6514 = vpop.f32.mrf.mxu0
        %v6515 = vadd.f32 0.0, %v6514
        %6516 = vmatmul.bf16.gmra.mxu0 %v6118
        %v6517 = vpop.f32.mrf.mxu0
        %v6518 = vadd.f32 0.0, %v6517
        %v6519 = vpop.f32.mrf.mxu0
        %v6520 = vadd.f32 0.0, %v6519
        %6521 = vmatmul.bf16.gmra.mxu0 %v6122
        %v6522 = vpop.f32.mrf.mxu0
        %v6523 = vadd.f32 0.0, %v6522
        %v6524 = vpop.f32.mrf.mxu0
        %v6525 = vadd.f32 0.0, %v6524
        %6526 = vmatmul.bf16.gmra.mxu0 %v6126
        %v6527 = vpop.f32.mrf.mxu0
        %v6528 = vadd.f32 0.0, %v6527
        %v6529 = vpop.f32.mrf.mxu0
        %v6530 = vadd.f32 0.0, %v6529
        %6531 = vmatmul.bf16.gmra.mxu0 %v6130
        %v6532 = vpop.f32.mrf.mxu0
        %v6533 = vadd.f32 0.0, %v6532
        %v6534 = vpop.f32.mrf.mxu0
        %v6535 = vadd.f32 0.0, %v6534
        %6536 = vmatmul.bf16.gmra.mxu0 %v6134
        %v6537 = vpop.f32.mrf.mxu0
        %v6538 = vadd.f32 0.0, %v6537
        %v6539 = vpop.f32.mrf.mxu0
        %v6540 = vadd.f32 0.0, %v6539
        %6541 = vmatmul.bf16.gmra.mxu0 %v6138
        %v6542 = vpop.f32.mrf.mxu0
        %v6543 = vadd.f32 0.0, %v6542
        %v6544 = vpop.f32.mrf.mxu0
        %v6545 = vadd.f32 0.0, %v6544
        %6546 = vmatmul.bf16.gmra.mxu0 %v6142
        %v6547 = vpop.f32.mrf.mxu0
        %v6548 = vadd.f32 0.0, %v6547
        %v6549 = vpop.f32.mrf.mxu0
        %v6550 = vadd.f32 0.0, %v6549
        %6551 = vmatmul.bf16.gmra.mxu0 %v6146
        %v6552 = vpop.f32.mrf.mxu0
        %v6553 = vadd.f32 0.0, %v6552
        %v6554 = vpop.f32.mrf.mxu0
        %v6555 = vadd.f32 0.0, %v6554
        %6556 = vmatmul.bf16.gmra.mxu0 %v6150
        %v6557 = vpop.f32.mrf.mxu0
        %v6558 = vadd.f32 0.0, %v6557
        %v6559 = vpop.f32.mrf.mxu0
        %v6560 = vadd.f32 0.0, %v6559
        %6561 = vmatmul.bf16.gmra.mxu0 %v6154
        %v6562 = vpop.f32.mrf.mxu0
        %v6563 = vadd.f32 0.0, %v6562
        %v6564 = vpop.f32.mrf.mxu0
        %v6565 = vadd.f32 0.0, %v6564
        %6566 = vmatmul.bf16.gmra.mxu0 %v6158
        %v6567 = vpop.f32.mrf.mxu0
        %v6568 = vadd.f32 0.0, %v6567
        %v6569 = vpop.f32.mrf.mxu0
        %v6570 = vadd.f32 0.0, %v6569
        %6571 = vmatmul.bf16.gmra.mxu0 %v6162
        %v6572 = vpop.f32.mrf.mxu0
        %v6573 = vadd.f32 0.0, %v6572
        %v6574 = vpop.f32.mrf.mxu0
        %v6575 = vadd.f32 0.0, %v6574
        %6576 = vmatmul.bf16.gmra.mxu0 %v6166
        %v6577 = vpop.f32.mrf.mxu0
        %v6578 = vadd.f32 0.0, %v6577
        %v6579 = vpop.f32.mrf.mxu0
        %v6580 = vadd.f32 0.0, %v6579
        %6581 = vmatmul.bf16.gmra.mxu0 %v6170
        %v6582 = vpop.f32.mrf.mxu0
        %v6583 = vadd.f32 0.0, %v6582
        %v6584 = vpop.f32.mrf.mxu0
        %v6585 = vadd.f32 0.0, %v6584
        %6586 = vmatmul.bf16.gmra.mxu0 %v6174
        %v6587 = vpop.f32.mrf.mxu0
        %v6588 = vadd.f32 0.0, %v6587
        %v6589 = vpop.f32.mrf.mxu0
        %v6590 = vadd.f32 0.0, %v6589
        %6591 = vmatmul.bf16.gmra.mxu0 %v6178
        %v6592 = vpop.f32.mrf.mxu0
        %v6593 = vadd.f32 0.0, %v6592
        %v6594 = vpop.f32.mrf.mxu0
        %v6595 = vadd.f32 0.0, %v6594
        %6596 = vmatmul.bf16.gmra.mxu0 %v6182
        %v6597 = vpop.f32.mrf.mxu0
        %v6598 = vadd.f32 0.0, %v6597
        %v6599 = vpop.f32.mrf.mxu0
        %v6600 = vadd.f32 0.0, %v6599
        %6601 = vmatmul.bf16.gmra.mxu0 %v6186
        %v6602 = vpop.f32.mrf.mxu0
        %v6603 = vadd.f32 0.0, %v6602
        %v6604 = vpop.f32.mrf.mxu0
        %v6605 = vadd.f32 0.0, %v6604
        %6606 = vmatmul.bf16.gmra.mxu0 %v6190
        %v6607 = vpop.f32.mrf.mxu0
        %v6608 = vadd.f32 0.0, %v6607
        %v6609 = vpop.f32.mrf.mxu0
        %v6610 = vadd.f32 0.0, %v6609
        %6611 = vmatmul.bf16.gmra.mxu0 %v6194
        %v6612 = vpop.f32.mrf.mxu0
        %v6613 = vadd.f32 0.0, %v6612
        %v6614 = vpop.f32.mrf.mxu0
        %v6615 = vadd.f32 0.0, %v6614
        %6616 = vmatmul.bf16.gmra.mxu0 %v6198
        %v6617 = vpop.f32.mrf.mxu0
        %v6618 = vadd.f32 0.0, %v6617
        %v6619 = vpop.f32.mrf.mxu0
        %v6620 = vadd.f32 0.0, %v6619
        %6621 = vmatmul.bf16.gmra.mxu0 %v6202
        %v6622 = vpop.f32.mrf.mxu0
        %v6623 = vadd.f32 0.0, %v6622
        %v6624 = vpop.f32.mrf.mxu0
        %v6625 = vadd.f32 0.0, %v6624
        %6626 = vmatmul.bf16.gmra.mxu0 %v6206
        %v6627 = vpop.f32.mrf.mxu0
        %v6628 = vadd.f32 0.0, %v6627
        %v6629 = vpop.f32.mrf.mxu0
        %v6630 = vadd.f32 0.0, %v6629
        %6631 = vmatmul.bf16.gmra.mxu0 %v6210
        %v6632 = vpop.f32.mrf.mxu0
        %v6633 = vadd.f32 0.0, %v6632
        %v6634 = vpop.f32.mrf.mxu0
        %v6635 = vadd.f32 0.0, %v6634
        %6636 = vmatmul.bf16.gmra.mxu0 %v6214
        %v6637 = vpop.f32.mrf.mxu0
        %v6638 = vadd.f32 0.0, %v6637
        %v6639 = vpop.f32.mrf.mxu0
        %v6640 = vadd.f32 0.0, %v6639
        %6641 = vmatmul.bf16.gmra.mxu0 %v6218
        %v6642 = vpop.f32.mrf.mxu0
        %v6643 = vadd.f32 0.0, %v6642
        %v6644 = vpop.f32.mrf.mxu0
        %v6645 = vadd.f32 0.0, %v6644
        %6646 = vdwg.mxu0
        %6647 = vmatpush.bf16.msra.mxu0 %v6429
        %6648 = vmatpush.bf16.msra.mxu0 %v6428
        %6649 = vmatpush.bf16.msra.mxu0 %v6427
        %6650 = vmatpush.bf16.msra.mxu0 %v6426
        %6651 = vmatpush.bf16.msra.mxu0 %v6425
        %6652 = vmatpush.bf16.msra.mxu0 %v6424
        %6653 = vmatpush.bf16.msra.mxu0 %v6423
        %6654 = vmatpush.bf16.msra.mxu0 %v6422
        %6655 = vmatmul.bf16.gmra.mxu0 %v6095
        %v6656 = vpop.f32.mrf.mxu0
        %v6657 = vadd.f32 %v6488, %v6656
        %v6658 = vpop.f32.mrf.mxu0
        %v6659 = vadd.f32 %v6490, %v6658
        %6660 = vmatmul.bf16.gmra.mxu0 %v6099
        %v6661 = vpop.f32.mrf.mxu0
        %v6662 = vadd.f32 %v6493, %v6661
        %v6663 = vpop.f32.mrf.mxu0
        %v6664 = vadd.f32 %v6495, %v6663
        %6665 = vmatmul.bf16.gmra.mxu0 %v6103
        %v6666 = vpop.f32.mrf.mxu0
        %v6667 = vadd.f32 %v6498, %v6666
        %v6668 = vpop.f32.mrf.mxu0
        %v6669 = vadd.f32 %v6500, %v6668
        %6670 = vmatmul.bf16.gmra.mxu0 %v6107
        %v6671 = vpop.f32.mrf.mxu0
        %v6672 = vadd.f32 %v6503, %v6671
        %v6673 = vpop.f32.mrf.mxu0
        %v6674 = vadd.f32 %v6505, %v6673
        %6675 = vmatmul.bf16.gmra.mxu0 %v6111
        %v6676 = vpop.f32.mrf.mxu0
        %v6677 = vadd.f32 %v6508, %v6676
        %v6678 = vpop.f32.mrf.mxu0
        %v6679 = vadd.f32 %v6510, %v6678
        %6680 = vmatmul.bf16.gmra.mxu0 %v6115
        %v6681 = vpop.f32.mrf.mxu0
        %v6682 = vadd.f32 %v6513, %v6681
        %v6683 = vpop.f32.mrf.mxu0
        %v6684 = vadd.f32 %v6515, %v6683
        %6685 = vmatmul.bf16.gmra.mxu0 %v6119
        %v6686 = vpop.f32.mrf.mxu0
        %v6687 = vadd.f32 %v6518, %v6686
        %v6688 = vpop.f32.mrf.mxu0
        %v6689 = vadd.f32 %v6520, %v6688
        %6690 = vmatmul.bf16.gmra.mxu0 %v6123
        %v6691 = vpop.f32.mrf.mxu0
        %v6692 = vadd.f32 %v6523, %v6691
        %v6693 = vpop.f32.mrf.mxu0
        %v6694 = vadd.f32 %v6525, %v6693
        %6695 = vmatmul.bf16.gmra.mxu0 %v6127
        %v6696 = vpop.f32.mrf.mxu0
        %v6697 = vadd.f32 %v6528, %v6696
        %v6698 = vpop.f32.mrf.mxu0
        %v6699 = vadd.f32 %v6530, %v6698
        %6700 = vmatmul.bf16.gmra.mxu0 %v6131
        %v6701 = vpop.f32.mrf.mxu0
        %v6702 = vadd.f32 %v6533, %v6701
        %v6703 = vpop.f32.mrf.mxu0
        %v6704 = vadd.f32 %v6535, %v6703
        %6705 = vmatmul.bf16.gmra.mxu0 %v6135
        %v6706 = vpop.f32.mrf.mxu0
        %v6707 = vadd.f32 %v6538, %v6706
        %v6708 = vpop.f32.mrf.mxu0
        %v6709 = vadd.f32 %v6540, %v6708
        %6710 = vmatmul.bf16.gmra.mxu0 %v6139
        %v6711 = vpop.f32.mrf.mxu0
        %v6712 = vadd.f32 %v6543, %v6711
        %v6713 = vpop.f32.mrf.mxu0
        %v6714 = vadd.f32 %v6545, %v6713
        %6715 = vmatmul.bf16.gmra.mxu0 %v6143
        %v6716 = vpop.f32.mrf.mxu0
        %v6717 = vadd.f32 %v6548, %v6716
        %v6718 = vpop.f32.mrf.mxu0
        %v6719 = vadd.f32 %v6550, %v6718
        %6720 = vmatmul.bf16.gmra.mxu0 %v6147
        %v6721 = vpop.f32.mrf.mxu0
        %v6722 = vadd.f32 %v6553, %v6721
        %v6723 = vpop.f32.mrf.mxu0
        %v6724 = vadd.f32 %v6555, %v6723
        %6725 = vmatmul.bf16.gmra.mxu0 %v6151
        %v6726 = vpop.f32.mrf.mxu0
        %v6727 = vadd.f32 %v6558, %v6726
        %v6728 = vpop.f32.mrf.mxu0
        %v6729 = vadd.f32 %v6560, %v6728
        %6730 = vmatmul.bf16.gmra.mxu0 %v6155
        %v6731 = vpop.f32.mrf.mxu0
        %v6732 = vadd.f32 %v6563, %v6731
        %v6733 = vpop.f32.mrf.mxu0
        %v6734 = vadd.f32 %v6565, %v6733
        %6735 = vmatmul.bf16.gmra.mxu0 %v6159
        %v6736 = vpop.f32.mrf.mxu0
        %v6737 = vadd.f32 %v6568, %v6736
        %v6738 = vpop.f32.mrf.mxu0
        %v6739 = vadd.f32 %v6570, %v6738
        %6740 = vmatmul.bf16.gmra.mxu0 %v6163
        %v6741 = vpop.f32.mrf.mxu0
        %v6742 = vadd.f32 %v6573, %v6741
        %v6743 = vpop.f32.mrf.mxu0
        %v6744 = vadd.f32 %v6575, %v6743
        %6745 = vmatmul.bf16.gmra.mxu0 %v6167
        %v6746 = vpop.f32.mrf.mxu0
        %v6747 = vadd.f32 %v6578, %v6746
        %v6748 = vpop.f32.mrf.mxu0
        %v6749 = vadd.f32 %v6580, %v6748
        %6750 = vmatmul.bf16.gmra.mxu0 %v6171
        %v6751 = vpop.f32.mrf.mxu0
        %v6752 = vadd.f32 %v6583, %v6751
        %v6753 = vpop.f32.mrf.mxu0
        %v6754 = vadd.f32 %v6585, %v6753
        %6755 = vmatmul.bf16.gmra.mxu0 %v6175
        %v6756 = vpop.f32.mrf.mxu0
        %v6757 = vadd.f32 %v6588, %v6756
        %v6758 = vpop.f32.mrf.mxu0
        %v6759 = vadd.f32 %v6590, %v6758
        %6760 = vmatmul.bf16.gmra.mxu0 %v6179
        %v6761 = vpop.f32.mrf.mxu0
        %v6762 = vadd.f32 %v6593, %v6761
        %v6763 = vpop.f32.mrf.mxu0
        %v6764 = vadd.f32 %v6595, %v6763
        %6765 = vmatmul.bf16.gmra.mxu0 %v6183
        %v6766 = vpop.f32.mrf.mxu0
        %v6767 = vadd.f32 %v6598, %v6766
        %v6768 = vpop.f32.mrf.mxu0
        %v6769 = vadd.f32 %v6600, %v6768
        %6770 = vmatmul.bf16.gmra.mxu0 %v6187
        %v6771 = vpop.f32.mrf.mxu0
        %v6772 = vadd.f32 %v6603, %v6771
        %v6773 = vpop.f32.mrf.mxu0
        %v6774 = vadd.f32 %v6605, %v6773
        %6775 = vmatmul.bf16.gmra.mxu0 %v6191
        %v6776 = vpop.f32.mrf.mxu0
        %v6777 = vadd.f32 %v6608, %v6776
        %v6778 = vpop.f32.mrf.mxu0
        %v6779 = vadd.f32 %v6610, %v6778
        %6780 = vmatmul.bf16.gmra.mxu0 %v6195
        %v6781 = vpop.f32.mrf.mxu0
        %v6782 = vadd.f32 %v6613, %v6781
        %v6783 = vpop.f32.mrf.mxu0
        %v6784 = vadd.f32 %v6615, %v6783
        %6785 = vmatmul.bf16.gmra.mxu0 %v6199
        %v6786 = vpop.f32.mrf.mxu0
        %v6787 = vadd.f32 %v6618, %v6786
        %v6788 = vpop.f32.mrf.mxu0
        %v6789 = vadd.f32 %v6620, %v6788
        %6790 = vmatmul.bf16.gmra.mxu0 %v6203
        %v6791 = vpop.f32.mrf.mxu0
        %v6792 = vadd.f32 %v6623, %v6791
        %v6793 = vpop.f32.mrf.mxu0
        %v6794 = vadd.f32 %v6625, %v6793
        %6795 = vmatmul.bf16.gmra.mxu0 %v6207
        %v6796 = vpop.f32.mrf.mxu0
        %v6797 = vadd.f32 %v6628, %v6796
        %v6798 = vpop.f32.mrf.mxu0
        %v6799 = vadd.f32 %v6630, %v6798
        %6800 = vmatmul.bf16.gmra.mxu0 %v6211
        %v6801 = vpop.f32.mrf.mxu0
        %v6802 = vadd.f32 %v6633, %v6801
        %v6803 = vpop.f32.mrf.mxu0
        %v6804 = vadd.f32 %v6635, %v6803
        %6805 = vmatmul.bf16.gmra.mxu0 %v6215
        %v6806 = vpop.f32.mrf.mxu0
        %v6807 = vadd.f32 %v6638, %v6806
        %v6808 = vpop.f32.mrf.mxu0
        %v6809 = vadd.f32 %v6640, %v6808
        %6810 = vmatmul.bf16.gmra.mxu0 %v6219
        %v6811 = vpop.f32.mrf.mxu0
        %v6812 = vadd.f32 %v6643, %v6811
        %v6813 = vpop.f32.mrf.mxu0
        %v6814 = vadd.f32 %v6645, %v6813
        %6815 = vdwg.mxu0
        %6816 = vmatpush.bf16.msra.mxu0 %v6437
        %6817 = vmatpush.bf16.msra.mxu0 %v6436
        %6818 = vmatpush.bf16.msra.mxu0 %v6435
        %6819 = vmatpush.bf16.msra.mxu0 %v6434
        %6820 = vmatpush.bf16.msra.mxu0 %v6433
        %6821 = vmatpush.bf16.msra.mxu0 %v6432
        %6822 = vmatpush.bf16.msra.mxu0 %v6431
        %6823 = vmatpush.bf16.msra.mxu0 %v6430
        %6824 = vmatmul.bf16.gmra.mxu0 %v6096
        %v6825 = vpop.f32.mrf.mxu0
        %v6826 = vadd.f32 %v6657, %v6825
        %v6827 = vpop.f32.mrf.mxu0
        %v6828 = vadd.f32 %v6659, %v6827
        %6829 = vmatmul.bf16.gmra.mxu0 %v6100
        %v6830 = vpop.f32.mrf.mxu0
        %v6831 = vadd.f32 %v6662, %v6830
        %v6832 = vpop.f32.mrf.mxu0
        %v6833 = vadd.f32 %v6664, %v6832
        %6834 = vmatmul.bf16.gmra.mxu0 %v6104
        %v6835 = vpop.f32.mrf.mxu0
        %v6836 = vadd.f32 %v6667, %v6835
        %v6837 = vpop.f32.mrf.mxu0
        %v6838 = vadd.f32 %v6669, %v6837
        %6839 = vmatmul.bf16.gmra.mxu0 %v6108
        %v6840 = vpop.f32.mrf.mxu0
        %v6841 = vadd.f32 %v6672, %v6840
        %v6842 = vpop.f32.mrf.mxu0
        %v6843 = vadd.f32 %v6674, %v6842
        %6844 = vmatmul.bf16.gmra.mxu0 %v6112
        %v6845 = vpop.f32.mrf.mxu0
        %v6846 = vadd.f32 %v6677, %v6845
        %v6847 = vpop.f32.mrf.mxu0
        %v6848 = vadd.f32 %v6679, %v6847
        %6849 = vmatmul.bf16.gmra.mxu0 %v6116
        %v6850 = vpop.f32.mrf.mxu0
        %v6851 = vadd.f32 %v6682, %v6850
        %v6852 = vpop.f32.mrf.mxu0
        %v6853 = vadd.f32 %v6684, %v6852
        %6854 = vmatmul.bf16.gmra.mxu0 %v6120
        %v6855 = vpop.f32.mrf.mxu0
        %v6856 = vadd.f32 %v6687, %v6855
        %v6857 = vpop.f32.mrf.mxu0
        %v6858 = vadd.f32 %v6689, %v6857
        %6859 = vmatmul.bf16.gmra.mxu0 %v6124
        %v6860 = vpop.f32.mrf.mxu0
        %v6861 = vadd.f32 %v6692, %v6860
        %v6862 = vpop.f32.mrf.mxu0
        %v6863 = vadd.f32 %v6694, %v6862
        %6864 = vmatmul.bf16.gmra.mxu0 %v6128
        %v6865 = vpop.f32.mrf.mxu0
        %v6866 = vadd.f32 %v6697, %v6865
        %v6867 = vpop.f32.mrf.mxu0
        %v6868 = vadd.f32 %v6699, %v6867
        %6869 = vmatmul.bf16.gmra.mxu0 %v6132
        %v6870 = vpop.f32.mrf.mxu0
        %v6871 = vadd.f32 %v6702, %v6870
        %v6872 = vpop.f32.mrf.mxu0
        %v6873 = vadd.f32 %v6704, %v6872
        %6874 = vmatmul.bf16.gmra.mxu0 %v6136
        %v6875 = vpop.f32.mrf.mxu0
        %v6876 = vadd.f32 %v6707, %v6875
        %v6877 = vpop.f32.mrf.mxu0
        %v6878 = vadd.f32 %v6709, %v6877
        %6879 = vmatmul.bf16.gmra.mxu0 %v6140
        %v6880 = vpop.f32.mrf.mxu0
        %v6881 = vadd.f32 %v6712, %v6880
        %v6882 = vpop.f32.mrf.mxu0
        %v6883 = vadd.f32 %v6714, %v6882
        %6884 = vmatmul.bf16.gmra.mxu0 %v6144
        %v6885 = vpop.f32.mrf.mxu0
        %v6886 = vadd.f32 %v6717, %v6885
        %v6887 = vpop.f32.mrf.mxu0
        %v6888 = vadd.f32 %v6719, %v6887
        %6889 = vmatmul.bf16.gmra.mxu0 %v6148
        %v6890 = vpop.f32.mrf.mxu0
        %v6891 = vadd.f32 %v6722, %v6890
        %v6892 = vpop.f32.mrf.mxu0
        %v6893 = vadd.f32 %v6724, %v6892
        %6894 = vmatmul.bf16.gmra.mxu0 %v6152
        %v6895 = vpop.f32.mrf.mxu0
        %v6896 = vadd.f32 %v6727, %v6895
        %v6897 = vpop.f32.mrf.mxu0
        %v6898 = vadd.f32 %v6729, %v6897
        %6899 = vmatmul.bf16.gmra.mxu0 %v6156
        %v6900 = vpop.f32.mrf.mxu0
        %v6901 = vadd.f32 %v6732, %v6900
        %v6902 = vpop.f32.mrf.mxu0
        %v6903 = vadd.f32 %v6734, %v6902
        %6904 = vmatmul.bf16.gmra.mxu0 %v6160
        %v6905 = vpop.f32.mrf.mxu0
        %v6906 = vadd.f32 %v6737, %v6905
        %v6907 = vpop.f32.mrf.mxu0
        %v6908 = vadd.f32 %v6739, %v6907
        %6909 = vmatmul.bf16.gmra.mxu0 %v6164
        %v6910 = vpop.f32.mrf.mxu0
        %v6911 = vadd.f32 %v6742, %v6910
        %v6912 = vpop.f32.mrf.mxu0
        %v6913 = vadd.f32 %v6744, %v6912
        %6914 = vmatmul.bf16.gmra.mxu0 %v6168
        %v6915 = vpop.f32.mrf.mxu0
        %v6916 = vadd.f32 %v6747, %v6915
        %v6917 = vpop.f32.mrf.mxu0
        %v6918 = vadd.f32 %v6749, %v6917
        %6919 = vmatmul.bf16.gmra.mxu0 %v6172
        %v6920 = vpop.f32.mrf.mxu0
        %v6921 = vadd.f32 %v6752, %v6920
        %v6922 = vpop.f32.mrf.mxu0
        %v6923 = vadd.f32 %v6754, %v6922
        %6924 = vmatmul.bf16.gmra.mxu0 %v6176
        %v6925 = vpop.f32.mrf.mxu0
        %v6926 = vadd.f32 %v6757, %v6925
        %v6927 = vpop.f32.mrf.mxu0
        %v6928 = vadd.f32 %v6759, %v6927
        %6929 = vmatmul.bf16.gmra.mxu0 %v6180
        %v6930 = vpop.f32.mrf.mxu0
        %v6931 = vadd.f32 %v6762, %v6930
        %v6932 = vpop.f32.mrf.mxu0
        %v6933 = vadd.f32 %v6764, %v6932
        %6934 = vmatmul.bf16.gmra.mxu0 %v6184
        %v6935 = vpop.f32.mrf.mxu0
        %v6936 = vadd.f32 %v6767, %v6935
        %v6937 = vpop.f32.mrf.mxu0
        %v6938 = vadd.f32 %v6769, %v6937
        %6939 = vmatmul.bf16.gmra.mxu0 %v6188
        %v6940 = vpop.f32.mrf.mxu0
        %v6941 = vadd.f32 %v6772, %v6940
        %v6942 = vpop.f32.mrf.mxu0
        %v6943 = vadd.f32 %v6774, %v6942
        %6944 = vmatmul.bf16.gmra.mxu0 %v6192
        %v6945 = vpop.f32.mrf.mxu0
        %v6946 = vadd.f32 %v6777, %v6945
        %v6947 = vpop.f32.mrf.mxu0
        %v6948 = vadd.f32 %v6779, %v6947
        %6949 = vmatmul.bf16.gmra.mxu0 %v6196
        %v6950 = vpop.f32.mrf.mxu0
        %v6951 = vadd.f32 %v6782, %v6950
        %v6952 = vpop.f32.mrf.mxu0
        %v6953 = vadd.f32 %v6784, %v6952
        %6954 = vmatmul.bf16.gmra.mxu0 %v6200
        %v6955 = vpop.f32.mrf.mxu0
        %v6956 = vadd.f32 %v6787, %v6955
        %v6957 = vpop.f32.mrf.mxu0
        %v6958 = vadd.f32 %v6789, %v6957
        %6959 = vmatmul.bf16.gmra.mxu0 %v6204
        %v6960 = vpop.f32.mrf.mxu0
        %v6961 = vadd.f32 %v6792, %v6960
        %v6962 = vpop.f32.mrf.mxu0
        %v6963 = vadd.f32 %v6794, %v6962
        %6964 = vmatmul.bf16.gmra.mxu0 %v6208
        %v6965 = vpop.f32.mrf.mxu0
        %v6966 = vadd.f32 %v6797, %v6965
        %v6967 = vpop.f32.mrf.mxu0
        %v6968 = vadd.f32 %v6799, %v6967
        %6969 = vmatmul.bf16.gmra.mxu0 %v6212
        %v6970 = vpop.f32.mrf.mxu0
        %v6971 = vadd.f32 %v6802, %v6970
        %v6972 = vpop.f32.mrf.mxu0
        %v6973 = vadd.f32 %v6804, %v6972
        %6974 = vmatmul.bf16.gmra.mxu0 %v6216
        %v6975 = vpop.f32.mrf.mxu0
        %v6976 = vadd.f32 %v6807, %v6975
        %v6977 = vpop.f32.mrf.mxu0
        %v6978 = vadd.f32 %v6809, %v6977
        %6979 = vmatmul.bf16.gmra.mxu0 %v6220
        %v6980 = vpop.f32.mrf.mxu0
        %v6981 = vadd.f32 %v6812, %v6980
        %v6982 = vpop.f32.mrf.mxu0
        %v6983 = vadd.f32 %v6814, %v6982
        %6984 = vdwg.mxu0
        %6985 = vmatpush.bf16.msra.mxu0 %v6445
        %6986 = vmatpush.bf16.msra.mxu0 %v6444
        %6987 = vmatpush.bf16.msra.mxu0 %v6443
        %6988 = vmatpush.bf16.msra.mxu0 %v6442
        %6989 = vmatpush.bf16.msra.mxu0 %v6441
        %6990 = vmatpush.bf16.msra.mxu0 %v6440
        %6991 = vmatpush.bf16.msra.mxu0 %v6439
        %6992 = vmatpush.bf16.msra.mxu0 %v6438
        %6993 = vmatmul.bf16.gmra.mxu0 %v6097
        %v6994 = vpop.f32.mrf.mxu0
        %v6995 = vadd.f32 %v6826, %v6994
        %v6996 = vpop.f32.mrf.mxu0
        %v6997 = vadd.f32 %v6828, %v6996
        %6998 = vmatmul.bf16.gmra.mxu0 %v6101
        %v6999 = vpop.f32.mrf.mxu0
        %v7000 = vadd.f32 %v6831, %v6999
        %v7001 = vpop.f32.mrf.mxu0
        %v7002 = vadd.f32 %v6833, %v7001
        %7003 = vmatmul.bf16.gmra.mxu0 %v6105
        %v7004 = vpop.f32.mrf.mxu0
        %v7005 = vadd.f32 %v6836, %v7004
        %v7006 = vpop.f32.mrf.mxu0
        %v7007 = vadd.f32 %v6838, %v7006
        %7008 = vmatmul.bf16.gmra.mxu0 %v6109
        %v7009 = vpop.f32.mrf.mxu0
        %v7010 = vadd.f32 %v6841, %v7009
        %v7011 = vpop.f32.mrf.mxu0
        %v7012 = vadd.f32 %v6843, %v7011
        %7013 = vmatmul.bf16.gmra.mxu0 %v6113
        %v7014 = vpop.f32.mrf.mxu0
        %v7015 = vadd.f32 %v6846, %v7014
        %v7016 = vpop.f32.mrf.mxu0
        %v7017 = vadd.f32 %v6848, %v7016
        %7018 = vmatmul.bf16.gmra.mxu0 %v6117
        %v7019 = vpop.f32.mrf.mxu0
        %v7020 = vadd.f32 %v6851, %v7019
        %v7021 = vpop.f32.mrf.mxu0
        %v7022 = vadd.f32 %v6853, %v7021
        %7023 = vmatmul.bf16.gmra.mxu0 %v6121
        %v7024 = vpop.f32.mrf.mxu0
        %v7025 = vadd.f32 %v6856, %v7024
        %v7026 = vpop.f32.mrf.mxu0
        %v7027 = vadd.f32 %v6858, %v7026
        %7028 = vmatmul.bf16.gmra.mxu0 %v6125
        %v7029 = vpop.f32.mrf.mxu0
        %v7030 = vadd.f32 %v6861, %v7029
        %v7031 = vpop.f32.mrf.mxu0
        %v7032 = vadd.f32 %v6863, %v7031
        %7033 = vmatmul.bf16.gmra.mxu0 %v6129
        %v7034 = vpop.f32.mrf.mxu0
        %v7035 = vadd.f32 %v6866, %v7034
        %v7036 = vpop.f32.mrf.mxu0
        %v7037 = vadd.f32 %v6868, %v7036
        %7038 = vmatmul.bf16.gmra.mxu0 %v6133
        %v7039 = vpop.f32.mrf.mxu0
        %v7040 = vadd.f32 %v6871, %v7039
        %v7041 = vpop.f32.mrf.mxu0
        %v7042 = vadd.f32 %v6873, %v7041
        %7043 = vmatmul.bf16.gmra.mxu0 %v6137
        %v7044 = vpop.f32.mrf.mxu0
        %v7045 = vadd.f32 %v6876, %v7044
        %v7046 = vpop.f32.mrf.mxu0
        %v7047 = vadd.f32 %v6878, %v7046
        %7048 = vmatmul.bf16.gmra.mxu0 %v6141
        %v7049 = vpop.f32.mrf.mxu0
        %v7050 = vadd.f32 %v6881, %v7049
        %v7051 = vpop.f32.mrf.mxu0
        %v7052 = vadd.f32 %v6883, %v7051
        %7053 = vmatmul.bf16.gmra.mxu0 %v6145
        %v7054 = vpop.f32.mrf.mxu0
        %v7055 = vadd.f32 %v6886, %v7054
        %v7056 = vpop.f32.mrf.mxu0
        %v7057 = vadd.f32 %v6888, %v7056
        %7058 = vmatmul.bf16.gmra.mxu0 %v6149
        %v7059 = vpop.f32.mrf.mxu0
        %v7060 = vadd.f32 %v6891, %v7059
        %v7061 = vpop.f32.mrf.mxu0
        %v7062 = vadd.f32 %v6893, %v7061
        %7063 = vmatmul.bf16.gmra.mxu0 %v6153
        %v7064 = vpop.f32.mrf.mxu0
        %v7065 = vadd.f32 %v6896, %v7064
        %v7066 = vpop.f32.mrf.mxu0
        %v7067 = vadd.f32 %v6898, %v7066
        %7068 = vmatmul.bf16.gmra.mxu0 %v6157
        %v7069 = vpop.f32.mrf.mxu0
        %v7070 = vadd.f32 %v6901, %v7069
        %v7071 = vpop.f32.mrf.mxu0
        %v7072 = vadd.f32 %v6903, %v7071
        %7073 = vmatmul.bf16.gmra.mxu0 %v6161
        %v7074 = vpop.f32.mrf.mxu0
        %v7075 = vadd.f32 %v6906, %v7074
        %v7076 = vpop.f32.mrf.mxu0
        %v7077 = vadd.f32 %v6908, %v7076
        %7078 = vmatmul.bf16.gmra.mxu0 %v6165
        %v7079 = vpop.f32.mrf.mxu0
        %v7080 = vadd.f32 %v6911, %v7079
        %v7081 = vpop.f32.mrf.mxu0
        %v7082 = vadd.f32 %v6913, %v7081
        %7083 = vmatmul.bf16.gmra.mxu0 %v6169
        %v7084 = vpop.f32.mrf.mxu0
        %v7085 = vadd.f32 %v6916, %v7084
        %v7086 = vpop.f32.mrf.mxu0
        %v7087 = vadd.f32 %v6918, %v7086
        %7088 = vmatmul.bf16.gmra.mxu0 %v6173
        %v7089 = vpop.f32.mrf.mxu0
        %v7090 = vadd.f32 %v6921, %v7089
        %v7091 = vpop.f32.mrf.mxu0
        %v7092 = vadd.f32 %v6923, %v7091
        %7093 = vmatmul.bf16.gmra.mxu0 %v6177
        %v7094 = vpop.f32.mrf.mxu0
        %v7095 = vadd.f32 %v6926, %v7094
        %v7096 = vpop.f32.mrf.mxu0
        %v7097 = vadd.f32 %v6928, %v7096
        %7098 = vmatmul.bf16.gmra.mxu0 %v6181
        %v7099 = vpop.f32.mrf.mxu0
        %v7100 = vadd.f32 %v6931, %v7099
        %v7101 = vpop.f32.mrf.mxu0
        %v7102 = vadd.f32 %v6933, %v7101
        %7103 = vmatmul.bf16.gmra.mxu0 %v6185
        %v7104 = vpop.f32.mrf.mxu0
        %v7105 = vadd.f32 %v6936, %v7104
        %v7106 = vpop.f32.mrf.mxu0
        %v7107 = vadd.f32 %v6938, %v7106
        %7108 = vmatmul.bf16.gmra.mxu0 %v6189
        %v7109 = vpop.f32.mrf.mxu0
        %v7110 = vadd.f32 %v6941, %v7109
        %v7111 = vpop.f32.mrf.mxu0
        %v7112 = vadd.f32 %v6943, %v7111
        %7113 = vmatmul.bf16.gmra.mxu0 %v6193
        %v7114 = vpop.f32.mrf.mxu0
        %v7115 = vadd.f32 %v6946, %v7114
        %v7116 = vpop.f32.mrf.mxu0
        %v7117 = vadd.f32 %v6948, %v7116
        %7118 = vmatmul.bf16.gmra.mxu0 %v6197
        %v7119 = vpop.f32.mrf.mxu0
        %v7120 = vadd.f32 %v6951, %v7119
        %v7121 = vpop.f32.mrf.mxu0
        %v7122 = vadd.f32 %v6953, %v7121
        %7123 = vmatmul.bf16.gmra.mxu0 %v6201
        %v7124 = vpop.f32.mrf.mxu0
        %v7125 = vadd.f32 %v6956, %v7124
        %v7126 = vpop.f32.mrf.mxu0
        %v7127 = vadd.f32 %v6958, %v7126
        %7128 = vmatmul.bf16.gmra.mxu0 %v6205
        %v7129 = vpop.f32.mrf.mxu0
        %v7130 = vadd.f32 %v6961, %v7129
        %v7131 = vpop.f32.mrf.mxu0
        %v7132 = vadd.f32 %v6963, %v7131
        %7133 = vmatmul.bf16.gmra.mxu0 %v6209
        %v7134 = vpop.f32.mrf.mxu0
        %v7135 = vadd.f32 %v6966, %v7134
        %v7136 = vpop.f32.mrf.mxu0
        %v7137 = vadd.f32 %v6968, %v7136
        %7138 = vmatmul.bf16.gmra.mxu0 %v6213
        %v7139 = vpop.f32.mrf.mxu0
        %v7140 = vadd.f32 %v6971, %v7139
        %v7141 = vpop.f32.mrf.mxu0
        %v7142 = vadd.f32 %v6973, %v7141
        %7143 = vmatmul.bf16.gmra.mxu0 %v6217
        %v7144 = vpop.f32.mrf.mxu0
        %v7145 = vadd.f32 %v6976, %v7144
        %v7146 = vpop.f32.mrf.mxu0
        %v7147 = vadd.f32 %v6978, %v7146
        %7148 = vmatmul.bf16.gmra.mxu0 %v6221
        %v7149 = vpop.f32.mrf.mxu0
        %v7150 = vadd.f32 %v6981, %v7149
        %v7151 = vpop.f32.mrf.mxu0
        %v7152 = vadd.f32 %v6983, %v7151
        %7153 = vdwg.mxu0
        %v7154 = vmax.f32 %v6995, %v6997
        %v7155 = vmax.f32 %v7154, %v7000
        %v7156 = vmax.f32 %v7155, %v7002
        %v7157 = vrot.slane %v7156, 4
        %v7158 = vmax.f32 %v7156, %v7157
        %v7159 = vrot.slane %v7158, 2
        %v7160 = vmax.f32 %v7158, %v7159
        %v7161 = vrot.slane %v7160, 1
        %v7162 = vmax.f32 %v7160, %v7161
        %v7163 = vmax.f32 %v7005, %v7007
        %v7164 = vmax.f32 %v7163, %v7010
        %v7165 = vmax.f32 %v7164, %v7012
        %v7166 = vrot.slane %v7165, 4
        %v7167 = vmax.f32 %v7165, %v7166
        %v7168 = vrot.slane %v7167, 2
        %v7169 = vmax.f32 %v7167, %v7168
        %v7170 = vrot.slane %v7169, 1
        %v7171 = vmax.f32 %v7169, %v7170
        %v7172 = vmax.f32 %v7015, %v7017
        %v7173 = vmax.f32 %v7172, %v7020
        %v7174 = vmax.f32 %v7173, %v7022
        %v7175 = vrot.slane %v7174, 4
        %v7176 = vmax.f32 %v7174, %v7175
        %v7177 = vrot.slane %v7176, 2
        %v7178 = vmax.f32 %v7176, %v7177
        %v7179 = vrot.slane %v7178, 1
        %v7180 = vmax.f32 %v7178, %v7179
        %v7181 = vmax.f32 %v7025, %v7027
        %v7182 = vmax.f32 %v7181, %v7030
        %v7183 = vmax.f32 %v7182, %v7032
        %v7184 = vrot.slane %v7183, 4
        %v7185 = vmax.f32 %v7183, %v7184
        %v7186 = vrot.slane %v7185, 2
        %v7187 = vmax.f32 %v7185, %v7186
        %v7188 = vrot.slane %v7187, 1
        %v7189 = vmax.f32 %v7187, %v7188
        %v7190 = vmax.f32 %v7035, %v7037
        %v7191 = vmax.f32 %v7190, %v7040
        %v7192 = vmax.f32 %v7191, %v7042
        %v7193 = vrot.slane %v7192, 4
        %v7194 = vmax.f32 %v7192, %v7193
        %v7195 = vrot.slane %v7194, 2
        %v7196 = vmax.f32 %v7194, %v7195
        %v7197 = vrot.slane %v7196, 1
        %v7198 = vmax.f32 %v7196, %v7197
        %v7199 = vmax.f32 %v7045, %v7047
        %v7200 = vmax.f32 %v7199, %v7050
        %v7201 = vmax.f32 %v7200, %v7052
        %v7202 = vrot.slane %v7201, 4
        %v7203 = vmax.f32 %v7201, %v7202
        %v7204 = vrot.slane %v7203, 2
        %v7205 = vmax.f32 %v7203, %v7204
        %v7206 = vrot.slane %v7205, 1
        %v7207 = vmax.f32 %v7205, %v7206
        %v7208 = vmax.f32 %v7055, %v7057
        %v7209 = vmax.f32 %v7208, %v7060
        %v7210 = vmax.f32 %v7209, %v7062
        %v7211 = vrot.slane %v7210, 4
        %v7212 = vmax.f32 %v7210, %v7211
        %v7213 = vrot.slane %v7212, 2
        %v7214 = vmax.f32 %v7212, %v7213
        %v7215 = vrot.slane %v7214, 1
        %v7216 = vmax.f32 %v7214, %v7215
        %v7217 = vmax.f32 %v7065, %v7067
        %v7218 = vmax.f32 %v7217, %v7070
        %v7219 = vmax.f32 %v7218, %v7072
        %v7220 = vrot.slane %v7219, 4
        %v7221 = vmax.f32 %v7219, %v7220
        %v7222 = vrot.slane %v7221, 2
        %v7223 = vmax.f32 %v7221, %v7222
        %v7224 = vrot.slane %v7223, 1
        %v7225 = vmax.f32 %v7223, %v7224
        %v7226 = vmax.f32 %v7075, %v7077
        %v7227 = vmax.f32 %v7226, %v7080
        %v7228 = vmax.f32 %v7227, %v7082
        %v7229 = vrot.slane %v7228, 4
        %v7230 = vmax.f32 %v7228, %v7229
        %v7231 = vrot.slane %v7230, 2
        %v7232 = vmax.f32 %v7230, %v7231
        %v7233 = vrot.slane %v7232, 1
        %v7234 = vmax.f32 %v7232, %v7233
        %v7235 = vmax.f32 %v7085, %v7087
        %v7236 = vmax.f32 %v7235, %v7090
        %v7237 = vmax.f32 %v7236, %v7092
        %v7238 = vrot.slane %v7237, 4
        %v7239 = vmax.f32 %v7237, %v7238
        %v7240 = vrot.slane %v7239, 2
        %v7241 = vmax.f32 %v7239, %v7240
        %v7242 = vrot.slane %v7241, 1
        %v7243 = vmax.f32 %v7241, %v7242
        %v7244 = vmax.f32 %v7095, %v7097
        %v7245 = vmax.f32 %v7244, %v7100
        %v7246 = vmax.f32 %v7245, %v7102
        %v7247 = vrot.slane %v7246, 4
        %v7248 = vmax.f32 %v7246, %v7247
        %v7249 = vrot.slane %v7248, 2
        %v7250 = vmax.f32 %v7248, %v7249
        %v7251 = vrot.slane %v7250, 1
        %v7252 = vmax.f32 %v7250, %v7251
        %v7253 = vmax.f32 %v7105, %v7107
        %v7254 = vmax.f32 %v7253, %v7110
        %v7255 = vmax.f32 %v7254, %v7112
        %v7256 = vrot.slane %v7255, 4
        %v7257 = vmax.f32 %v7255, %v7256
        %v7258 = vrot.slane %v7257, 2
        %v7259 = vmax.f32 %v7257, %v7258
        %v7260 = vrot.slane %v7259, 1
        %v7261 = vmax.f32 %v7259, %v7260
        %v7262 = vmax.f32 %v7115, %v7117
        %v7263 = vmax.f32 %v7262, %v7120
        %v7264 = vmax.f32 %v7263, %v7122
        %v7265 = vrot.slane %v7264, 4
        %v7266 = vmax.f32 %v7264, %v7265
        %v7267 = vrot.slane %v7266, 2
        %v7268 = vmax.f32 %v7266, %v7267
        %v7269 = vrot.slane %v7268, 1
        %v7270 = vmax.f32 %v7268, %v7269
        %v7271 = vmax.f32 %v7125, %v7127
        %v7272 = vmax.f32 %v7271, %v7130
        %v7273 = vmax.f32 %v7272, %v7132
        %v7274 = vrot.slane %v7273, 4
        %v7275 = vmax.f32 %v7273, %v7274
        %v7276 = vrot.slane %v7275, 2
        %v7277 = vmax.f32 %v7275, %v7276
        %v7278 = vrot.slane %v7277, 1
        %v7279 = vmax.f32 %v7277, %v7278
        %v7280 = vmax.f32 %v7135, %v7137
        %v7281 = vmax.f32 %v7280, %v7140
        %v7282 = vmax.f32 %v7281, %v7142
        %v7283 = vrot.slane %v7282, 4
        %v7284 = vmax.f32 %v7282, %v7283
        %v7285 = vrot.slane %v7284, 2
        %v7286 = vmax.f32 %v7284, %v7285
        %v7287 = vrot.slane %v7286, 1
        %v7288 = vmax.f32 %v7286, %v7287
        %v7289 = vmax.f32 %v7145, %v7147
        %v7290 = vmax.f32 %v7289, %v7150
        %v7291 = vmax.f32 %v7290, %v7152
        %v7292 = vrot.slane %v7291, 4
        %v7293 = vmax.f32 %v7291, %v7292
        %v7294 = vrot.slane %v7293, 2
        %v7295 = vmax.f32 %v7293, %v7294
        %v7296 = vrot.slane %v7295, 1
        %v7297 = vmax.f32 %v7295, %v7296
        %v7298 = vld [vmem:[%s8] sm:$0x1]
        %v7300 = vperm.slane %v7298, 0
        %v7302 = vadd.f32 %v7162, %v7300
        %v7303 = vadd.f32 %v7171, %v7300
        %v7304 = vadd.f32 %v7180, %v7300
        %v7305 = vadd.f32 %v7189, %v7300
        %v7306 = vadd.f32 %v7198, %v7300
        %v7307 = vadd.f32 %v7207, %v7300
        %v7308 = vadd.f32 %v7216, %v7300
        %v7309 = vadd.f32 %v7225, %v7300
        %v7310 = vadd.f32 %v7234, %v7300
        %v7311 = vadd.f32 %v7243, %v7300
        %v7312 = vadd.f32 %v7252, %v7300
        %v7313 = vadd.f32 %v7261, %v7300
        %v7314 = vadd.f32 %v7270, %v7300
        %v7315 = vadd.f32 %v7279, %v7300
        %v7316 = vadd.f32 %v7288, %v7300
        %v7317 = vadd.f32 %v7297, %v7300
        %v7334 = vrot.slane %v7303, 7
        %v7335 = vsel %vm4897, %v7334, %v7302
        %v7336 = vrot.slane %v7304, 6
        %v7337 = vsel %vm4899, %v7336, %v7335
        %v7338 = vrot.slane %v7305, 5
        %v7339 = vsel %vm4901, %v7338, %v7337
        %v7340 = vrot.slane %v7306, 4
        %v7341 = vsel %vm4903, %v7340, %v7339
        %v7342 = vrot.slane %v7307, 3
        %v7343 = vsel %vm4905, %v7342, %v7341
        %v7344 = vrot.slane %v7308, 2
        %v7345 = vsel %vm4907, %v7344, %v7343
        %v7346 = vrot.slane %v7309, 1
        %v7347 = vsel %vm4909, %v7346, %v7345
        %v7348 = vrot.slane %v7311, 7
        %v7349 = vsel %vm4897, %v7348, %v7310
        %v7350 = vrot.slane %v7312, 6
        %v7351 = vsel %vm4899, %v7350, %v7349
        %v7352 = vrot.slane %v7313, 5
        %v7353 = vsel %vm4901, %v7352, %v7351
        %v7354 = vrot.slane %v7314, 4
        %v7355 = vsel %vm4903, %v7354, %v7353
        %v7356 = vrot.slane %v7315, 3
        %v7357 = vsel %vm4905, %v7356, %v7355
        %v7358 = vrot.slane %v7316, 2
        %v7359 = vsel %vm4907, %v7358, %v7357
        %v7360 = vrot.slane %v7317, 1
        %v7361 = vsel %vm4909, %v7360, %v7359
        %7364 = vst [vmem:[%s362] sm:$0xff] %v7347
        %7365 = vst [vmem:[%s362 + $0x8] sm:$0xff] %v7361
        %s7366 = sand.u32 %s227, 1
        %s7367 = scalar_lea.sflag [#allocation4], %s7366
        %s7368 = sand.u32 %s227, 1
        %s7369 = smul.addr %s7368, 16
        %s7370 = scalar_lea.vmem [#allocation7], %s7369
        // Predicated region
        $region65: #{tpu_custom_call.1} parent=55 // pred_check
          %p7371 = pneg %p237
        $region66: #{tpu_custom_call.1} parent=55 // pred_check_branch
          %7373 = sbr.rel (%p7371) target = $region68
        $region67: #{tpu_custom_call.1} parent=55 // pred_region
          %s7374 = smul.u32 2, %s25
          %7376 = vsyncadd %s7367, 0
          %s7377 = smul.addr %s7374, 8
          %s7378 = scalar_lea.hbm %s9, %s7377
          %s7379 = sshll.u32 %s7370, 4
          %s7380 = int_to_ptr.vmem [resolvable:$true] %s7379
          %s7381 = sshll.u32 %s7378, 4
          %s7382 = int_to_ptr.hbm [resolvable:$true] %s7381
          %7387 = dma.vmem_to_hbm [thread:$0]  %s7380, 256, %s7382, %s7367, 128, 128, 8
        $region68: #{tpu_custom_call.1} parent=55 // pred_fallthru
          _
      $region56: #{tpu_custom_call.1} parent=5 // pred_fallthru
        _
      %p7388 = scmp.le.s32.totalorder 2, %s20
      // Predicated region
      $region69: #{tpu_custom_call.1} parent=5 // pred_check
        %p7389 = pneg %p7388
      $region70: #{tpu_custom_call.1} parent=5 // pred_check_branch
        %7391 = sbr.rel (%p7389) target = $region72
      $region71: #{tpu_custom_call.1} parent=5 // pred_region
        %s7392 = ssub.s32 %s20, 2
        // Predicated region
        $region73: #{tpu_custom_call.1} parent=71 // pred_check
          %p7393 = pneg %p243
        $region74: #{tpu_custom_call.1} parent=71 // pred_check_branch
          %7395 = sbr.rel (%p7393) target = $region76
        $region75: #{tpu_custom_call.1} parent=71 // pred_region
          %s7396 = sand.u32 %s228, 1
          %s7397 = scalar_lea.sflag [#allocation4], %s7396
          %s7398 = sand.u32 %s228, 1
          %s7399 = smul.addr %s7398, 16
          %s7400 = scalar_lea.vmem [#allocation7], %s7399
          %7402 = dma.done %s7397, 256
        $region76: #{tpu_custom_call.1} parent=71 // pred_fallthru
          _
      $region72: #{tpu_custom_call.1} parent=5 // pred_fallthru
        _
    $region6: #{tpu_custom_call.1} parent=1 // loop_footer
      %s24 = sadd.s32 1, %s20
    $region7: #{tpu_custom_call.1} parent=1 // loop_footer_branch
      %19 = sbr.rel target = $region3
    $region8: #{tpu_custom_call.1} parent=1 // loop_exit
      _
    %7403 = vsyncpa [#allocation3], 1
    %s7404 = scalar_lea.sflag [#allocation3], 1
    %7405 = vsyncpa %s7404, 1
    %7406 = vsyncpa [#allocation6], 1
    %7407 = vsyncpa [#allocation4], 1
    %s7408 = scalar_lea.sflag [#allocation4], 1
    %7409 = vsyncpa %s7408, 1

</llo_original>
